<compile_context>
chip_gen: v7x
topology: tpu7x:2x2x1
jax: 0.10.0
libtpu: 0.0.40
codegen_flags: <defaults>
</compile_context>

<pallas_src>
import jax
import jax.numpy as jnp
import numpy as np
from jax import lax
from jax.experimental import pallas as pl
from jax.experimental.pallas import tpu as pltpu


def make_channel_block_kernel(C, F, H, W, kh, kw, ph, pw, mask_row, use_expand):
    HW = H * W
    SC = W + 1                    # flat halo for the fixed 3x3/pad1 depthwise convs
    SF = ph * W + pw              # flat halo for the GCW spatial taps
    HIGHEST = lax.Precision.HIGHEST

    def kernel(x_ref, wdw1_ref, bdw1_ref, w1_ref, b1_ref,
               wdw2_ref, w2_ref, b2_ref, w3m_ref, b3_ref, cmask_ref,
               *rest):
        if use_expand:
            wexp_ref, bexp_ref, out_ref, padc, padf = rest
        else:
            out_ref, padc, padf = rest

        # Zero only the halo lanes (interior is fully overwritten every step,
        # and per-step halo zeroing stays correct under "parallel" batch axis).
        zc = jnp.zeros((C, SC), jnp.float32)
        padc[:, 0:SC] = zc
        padc[:, SC + HW:2 * SC + HW] = zc
        if SF > 0:
            zf = jnp.zeros((F, SF), jnp.float32)
            padf[:, 0:SF] = zf
            padf[:, SF + HW:2 * SF + HW] = zf

        def shifted(pad_ref, halo, s, col_off):
            # source pixel p+s of the flat (ch, H*W) image; vertical overrun
            # lands in the zero halo, horizontal wrap is killed by the mask.
            v = pad_ref[:, halo + s:halo + s + HW]
            if col_off != 0:
                r = mask_row[col_off]
                v = v * cmask_ref[r:r + 1, :]
            return v

        x = x_ref[0]                                          # (C, HW)

        def depthwise3x3(a, w_ref):
            padc[:, SC:SC + HW] = a
            acc = None
            for di in range(3):
                for dj in range(3):
                    s = (di - 1) * W + (dj - 1)
                    t = di * 3 + dj
                    term = w_ref[:, t:t + 1] * shifted(padc, SC, s, dj - 1)
                    acc = term if acc is None else acc + term
            return acc

        # depthwise 3x3 #1 (bias) -> grouped 1x1 #1 (BN1 folded) -> ReLU6
        y1 = depthwise3x3(x, wdw1_ref) + bdw1_ref[...]
        a1 = jnp.clip(jnp.dot(w1_ref[...], y1, precision=HIGHEST,
                              preferred_element_type=jnp.float32) + b1_ref[...],
                      0.0, 6.0)

        # depthwise 3x3 #2 -> grouped 1x1 #2 (BN2 folded) -> ReLU6
        y2 = depthwise3x3(a1, wdw2_ref)
        a2 = jnp.clip(jnp.dot(w2_ref[...], y2, precision=HIGHEST,
                              preferred_element_type=jnp.float32) + b2_ref[...],
                      0.0, 6.0)

        # GCWConv: one (F,F) x (F,HW) MXU matmul per spatial tap (depth taps,
        # stride, depth padding and groups folded into w3m on the host).
        padf[:, SF:SF + HW] = a2
        acc3 = None
        for b in range(kh):
            for c in range(kw):
                s = (b - ph) * W + (c - pw)
                v = shifted(padf, SF, s, c - pw)
                m = jnp.dot(w3m_ref[b * kw + c], v, precision=HIGHEST,
                            preferred_element_type=jnp.float32)
                acc3 = m if acc3 is None else acc3 + m
        z = jnp.maximum(acc3 + b3_ref[...], 0.0)

        # expand residual (1x1 conv when C != F, plain identity add otherwise)
        if use_expand:
            e = jnp.dot(wexp_ref[...], x, precision=HIGHEST,
                        preferred_element_type=jnp.float32) + bexp_ref[...]
        else:
            e = x

        out_ref[0] = (z + e).astype(out_ref.dtype)            # single dense store

    return kernel


def channel_block_pallas(x, p, groups, kernels, paddings):
    N, C, H, W = x.shape
    F = int(p["wg2"].shape[0])
    g = groups
    kd, kh, kw = kernels
    pd, ph, pw = paddings
    HW = H * W
    Cg, Fg = C // g, F // g
    D_out = (F + 2 * pd - kd) // g + 1
    assert g * D_out == F, "GCWConv output channels must equal out_channels"
    assert kh == 2 * ph + 1 and kw == 2 * pw + 1, "GCWConv must preserve H, W"
    eps = 1e-5
    f32 = np.float32

    # ---- fold BN (inference) into the grouped-1x1 weights / biases ----
    s1 = np.asarray(p["bn1_gamma"], f32) / np.sqrt(np.asarray(p["bn1_var"], f32) + eps)
    t1 = np.asarray(p["bn1_beta"], f32) - np.asarray(p["bn1_mean"], f32) * s1
    s2 = np.asarray(p["bn2_gamma"], f32) / np.sqrt(np.asarray(p["bn2_var"], f32) + eps)
    t2 = np.asarray(p["bn2_beta"], f32) - np.asarray(p["bn2_mean"], f32) * s2

    wg1 = np.asarray(p["wg1"], f32).reshape(C, Cg)
    W1 = np.zeros((C, C), f32)
    for gi in range(g):
        W1[gi * Cg:(gi + 1) * Cg, gi * Cg:(gi + 1) * Cg] = wg1[gi * Cg:(gi + 1) * Cg]
    W1 *= s1[:, None]

    wg2 = np.asarray(p["wg2"], f32).reshape(F, Cg)
    W2 = np.zeros((F, C), f32)
    for gi in range(g):
        W2[gi * Fg:(gi + 1) * Fg, gi * Cg:(gi + 1) * Cg] = wg2[gi * Fg:(gi + 1) * Fg]
    W2 *= s2[:, None]

    # ---- GCWConv -> per-spatial-tap dense (F, F) channel-mixing matrices ----
    w3 = np.asarray(p["w3"], f32)                              # (g, 1, kd, kh, kw)
    b3 = np.asarray(p["b3"], f32)
    M = np.zeros((kh * kw, F, F), f32)
    b3f = np.zeros((F, 1), f32)
    for go in range(g):
        for d in range(D_out):
            ch = go * D_out + d
            b3f[ch, 0] = b3[go]
            for a in range(kd):
                fi = d * g + a - pd
                if 0 <= fi < F:
                    for bb in range(kh):
                        for cc in range(kw):
                            M[bb * kw + cc, ch, fi] = w3[go, 0, a, bb, cc]

    # ---- column-wrap masks for flat spatial shifts ----
    col_offs = sorted({-1, 1} | {c - pw for c in range(kw) if c != pw})
    mask_row = {o: i for i, o in enumerate(col_offs)}
    colv = np.arange(HW) % W
    cmask = np.stack([((colv + o >= 0) & (colv + o < W)).astype(f32)
                      for o in col_offs], axis=0)

    wdw1 = np.asarray(p["wdw1"], f32).reshape(C, 9)
    wdw2 = np.asarray(p["wdw2"], f32).reshape(C, 9)
    bdw1 = np.asarray(p["bdw1"], f32).reshape(C, 1)

    use_expand = (C != F)

    args = [x.reshape(N, C, HW).astype(jnp.float32),
            jnp.asarray(wdw1), jnp.asarray(bdw1),
            jnp.asarray(W1), jnp.asarray(t1.reshape(C, 1)),
            jnp.asarray(wdw2),
            jnp.asarray(W2), jnp.asarray(t2.reshape(F, 1)),
            jnp.asarray(M), jnp.asarray(b3f), jnp.asarray(cmask)]
    if use_expand:
        args += [jnp.asarray(np.asarray(p["wexp"], f32).reshape(F, C)),
                 jnp.asarray(np.asarray(p["bexp"], f32).reshape(F, 1))]

    kernel = make_channel_block_kernel(C, F, H, W, kh, kw, ph, pw,
                                       mask_row, use_expand)

    def const_spec(a):
        nd = a.ndim
        return pl.BlockSpec(a.shape, lambda n, _nd=nd: (0,) * _nd)

    in_specs = [pl.BlockSpec((1, C, HW), lambda n: (n, 0, 0))]
    in_specs += [const_spec(a) for a in args[1:]]

    SC = W + 1
    SF = ph * W + pw

    out_flat = pl.pallas_call(
        kernel,
        out_shape=jax.ShapeDtypeStruct((N, F, HW), jnp.float32),
        grid_spec=pltpu.PrefetchScalarGridSpec(
            num_scalar_prefetch=0,
            grid=(N,),
            in_specs=in_specs,
            out_specs=pl.BlockSpec((1, F, HW), lambda n: (n, 0, 0)),
            scratch_shapes=[
                pltpu.VMEM((C, HW + 2 * SC), jnp.float32),   # flat-padded C-channel buf
                pltpu.VMEM((F, HW + 2 * SF), jnp.float32),   # flat-padded F-channel buf
            ]),
        compiler_params=pltpu.CompilerParams(
            dimension_semantics=("parallel",)),
    )(*args)
    return out_flat.reshape(N, F, H, W)


# ------------------------- pure-JAX reference ------------------------------

def _conv2d_ref(x, w, b=None, groups=1, padding=0):
    y = lax.conv_general_dilated(
        x, w, window_strides=(1, 1),
        padding=[(padding, padding), (padding, padding)],
        dimension_numbers=("NCHW", "OIHW", "NCHW"),
        feature_group_count=groups,
        precision=lax.Precision.HIGHEST)
    if b is not None:
        y = y + b[None, :, None, None]
    return y


def _bn_ref(x, gamma, beta, mean, var, eps=1e-5):
    return (x - mean[None, :, None, None]) / jnp.sqrt(
        var[None, :, None, None] + eps) * gamma[None, :, None, None] \
        + beta[None, :, None, None]


def _relu6(x):
    return jnp.clip(x, 0.0, 6.0)


def channel_block_ref(x, p, groups, kernels, paddings):
    N, C, H, W = x.shape
    F = p["wg2"].shape[0]
    g = groups
    pd, ph, pw = paddings

    y = _conv2d_ref(x, p["wdw1"], p["bdw1"], groups=C, padding=1)
    y = _conv2d_ref(y, p["wg1"], None, groups=g, padding=0)
    y = _relu6(_bn_ref(y, p["bn1_gamma"], p["bn1_beta"], p["bn1_mean"], p["bn1_var"]))
    y = _conv2d_ref(y, p["wdw2"], None, groups=C, padding=1)
    y = _conv2d_ref(y, p["wg2"], None, groups=g, padding=0)
    y = _relu6(_bn_ref(y, p["bn2_gamma"], p["bn2_beta"], p["bn2_mean"], p["bn2_var"]))

    # GCWConv
    z = y[:, None]                                              # (N,1,F,H,W)
    z = lax.conv_general_dilated(
        z, p["w3"], window_strides=(g, 1, 1),
        padding=[(pd, pd), (ph, ph), (pw, pw)],
        dimension_numbers=("NCDHW", "OIDHW", "NCDHW"),
        precision=lax.Precision.HIGHEST)
    z = z + p["b3"][None, :, None, None, None]
    z = z.reshape(N, -1, z.shape[3], z.shape[4])
    z = jnp.maximum(z, 0.0)

    e = x if C == F else _conv2d_ref(x, p["wexp"], p["bexp"], groups=1, padding=0)
    return z + e


# -------------------------------- main --------------------------------------

if __name__ == "__main__":
    N, C, F = 2, 8, 16
    H = W = 16
    groups = 2
    kernels = (3, 3, 3)
    paddings = (1, 1, 1)

    key = jax.random.PRNGKey(0)
    ks = jax.random.split(key, 16)

    p = {
        "wdw1": 0.3 * jax.random.normal(ks[0], (C, 1, 3, 3), jnp.float32),
        "bdw1": 0.1 * jax.random.normal(ks[1], (C,), jnp.float32),
        "wg1": 0.3 * jax.random.normal(ks[2], (C, C // groups, 1, 1), jnp.float32),
        "bn1_gamma": 1.0 + 0.1 * jax.random.normal(ks[3], (C,), jnp.float32),
        "bn1_beta": 0.1 * jax.random.normal(ks[4], (C,), jnp.float32),
        "bn1_mean": 0.1 * jax.random.normal(ks[5], (C,), jnp.float32),
        "bn1_var": jax.random.uniform(ks[6], (C,), jnp.float32, 0.5, 1.5),
        "wdw2": 0.3 * jax.random.normal(ks[7], (C, 1, 3, 3), jnp.float32),
        "wg2": 0.3 * jax.random.normal(ks[8], (F, C // groups, 1, 1), jnp.float32),
        "bn2_gamma": 1.0 + 0.1 * jax.random.normal(ks[9], (F,), jnp.float32),
        "bn2_beta": 0.1 * jax.random.normal(ks[10], (F,), jnp.float32),
        "bn2_mean": 0.1 * jax.random.normal(ks[11], (F,), jnp.float32),
        "bn2_var": jax.random.uniform(ks[12], (F,), jnp.float32, 0.5, 1.5),
        "w3": 0.3 * jax.random.normal(ks[13], (groups, 1) + kernels, jnp.float32),
        "b3": 0.1 * jax.random.normal(ks[14], (groups,), jnp.float32),
    }
    kx, kw_, kb_ = jax.random.split(ks[15], 3)
    p["wexp"] = 0.3 * jax.random.normal(kw_, (F, C, 1, 1), jnp.float32)
    p["bexp"] = 0.1 * jax.random.normal(kb_, (F,), jnp.float32)

    x = jax.random.normal(kx, (N, C, H, W), jnp.float32)

    out = channel_block_pallas(x, p, groups, kernels, paddings)
    out = jax.block_until_ready(out)

    ref = channel_block_ref(x, p, groups, kernels, paddings)
    np.testing.assert_allclose(np.asarray(out), np.asarray(ref),
                               rtol=1e-3, atol=1e-3)
    print("KERNEL_OK")
</pallas_src>

<mosaic_0001>
module attributes {stable_mosaic.version = 11 : i64} {
  func.func @kernel(%arg0: i32, %arg1: memref<1x8x256xf32, #tpu.memory_space<vmem>>, %arg2: memref<8x9xf32, #tpu.memory_space<vmem>>, %arg3: memref<8x1xf32, #tpu.memory_space<vmem>>, %arg4: memref<8x8xf32, #tpu.memory_space<vmem>>, %arg5: memref<8x1xf32, #tpu.memory_space<vmem>>, %arg6: memref<8x9xf32, #tpu.memory_space<vmem>>, %arg7: memref<16x8xf32, #tpu.memory_space<vmem>>, %arg8: memref<16x1xf32, #tpu.memory_space<vmem>>, %arg9: memref<9x16x16xf32, #tpu.memory_space<vmem>>, %arg10: memref<16x1xf32, #tpu.memory_space<vmem>>, %arg11: memref<2x256xf32, #tpu.memory_space<vmem>>, %arg12: memref<16x8xf32, #tpu.memory_space<vmem>>, %arg13: memref<16x1xf32, #tpu.memory_space<vmem>>, %arg14: memref<1x16x256xf32, #tpu.memory_space<vmem>>, %arg15: memref<8x290xf32, #tpu.memory_space<vmem>>, %arg16: memref<16x290xf32, #tpu.memory_space<vmem>>) attributes {dimension_semantics = [#tpu.dimension_semantics<parallel>], iteration_bounds = array<i64: 2>, scalar_prefetch = 0 : i64, scratch_operands = 2 : i64, tpu.core_type = #tpu.core_type<tc>, window_params = [{transform_indices = @transform_0, window_bounds = array<i64: 1, 8, 256>}, {pipeline_mode = #tpu.pipeline_mode<synchronous>, transform_indices = @transform_1, window_bounds = array<i64: 8, 9>}, {pipeline_mode = #tpu.pipeline_mode<synchronous>, transform_indices = @transform_2, window_bounds = array<i64: 8, 1>}, {pipeline_mode = #tpu.pipeline_mode<synchronous>, transform_indices = @transform_3, window_bounds = array<i64: 8, 8>}, {pipeline_mode = #tpu.pipeline_mode<synchronous>, transform_indices = @transform_4, window_bounds = array<i64: 8, 1>}, {pipeline_mode = #tpu.pipeline_mode<synchronous>, transform_indices = @transform_5, window_bounds = array<i64: 8, 9>}, {pipeline_mode = #tpu.pipeline_mode<synchronous>, transform_indices = @transform_6, window_bounds = array<i64: 16, 8>}, {pipeline_mode = #tpu.pipeline_mode<synchronous>, transform_indices = @transform_7, window_bounds = array<i64: 16, 1>}, {pipeline_mode = #tpu.pipeline_mode<synchronous>, transform_indices = @transform_8, window_bounds = array<i64: 9, 16, 16>}, {pipeline_mode = #tpu.pipeline_mode<synchronous>, transform_indices = @transform_9, window_bounds = array<i64: 16, 1>}, {pipeline_mode = #tpu.pipeline_mode<synchronous>, transform_indices = @transform_10, window_bounds = array<i64: 2, 256>}, {pipeline_mode = #tpu.pipeline_mode<synchronous>, transform_indices = @transform_11, window_bounds = array<i64: 16, 8>}, {pipeline_mode = #tpu.pipeline_mode<synchronous>, transform_indices = @transform_12, window_bounds = array<i64: 16, 1>}, {transform_indices = @transform_13, window_bounds = array<i64: 1, 16, 256>}]} {
    %cst = arith.constant 0.000000e+00 : f32
    %0 = vector.broadcast %cst : f32 to vector<8x17xf32>
    %c0 = arith.constant 0 : index
    %c0_0 = arith.constant 0 : index
    %1 = vector.load %arg15[%c0, %c0_0] : memref<8x290xf32, #tpu.memory_space<vmem>>, vector<8x17xf32>
    tpu.vector_store %arg15[%c0, %c0_0], %0 {strides = array<i32>} : memref<8x290xf32, #tpu.memory_space<vmem>>, vector<8x17xf32>,
    %c0_1 = arith.constant 0 : index
    %c273 = arith.constant 273 : index
    %2 = vector.load %arg15[%c0_1, %c273] : memref<8x290xf32, #tpu.memory_space<vmem>>, vector<8x17xf32>
    tpu.vector_store %arg15[%c0_1, %c273], %0 {strides = array<i32>} : memref<8x290xf32, #tpu.memory_space<vmem>>, vector<8x17xf32>,
    %cst_2 = arith.constant 0.000000e+00 : f32
    %3 = vector.broadcast %cst_2 : f32 to vector<16x17xf32>
    %c0_3 = arith.constant 0 : index
    %c0_4 = arith.constant 0 : index
    %4 = vector.load %arg16[%c0_3, %c0_4] : memref<16x290xf32, #tpu.memory_space<vmem>>, vector<16x17xf32>
    tpu.vector_store %arg16[%c0_3, %c0_4], %3 {strides = array<i32>} : memref<16x290xf32, #tpu.memory_space<vmem>>, vector<16x17xf32>,
    %c0_5 = arith.constant 0 : index
    %c273_6 = arith.constant 273 : index
    %5 = vector.load %arg16[%c0_5, %c273_6] : memref<16x290xf32, #tpu.memory_space<vmem>>, vector<16x17xf32>
    tpu.vector_store %arg16[%c0_5, %c273_6], %3 {strides = array<i32>} : memref<16x290xf32, #tpu.memory_space<vmem>>, vector<16x17xf32>,
    %c0_7 = arith.constant 0 : index
    %c0_8 = arith.constant 0 : index
    %c0_9 = arith.constant 0 : index
    %6 = vector.load %arg1[%c0_7, %c0_8, %c0_9] : memref<1x8x256xf32, #tpu.memory_space<vmem>>, vector<1x8x256xf32>
    %7 = vector.shape_cast %6 : vector<1x8x256xf32> to vector<8x256xf32>
    %c0_10 = arith.constant 0 : index
    %c17 = arith.constant 17 : index
    %8 = vector.load %arg15[%c0_10, %c17] : memref<8x290xf32, #tpu.memory_space<vmem>>, vector<8x256xf32>
    tpu.vector_store %arg15[%c0_10, %c17], %7 {strides = array<i32>} : memref<8x290xf32, #tpu.memory_space<vmem>>, vector<8x256xf32>,
    %c0_11 = arith.constant 0 : index
    %c0_12 = arith.constant 0 : index
    %9 = vector.load %arg2[%c0_11, %c0_12] : memref<8x9xf32, #tpu.memory_space<vmem>>, vector<8x1xf32>
    %c0_13 = arith.constant 0 : index
    %c0_14 = arith.constant 0 : index
    %10 = vector.load %arg15[%c0_13, %c0_14] : memref<8x290xf32, #tpu.memory_space<vmem>>, vector<8x256xf32>
    %c0_15 = arith.constant 0 : index
    %c0_16 = arith.constant 0 : index
    %11 = vector.load %arg11[%c0_15, %c0_16] : memref<2x256xf32, #tpu.memory_space<vmem>>, vector<1x256xf32>
    %12 = vector.broadcast %11 : vector<1x256xf32> to vector<8x256xf32>
    %13 = arith.mulf %10, %12 : vector<8x256xf32>
    %14 = vector.broadcast %9 : vector<8x1xf32> to vector<8x256xf32>
    %15 = arith.mulf %14, %13 : vector<8x256xf32>
    %c0_17 = arith.constant 0 : index
    %c1 = arith.constant 1 : index
    %16 = vector.load %arg2[%c0_17, %c1] : memref<8x9xf32, #tpu.memory_space<vmem>>, vector<8x1xf32>
    %c0_18 = arith.constant 0 : index
    %c1_19 = arith.constant 1 : index
    %17 = vector.load %arg15[%c0_18, %c1_19] : memref<8x290xf32, #tpu.memory_space<vmem>>, vector<8x256xf32>
    %18 = vector.broadcast %16 : vector<8x1xf32> to vector<8x256xf32>
    %19 = arith.mulf %18, %17 : vector<8x256xf32>
    %20 = arith.addf %15, %19 : vector<8x256xf32>
    %c0_20 = arith.constant 0 : index
    %c2 = arith.constant 2 : index
    %21 = vector.load %arg2[%c0_20, %c2] : memref<8x9xf32, #tpu.memory_space<vmem>>, vector<8x1xf32>
    %c0_21 = arith.constant 0 : index
    %c2_22 = arith.constant 2 : index
    %22 = vector.load %arg15[%c0_21, %c2_22] : memref<8x290xf32, #tpu.memory_space<vmem>>, vector<8x256xf32>
    %c1_23 = arith.constant 1 : index
    %c0_24 = arith.constant 0 : index
    %23 = vector.load %arg11[%c1_23, %c0_24] : memref<2x256xf32, #tpu.memory_space<vmem>>, vector<1x256xf32>
    %24 = vector.broadcast %23 : vector<1x256xf32> to vector<8x256xf32>
    %25 = arith.mulf %22, %24 : vector<8x256xf32>
    %26 = vector.broadcast %21 : vector<8x1xf32> to vector<8x256xf32>
    %27 = arith.mulf %26, %25 : vector<8x256xf32>
    %28 = arith.addf %20, %27 : vector<8x256xf32>
    %c0_25 = arith.constant 0 : index
    %c3 = arith.constant 3 : index
    %29 = vector.load %arg2[%c0_25, %c3] : memref<8x9xf32, #tpu.memory_space<vmem>>, vector<8x1xf32>
    %c0_26 = arith.constant 0 : index
    %c16 = arith.constant 16 : index
    %30 = vector.load %arg15[%c0_26, %c16] : memref<8x290xf32, #tpu.memory_space<vmem>>, vector<8x256xf32>
    %c0_27 = arith.constant 0 : index
    %c0_28 = arith.constant 0 : index
    %31 = vector.load %arg11[%c0_27, %c0_28] : memref<2x256xf32, #tpu.memory_space<vmem>>, vector<1x256xf32>
    %32 = vector.broadcast %31 : vector<1x256xf32> to vector<8x256xf32>
    %33 = arith.mulf %30, %32 : vector<8x256xf32>
    %34 = vector.broadcast %29 : vector<8x1xf32> to vector<8x256xf32>
    %35 = arith.mulf %34, %33 : vector<8x256xf32>
    %36 = arith.addf %28, %35 : vector<8x256xf32>
    %c0_29 = arith.constant 0 : index
    %c4 = arith.constant 4 : index
    %37 = vector.load %arg2[%c0_29, %c4] : memref<8x9xf32, #tpu.memory_space<vmem>>, vector<8x1xf32>
    %c0_30 = arith.constant 0 : index
    %c17_31 = arith.constant 17 : index
    %38 = vector.load %arg15[%c0_30, %c17_31] : memref<8x290xf32, #tpu.memory_space<vmem>>, vector<8x256xf32>
    %39 = vector.broadcast %37 : vector<8x1xf32> to vector<8x256xf32>
    %40 = arith.mulf %39, %38 : vector<8x256xf32>
    %41 = arith.addf %36, %40 : vector<8x256xf32>
    %c0_32 = arith.constant 0 : index
    %c5 = arith.constant 5 : index
    %42 = vector.load %arg2[%c0_32, %c5] : memref<8x9xf32, #tpu.memory_space<vmem>>, vector<8x1xf32>
    %c0_33 = arith.constant 0 : index
    %c18 = arith.constant 18 : index
    %43 = vector.load %arg15[%c0_33, %c18] : memref<8x290xf32, #tpu.memory_space<vmem>>, vector<8x256xf32>
    %c1_34 = arith.constant 1 : index
    %c0_35 = arith.constant 0 : index
    %44 = vector.load %arg11[%c1_34, %c0_35] : memref<2x256xf32, #tpu.memory_space<vmem>>, vector<1x256xf32>
    %45 = vector.broadcast %44 : vector<1x256xf32> to vector<8x256xf32>
    %46 = arith.mulf %43, %45 : vector<8x256xf32>
    %47 = vector.broadcast %42 : vector<8x1xf32> to vector<8x256xf32>
    %48 = arith.mulf %47, %46 : vector<8x256xf32>
    %49 = arith.addf %41, %48 : vector<8x256xf32>
    %c0_36 = arith.constant 0 : index
    %c6 = arith.constant 6 : index
    %50 = vector.load %arg2[%c0_36, %c6] : memref<8x9xf32, #tpu.memory_space<vmem>>, vector<8x1xf32>
    %c0_37 = arith.constant 0 : index
    %c32 = arith.constant 32 : index
    %51 = vector.load %arg15[%c0_37, %c32] : memref<8x290xf32, #tpu.memory_space<vmem>>, vector<8x256xf32>
    %c0_38 = arith.constant 0 : index
    %c0_39 = arith.constant 0 : index
    %52 = vector.load %arg11[%c0_38, %c0_39] : memref<2x256xf32, #tpu.memory_space<vmem>>, vector<1x256xf32>
    %53 = vector.broadcast %52 : vector<1x256xf32> to vector<8x256xf32>
    %54 = arith.mulf %51, %53 : vector<8x256xf32>
    %55 = vector.broadcast %50 : vector<8x1xf32> to vector<8x256xf32>
    %56 = arith.mulf %55, %54 : vector<8x256xf32>
    %57 = arith.addf %49, %56 : vector<8x256xf32>
    %c0_40 = arith.constant 0 : index
    %c7 = arith.constant 7 : index
    %58 = vector.load %arg2[%c0_40, %c7] : memref<8x9xf32, #tpu.memory_space<vmem>>, vector<8x1xf32>
    %c0_41 = arith.constant 0 : index
    %c33 = arith.constant 33 : index
    %59 = vector.load %arg15[%c0_41, %c33] : memref<8x290xf32, #tpu.memory_space<vmem>>, vector<8x256xf32>
    %60 = vector.broadcast %58 : vector<8x1xf32> to vector<8x256xf32>
    %61 = arith.mulf %60, %59 : vector<8x256xf32>
    %62 = arith.addf %57, %61 : vector<8x256xf32>
    %c0_42 = arith.constant 0 : index
    %c8 = arith.constant 8 : index
    %63 = vector.load %arg2[%c0_42, %c8] : memref<8x9xf32, #tpu.memory_space<vmem>>, vector<8x1xf32>
    %c0_43 = arith.constant 0 : index
    %c34 = arith.constant 34 : index
    %64 = vector.load %arg15[%c0_43, %c34] : memref<8x290xf32, #tpu.memory_space<vmem>>, vector<8x256xf32>
    %c1_44 = arith.constant 1 : index
    %c0_45 = arith.constant 0 : index
    %65 = vector.load %arg11[%c1_44, %c0_45] : memref<2x256xf32, #tpu.memory_space<vmem>>, vector<1x256xf32>
    %66 = vector.broadcast %65 : vector<1x256xf32> to vector<8x256xf32>
    %67 = arith.mulf %64, %66 : vector<8x256xf32>
    %68 = vector.broadcast %63 : vector<8x1xf32> to vector<8x256xf32>
    %69 = arith.mulf %68, %67 : vector<8x256xf32>
    %70 = arith.addf %62, %69 : vector<8x256xf32>
    %c0_46 = arith.constant 0 : index
    %c0_47 = arith.constant 0 : index
    %71 = vector.load %arg3[%c0_46, %c0_47] : memref<8x1xf32, #tpu.memory_space<vmem>>, vector<8x1xf32>
    %72 = vector.broadcast %71 : vector<8x1xf32> to vector<8x256xf32>
    %73 = arith.addf %70, %72 : vector<8x256xf32>
    %c0_48 = arith.constant 0 : index
    %c0_49 = arith.constant 0 : index
    %74 = vector.load %arg4[%c0_48, %c0_49] : memref<8x8xf32, #tpu.memory_space<vmem>>, vector<8x8xf32>
    %cst_50 = arith.constant dense<0.000000e+00> : vector<8x256xf32>
    %75 = tpu.matmul %74, %73, %cst_50 {dimension_numbers = #tpu.dot_dimension_numbers<[1], [0], [0], [1], [0, 0, 1, 1], [], []>, precision = #tpu.contract_precision<fp32>} : vector<8x8xf32>, vector<8x256xf32>, vector<8x256xf32> -> vector<8x256xf32>
    %c0_51 = arith.constant 0 : index
    %c0_52 = arith.constant 0 : index
    %76 = vector.load %arg5[%c0_51, %c0_52] : memref<8x1xf32, #tpu.memory_space<vmem>>, vector<8x1xf32>
    %77 = vector.broadcast %76 : vector<8x1xf32> to vector<8x256xf32>
    %78 = arith.addf %75, %77 : vector<8x256xf32>
    %cst_53 = arith.constant 0.000000e+00 : f32
    %cst_54 = arith.constant 6.000000e+00 : f32
    %79 = vector.broadcast %cst_53 : f32 to vector<8x256xf32>
    %80 = arith.maximumf %79, %78 : vector<8x256xf32>
    %81 = vector.broadcast %cst_54 : f32 to vector<8x256xf32>
    %82 = arith.minimumf %81, %80 : vector<8x256xf32>
    %c0_55 = arith.constant 0 : index
    %c17_56 = arith.constant 17 : index
    %83 = vector.load %arg15[%c0_55, %c17_56] : memref<8x290xf32, #tpu.memory_space<vmem>>, vector<8x256xf32>
    tpu.vector_store %arg15[%c0_55, %c17_56], %82 {strides = array<i32>} : memref<8x290xf32, #tpu.memory_space<vmem>>, vector<8x256xf32>,
    %c0_57 = arith.constant 0 : index
    %c0_58 = arith.constant 0 : index
    %84 = vector.load %arg6[%c0_57, %c0_58] : memref<8x9xf32, #tpu.memory_space<vmem>>, vector<8x1xf32>
    %c0_59 = arith.constant 0 : index
    %c0_60 = arith.constant 0 : index
    %85 = vector.load %arg15[%c0_59, %c0_60] : memref<8x290xf32, #tpu.memory_space<vmem>>, vector<8x256xf32>
    %c0_61 = arith.constant 0 : index
    %c0_62 = arith.constant 0 : index
    %86 = vector.load %arg11[%c0_61, %c0_62] : memref<2x256xf32, #tpu.memory_space<vmem>>, vector<1x256xf32>
    %87 = vector.broadcast %86 : vector<1x256xf32> to vector<8x256xf32>
    %88 = arith.mulf %85, %87 : vector<8x256xf32>
    %89 = vector.broadcast %84 : vector<8x1xf32> to vector<8x256xf32>
    %90 = arith.mulf %89, %88 : vector<8x256xf32>
    %c0_63 = arith.constant 0 : index
    %c1_64 = arith.constant 1 : index
    %91 = vector.load %arg6[%c0_63, %c1_64] : memref<8x9xf32, #tpu.memory_space<vmem>>, vector<8x1xf32>
    %c0_65 = arith.constant 0 : index
    %c1_66 = arith.constant 1 : index
    %92 = vector.load %arg15[%c0_65, %c1_66] : memref<8x290xf32, #tpu.memory_space<vmem>>, vector<8x256xf32>
    %93 = vector.broadcast %91 : vector<8x1xf32> to vector<8x256xf32>
    %94 = arith.mulf %93, %92 : vector<8x256xf32>
    %95 = arith.addf %90, %94 : vector<8x256xf32>
    %c0_67 = arith.constant 0 : index
    %c2_68 = arith.constant 2 : index
    %96 = vector.load %arg6[%c0_67, %c2_68] : memref<8x9xf32, #tpu.memory_space<vmem>>, vector<8x1xf32>
    %c0_69 = arith.constant 0 : index
    %c2_70 = arith.constant 2 : index
    %97 = vector.load %arg15[%c0_69, %c2_70] : memref<8x290xf32, #tpu.memory_space<vmem>>, vector<8x256xf32>
    %c1_71 = arith.constant 1 : index
    %c0_72 = arith.constant 0 : index
    %98 = vector.load %arg11[%c1_71, %c0_72] : memref<2x256xf32, #tpu.memory_space<vmem>>, vector<1x256xf32>
    %99 = vector.broadcast %98 : vector<1x256xf32> to vector<8x256xf32>
    %100 = arith.mulf %97, %99 : vector<8x256xf32>
    %101 = vector.broadcast %96 : vector<8x1xf32> to vector<8x256xf32>
    %102 = arith.mulf %101, %100 : vector<8x256xf32>
    %103 = arith.addf %95, %102 : vector<8x256xf32>
    %c0_73 = arith.constant 0 : index
    %c3_74 = arith.constant 3 : index
    %104 = vector.load %arg6[%c0_73, %c3_74] : memref<8x9xf32, #tpu.memory_space<vmem>>, vector<8x1xf32>
    %c0_75 = arith.constant 0 : index
    %c16_76 = arith.constant 16 : index
    %105 = vector.load %arg15[%c0_75, %c16_76] : memref<8x290xf32, #tpu.memory_space<vmem>>, vector<8x256xf32>
    %c0_77 = arith.constant 0 : index
    %c0_78 = arith.constant 0 : index
    %106 = vector.load %arg11[%c0_77, %c0_78] : memref<2x256xf32, #tpu.memory_space<vmem>>, vector<1x256xf32>
    %107 = vector.broadcast %106 : vector<1x256xf32> to vector<8x256xf32>
    %108 = arith.mulf %105, %107 : vector<8x256xf32>
    %109 = vector.broadcast %104 : vector<8x1xf32> to vector<8x256xf32>
    %110 = arith.mulf %109, %108 : vector<8x256xf32>
    %111 = arith.addf %103, %110 : vector<8x256xf32>
    %c0_79 = arith.constant 0 : index
    %c4_80 = arith.constant 4 : index
    %112 = vector.load %arg6[%c0_79, %c4_80] : memref<8x9xf32, #tpu.memory_space<vmem>>, vector<8x1xf32>
    %c0_81 = arith.constant 0 : index
    %c17_82 = arith.constant 17 : index
    %113 = vector.load %arg15[%c0_81, %c17_82] : memref<8x290xf32, #tpu.memory_space<vmem>>, vector<8x256xf32>
    %114 = vector.broadcast %112 : vector<8x1xf32> to vector<8x256xf32>
    %115 = arith.mulf %114, %113 : vector<8x256xf32>
    %116 = arith.addf %111, %115 : vector<8x256xf32>
    %c0_83 = arith.constant 0 : index
    %c5_84 = arith.constant 5 : index
    %117 = vector.load %arg6[%c0_83, %c5_84] : memref<8x9xf32, #tpu.memory_space<vmem>>, vector<8x1xf32>
    %c0_85 = arith.constant 0 : index
    %c18_86 = arith.constant 18 : index
    %118 = vector.load %arg15[%c0_85, %c18_86] : memref<8x290xf32, #tpu.memory_space<vmem>>, vector<8x256xf32>
    %c1_87 = arith.constant 1 : index
    %c0_88 = arith.constant 0 : index
    %119 = vector.load %arg11[%c1_87, %c0_88] : memref<2x256xf32, #tpu.memory_space<vmem>>, vector<1x256xf32>
    %120 = vector.broadcast %119 : vector<1x256xf32> to vector<8x256xf32>
    %121 = arith.mulf %118, %120 : vector<8x256xf32>
    %122 = vector.broadcast %117 : vector<8x1xf32> to vector<8x256xf32>
    %123 = arith.mulf %122, %121 : vector<8x256xf32>
    %124 = arith.addf %116, %123 : vector<8x256xf32>
    %c0_89 = arith.constant 0 : index
    %c6_90 = arith.constant 6 : index
    %125 = vector.load %arg6[%c0_89, %c6_90] : memref<8x9xf32, #tpu.memory_space<vmem>>, vector<8x1xf32>
    %c0_91 = arith.constant 0 : index
    %c32_92 = arith.constant 32 : index
    %126 = vector.load %arg15[%c0_91, %c32_92] : memref<8x290xf32, #tpu.memory_space<vmem>>, vector<8x256xf32>
    %c0_93 = arith.constant 0 : index
    %c0_94 = arith.constant 0 : index
    %127 = vector.load %arg11[%c0_93, %c0_94] : memref<2x256xf32, #tpu.memory_space<vmem>>, vector<1x256xf32>
    %128 = vector.broadcast %127 : vector<1x256xf32> to vector<8x256xf32>
    %129 = arith.mulf %126, %128 : vector<8x256xf32>
    %130 = vector.broadcast %125 : vector<8x1xf32> to vector<8x256xf32>
    %131 = arith.mulf %130, %129 : vector<8x256xf32>
    %132 = arith.addf %124, %131 : vector<8x256xf32>
    %c0_95 = arith.constant 0 : index
    %c7_96 = arith.constant 7 : index
    %133 = vector.load %arg6[%c0_95, %c7_96] : memref<8x9xf32, #tpu.memory_space<vmem>>, vector<8x1xf32>
    %c0_97 = arith.constant 0 : index
    %c33_98 = arith.constant 33 : index
    %134 = vector.load %arg15[%c0_97, %c33_98] : memref<8x290xf32, #tpu.memory_space<vmem>>, vector<8x256xf32>
    %135 = vector.broadcast %133 : vector<8x1xf32> to vector<8x256xf32>
    %136 = arith.mulf %135, %134 : vector<8x256xf32>
    %137 = arith.addf %132, %136 : vector<8x256xf32>
    %c0_99 = arith.constant 0 : index
    %c8_100 = arith.constant 8 : index
    %138 = vector.load %arg6[%c0_99, %c8_100] : memref<8x9xf32, #tpu.memory_space<vmem>>, vector<8x1xf32>
    %c0_101 = arith.constant 0 : index
    %c34_102 = arith.constant 34 : index
    %139 = vector.load %arg15[%c0_101, %c34_102] : memref<8x290xf32, #tpu.memory_space<vmem>>, vector<8x256xf32>
    %c1_103 = arith.constant 1 : index
    %c0_104 = arith.constant 0 : index
    %140 = vector.load %arg11[%c1_103, %c0_104] : memref<2x256xf32, #tpu.memory_space<vmem>>, vector<1x256xf32>
    %141 = vector.broadcast %140 : vector<1x256xf32> to vector<8x256xf32>
    %142 = arith.mulf %139, %141 : vector<8x256xf32>
    %143 = vector.broadcast %138 : vector<8x1xf32> to vector<8x256xf32>
    %144 = arith.mulf %143, %142 : vector<8x256xf32>
    %145 = arith.addf %137, %144 : vector<8x256xf32>
    %c0_105 = arith.constant 0 : index
    %c0_106 = arith.constant 0 : index
    %146 = vector.load %arg7[%c0_105, %c0_106] : memref<16x8xf32, #tpu.memory_space<vmem>>, vector<16x8xf32>
    %cst_107 = arith.constant dense<0.000000e+00> : vector<16x256xf32>
    %147 = tpu.matmul %146, %145, %cst_107 {dimension_numbers = #tpu.dot_dimension_numbers<[1], [0], [0], [1], [0, 0, 1, 1], [], []>, precision = #tpu.contract_precision<fp32>} : vector<16x8xf32>, vector<8x256xf32>, vector<16x256xf32> -> vector<16x256xf32>
    %c0_108 = arith.constant 0 : index
    %c0_109 = arith.constant 0 : index
    %148 = vector.load %arg8[%c0_108, %c0_109] : memref<16x1xf32, #tpu.memory_space<vmem>>, vector<16x1xf32>
    %149 = vector.broadcast %148 : vector<16x1xf32> to vector<16x256xf32>
    %150 = arith.addf %147, %149 : vector<16x256xf32>
    %cst_110 = arith.constant 0.000000e+00 : f32
    %cst_111 = arith.constant 6.000000e+00 : f32
    %151 = vector.broadcast %cst_110 : f32 to vector<16x256xf32>
    %152 = arith.maximumf %151, %150 : vector<16x256xf32>
    %153 = vector.broadcast %cst_111 : f32 to vector<16x256xf32>
    %154 = arith.minimumf %153, %152 : vector<16x256xf32>
    %c0_112 = arith.constant 0 : index
    %c17_113 = arith.constant 17 : index
    %155 = vector.load %arg16[%c0_112, %c17_113] : memref<16x290xf32, #tpu.memory_space<vmem>>, vector<16x256xf32>
    tpu.vector_store %arg16[%c0_112, %c17_113], %154 {strides = array<i32>} : memref<16x290xf32, #tpu.memory_space<vmem>>, vector<16x256xf32>,
    %c0_114 = arith.constant 0 : index
    %c0_115 = arith.constant 0 : index
    %156 = vector.load %arg16[%c0_114, %c0_115] : memref<16x290xf32, #tpu.memory_space<vmem>>, vector<16x256xf32>
    %c0_116 = arith.constant 0 : index
    %c0_117 = arith.constant 0 : index
    %157 = vector.load %arg11[%c0_116, %c0_117] : memref<2x256xf32, #tpu.memory_space<vmem>>, vector<1x256xf32>
    %158 = vector.broadcast %157 : vector<1x256xf32> to vector<16x256xf32>
    %159 = arith.mulf %156, %158 : vector<16x256xf32>
    %c0_118 = arith.constant 0 : index
    %c0_119 = arith.constant 0 : index
    %c0_120 = arith.constant 0 : index
    %160 = vector.load %arg9[%c0_118, %c0_119, %c0_120] : memref<9x16x16xf32, #tpu.memory_space<vmem>>, vector<1x16x16xf32>
    %161 = vector.shape_cast %160 : vector<1x16x16xf32> to vector<16x16xf32>
    %cst_121 = arith.constant dense<0.000000e+00> : vector<16x256xf32>
    %162 = tpu.matmul %161, %159, %cst_121 {dimension_numbers = #tpu.dot_dimension_numbers<[1], [0], [0], [1], [0, 0, 1, 1], [], []>, precision = #tpu.contract_precision<fp32>} : vector<16x16xf32>, vector<16x256xf32>, vector<16x256xf32> -> vector<16x256xf32>
    %c0_122 = arith.constant 0 : index
    %c1_123 = arith.constant 1 : index
    %163 = vector.load %arg16[%c0_122, %c1_123] : memref<16x290xf32, #tpu.memory_space<vmem>>, vector<16x256xf32>
    %c1_124 = arith.constant 1 : index
    %c0_125 = arith.constant 0 : index
    %c0_126 = arith.constant 0 : index
    %164 = vector.load %arg9[%c1_124, %c0_125, %c0_126] : memref<9x16x16xf32, #tpu.memory_space<vmem>>, vector<1x16x16xf32>
    %165 = vector.shape_cast %164 : vector<1x16x16xf32> to vector<16x16xf32>
    %cst_127 = arith.constant dense<0.000000e+00> : vector<16x256xf32>
    %166 = tpu.matmul %165, %163, %cst_127 {dimension_numbers = #tpu.dot_dimension_numbers<[1], [0], [0], [1], [0, 0, 1, 1], [], []>, precision = #tpu.contract_precision<fp32>} : vector<16x16xf32>, vector<16x256xf32>, vector<16x256xf32> -> vector<16x256xf32>
    %167 = arith.addf %162, %166 : vector<16x256xf32>
    %c0_128 = arith.constant 0 : index
    %c2_129 = arith.constant 2 : index
    %168 = vector.load %arg16[%c0_128, %c2_129] : memref<16x290xf32, #tpu.memory_space<vmem>>, vector<16x256xf32>
    %c1_130 = arith.constant 1 : index
    %c0_131 = arith.constant 0 : index
    %169 = vector.load %arg11[%c1_130, %c0_131] : memref<2x256xf32, #tpu.memory_space<vmem>>, vector<1x256xf32>
    %170 = vector.broadcast %169 : vector<1x256xf32> to vector<16x256xf32>
    %171 = arith.mulf %168, %170 : vector<16x256xf32>
    %c2_132 = arith.constant 2 : index
    %c0_133 = arith.constant 0 : index
    %c0_134 = arith.constant 0 : index
    %172 = vector.load %arg9[%c2_132, %c0_133, %c0_134] : memref<9x16x16xf32, #tpu.memory_space<vmem>>, vector<1x16x16xf32>
    %173 = vector.shape_cast %172 : vector<1x16x16xf32> to vector<16x16xf32>
    %cst_135 = arith.constant dense<0.000000e+00> : vector<16x256xf32>
    %174 = tpu.matmul %173, %171, %cst_135 {dimension_numbers = #tpu.dot_dimension_numbers<[1], [0], [0], [1], [0, 0, 1, 1], [], []>, precision = #tpu.contract_precision<fp32>} : vector<16x16xf32>, vector<16x256xf32>, vector<16x256xf32> -> vector<16x256xf32>
    %175 = arith.addf %167, %174 : vector<16x256xf32>
    %c0_136 = arith.constant 0 : index
    %c16_137 = arith.constant 16 : index
    %176 = vector.load %arg16[%c0_136, %c16_137] : memref<16x290xf32, #tpu.memory_space<vmem>>, vector<16x256xf32>
    %c0_138 = arith.constant 0 : index
    %c0_139 = arith.constant 0 : index
    %177 = vector.load %arg11[%c0_138, %c0_139] : memref<2x256xf32, #tpu.memory_space<vmem>>, vector<1x256xf32>
    %178 = vector.broadcast %177 : vector<1x256xf32> to vector<16x256xf32>
    %179 = arith.mulf %176, %178 : vector<16x256xf32>
    %c3_140 = arith.constant 3 : index
    %c0_141 = arith.constant 0 : index
    %c0_142 = arith.constant 0 : index
    %180 = vector.load %arg9[%c3_140, %c0_141, %c0_142] : memref<9x16x16xf32, #tpu.memory_space<vmem>>, vector<1x16x16xf32>
    %181 = vector.shape_cast %180 : vector<1x16x16xf32> to vector<16x16xf32>
    %cst_143 = arith.constant dense<0.000000e+00> : vector<16x256xf32>
    %182 = tpu.matmul %181, %179, %cst_143 {dimension_numbers = #tpu.dot_dimension_numbers<[1], [0], [0], [1], [0, 0, 1, 1], [], []>, precision = #tpu.contract_precision<fp32>} : vector<16x16xf32>, vector<16x256xf32>, vector<16x256xf32> -> vector<16x256xf32>
    %183 = arith.addf %175, %182 : vector<16x256xf32>
    %c0_144 = arith.constant 0 : index
    %c17_145 = arith.constant 17 : index
    %184 = vector.load %arg16[%c0_144, %c17_145] : memref<16x290xf32, #tpu.memory_space<vmem>>, vector<16x256xf32>
    %c4_146 = arith.constant 4 : index
    %c0_147 = arith.constant 0 : index
    %c0_148 = arith.constant 0 : index
    %185 = vector.load %arg9[%c4_146, %c0_147, %c0_148] : memref<9x16x16xf32, #tpu.memory_space<vmem>>, vector<1x16x16xf32>
    %186 = vector.shape_cast %185 : vector<1x16x16xf32> to vector<16x16xf32>
    %cst_149 = arith.constant dense<0.000000e+00> : vector<16x256xf32>
    %187 = tpu.matmul %186, %184, %cst_149 {dimension_numbers = #tpu.dot_dimension_numbers<[1], [0], [0], [1], [0, 0, 1, 1], [], []>, precision = #tpu.contract_precision<fp32>} : vector<16x16xf32>, vector<16x256xf32>, vector<16x256xf32> -> vector<16x256xf32>
    %188 = arith.addf %183, %187 : vector<16x256xf32>
    %c0_150 = arith.constant 0 : index
    %c18_151 = arith.constant 18 : index
    %189 = vector.load %arg16[%c0_150, %c18_151] : memref<16x290xf32, #tpu.memory_space<vmem>>, vector<16x256xf32>
    %c1_152 = arith.constant 1 : index
    %c0_153 = arith.constant 0 : index
    %190 = vector.load %arg11[%c1_152, %c0_153] : memref<2x256xf32, #tpu.memory_space<vmem>>, vector<1x256xf32>
    %191 = vector.broadcast %190 : vector<1x256xf32> to vector<16x256xf32>
    %192 = arith.mulf %189, %191 : vector<16x256xf32>
    %c5_154 = arith.constant 5 : index
    %c0_155 = arith.constant 0 : index
    %c0_156 = arith.constant 0 : index
    %193 = vector.load %arg9[%c5_154, %c0_155, %c0_156] : memref<9x16x16xf32, #tpu.memory_space<vmem>>, vector<1x16x16xf32>
    %194 = vector.shape_cast %193 : vector<1x16x16xf32> to vector<16x16xf32>
    %cst_157 = arith.constant dense<0.000000e+00> : vector<16x256xf32>
    %195 = tpu.matmul %194, %192, %cst_157 {dimension_numbers = #tpu.dot_dimension_numbers<[1], [0], [0], [1], [0, 0, 1, 1], [], []>, precision = #tpu.contract_precision<fp32>} : vector<16x16xf32>, vector<16x256xf32>, vector<16x256xf32> -> vector<16x256xf32>
    %196 = arith.addf %188, %195 : vector<16x256xf32>
    %c0_158 = arith.constant 0 : index
    %c32_159 = arith.constant 32 : index
    %197 = vector.load %arg16[%c0_158, %c32_159] : memref<16x290xf32, #tpu.memory_space<vmem>>, vector<16x256xf32>
    %c0_160 = arith.constant 0 : index
    %c0_161 = arith.constant 0 : index
    %198 = vector.load %arg11[%c0_160, %c0_161] : memref<2x256xf32, #tpu.memory_space<vmem>>, vector<1x256xf32>
    %199 = vector.broadcast %198 : vector<1x256xf32> to vector<16x256xf32>
    %200 = arith.mulf %197, %199 : vector<16x256xf32>
    %c6_162 = arith.constant 6 : index
    %c0_163 = arith.constant 0 : index
    %c0_164 = arith.constant 0 : index
    %201 = vector.load %arg9[%c6_162, %c0_163, %c0_164] : memref<9x16x16xf32, #tpu.memory_space<vmem>>, vector<1x16x16xf32>
    %202 = vector.shape_cast %201 : vector<1x16x16xf32> to vector<16x16xf32>
    %cst_165 = arith.constant dense<0.000000e+00> : vector<16x256xf32>
    %203 = tpu.matmul %202, %200, %cst_165 {dimension_numbers = #tpu.dot_dimension_numbers<[1], [0], [0], [1], [0, 0, 1, 1], [], []>, precision = #tpu.contract_precision<fp32>} : vector<16x16xf32>, vector<16x256xf32>, vector<16x256xf32> -> vector<16x256xf32>
    %204 = arith.addf %196, %203 : vector<16x256xf32>
    %c0_166 = arith.constant 0 : index
    %c33_167 = arith.constant 33 : index
    %205 = vector.load %arg16[%c0_166, %c33_167] : memref<16x290xf32, #tpu.memory_space<vmem>>, vector<16x256xf32>
    %c7_168 = arith.constant 7 : index
    %c0_169 = arith.constant 0 : index
    %c0_170 = arith.constant 0 : index
    %206 = vector.load %arg9[%c7_168, %c0_169, %c0_170] : memref<9x16x16xf32, #tpu.memory_space<vmem>>, vector<1x16x16xf32>
    %207 = vector.shape_cast %206 : vector<1x16x16xf32> to vector<16x16xf32>
    %cst_171 = arith.constant dense<0.000000e+00> : vector<16x256xf32>
    %208 = tpu.matmul %207, %205, %cst_171 {dimension_numbers = #tpu.dot_dimension_numbers<[1], [0], [0], [1], [0, 0, 1, 1], [], []>, precision = #tpu.contract_precision<fp32>} : vector<16x16xf32>, vector<16x256xf32>, vector<16x256xf32> -> vector<16x256xf32>
    %209 = arith.addf %204, %208 : vector<16x256xf32>
    %c0_172 = arith.constant 0 : index
    %c34_173 = arith.constant 34 : index
    %210 = vector.load %arg16[%c0_172, %c34_173] : memref<16x290xf32, #tpu.memory_space<vmem>>, vector<16x256xf32>
    %c1_174 = arith.constant 1 : index
    %c0_175 = arith.constant 0 : index
    %211 = vector.load %arg11[%c1_174, %c0_175] : memref<2x256xf32, #tpu.memory_space<vmem>>, vector<1x256xf32>
    %212 = vector.broadcast %211 : vector<1x256xf32> to vector<16x256xf32>
    %213 = arith.mulf %210, %212 : vector<16x256xf32>
    %c8_176 = arith.constant 8 : index
    %c0_177 = arith.constant 0 : index
    %c0_178 = arith.constant 0 : index
    %214 = vector.load %arg9[%c8_176, %c0_177, %c0_178] : memref<9x16x16xf32, #tpu.memory_space<vmem>>, vector<1x16x16xf32>
    %215 = vector.shape_cast %214 : vector<1x16x16xf32> to vector<16x16xf32>
    %cst_179 = arith.constant dense<0.000000e+00> : vector<16x256xf32>
    %216 = tpu.matmul %215, %213, %cst_179 {dimension_numbers = #tpu.dot_dimension_numbers<[1], [0], [0], [1], [0, 0, 1, 1], [], []>, precision = #tpu.contract_precision<fp32>} : vector<16x16xf32>, vector<16x256xf32>, vector<16x256xf32> -> vector<16x256xf32>
    %217 = arith.addf %209, %216 : vector<16x256xf32>
    %c0_180 = arith.constant 0 : index
    %c0_181 = arith.constant 0 : index
    %218 = vector.load %arg10[%c0_180, %c0_181] : memref<16x1xf32, #tpu.memory_space<vmem>>, vector<16x1xf32>
    %219 = vector.broadcast %218 : vector<16x1xf32> to vector<16x256xf32>
    %220 = arith.addf %217, %219 : vector<16x256xf32>
    %cst_182 = arith.constant 0.000000e+00 : f32
    %221 = vector.broadcast %cst_182 : f32 to vector<16x256xf32>
    %222 = arith.maximumf %220, %221 : vector<16x256xf32>
    %c0_183 = arith.constant 0 : index
    %c0_184 = arith.constant 0 : index
    %223 = vector.load %arg12[%c0_183, %c0_184] : memref<16x8xf32, #tpu.memory_space<vmem>>, vector<16x8xf32>
    %cst_185 = arith.constant dense<0.000000e+00> : vector<16x256xf32>
    %224 = tpu.matmul %223, %7, %cst_185 {dimension_numbers = #tpu.dot_dimension_numbers<[1], [0], [0], [1], [0, 0, 1, 1], [], []>, precision = #tpu.contract_precision<fp32>} : vector<16x8xf32>, vector<8x256xf32>, vector<16x256xf32> -> vector<16x256xf32>
    %c0_186 = arith.constant 0 : index
    %c0_187 = arith.constant 0 : index
    %225 = vector.load %arg13[%c0_186, %c0_187] : memref<16x1xf32, #tpu.memory_space<vmem>>, vector<16x1xf32>
    %226 = vector.broadcast %225 : vector<16x1xf32> to vector<16x256xf32>
    %227 = arith.addf %224, %226 : vector<16x256xf32>
    %228 = arith.addf %222, %227 : vector<16x256xf32>
    %c0_188 = arith.constant 0 : index
    %c0_189 = arith.constant 0 : index
    %c0_190 = arith.constant 0 : index
    %229 = vector.load %arg14[%c0_188, %c0_189, %c0_190] : memref<1x16x256xf32, #tpu.memory_space<vmem>>, vector<1x16x256xf32>
    %230 = vector.shape_cast %229 : vector<1x16x256xf32> to vector<16x256xf32>
    %231 = vector.shape_cast %228 : vector<16x256xf32> to vector<1x16x256xf32>
    tpu.vector_store %arg14[%c0_188, %c0_189, %c0_190], %231 {strides = array<i32>} : memref<1x16x256xf32, #tpu.memory_space<vmem>>, vector<1x16x256xf32>,
    return
  }
  func.func @transform_0(%arg0: i32) -> (i32, i32, i32) {
    %c0_i32 = arith.constant 0 : i32
    %c0_i32_0 = arith.constant 0 : i32
    %c0_i32_1 = arith.constant 0 : i32
    return %arg0, %c0_i32, %c0_i32_0 : i32, i32, i32
  }
  func.func @transform_1(%arg0: i32) -> (i32, i32) {
    %c0_i32 = arith.constant 0 : i32
    %c0_i32_0 = arith.constant 0 : i32
    %c0_i32_1 = arith.constant 0 : i32
    return %c0_i32, %c0_i32_0 : i32, i32
  }
  func.func @transform_2(%arg0: i32) -> (i32, i32) {
    %c0_i32 = arith.constant 0 : i32
    %c0_i32_0 = arith.constant 0 : i32
    %c0_i32_1 = arith.constant 0 : i32
    return %c0_i32, %c0_i32_0 : i32, i32
  }
  func.func @transform_3(%arg0: i32) -> (i32, i32) {
    %c0_i32 = arith.constant 0 : i32
    %c0_i32_0 = arith.constant 0 : i32
    %c0_i32_1 = arith.constant 0 : i32
    return %c0_i32, %c0_i32_0 : i32, i32
  }
  func.func @transform_4(%arg0: i32) -> (i32, i32) {
    %c0_i32 = arith.constant 0 : i32
    %c0_i32_0 = arith.constant 0 : i32
    %c0_i32_1 = arith.constant 0 : i32
    return %c0_i32, %c0_i32_0 : i32, i32
  }
  func.func @transform_5(%arg0: i32) -> (i32, i32) {
    %c0_i32 = arith.constant 0 : i32
    %c0_i32_0 = arith.constant 0 : i32
    %c0_i32_1 = arith.constant 0 : i32
    return %c0_i32, %c0_i32_0 : i32, i32
  }
  func.func @transform_6(%arg0: i32) -> (i32, i32) {
    %c0_i32 = arith.constant 0 : i32
    %c0_i32_0 = arith.constant 0 : i32
    %c0_i32_1 = arith.constant 0 : i32
    return %c0_i32, %c0_i32_0 : i32, i32
  }
  func.func @transform_7(%arg0: i32) -> (i32, i32) {
    %c0_i32 = arith.constant 0 : i32
    %c0_i32_0 = arith.constant 0 : i32
    %c0_i32_1 = arith.constant 0 : i32
    return %c0_i32, %c0_i32_0 : i32, i32
  }
  func.func @transform_8(%arg0: i32) -> (i32, i32, i32) {
    %c0_i32 = arith.constant 0 : i32
    %c0_i32_0 = arith.constant 0 : i32
    %c0_i32_1 = arith.constant 0 : i32
    %c0_i32_2 = arith.constant 0 : i32
    return %c0_i32, %c0_i32_0, %c0_i32_1 : i32, i32, i32
  }
  func.func @transform_9(%arg0: i32) -> (i32, i32) {
    %c0_i32 = arith.constant 0 : i32
    %c0_i32_0 = arith.constant 0 : i32
    %c0_i32_1 = arith.constant 0 : i32
    return %c0_i32, %c0_i32_0 : i32, i32
  }
  func.func @transform_10(%arg0: i32) -> (i32, i32) {
    %c0_i32 = arith.constant 0 : i32
    %c0_i32_0 = arith.constant 0 : i32
    %c0_i32_1 = arith.constant 0 : i32
    return %c0_i32, %c0_i32_0 : i32, i32
  }
  func.func @transform_11(%arg0: i32) -> (i32, i32) {
    %c0_i32 = arith.constant 0 : i32
    %c0_i32_0 = arith.constant 0 : i32
    %c0_i32_1 = arith.constant 0 : i32
    return %c0_i32, %c0_i32_0 : i32, i32
  }
  func.func @transform_12(%arg0: i32) -> (i32, i32) {
    %c0_i32 = arith.constant 0 : i32
    %c0_i32_0 = arith.constant 0 : i32
    %c0_i32_1 = arith.constant 0 : i32
    return %c0_i32, %c0_i32_0 : i32, i32
  }
  func.func @transform_13(%arg0: i32) -> (i32, i32, i32) {
    %c0_i32 = arith.constant 0 : i32
    %c0_i32_0 = arith.constant 0 : i32
    %c0_i32_1 = arith.constant 0 : i32
    return %arg0, %c0_i32, %c0_i32_0 : i32, i32, i32
  }
}

</mosaic_0001>

<llo_original>
// kernel: tpu_custom_call.1
$region0: #{tpu_custom_call.1}
  #allocation0 [shape = 'u32[]', space=smem, size = 0x4, offset = 0x4, fixed_abs, tag = 'smem constant byte address 0x4 - core index']
  #allocation1 [shape = 'u32[144,128]{1,0:T(1,128)}', space=vmem, size = 0x12000, scoped, tag = 'internal scratch']
  #allocation2 [shape = 'f32[8,290]{1,0:T(8,128)}', space=vmem, size = 0x3000, scoped, tag = 'scratch operand']
  #allocation3 [shape = 'f32[16,290]{1,0:T(8,128)}', space=vmem, size = 0x6000, scoped, tag = 'scratch operand']
  %s0 = inlined_call_operand.hbm [shape: f32[2,8,256], index: 0, kind: input, shape index: {}]
  %s1 = inlined_call_operand.hbm [shape: f32[8,9], index: 1, kind: input, shape index: {}]
  %s2 = inlined_call_operand.vmem [shape: f32[8,1], index: 2, kind: input, shape index: {}]
  %s3 = inlined_call_operand.hbm [shape: f32[8,8], index: 3, kind: input, shape index: {}]
  %s4 = inlined_call_operand.vmem [shape: f32[8,1], index: 4, kind: input, shape index: {}]
  %s5 = inlined_call_operand.hbm [shape: f32[8,9], index: 5, kind: input, shape index: {}]
  %s6 = inlined_call_operand.vmem [shape: f32[16,8], index: 6, kind: input, shape index: {}]
  %s7 = inlined_call_operand.vmem [shape: f32[16,1], index: 7, kind: input, shape index: {}]
  %s8 = inlined_call_operand.vmem [shape: f32[9,16,16], index: 8, kind: input, shape index: {}]
  %s9 = inlined_call_operand.vmem [shape: f32[16,1], index: 9, kind: input, shape index: {}]
  %s10 = inlined_call_operand.hbm [shape: f32[2,256], index: 10, kind: input, shape index: {}]
  %s11 = inlined_call_operand.vmem [shape: f32[16,8], index: 11, kind: input, shape index: {}]
  %s12 = inlined_call_operand.vmem [shape: f32[16,1], index: 12, kind: input, shape index: {}]
  %s13 = inlined_call_operand.hbm [shape: f32[2,16,256], index: 13, kind: output, shape index: {}]
  %s14 = sld [smem:[#allocation0]]
  $region105: #{tpu_custom_call.1} parent=0
    _
  %s16 = ssub.s32 1, %s14
  %s17 = scalar_select 0, %s16, %s14
  $region1: #{tpu_custom_call.1} parent=0
    #allocation4 [shape = 'u8[16384]{0}', space=vmem, size = 0x4000, scoped, tag = 'input window, operand 0']
    #allocation5 [shape = 's32[2]{0}', space=sflag, size = 0x8, scoped, tag = 'scoped memory for tpu_custom_call.1']
    #allocation6 [shape = 's32[2]{0}', space=sflag, size = 0x8, scoped, tag = 'scoped memory for tpu_custom_call.1']
    #allocation7 [shape = 'u8[4096]{0}', space=vmem, size = 0x1000, scoped, tag = 'input window, operand 1, single buffered']
    #allocation8 [shape = 's32[1]{0}', space=sflag, size = 0x4, scoped, tag = 'scoped memory for tpu_custom_call.1']
    #allocation9 [shape = 'u8[4096]{0}', space=vmem, size = 0x1000, scoped, tag = 'input window, operand 3, single buffered']
    #allocation10 [shape = 'u8[4096]{0}', space=vmem, size = 0x1000, scoped, tag = 'input window, operand 5, single buffered']
    #allocation11 [shape = 's32[1]{0}', space=sflag, size = 0x4, scoped, tag = 'scoped memory for tpu_custom_call.1']
    #allocation12 [shape = 'u8[2048]{0}', space=vmem, size = 0x800, scoped, tag = 'input window, operand 10, single buffered']
    #allocation13 [shape = 'u8[32768]{0}', space=vmem, size = 0x8000, scoped, tag = 'output window, operand 0']
    %18 = vsyncpa [#allocation5], 0
    %s19 = scalar_lea.sflag [#allocation5], 1
    %20 = vsyncpa %s19, 0
    %21 = vsyncpa [#allocation8], 0
    %22 = vsyncpa [#allocation11], 0
    %23 = vsyncpa [#allocation6], 0
    %s24 = scalar_lea.sflag [#allocation6], 1
    %25 = vsyncpa %s24, 0
    loop: start=0, step=1, limit=4
    $region2: #{tpu_custom_call.1} parent=1 // loop_pre_header
      _
    $region3: #{tpu_custom_call.1} parent=1 // loop_header
      %s27 = sphi 0, %s31
      %p28 = scmp.ge.s32.totalorder %s27, 4
      %s37 = sphi 0, %s39
      %s40 = sphi 0, %s37
      %s41 = sphi 0, %s40
      %s57 = sphi 0, %s41
      %s61 = sphi 0, %s61
      %s63 = sphi 0, %s61
      %s64 = sphi 0, %s63
      %s78 = sphi 0, %s64
      %s82 = sphi 0, %s82
      %s84 = sphi 0, %s82
      %s85 = sphi 0, %s84
      %s99 = sphi 0, %s85
      %s103 = sphi 0, %s103
      %s105 = sphi 0, %s103
      %s106 = sphi 0, %s105
      %s120 = sphi 0, %s106
      %s124 = sphi 0, %s124
      %s126 = sphi 0, %s124
      %s127 = sphi 0, %s126
      %s141 = sphi 0, %s127
      %s145 = sphi 0, %s145
      %s147 = sphi 0, %s145
      %s148 = sphi 0, %s147
      %s162 = sphi 0, %s148
      %s166 = sphi 0, %s166
      %s168 = sphi 0, %s166
      %s169 = sphi 0, %s168
      %s183 = sphi 0, %s169
      %s187 = sphi 0, %s187
      %s189 = sphi 0, %s187
      %s190 = sphi 0, %s189
      %s204 = sphi 0, %s190
      %s208 = sphi 0, %s208
      %s210 = sphi 0, %s208
      %s211 = sphi 0, %s210
      %s225 = sphi 0, %s211
      %s229 = sphi 0, %s229
      %s231 = sphi 0, %s229
      %s232 = sphi 0, %s231
      %s246 = sphi 0, %s232
      %s250 = sphi 0, %s250
      %s252 = sphi 0, %s250
      %s253 = sphi 0, %s252
      %s267 = sphi 0, %s253
      %s271 = sphi 0, %s271
      %s273 = sphi 0, %s271
      %s274 = sphi 0, %s273
      %s288 = sphi 0, %s274
      %s292 = sphi 0, %s292
      %s294 = sphi 0, %s292
      %s295 = sphi 0, %s294
      %s309 = sphi 0, %s295
      %s315 = sphi 0, %s317
      %s318 = sphi 0, %s315
      %s319 = sphi 0, %s318
      %s335 = sphi 0, %s319
    $region4: #{tpu_custom_call.1} parent=1 // loop_header_branch
      %30 = sbr.rel (%p28) target = $region8
    $region5: #{tpu_custom_call.1} parent=1 // loop_body
      %s32 = ssub.s32 %s27, 1
      %s33 = ssub.s32 %s27, 2
      %s34 = sadd.s32 %s27, 1
      %s35 = ssub.s32 %s27, %s34
      %p36 = scmp.eq.s32.totalorder %s35, 0
      %s38 = sadd.s32 %s37, 1
      %s39 = scalar_select %p36, %s37, %s38
      %p42 = pneg %p36
      %p43 = scmp.eq.s32.totalorder %s27, 1
      %p44 = por %p42, %p43
      %p45 = scmp.ne.s32.totalorder %s37, %s40
      %p46 = scmp.eq.s32.totalorder %s27, 0
      %p47 = por %p45, %p46
      %p48 = scmp.ne.s32.totalorder %s37, %s40
      %p49 = scmp.eq.s32.totalorder %s32, 1
      %p50 = por %p48, %p49
      %p51 = scmp.ne.s32.totalorder %s40, %s41
      %p52 = scmp.eq.s32.totalorder %s32, 0
      %p53 = por %p51, %p52
      %p54 = scmp.ne.s32.totalorder %s40, %s41
      %p55 = scmp.eq.s32.totalorder %s33, 1
      %p56 = por %p54, %p55
      %p58 = scmp.ne.s32.totalorder %s41, %s57
      %p59 = scmp.eq.s32.totalorder %s33, 0
      %p60 = por %p58, %p59
      %s62 = sadd.s32 %s61, 1
      %p65 = scmp.eq.s32.totalorder %s27, 1
      %p66 = scmp.ne.s32.totalorder %s61, %s63
      %p67 = scmp.eq.s32.totalorder %s27, 0
      %p68 = por %p66, %p67
      %p69 = scmp.ne.s32.totalorder %s61, %s63
      %p70 = scmp.eq.s32.totalorder %s32, 1
      %p71 = por %p69, %p70
      %p72 = scmp.ne.s32.totalorder %s63, %s64
      %p73 = scmp.eq.s32.totalorder %s32, 0
      %p74 = por %p72, %p73
      %p75 = scmp.ne.s32.totalorder %s63, %s64
      %p76 = scmp.eq.s32.totalorder %s33, 1
      %p77 = por %p75, %p76
      %p79 = scmp.ne.s32.totalorder %s64, %s78
      %p80 = scmp.eq.s32.totalorder %s33, 0
      %p81 = por %p79, %p80
      %s83 = sadd.s32 %s82, 1
      %p86 = scmp.eq.s32.totalorder %s27, 1
      %p87 = scmp.ne.s32.totalorder %s82, %s84
      %p88 = scmp.eq.s32.totalorder %s27, 0
      %p89 = por %p87, %p88
      %p90 = scmp.ne.s32.totalorder %s82, %s84
      %p91 = scmp.eq.s32.totalorder %s32, 1
      %p92 = por %p90, %p91
      %p93 = scmp.ne.s32.totalorder %s84, %s85
      %p94 = scmp.eq.s32.totalorder %s32, 0
      %p95 = por %p93, %p94
      %p96 = scmp.ne.s32.totalorder %s84, %s85
      %p97 = scmp.eq.s32.totalorder %s33, 1
      %p98 = por %p96, %p97
      %p100 = scmp.ne.s32.totalorder %s85, %s99
      %p101 = scmp.eq.s32.totalorder %s33, 0
      %p102 = por %p100, %p101
      %s104 = sadd.s32 %s103, 1
      %p107 = scmp.eq.s32.totalorder %s27, 1
      %p108 = scmp.ne.s32.totalorder %s103, %s105
      %p109 = scmp.eq.s32.totalorder %s27, 0
      %p110 = por %p108, %p109
      %p111 = scmp.ne.s32.totalorder %s103, %s105
      %p112 = scmp.eq.s32.totalorder %s32, 1
      %p113 = por %p111, %p112
      %p114 = scmp.ne.s32.totalorder %s105, %s106
      %p115 = scmp.eq.s32.totalorder %s32, 0
      %p116 = por %p114, %p115
      %p117 = scmp.ne.s32.totalorder %s105, %s106
      %p118 = scmp.eq.s32.totalorder %s33, 1
      %p119 = por %p117, %p118
      %p121 = scmp.ne.s32.totalorder %s106, %s120
      %p122 = scmp.eq.s32.totalorder %s33, 0
      %p123 = por %p121, %p122
      %s125 = sadd.s32 %s124, 1
      %p128 = scmp.eq.s32.totalorder %s27, 1
      %p129 = scmp.ne.s32.totalorder %s124, %s126
      %p130 = scmp.eq.s32.totalorder %s27, 0
      %p131 = por %p129, %p130
      %p132 = scmp.ne.s32.totalorder %s124, %s126
      %p133 = scmp.eq.s32.totalorder %s32, 1
      %p134 = por %p132, %p133
      %p135 = scmp.ne.s32.totalorder %s126, %s127
      %p136 = scmp.eq.s32.totalorder %s32, 0
      %p137 = por %p135, %p136
      %p138 = scmp.ne.s32.totalorder %s126, %s127
      %p139 = scmp.eq.s32.totalorder %s33, 1
      %p140 = por %p138, %p139
      %p142 = scmp.ne.s32.totalorder %s127, %s141
      %p143 = scmp.eq.s32.totalorder %s33, 0
      %p144 = por %p142, %p143
      %s146 = sadd.s32 %s145, 1
      %p149 = scmp.eq.s32.totalorder %s27, 1
      %p150 = scmp.ne.s32.totalorder %s145, %s147
      %p151 = scmp.eq.s32.totalorder %s27, 0
      %p152 = por %p150, %p151
      %p153 = scmp.ne.s32.totalorder %s145, %s147
      %p154 = scmp.eq.s32.totalorder %s32, 1
      %p155 = por %p153, %p154
      %p156 = scmp.ne.s32.totalorder %s147, %s148
      %p157 = scmp.eq.s32.totalorder %s32, 0
      %p158 = por %p156, %p157
      %p159 = scmp.ne.s32.totalorder %s147, %s148
      %p160 = scmp.eq.s32.totalorder %s33, 1
      %p161 = por %p159, %p160
      %p163 = scmp.ne.s32.totalorder %s148, %s162
      %p164 = scmp.eq.s32.totalorder %s33, 0
      %p165 = por %p163, %p164
      %s167 = sadd.s32 %s166, 1
      %p170 = scmp.eq.s32.totalorder %s27, 1
      %p171 = scmp.ne.s32.totalorder %s166, %s168
      %p172 = scmp.eq.s32.totalorder %s27, 0
      %p173 = por %p171, %p172
      %p174 = scmp.ne.s32.totalorder %s166, %s168
      %p175 = scmp.eq.s32.totalorder %s32, 1
      %p176 = por %p174, %p175
      %p177 = scmp.ne.s32.totalorder %s168, %s169
      %p178 = scmp.eq.s32.totalorder %s32, 0
      %p179 = por %p177, %p178
      %p180 = scmp.ne.s32.totalorder %s168, %s169
      %p181 = scmp.eq.s32.totalorder %s33, 1
      %p182 = por %p180, %p181
      %p184 = scmp.ne.s32.totalorder %s169, %s183
      %p185 = scmp.eq.s32.totalorder %s33, 0
      %p186 = por %p184, %p185
      %s188 = sadd.s32 %s187, 1
      %p191 = scmp.eq.s32.totalorder %s27, 1
      %p192 = scmp.ne.s32.totalorder %s187, %s189
      %p193 = scmp.eq.s32.totalorder %s27, 0
      %p194 = por %p192, %p193
      %p195 = scmp.ne.s32.totalorder %s187, %s189
      %p196 = scmp.eq.s32.totalorder %s32, 1
      %p197 = por %p195, %p196
      %p198 = scmp.ne.s32.totalorder %s189, %s190
      %p199 = scmp.eq.s32.totalorder %s32, 0
      %p200 = por %p198, %p199
      %p201 = scmp.ne.s32.totalorder %s189, %s190
      %p202 = scmp.eq.s32.totalorder %s33, 1
      %p203 = por %p201, %p202
      %p205 = scmp.ne.s32.totalorder %s190, %s204
      %p206 = scmp.eq.s32.totalorder %s33, 0
      %p207 = por %p205, %p206
      %s209 = sadd.s32 %s208, 1
      %p212 = scmp.eq.s32.totalorder %s27, 1
      %p213 = scmp.ne.s32.totalorder %s208, %s210
      %p214 = scmp.eq.s32.totalorder %s27, 0
      %p215 = por %p213, %p214
      %p216 = scmp.ne.s32.totalorder %s208, %s210
      %p217 = scmp.eq.s32.totalorder %s32, 1
      %p218 = por %p216, %p217
      %p219 = scmp.ne.s32.totalorder %s210, %s211
      %p220 = scmp.eq.s32.totalorder %s32, 0
      %p221 = por %p219, %p220
      %p222 = scmp.ne.s32.totalorder %s210, %s211
      %p223 = scmp.eq.s32.totalorder %s33, 1
      %p224 = por %p222, %p223
      %p226 = scmp.ne.s32.totalorder %s211, %s225
      %p227 = scmp.eq.s32.totalorder %s33, 0
      %p228 = por %p226, %p227
      %s230 = sadd.s32 %s229, 1
      %p233 = scmp.eq.s32.totalorder %s27, 1
      %p234 = scmp.ne.s32.totalorder %s229, %s231
      %p235 = scmp.eq.s32.totalorder %s27, 0
      %p236 = por %p234, %p235
      %p237 = scmp.ne.s32.totalorder %s229, %s231
      %p238 = scmp.eq.s32.totalorder %s32, 1
      %p239 = por %p237, %p238
      %p240 = scmp.ne.s32.totalorder %s231, %s232
      %p241 = scmp.eq.s32.totalorder %s32, 0
      %p242 = por %p240, %p241
      %p243 = scmp.ne.s32.totalorder %s231, %s232
      %p244 = scmp.eq.s32.totalorder %s33, 1
      %p245 = por %p243, %p244
      %p247 = scmp.ne.s32.totalorder %s232, %s246
      %p248 = scmp.eq.s32.totalorder %s33, 0
      %p249 = por %p247, %p248
      %s251 = sadd.s32 %s250, 1
      %p254 = scmp.eq.s32.totalorder %s27, 1
      %p255 = scmp.ne.s32.totalorder %s250, %s252
      %p256 = scmp.eq.s32.totalorder %s27, 0
      %p257 = por %p255, %p256
      %p258 = scmp.ne.s32.totalorder %s250, %s252
      %p259 = scmp.eq.s32.totalorder %s32, 1
      %p260 = por %p258, %p259
      %p261 = scmp.ne.s32.totalorder %s252, %s253
      %p262 = scmp.eq.s32.totalorder %s32, 0
      %p263 = por %p261, %p262
      %p264 = scmp.ne.s32.totalorder %s252, %s253
      %p265 = scmp.eq.s32.totalorder %s33, 1
      %p266 = por %p264, %p265
      %p268 = scmp.ne.s32.totalorder %s253, %s267
      %p269 = scmp.eq.s32.totalorder %s33, 0
      %p270 = por %p268, %p269
      %s272 = sadd.s32 %s271, 1
      %p275 = scmp.eq.s32.totalorder %s27, 1
      %p276 = scmp.ne.s32.totalorder %s271, %s273
      %p277 = scmp.eq.s32.totalorder %s27, 0
      %p278 = por %p276, %p277
      %p279 = scmp.ne.s32.totalorder %s271, %s273
      %p280 = scmp.eq.s32.totalorder %s32, 1
      %p281 = por %p279, %p280
      %p282 = scmp.ne.s32.totalorder %s273, %s274
      %p283 = scmp.eq.s32.totalorder %s32, 0
      %p284 = por %p282, %p283
      %p285 = scmp.ne.s32.totalorder %s273, %s274
      %p286 = scmp.eq.s32.totalorder %s33, 1
      %p287 = por %p285, %p286
      %p289 = scmp.ne.s32.totalorder %s274, %s288
      %p290 = scmp.eq.s32.totalorder %s33, 0
      %p291 = por %p289, %p290
      %s293 = sadd.s32 %s292, 1
      %p296 = scmp.eq.s32.totalorder %s27, 1
      %p297 = scmp.ne.s32.totalorder %s292, %s294
      %p298 = scmp.eq.s32.totalorder %s27, 0
      %p299 = por %p297, %p298
      %p300 = scmp.ne.s32.totalorder %s292, %s294
      %p301 = scmp.eq.s32.totalorder %s32, 1
      %p302 = por %p300, %p301
      %p303 = scmp.ne.s32.totalorder %s294, %s295
      %p304 = scmp.eq.s32.totalorder %s32, 0
      %p305 = por %p303, %p304
      %p306 = scmp.ne.s32.totalorder %s294, %s295
      %p307 = scmp.eq.s32.totalorder %s33, 1
      %p308 = por %p306, %p307
      %p310 = scmp.ne.s32.totalorder %s295, %s309
      %p311 = scmp.eq.s32.totalorder %s33, 0
      %p312 = por %p310, %p311
      %s313 = ssub.s32 %s27, %s34
      %p314 = scmp.eq.s32.totalorder %s313, 0
      %s316 = sadd.s32 %s315, 1
      %s317 = scalar_select %p314, %s315, %s316
      %p320 = pneg %p314
      %p321 = scmp.eq.s32.totalorder %s27, 1
      %p322 = por %p320, %p321
      %p323 = scmp.ne.s32.totalorder %s315, %s318
      %p324 = scmp.eq.s32.totalorder %s27, 0
      %p325 = por %p323, %p324
      %p326 = scmp.ne.s32.totalorder %s315, %s318
      %p327 = scmp.eq.s32.totalorder %s32, 1
      %p328 = por %p326, %p327
      %p329 = scmp.ne.s32.totalorder %s318, %s319
      %p330 = scmp.eq.s32.totalorder %s32, 0
      %p331 = por %p329, %p330
      %p332 = scmp.ne.s32.totalorder %s318, %s319
      %p333 = scmp.eq.s32.totalorder %s33, 1
      %p334 = por %p332, %p333
      %p336 = scmp.ne.s32.totalorder %s319, %s335
      %p337 = scmp.eq.s32.totalorder %s33, 0
      %p338 = por %p336, %p337
      %p339 = scmp.le.s32.totalorder 1, %s27
      %p340 = scmp.lt.s32.totalorder %s27, 3
      %p341 = pnand %p339, %p340
      %p342 = pneg %p341
      // Predicated region
      $region9: #{tpu_custom_call.1} parent=5 // pred_check
        _
      $region10: #{tpu_custom_call.1} parent=5 // pred_check_branch
        %344 = sbr.rel (%p341) target = $region12
      $region11: #{tpu_custom_call.1} parent=5 // pred_region
        %s345 = ssub.s32 %s27, 1
        // Predicated region
        $region13: #{tpu_custom_call.1} parent=11 // pred_check
          %p346 = pneg %p74
        $region14: #{tpu_custom_call.1} parent=11 // pred_check_branch
          %348 = sbr.rel (%p346) target = $region16
        $region15: #{tpu_custom_call.1} parent=11 // pred_region
          %s350 = ssub.s32 128, 128
          %351 = vsyncadd [#allocation8], %s350
          %s353 = sshll.u32 [#allocation7], 4
          %s354 = int_to_ptr.vmem [resolvable:$true] %s353
          %356 = dma.hbm_to_vmem [thread:$0]  %s1, 128, %s354, [#allocation8]
        $region16: #{tpu_custom_call.1} parent=11 // pred_fallthru
          _
        // Predicated region
        $region17: #{tpu_custom_call.1} parent=11 // pred_check
          %p357 = pneg %p95
        $region18: #{tpu_custom_call.1} parent=11 // pred_check_branch
          %359 = sbr.rel (%p357) target = $region20
        $region19: #{tpu_custom_call.1} parent=11 // pred_region
          _
        $region20: #{tpu_custom_call.1} parent=11 // pred_fallthru
          _
        // Predicated region
        $region21: #{tpu_custom_call.1} parent=11 // pred_check
          %p360 = pneg %p116
        $region22: #{tpu_custom_call.1} parent=11 // pred_check_branch
          %362 = sbr.rel (%p360) target = $region24
        $region23: #{tpu_custom_call.1} parent=11 // pred_region
          %s364 = ssub.s32 128, 128
          %365 = vsyncadd [#allocation8], %s364
          %s367 = sshll.u32 [#allocation9], 4
          %s368 = int_to_ptr.vmem [resolvable:$true] %s367
          %370 = dma.hbm_to_vmem [thread:$0]  %s3, 128, %s368, [#allocation8]
        $region24: #{tpu_custom_call.1} parent=11 // pred_fallthru
          _
        // Predicated region
        $region25: #{tpu_custom_call.1} parent=11 // pred_check
          %p371 = pneg %p137
        $region26: #{tpu_custom_call.1} parent=11 // pred_check_branch
          %373 = sbr.rel (%p371) target = $region28
        $region27: #{tpu_custom_call.1} parent=11 // pred_region
          _
        $region28: #{tpu_custom_call.1} parent=11 // pred_fallthru
          _
        // Predicated region
        $region29: #{tpu_custom_call.1} parent=11 // pred_check
          %p374 = pneg %p158
        $region30: #{tpu_custom_call.1} parent=11 // pred_check_branch
          %376 = sbr.rel (%p374) target = $region32
        $region31: #{tpu_custom_call.1} parent=11 // pred_region
          %s378 = ssub.s32 128, 128
          %379 = vsyncadd [#allocation11], %s378
          %s381 = sshll.u32 [#allocation10], 4
          %s382 = int_to_ptr.vmem [resolvable:$true] %s381
          %384 = dma.hbm_to_vmem [thread:$0]  %s5, 128, %s382, [#allocation11]
        $region32: #{tpu_custom_call.1} parent=11 // pred_fallthru
          _
        // Predicated region
        $region33: #{tpu_custom_call.1} parent=11 // pred_check
          %p385 = pneg %p179
        $region34: #{tpu_custom_call.1} parent=11 // pred_check_branch
          %387 = sbr.rel (%p385) target = $region36
        $region35: #{tpu_custom_call.1} parent=11 // pred_region
          _
        $region36: #{tpu_custom_call.1} parent=11 // pred_fallthru
          _
        // Predicated region
        $region37: #{tpu_custom_call.1} parent=11 // pred_check
          %p388 = pneg %p200
        $region38: #{tpu_custom_call.1} parent=11 // pred_check_branch
          %390 = sbr.rel (%p388) target = $region40
        $region39: #{tpu_custom_call.1} parent=11 // pred_region
          _
        $region40: #{tpu_custom_call.1} parent=11 // pred_fallthru
          _
        // Predicated region
        $region41: #{tpu_custom_call.1} parent=11 // pred_check
          %p391 = pneg %p221
        $region42: #{tpu_custom_call.1} parent=11 // pred_check_branch
          %393 = sbr.rel (%p391) target = $region44
        $region43: #{tpu_custom_call.1} parent=11 // pred_region
          _
        $region44: #{tpu_custom_call.1} parent=11 // pred_fallthru
          _
        // Predicated region
        $region45: #{tpu_custom_call.1} parent=11 // pred_check
          %p394 = pneg %p242
        $region46: #{tpu_custom_call.1} parent=11 // pred_check_branch
          %396 = sbr.rel (%p394) target = $region48
        $region47: #{tpu_custom_call.1} parent=11 // pred_region
          _
        $region48: #{tpu_custom_call.1} parent=11 // pred_fallthru
          _
        // Predicated region
        $region49: #{tpu_custom_call.1} parent=11 // pred_check
          %p397 = pneg %p263
        $region50: #{tpu_custom_call.1} parent=11 // pred_check_branch
          %399 = sbr.rel (%p397) target = $region52
        $region51: #{tpu_custom_call.1} parent=11 // pred_region
          %s401 = ssub.s32 64, 64
          %402 = vsyncadd [#allocation11], %s401
          %s404 = sshll.u32 [#allocation12], 4
          %s405 = int_to_ptr.vmem [resolvable:$true] %s404
          %407 = dma.hbm_to_vmem [thread:$0]  %s10, 64, %s405, [#allocation11]
        $region52: #{tpu_custom_call.1} parent=11 // pred_fallthru
          _
        // Predicated region
        $region53: #{tpu_custom_call.1} parent=11 // pred_check
          %p408 = pneg %p284
        $region54: #{tpu_custom_call.1} parent=11 // pred_check_branch
          %410 = sbr.rel (%p408) target = $region56
        $region55: #{tpu_custom_call.1} parent=11 // pred_region
          _
        $region56: #{tpu_custom_call.1} parent=11 // pred_fallthru
          _
        // Predicated region
        $region57: #{tpu_custom_call.1} parent=11 // pred_check
          %p411 = pneg %p305
        $region58: #{tpu_custom_call.1} parent=11 // pred_check_branch
          %413 = sbr.rel (%p411) target = $region60
        $region59: #{tpu_custom_call.1} parent=11 // pred_region
          _
        $region60: #{tpu_custom_call.1} parent=11 // pred_fallthru
          _
      $region12: #{tpu_custom_call.1} parent=5 // pred_fallthru
        _
      %p414 = scmp.lt.s32.totalorder %s27, 2
      // Predicated region
      $region61: #{tpu_custom_call.1} parent=5 // pred_check
        %p415 = pneg %p414
      $region62: #{tpu_custom_call.1} parent=5 // pred_check_branch
        %417 = sbr.rel (%p415) target = $region64
      $region63: #{tpu_custom_call.1} parent=5 // pred_region
        // Predicated region
        $region65: #{tpu_custom_call.1} parent=63 // pred_check
          %p418 = pneg %p47
        $region66: #{tpu_custom_call.1} parent=63 // pred_check_branch
          %420 = sbr.rel (%p418) target = $region68
        $region67: #{tpu_custom_call.1} parent=63 // pred_region
          %s421 = sand.u32 %s37, 1
          %s422 = scalar_lea.sflag [#allocation5], %s421
          %s423 = sand.u32 %s37, 1
          %s424 = smul.addr %s423, 16
          %s425 = scalar_lea.vmem [#allocation4], %s424
          %s427 = ssub.s32 256, 256
          %428 = vsyncadd %s422, %s427
          %s429 = smul.addr %s27, 2
          %s430 = smul.addr %s429, 128
          %s431 = scalar_lea.hbm %s0, %s430
          %s433 = sshll.u32 %s425, 4
          %s434 = int_to_ptr.vmem [resolvable:$true] %s433
          %436 = dma.hbm_to_vmem [thread:$0]  %s431, 256, %s434, %s422
        $region68: #{tpu_custom_call.1} parent=63 // pred_fallthru
          _
      $region64: #{tpu_custom_call.1} parent=5 // pred_fallthru
        _
      %p437 = scmp.le.s32.totalorder 1, %s27
      %p438 = scmp.lt.s32.totalorder %s27, 3
      %p439 = pnand %p437, %p438
      %p440 = pneg %p439
      // Predicated region
      $region69: #{tpu_custom_call.1} parent=5 // pred_check
        _
      $region70: #{tpu_custom_call.1} parent=5 // pred_check_branch
        %442 = sbr.rel (%p439) target = $region72
      $region71: #{tpu_custom_call.1} parent=5 // pred_region
        %s443 = ssub.s32 %s27, 1
        %s444 = sand.u32 %s40, 1
        %s445 = scalar_lea.sflag [#allocation5], %s444
        %s446 = sand.u32 %s40, 1
        %s447 = smul.addr %s446, 16
        %s448 = scalar_lea.vmem [#allocation4], %s447
        // Predicated region
        $region73: #{tpu_custom_call.1} parent=71 // pred_check
          %p449 = pneg %p53
        $region74: #{tpu_custom_call.1} parent=71 // pred_check_branch
          %451 = sbr.rel (%p449) target = $region76
        $region75: #{tpu_custom_call.1} parent=71 // pred_region
          %452 = dma.done %s445, 256
        $region76: #{tpu_custom_call.1} parent=71 // pred_fallthru
          _
        // Predicated region
        $region77: #{tpu_custom_call.1} parent=71 // pred_check
          %p453 = pneg %p74
        $region78: #{tpu_custom_call.1} parent=71 // pred_check_branch
          %455 = sbr.rel (%p453) target = $region80
        $region79: #{tpu_custom_call.1} parent=71 // pred_region
          %456 = dma.done [#allocation8], 128
        $region80: #{tpu_custom_call.1} parent=71 // pred_fallthru
          _
        // Predicated region
        $region81: #{tpu_custom_call.1} parent=71 // pred_check
          %p457 = pneg %p116
        $region82: #{tpu_custom_call.1} parent=71 // pred_check_branch
          %459 = sbr.rel (%p457) target = $region84
        $region83: #{tpu_custom_call.1} parent=71 // pred_region
          %460 = dma.done [#allocation8], 128
        $region84: #{tpu_custom_call.1} parent=71 // pred_fallthru
          _
        // Predicated region
        $region85: #{tpu_custom_call.1} parent=71 // pred_check
          %p461 = pneg %p158
        $region86: #{tpu_custom_call.1} parent=71 // pred_check_branch
          %463 = sbr.rel (%p461) target = $region88
        $region87: #{tpu_custom_call.1} parent=71 // pred_region
          %464 = dma.done [#allocation11], 128
        $region88: #{tpu_custom_call.1} parent=71 // pred_fallthru
          _
        // Predicated region
        $region89: #{tpu_custom_call.1} parent=71 // pred_check
          %p465 = pneg %p263
        $region90: #{tpu_custom_call.1} parent=71 // pred_check_branch
          %467 = sbr.rel (%p465) target = $region92
        $region91: #{tpu_custom_call.1} parent=71 // pred_region
          %468 = dma.done [#allocation11], 64
        $region92: #{tpu_custom_call.1} parent=71 // pred_fallthru
          _
        %s469 = sand.u32 %s40, 1
        %s470 = scalar_lea.sflag [#allocation5], %s469
        %s471 = sand.u32 %s40, 1
        %s472 = smul.addr %s471, 16
        %s473 = scalar_lea.vmem [#allocation4], %s472
        %p474 = pneg %p53
        %p475 = pneg %p50
        %p476 = pneg %p74
        %p477 = pneg %p71
        %p478 = pneg %p95
        %p479 = pneg %p92
        %p480 = pneg %p116
        %p481 = pneg %p113
        %p482 = pneg %p137
        %p483 = pneg %p134
        %p484 = pneg %p158
        %p485 = pneg %p155
        %p486 = pneg %p179
        %p487 = pneg %p176
        %p488 = pneg %p200
        %p489 = pneg %p197
        %p490 = pneg %p221
        %p491 = pneg %p218
        %p492 = pneg %p242
        %p493 = pneg %p239
        %p494 = pneg %p263
        %p495 = pneg %p260
        %p496 = pneg %p284
        %p497 = pneg %p281
        %p498 = pneg %p305
        %p499 = pneg %p302
        %p500 = pneg %p331
        %p501 = pneg %p328
        %s502 = sand.u32 %s318, 1
        %s503 = scalar_lea.sflag [#allocation6], %s502
        %s504 = sand.u32 %s318, 1
        %s505 = smul.addr %s504, 32
        %s506 = scalar_lea.vmem [#allocation13], %s505
        %vm507 = vcmask 138240
        %508 = vst.msk [vmem:[#allocation2] sm:$0xff] %vm507, 0.0
        %vm509 = vcmask 277640
        %510 = vst.msk [vmem:[#allocation2 + $0x10] sm:$0xff] %vm509, 0.0
        %511 = vst.msk [vmem:[#allocation3] sm:$0xff] %vm507, 0.0
        %512 = vst.msk [vmem:[#allocation3 + $0x18] sm:$0xff] %vm507, 0.0
        %513 = vst.msk [vmem:[#allocation3 + $0x10] sm:$0xff] %vm509, 0.0
        %514 = vst.msk [vmem:[#allocation3 + $0x28] sm:$0xff] %vm509, 0.0
        %v515 = vld [vmem:[%s448] sm:$0xff]
        %v516 = vld [vmem:[%s448 + $0x8] sm:$0xff]
        %519 = vrot.lane.b32.xlu0 %v515, 17
        %v520 = vpop.permute.xlu0 %519
        %521 = vrot.lane.b32.xlu0 %v516, 17
        %v522 = vpop.permute.xlu0 %521
        %v523 = vsel %vm507, %v520, %v522
        %vm527 = vcmask 1047688
        %528 = vst.msk [vmem:[#allocation2] sm:$0xff] %vm527, %v520
        %529 = vst [vmem:[#allocation2 + $0x8] sm:$0xff] %v523
        %530 = vst.msk [vmem:[#allocation2 + $0x10] sm:$0xff] %vm507, %v522
        %v531 = vld [vmem:[#allocation7] sm:$0xff]
        %v532 = vld [vmem:[#allocation2] sm:$0xff]
        %v533 = vld [vmem:[#allocation2 + $0x8] sm:$0xff]
        %v534 = vld [vmem:[#allocation12] ss:$2 sm:$0x3]
        %v536 = vlaneseq
        %v537 = vshrl.u32 %v536, 7
        %v538 = vsub.s32 0, %v537
        %v539 = vrot.slane %v534, %v538
        %v540 = vlaneseq
        %v541 = vshrl.u32 %v540, 7
        %v542 = vsub.s32 1, %v541
        %v543 = vrot.slane %v534, %v542
        %v546 = vmul.f32 %v532, %v539
        %v547 = vmul.f32 %v533, %v543
        %549 = vset.pattern.permute.xlu0 0
        %550 = vperm.xlu0 %549, %v531
        %v551 = vpop.permute.xlu0 %550
        %v553 = vmul.f32 %v551, %v546
        %v554 = vmul.f32 %v551, %v547
        %v555 = vld [vmem:[#allocation2] sm:$0xff]
        %v556 = vld [vmem:[#allocation2 + $0x8] sm:$0xff]
        %v557 = vld [vmem:[#allocation2 + $0x10] sm:$0xff]
        %558 = vset.pattern.permute.xlu0 1
        %559 = vperm.xlu0 %558, %v531
        %v560 = vpop.permute.xlu0 %559
        %v562 = vmul.f32 %v560, %v555
        %v563 = vmul.f32 %v560, %v556
        %v564 = vmul.f32 %v560, %v557
        %568 = vrot.lane.b32.xlu0 %v562, 127
        %v569 = vpop.permute.xlu0 %568
        %570 = vrot.lane.b32.xlu0 %v563, 127
        %v571 = vpop.permute.xlu0 %570
        %572 = vrot.lane.b32.xlu0 %v564, 127
        %v573 = vpop.permute.xlu0 %572
        %vm574 = vcmask 1039360
        %v575 = vsel %vm574, %v569, %v571
        %v576 = vsel %vm574, %v571, %v573
        %v579 = vadd.f32 %v553, %v575
        %v580 = vadd.f32 %v554, %v576
        %s581 = scalar_lea.vmem [#allocation12], 1
        %v582 = vld [vmem:[%s581] ss:$2 sm:$0x3]
        %v584 = vlaneseq
        %v585 = vshrl.u32 %v584, 7
        %v586 = vsub.s32 0, %v585
        %v587 = vrot.slane %v582, %v586
        %v588 = vlaneseq
        %v589 = vshrl.u32 %v588, 7
        %v590 = vsub.s32 1, %v589
        %v591 = vrot.slane %v582, %v590
        %592 = vrot.lane.b32.xlu0 %v587, 2
        %v593 = vpop.permute.xlu0 %592
        %594 = vrot.lane.b32.xlu0 %v591, 2
        %v595 = vpop.permute.xlu0 %594
        %vm596 = vcmask 15360
        %v597 = vsel %vm596, %v593, %v595
        %v601 = vmul.f32 %v555, %v593
        %v602 = vmul.f32 %v556, %v597
        %v603 = vmul.f32 %v557, %v595
        %604 = vset.pattern.permute.xlu0 2
        %605 = vperm.xlu0 %604, %v531
        %v606 = vpop.permute.xlu0 %605
        %v608 = vmul.f32 %v606, %v601
        %v609 = vmul.f32 %v606, %v602
        %v610 = vmul.f32 %v606, %v603
        %614 = vrot.lane.b32.xlu0 %v608, 126
        %v615 = vpop.permute.xlu0 %614
        %616 = vrot.lane.b32.xlu0 %v609, 126
        %v617 = vpop.permute.xlu0 %616
        %618 = vrot.lane.b32.xlu0 %v610, 126
        %v619 = vpop.permute.xlu0 %618
        %vm620 = vcmask 1031168
        %v621 = vsel %vm620, %v615, %v617
        %v622 = vsel %vm620, %v617, %v619
        %v625 = vadd.f32 %v579, %v621
        %v626 = vadd.f32 %v580, %v622
        %627 = vrot.lane.b32.xlu0 %v539, 16
        %v628 = vpop.permute.xlu0 %627
        %629 = vrot.lane.b32.xlu0 %v543, 16
        %v630 = vpop.permute.xlu0 %629
        %vm631 = vcmask 130048
        %v632 = vsel %vm631, %v628, %v630
        %v636 = vmul.f32 %v555, %v628
        %v637 = vmul.f32 %v556, %v632
        %v638 = vmul.f32 %v557, %v630
        %639 = vset.pattern.permute.xlu0 3
        %640 = vperm.xlu0 %639, %v531
        %v641 = vpop.permute.xlu0 %640
        %v643 = vmul.f32 %v641, %v636
        %v644 = vmul.f32 %v641, %v637
        %v645 = vmul.f32 %v641, %v638
        %649 = vrot.lane.b32.xlu0 %v643, 112
        %v650 = vpop.permute.xlu0 %649
        %651 = vrot.lane.b32.xlu0 %v644, 112
        %v652 = vpop.permute.xlu0 %651
        %653 = vrot.lane.b32.xlu0 %v645, 112
        %v654 = vpop.permute.xlu0 %653
        %vm655 = vcmask 916480
        %v656 = vsel %vm655, %v650, %v652
        %v657 = vsel %vm655, %v652, %v654
        %v660 = vadd.f32 %v625, %v656
        %v661 = vadd.f32 %v626, %v657
        %662 = vset.pattern.permute.xlu0 4
        %663 = vperm.xlu0 %662, %v531
        %v664 = vpop.permute.xlu0 %663
        %v666 = vmul.f32 %v664, %v555
        %v667 = vmul.f32 %v664, %v556
        %v668 = vmul.f32 %v664, %v557
        %672 = vrot.lane.b32.xlu0 %v666, 111
        %v673 = vpop.permute.xlu0 %672
        %674 = vrot.lane.b32.xlu0 %v667, 111
        %v675 = vpop.permute.xlu0 %674
        %676 = vrot.lane.b32.xlu0 %v668, 111
        %v677 = vpop.permute.xlu0 %676
        %vm678 = vcmask 908288
        %v679 = vsel %vm678, %v673, %v675
        %v680 = vsel %vm678, %v675, %v677
        %v683 = vadd.f32 %v660, %v679
        %v684 = vadd.f32 %v661, %v680
        %685 = vrot.lane.b32.xlu0 %v587, 18
        %v686 = vpop.permute.xlu0 %685
        %687 = vrot.lane.b32.xlu0 %v591, 18
        %v688 = vpop.permute.xlu0 %687
        %vm689 = vcmask 146432
        %v690 = vsel %vm689, %v686, %v688
        %v694 = vmul.f32 %v555, %v686
        %v695 = vmul.f32 %v556, %v690
        %v696 = vmul.f32 %v557, %v688
        %697 = vset.pattern.permute.xlu0 5
        %698 = vperm.xlu0 %697, %v531
        %v699 = vpop.permute.xlu0 %698
        %v701 = vmul.f32 %v699, %v694
        %v702 = vmul.f32 %v699, %v695
        %v703 = vmul.f32 %v699, %v696
        %707 = vrot.lane.b32.xlu0 %v701, 110
        %v708 = vpop.permute.xlu0 %707
        %709 = vrot.lane.b32.xlu0 %v702, 110
        %v710 = vpop.permute.xlu0 %709
        %711 = vrot.lane.b32.xlu0 %v703, 110
        %v712 = vpop.permute.xlu0 %711
        %vm713 = vcmask 900096
        %v714 = vsel %vm713, %v708, %v710
        %v715 = vsel %vm713, %v710, %v712
        %v718 = vadd.f32 %v683, %v714
        %v719 = vadd.f32 %v684, %v715
        %720 = vrot.lane.b32.xlu0 %v539, 32
        %v721 = vpop.permute.xlu0 %720
        %722 = vrot.lane.b32.xlu0 %v543, 32
        %v723 = vpop.permute.xlu0 %722
        %vm724 = vcmask 261120
        %v725 = vsel %vm724, %v721, %v723
        %v729 = vmul.f32 %v555, %v721
        %v730 = vmul.f32 %v556, %v725
        %v731 = vmul.f32 %v557, %v723
        %732 = vset.pattern.permute.xlu0 6
        %733 = vperm.xlu0 %732, %v531
        %v734 = vpop.permute.xlu0 %733
        %v736 = vmul.f32 %v734, %v729
        %v737 = vmul.f32 %v734, %v730
        %v738 = vmul.f32 %v734, %v731
        %742 = vrot.lane.b32.xlu0 %v736, 96
        %v743 = vpop.permute.xlu0 %742
        %744 = vrot.lane.b32.xlu0 %v737, 96
        %v745 = vpop.permute.xlu0 %744
        %746 = vrot.lane.b32.xlu0 %v738, 96
        %v747 = vpop.permute.xlu0 %746
        %vm748 = vcmask 785408
        %v749 = vsel %vm748, %v743, %v745
        %v750 = vsel %vm748, %v745, %v747
        %v753 = vadd.f32 %v718, %v749
        %v754 = vadd.f32 %v719, %v750
        %755 = vset.pattern.permute.xlu0 7
        %756 = vperm.xlu0 %755, %v531
        %v757 = vpop.permute.xlu0 %756
        %v759 = vmul.f32 %v757, %v555
        %v760 = vmul.f32 %v757, %v556
        %v761 = vmul.f32 %v757, %v557
        %765 = vrot.lane.b32.xlu0 %v759, 95
        %v766 = vpop.permute.xlu0 %765
        %767 = vrot.lane.b32.xlu0 %v760, 95
        %v768 = vpop.permute.xlu0 %767
        %769 = vrot.lane.b32.xlu0 %v761, 95
        %v770 = vpop.permute.xlu0 %769
        %vm771 = vcmask 777216
        %v772 = vsel %vm771, %v766, %v768
        %v773 = vsel %vm771, %v768, %v770
        %v776 = vadd.f32 %v753, %v772
        %v777 = vadd.f32 %v754, %v773
        %778 = vrot.lane.b32.xlu0 %v587, 34
        %v779 = vpop.permute.xlu0 %778
        %780 = vrot.lane.b32.xlu0 %v591, 34
        %v781 = vpop.permute.xlu0 %780
        %vm782 = vcmask 277504
        %v783 = vsel %vm782, %v779, %v781
        %v787 = vmul.f32 %v555, %v779
        %v788 = vmul.f32 %v556, %v783
        %v789 = vmul.f32 %v557, %v781
        %790 = vset.pattern.permute.xlu0 8
        %791 = vperm.xlu0 %790, %v531
        %v792 = vpop.permute.xlu0 %791
        %v794 = vmul.f32 %v792, %v787
        %v795 = vmul.f32 %v792, %v788
        %v796 = vmul.f32 %v792, %v789
        %800 = vrot.lane.b32.xlu0 %v794, 94
        %v801 = vpop.permute.xlu0 %800
        %802 = vrot.lane.b32.xlu0 %v795, 94
        %v803 = vpop.permute.xlu0 %802
        %804 = vrot.lane.b32.xlu0 %v796, 94
        %v805 = vpop.permute.xlu0 %804
        %vm806 = vcmask 769024
        %v807 = vsel %vm806, %v801, %v803
        %v808 = vsel %vm806, %v803, %v805
        %v811 = vadd.f32 %v776, %v807
        %v812 = vadd.f32 %v777, %v808
        %v813 = vld [vmem:[%s2] sm:$0xff]
        %815 = vset.pattern.permute.xlu0 0
        %816 = vperm.xlu0 %815, %v813
        %v817 = vpop.permute.xlu0 %816
        %v819 = vadd.f32 %v811, %v817
        %v820 = vadd.f32 %v812, %v817
        %v821 = vld [vmem:[#allocation9] sm:$0xff]
        %v822 = vld [vmem:[%s4] sm:$0xff]
        %824 = vset.pattern.permute.xlu0 0
        %825 = vperm.xlu0 %824, %v822
        %v826 = vpop.permute.xlu0 %825
        %vm828 = vcmask 64512
        %v830 = vsel %vm828, %v821, 0
        %v832 = vand.u32 %v820, 4294901760
        %833 = vmatprep.subr.mxu0 %v832
        %v834 = vand.u32 %v819, 4294901760
        %835 = vmatpush1.msra.mxu0 %v834
        %836 = vmatprep.subr.mxu0 0.0
        %837 = vmatpush1.msra.mxu0 0.0
        %838 = vmatprep.subr.mxu0 0.0
        %839 = vmatpush1.msra.mxu0 0.0
        %840 = vmatprep.subr.mxu0 0.0
        %841 = vmatpush1.msra.mxu0 0.0
        %842 = vmatprep.subr.mxu0 0.0
        %843 = vmatpush1.msra.mxu0 0.0
        %844 = vmatprep.subr.mxu0 0.0
        %845 = vmatpush1.msra.mxu0 0.0
        %846 = vmatprep.subr.mxu0 0.0
        %847 = vmatpush1.msra.mxu0 0.0
        %848 = vmatprep.subr.mxu0 0.0
        %849 = vmatpush1.msra.mxu0 0.0
        %850 = vmatprep.subr.mxu0 0.0
        %851 = vmatpush1.msra.mxu0 0.0
        %852 = vmatprep.subr.mxu0 0.0
        %853 = vmatpush1.msra.mxu0 0.0
        %854 = vmatprep.subr.mxu0 0.0
        %855 = vmatpush1.msra.mxu0 0.0
        %856 = vmatprep.subr.mxu0 0.0
        %857 = vmatpush1.msra.mxu0 0.0
        %858 = vmatprep.subr.mxu0 0.0
        %859 = vmatpush1.msra.mxu0 0.0
        %860 = vmatprep.subr.mxu0 0.0
        %861 = vmatpush1.msra.mxu0 0.0
        %862 = vmatprep.subr.mxu0 0.0
        %863 = vmatpush1.msra.mxu0 0.0
        %864 = vmatprep.subr.mxu0 0.0
        %865 = vmatpush1.msra.mxu0 0.0
        %866 = vmatprep.subr.mxu0 0.0
        %867 = vmatpush1.msra.mxu0 0.0
        %868 = vmatprep.subr.mxu0 0.0
        %869 = vmatpush1.msra.mxu0 0.0
        %870 = vmatprep.subr.mxu0 0.0
        %871 = vmatpush1.msra.mxu0 0.0
        %872 = vmatprep.subr.mxu0 0.0
        %873 = vmatpush1.msra.mxu0 0.0
        %874 = vmatprep.subr.mxu0 0.0
        %875 = vmatpush1.msra.mxu0 0.0
        %876 = vmatprep.subr.mxu0 0.0
        %877 = vmatpush1.msra.mxu0 0.0
        %878 = vmatprep.subr.mxu0 0.0
        %879 = vmatpush1.msra.mxu0 0.0
        %880 = vmatprep.subr.mxu0 0.0
        %881 = vmatpush1.msra.mxu0 0.0
        %882 = vmatprep.subr.mxu0 0.0
        %883 = vmatpush1.msra.mxu0 0.0
        %884 = vmatprep.subr.mxu0 0.0
        %885 = vmatpush1.msra.mxu0 0.0
        %886 = vmatprep.subr.mxu0 0.0
        %887 = vmatpush1.msra.mxu0 0.0
        %888 = vmatprep.subr.mxu0 0.0
        %889 = vmatpush1.msra.mxu0 0.0
        %890 = vmatprep.subr.mxu0 0.0
        %891 = vmatpush1.msra.mxu0 0.0
        %892 = vmatprep.subr.mxu0 0.0
        %893 = vmatpush1.msra.mxu0 0.0
        %894 = vmatprep.subr.mxu0 0.0
        %895 = vmatpush1.msra.mxu0 0.0
        %896 = vmatprep.subr.mxu0 0.0
        %897 = vmatpush1.msra.mxu0 0.0
        %898 = vmatprep.mubr.f32.mxu0 0.0
        %v899 = vand.u32 %v830, 4294901760
        %v900 = vsub.f32 %v830, %v899
        %v901 = vand.u32 %v900, 4294901760
        %v902 = vsub.f32 %v900, %v901
        %v903 = vand.u32 %v902, 4294901760
        %904 = vmatmul.mubr.f32.gmra.mrb[0].mxu0 %v903
        %v905 = vpop.f32.mrb[0].mxu0
        %v906 = vadd.f32 %v826, %v905
        %v907 = vpop.f32.mrb[0].mxu0
        %v908 = vadd.f32 %v826, %v907
        %909 = vdwg.mxu0
        %v910 = vand.u32 %v820, 4294901760
        %v911 = vsub.f32 %v820, %v910
        %v912 = vand.u32 %v911, 4294901760
        %v913 = vsub.f32 %v911, %v912
        %v914 = vand.u32 %v913, 4294901760
        %915 = vmatprep.subr.mxu0 %v914
        %v916 = vand.u32 %v819, 4294901760
        %v917 = vsub.f32 %v819, %v916
        %v918 = vand.u32 %v917, 4294901760
        %v919 = vsub.f32 %v917, %v918
        %v920 = vand.u32 %v919, 4294901760
        %921 = vmatpush1.msra.mxu0 %v920
        %922 = vmatprep.subr.mxu0 0.0
        %923 = vmatpush1.msra.mxu0 0.0
        %924 = vmatprep.subr.mxu0 0.0
        %925 = vmatpush1.msra.mxu0 0.0
        %926 = vmatprep.subr.mxu0 0.0
        %927 = vmatpush1.msra.mxu0 0.0
        %928 = vmatprep.subr.mxu0 0.0
        %929 = vmatpush1.msra.mxu0 0.0
        %930 = vmatprep.subr.mxu0 0.0
        %931 = vmatpush1.msra.mxu0 0.0
        %932 = vmatprep.subr.mxu0 0.0
        %933 = vmatpush1.msra.mxu0 0.0
        %934 = vmatprep.subr.mxu0 0.0
        %935 = vmatpush1.msra.mxu0 0.0
        %936 = vmatprep.subr.mxu0 0.0
        %937 = vmatpush1.msra.mxu0 0.0
        %938 = vmatprep.subr.mxu0 0.0
        %939 = vmatpush1.msra.mxu0 0.0
        %940 = vmatprep.subr.mxu0 0.0
        %941 = vmatpush1.msra.mxu0 0.0
        %942 = vmatprep.subr.mxu0 0.0
        %943 = vmatpush1.msra.mxu0 0.0
        %944 = vmatprep.subr.mxu0 0.0
        %945 = vmatpush1.msra.mxu0 0.0
        %946 = vmatprep.subr.mxu0 0.0
        %947 = vmatpush1.msra.mxu0 0.0
        %948 = vmatprep.subr.mxu0 0.0
        %949 = vmatpush1.msra.mxu0 0.0
        %950 = vmatprep.subr.mxu0 0.0
        %951 = vmatpush1.msra.mxu0 0.0
        %952 = vmatprep.subr.mxu0 0.0
        %953 = vmatpush1.msra.mxu0 0.0
        %954 = vmatprep.subr.mxu0 0.0
        %955 = vmatpush1.msra.mxu0 0.0
        %956 = vmatprep.subr.mxu0 0.0
        %957 = vmatpush1.msra.mxu0 0.0
        %958 = vmatprep.subr.mxu0 0.0
        %959 = vmatpush1.msra.mxu0 0.0
        %960 = vmatprep.subr.mxu0 0.0
        %961 = vmatpush1.msra.mxu0 0.0
        %962 = vmatprep.subr.mxu0 0.0
        %963 = vmatpush1.msra.mxu0 0.0
        %964 = vmatprep.subr.mxu0 0.0
        %965 = vmatpush1.msra.mxu0 0.0
        %966 = vmatprep.subr.mxu0 0.0
        %967 = vmatpush1.msra.mxu0 0.0
        %968 = vmatprep.subr.mxu0 0.0
        %969 = vmatpush1.msra.mxu0 0.0
        %970 = vmatprep.subr.mxu0 0.0
        %971 = vmatpush1.msra.mxu0 0.0
        %972 = vmatprep.subr.mxu0 0.0
        %973 = vmatpush1.msra.mxu0 0.0
        %974 = vmatprep.subr.mxu0 0.0
        %975 = vmatpush1.msra.mxu0 0.0
        %976 = vmatprep.subr.mxu0 0.0
        %977 = vmatpush1.msra.mxu0 0.0
        %978 = vmatprep.subr.mxu0 0.0
        %979 = vmatpush1.msra.mxu0 0.0
        %980 = vmatprep.subr.mxu0 0.0
        %981 = vmatpush1.msra.mxu0 0.0
        %982 = vmatprep.subr.mxu0 0.0
        %983 = vmatpush1.msra.mxu0 0.0
        %984 = vmatprep.mubr.f32.mxu0 0.0
        %v985 = vand.u32 %v830, 4294901760
        %986 = vmatmul.mubr.f32.gmra.mrb[0].mxu0 %v985
        %v987 = vpop.f32.mrb[0].mxu0
        %v988 = vadd.f32 %v906, %v987
        %v989 = vpop.f32.mrb[0].mxu0
        %v990 = vadd.f32 %v908, %v989
        %991 = vdwg.mxu0
        %v992 = vand.u32 %v820, 4294901760
        %v993 = vsub.f32 %v820, %v992
        %994 = vmatprep.subr.mxu0 %v993
        %v995 = vand.u32 %v819, 4294901760
        %v996 = vsub.f32 %v819, %v995
        %997 = vmatpush1.msra.mxu0 %v996
        %998 = vmatprep.subr.mxu0 0.0
        %999 = vmatpush1.msra.mxu0 0.0
        %1000 = vmatprep.subr.mxu0 0.0
        %1001 = vmatpush1.msra.mxu0 0.0
        %1002 = vmatprep.subr.mxu0 0.0
        %1003 = vmatpush1.msra.mxu0 0.0
        %1004 = vmatprep.subr.mxu0 0.0
        %1005 = vmatpush1.msra.mxu0 0.0
        %1006 = vmatprep.subr.mxu0 0.0
        %1007 = vmatpush1.msra.mxu0 0.0
        %1008 = vmatprep.subr.mxu0 0.0
        %1009 = vmatpush1.msra.mxu0 0.0
        %1010 = vmatprep.subr.mxu0 0.0
        %1011 = vmatpush1.msra.mxu0 0.0
        %1012 = vmatprep.subr.mxu0 0.0
        %1013 = vmatpush1.msra.mxu0 0.0
        %1014 = vmatprep.subr.mxu0 0.0
        %1015 = vmatpush1.msra.mxu0 0.0
        %1016 = vmatprep.subr.mxu0 0.0
        %1017 = vmatpush1.msra.mxu0 0.0
        %1018 = vmatprep.subr.mxu0 0.0
        %1019 = vmatpush1.msra.mxu0 0.0
        %1020 = vmatprep.subr.mxu0 0.0
        %1021 = vmatpush1.msra.mxu0 0.0
        %1022 = vmatprep.subr.mxu0 0.0
        %1023 = vmatpush1.msra.mxu0 0.0
        %1024 = vmatprep.subr.mxu0 0.0
        %1025 = vmatpush1.msra.mxu0 0.0
        %1026 = vmatprep.subr.mxu0 0.0
        %1027 = vmatpush1.msra.mxu0 0.0
        %1028 = vmatprep.subr.mxu0 0.0
        %1029 = vmatpush1.msra.mxu0 0.0
        %1030 = vmatprep.subr.mxu0 0.0
        %1031 = vmatpush1.msra.mxu0 0.0
        %1032 = vmatprep.subr.mxu0 0.0
        %1033 = vmatpush1.msra.mxu0 0.0
        %1034 = vmatprep.subr.mxu0 0.0
        %1035 = vmatpush1.msra.mxu0 0.0
        %1036 = vmatprep.subr.mxu0 0.0
        %1037 = vmatpush1.msra.mxu0 0.0
        %1038 = vmatprep.subr.mxu0 0.0
        %1039 = vmatpush1.msra.mxu0 0.0
        %1040 = vmatprep.subr.mxu0 0.0
        %1041 = vmatpush1.msra.mxu0 0.0
        %1042 = vmatprep.subr.mxu0 0.0
        %1043 = vmatpush1.msra.mxu0 0.0
        %1044 = vmatprep.subr.mxu0 0.0
        %1045 = vmatpush1.msra.mxu0 0.0
        %1046 = vmatprep.subr.mxu0 0.0
        %1047 = vmatpush1.msra.mxu0 0.0
        %1048 = vmatprep.subr.mxu0 0.0
        %1049 = vmatpush1.msra.mxu0 0.0
        %1050 = vmatprep.subr.mxu0 0.0
        %1051 = vmatpush1.msra.mxu0 0.0
        %1052 = vmatprep.subr.mxu0 0.0
        %1053 = vmatpush1.msra.mxu0 0.0
        %1054 = vmatprep.subr.mxu0 0.0
        %1055 = vmatpush1.msra.mxu0 0.0
        %1056 = vmatprep.subr.mxu0 0.0
        %1057 = vmatpush1.msra.mxu0 0.0
        %1058 = vmatprep.subr.mxu0 0.0
        %1059 = vmatpush1.msra.mxu0 0.0
        %1060 = vmatprep.mubr.f32.mxu0 0.0
        %v1061 = vand.u32 %v830, 4294901760
        %v1062 = vsub.f32 %v830, %v1061
        %1063 = vmatmul.mubr.f32.gmra.mrb[0].mxu0 %v1062
        %v1064 = vpop.f32.mrb[0].mxu0
        %v1065 = vadd.f32 %v988, %v1064
        %v1066 = vpop.f32.mrb[0].mxu0
        %v1067 = vadd.f32 %v990, %v1066
        %1068 = vdwg.mxu0
        %v1069 = vand.u32 %v820, 4294901760
        %1070 = vmatprep.subr.mxu0 %v1069
        %v1071 = vand.u32 %v819, 4294901760
        %1072 = vmatpush1.msra.mxu0 %v1071
        %1073 = vmatprep.subr.mxu0 0.0
        %1074 = vmatpush1.msra.mxu0 0.0
        %1075 = vmatprep.subr.mxu0 0.0
        %1076 = vmatpush1.msra.mxu0 0.0
        %1077 = vmatprep.subr.mxu0 0.0
        %1078 = vmatpush1.msra.mxu0 0.0
        %1079 = vmatprep.subr.mxu0 0.0
        %1080 = vmatpush1.msra.mxu0 0.0
        %1081 = vmatprep.subr.mxu0 0.0
        %1082 = vmatpush1.msra.mxu0 0.0
        %1083 = vmatprep.subr.mxu0 0.0
        %1084 = vmatpush1.msra.mxu0 0.0
        %1085 = vmatprep.subr.mxu0 0.0
        %1086 = vmatpush1.msra.mxu0 0.0
        %1087 = vmatprep.subr.mxu0 0.0
        %1088 = vmatpush1.msra.mxu0 0.0
        %1089 = vmatprep.subr.mxu0 0.0
        %1090 = vmatpush1.msra.mxu0 0.0
        %1091 = vmatprep.subr.mxu0 0.0
        %1092 = vmatpush1.msra.mxu0 0.0
        %1093 = vmatprep.subr.mxu0 0.0
        %1094 = vmatpush1.msra.mxu0 0.0
        %1095 = vmatprep.subr.mxu0 0.0
        %1096 = vmatpush1.msra.mxu0 0.0
        %1097 = vmatprep.subr.mxu0 0.0
        %1098 = vmatpush1.msra.mxu0 0.0
        %1099 = vmatprep.subr.mxu0 0.0
        %1100 = vmatpush1.msra.mxu0 0.0
        %1101 = vmatprep.subr.mxu0 0.0
        %1102 = vmatpush1.msra.mxu0 0.0
        %1103 = vmatprep.subr.mxu0 0.0
        %1104 = vmatpush1.msra.mxu0 0.0
        %1105 = vmatprep.subr.mxu0 0.0
        %1106 = vmatpush1.msra.mxu0 0.0
        %1107 = vmatprep.subr.mxu0 0.0
        %1108 = vmatpush1.msra.mxu0 0.0
        %1109 = vmatprep.subr.mxu0 0.0
        %1110 = vmatpush1.msra.mxu0 0.0
        %1111 = vmatprep.subr.mxu0 0.0
        %1112 = vmatpush1.msra.mxu0 0.0
        %1113 = vmatprep.subr.mxu0 0.0
        %1114 = vmatpush1.msra.mxu0 0.0
        %1115 = vmatprep.subr.mxu0 0.0
        %1116 = vmatpush1.msra.mxu0 0.0
        %1117 = vmatprep.subr.mxu0 0.0
        %1118 = vmatpush1.msra.mxu0 0.0
        %1119 = vmatprep.subr.mxu0 0.0
        %1120 = vmatpush1.msra.mxu0 0.0
        %1121 = vmatprep.subr.mxu0 0.0
        %1122 = vmatpush1.msra.mxu0 0.0
        %1123 = vmatprep.subr.mxu0 0.0
        %1124 = vmatpush1.msra.mxu0 0.0
        %1125 = vmatprep.subr.mxu0 0.0
        %1126 = vmatpush1.msra.mxu0 0.0
        %1127 = vmatprep.subr.mxu0 0.0
        %1128 = vmatpush1.msra.mxu0 0.0
        %1129 = vmatprep.subr.mxu0 0.0
        %1130 = vmatpush1.msra.mxu0 0.0
        %1131 = vmatprep.subr.mxu0 0.0
        %1132 = vmatpush1.msra.mxu0 0.0
        %1133 = vmatprep.subr.mxu0 0.0
        %1134 = vmatpush1.msra.mxu0 0.0
        %1135 = vmatprep.mubr.f32.mxu0 0.0
        %v1136 = vand.u32 %v830, 4294901760
        %v1137 = vsub.f32 %v830, %v1136
        %v1138 = vand.u32 %v1137, 4294901760
        %1139 = vmatmul.mubr.f32.gmra.mrb[0].mxu0 %v1138
        %v1140 = vpop.f32.mrb[0].mxu0
        %v1141 = vadd.f32 %v1065, %v1140
        %v1142 = vpop.f32.mrb[0].mxu0
        %v1143 = vadd.f32 %v1067, %v1142
        %1144 = vdwg.mxu0
        %v1145 = vand.u32 %v820, 4294901760
        %v1146 = vsub.f32 %v820, %v1145
        %v1147 = vand.u32 %v1146, 4294901760
        %1148 = vmatprep.subr.mxu0 %v1147
        %v1149 = vand.u32 %v819, 4294901760
        %v1150 = vsub.f32 %v819, %v1149
        %v1151 = vand.u32 %v1150, 4294901760
        %1152 = vmatpush1.msra.mxu0 %v1151
        %1153 = vmatprep.subr.mxu0 0.0
        %1154 = vmatpush1.msra.mxu0 0.0
        %1155 = vmatprep.subr.mxu0 0.0
        %1156 = vmatpush1.msra.mxu0 0.0
        %1157 = vmatprep.subr.mxu0 0.0
        %1158 = vmatpush1.msra.mxu0 0.0
        %1159 = vmatprep.subr.mxu0 0.0
        %1160 = vmatpush1.msra.mxu0 0.0
        %1161 = vmatprep.subr.mxu0 0.0
        %1162 = vmatpush1.msra.mxu0 0.0
        %1163 = vmatprep.subr.mxu0 0.0
        %1164 = vmatpush1.msra.mxu0 0.0
        %1165 = vmatprep.subr.mxu0 0.0
        %1166 = vmatpush1.msra.mxu0 0.0
        %1167 = vmatprep.subr.mxu0 0.0
        %1168 = vmatpush1.msra.mxu0 0.0
        %1169 = vmatprep.subr.mxu0 0.0
        %1170 = vmatpush1.msra.mxu0 0.0
        %1171 = vmatprep.subr.mxu0 0.0
        %1172 = vmatpush1.msra.mxu0 0.0
        %1173 = vmatprep.subr.mxu0 0.0
        %1174 = vmatpush1.msra.mxu0 0.0
        %1175 = vmatprep.subr.mxu0 0.0
        %1176 = vmatpush1.msra.mxu0 0.0
        %1177 = vmatprep.subr.mxu0 0.0
        %1178 = vmatpush1.msra.mxu0 0.0
        %1179 = vmatprep.subr.mxu0 0.0
        %1180 = vmatpush1.msra.mxu0 0.0
        %1181 = vmatprep.subr.mxu0 0.0
        %1182 = vmatpush1.msra.mxu0 0.0
        %1183 = vmatprep.subr.mxu0 0.0
        %1184 = vmatpush1.msra.mxu0 0.0
        %1185 = vmatprep.subr.mxu0 0.0
        %1186 = vmatpush1.msra.mxu0 0.0
        %1187 = vmatprep.subr.mxu0 0.0
        %1188 = vmatpush1.msra.mxu0 0.0
        %1189 = vmatprep.subr.mxu0 0.0
        %1190 = vmatpush1.msra.mxu0 0.0
        %1191 = vmatprep.subr.mxu0 0.0
        %1192 = vmatpush1.msra.mxu0 0.0
        %1193 = vmatprep.subr.mxu0 0.0
        %1194 = vmatpush1.msra.mxu0 0.0
        %1195 = vmatprep.subr.mxu0 0.0
        %1196 = vmatpush1.msra.mxu0 0.0
        %1197 = vmatprep.subr.mxu0 0.0
        %1198 = vmatpush1.msra.mxu0 0.0
        %1199 = vmatprep.subr.mxu0 0.0
        %1200 = vmatpush1.msra.mxu0 0.0
        %1201 = vmatprep.subr.mxu0 0.0
        %1202 = vmatpush1.msra.mxu0 0.0
        %1203 = vmatprep.subr.mxu0 0.0
        %1204 = vmatpush1.msra.mxu0 0.0
        %1205 = vmatprep.subr.mxu0 0.0
        %1206 = vmatpush1.msra.mxu0 0.0
        %1207 = vmatprep.subr.mxu0 0.0
        %1208 = vmatpush1.msra.mxu0 0.0
        %1209 = vmatprep.subr.mxu0 0.0
        %1210 = vmatpush1.msra.mxu0 0.0
        %1211 = vmatprep.subr.mxu0 0.0
        %1212 = vmatpush1.msra.mxu0 0.0
        %1213 = vmatprep.subr.mxu0 0.0
        %1214 = vmatpush1.msra.mxu0 0.0
        %1215 = vmatprep.mubr.f32.mxu0 0.0
        %v1216 = vand.u32 %v830, 4294901760
        %1217 = vmatmul.mubr.f32.gmra.mrb[0].mxu0 %v1216
        %v1218 = vpop.f32.mrb[0].mxu0
        %v1219 = vadd.f32 %v1141, %v1218
        %v1220 = vpop.f32.mrb[0].mxu0
        %v1221 = vadd.f32 %v1143, %v1220
        %1222 = vdwg.mxu0
        %v1223 = vand.u32 %v820, 4294901760
        %1224 = vmatprep.subr.mxu0 %v1223
        %v1225 = vand.u32 %v819, 4294901760
        %1226 = vmatpush1.msra.mxu0 %v1225
        %1227 = vmatprep.subr.mxu0 0.0
        %1228 = vmatpush1.msra.mxu0 0.0
        %1229 = vmatprep.subr.mxu0 0.0
        %1230 = vmatpush1.msra.mxu0 0.0
        %1231 = vmatprep.subr.mxu0 0.0
        %1232 = vmatpush1.msra.mxu0 0.0
        %1233 = vmatprep.subr.mxu0 0.0
        %1234 = vmatpush1.msra.mxu0 0.0
        %1235 = vmatprep.subr.mxu0 0.0
        %1236 = vmatpush1.msra.mxu0 0.0
        %1237 = vmatprep.subr.mxu0 0.0
        %1238 = vmatpush1.msra.mxu0 0.0
        %1239 = vmatprep.subr.mxu0 0.0
        %1240 = vmatpush1.msra.mxu0 0.0
        %1241 = vmatprep.subr.mxu0 0.0
        %1242 = vmatpush1.msra.mxu0 0.0
        %1243 = vmatprep.subr.mxu0 0.0
        %1244 = vmatpush1.msra.mxu0 0.0
        %1245 = vmatprep.subr.mxu0 0.0
        %1246 = vmatpush1.msra.mxu0 0.0
        %1247 = vmatprep.subr.mxu0 0.0
        %1248 = vmatpush1.msra.mxu0 0.0
        %1249 = vmatprep.subr.mxu0 0.0
        %1250 = vmatpush1.msra.mxu0 0.0
        %1251 = vmatprep.subr.mxu0 0.0
        %1252 = vmatpush1.msra.mxu0 0.0
        %1253 = vmatprep.subr.mxu0 0.0
        %1254 = vmatpush1.msra.mxu0 0.0
        %1255 = vmatprep.subr.mxu0 0.0
        %1256 = vmatpush1.msra.mxu0 0.0
        %1257 = vmatprep.subr.mxu0 0.0
        %1258 = vmatpush1.msra.mxu0 0.0
        %1259 = vmatprep.subr.mxu0 0.0
        %1260 = vmatpush1.msra.mxu0 0.0
        %1261 = vmatprep.subr.mxu0 0.0
        %1262 = vmatpush1.msra.mxu0 0.0
        %1263 = vmatprep.subr.mxu0 0.0
        %1264 = vmatpush1.msra.mxu0 0.0
        %1265 = vmatprep.subr.mxu0 0.0
        %1266 = vmatpush1.msra.mxu0 0.0
        %1267 = vmatprep.subr.mxu0 0.0
        %1268 = vmatpush1.msra.mxu0 0.0
        %1269 = vmatprep.subr.mxu0 0.0
        %1270 = vmatpush1.msra.mxu0 0.0
        %1271 = vmatprep.subr.mxu0 0.0
        %1272 = vmatpush1.msra.mxu0 0.0
        %1273 = vmatprep.subr.mxu0 0.0
        %1274 = vmatpush1.msra.mxu0 0.0
        %1275 = vmatprep.subr.mxu0 0.0
        %1276 = vmatpush1.msra.mxu0 0.0
        %1277 = vmatprep.subr.mxu0 0.0
        %1278 = vmatpush1.msra.mxu0 0.0
        %1279 = vmatprep.subr.mxu0 0.0
        %1280 = vmatpush1.msra.mxu0 0.0
        %1281 = vmatprep.subr.mxu0 0.0
        %1282 = vmatpush1.msra.mxu0 0.0
        %1283 = vmatprep.subr.mxu0 0.0
        %1284 = vmatpush1.msra.mxu0 0.0
        %1285 = vmatprep.subr.mxu0 0.0
        %1286 = vmatpush1.msra.mxu0 0.0
        %1287 = vmatprep.subr.mxu0 0.0
        %1288 = vmatpush1.msra.mxu0 0.0
        %1289 = vmatprep.mubr.f32.mxu0 0.0
        %v1290 = vand.u32 %v830, 4294901760
        %1291 = vmatmul.mubr.f32.gmra.mrb[0].mxu0 %v1290
        %v1292 = vpop.f32.mrb[0].mxu0
        %v1293 = vadd.f32 %v1219, %v1292
        %v1294 = vpop.f32.mrb[0].mxu0
        %v1295 = vadd.f32 %v1221, %v1294
        %1296 = vdwg.mxu0
        %v1297 = vmax.f32 %v1293, 0.0
        %v1298 = vmax.f32 %v1295, 0.0
        %v1299 = vmin.f32 %v1297, 6.0
        %v1300 = vmin.f32 %v1298, 6.0
        %1303 = vrot.lane.b32.xlu0 %v1299, 17
        %v1304 = vpop.permute.xlu0 %1303
        %1305 = vrot.lane.b32.xlu0 %v1300, 17
        %v1306 = vpop.permute.xlu0 %1305
        %v1307 = vsel %vm507, %v1304, %v1306
        %1311 = vst.msk [vmem:[#allocation2] sm:$0xff] %vm527, %v1304
        %1312 = vst [vmem:[#allocation2 + $0x8] sm:$0xff] %v1307
        %1313 = vst.msk [vmem:[#allocation2 + $0x10] sm:$0xff] %vm507, %v1306
        %v1314 = vld [vmem:[#allocation10] sm:$0xff]
        %v1315 = vld [vmem:[#allocation2] sm:$0xff]
        %v1316 = vld [vmem:[#allocation2 + $0x8] sm:$0xff]
        %v1317 = vld [vmem:[#allocation12] ss:$2 sm:$0x3]
        %v1319 = vlaneseq
        %v1320 = vshrl.u32 %v1319, 7
        %v1321 = vsub.s32 0, %v1320
        %v1322 = vrot.slane %v1317, %v1321
        %v1323 = vlaneseq
        %v1324 = vshrl.u32 %v1323, 7
        %v1325 = vsub.s32 1, %v1324
        %v1326 = vrot.slane %v1317, %v1325
        %v1329 = vmul.f32 %v1315, %v1322
        %v1330 = vmul.f32 %v1316, %v1326
        %1332 = vset.pattern.permute.xlu0 0
        %1333 = vperm.xlu0 %1332, %v1314
        %v1334 = vpop.permute.xlu0 %1333
        %v1336 = vmul.f32 %v1334, %v1329
        %v1337 = vmul.f32 %v1334, %v1330
        %v1338 = vld [vmem:[#allocation2] sm:$0xff]
        %v1339 = vld [vmem:[#allocation2 + $0x8] sm:$0xff]
        %v1340 = vld [vmem:[#allocation2 + $0x10] sm:$0xff]
        %1341 = vset.pattern.permute.xlu0 1
        %1342 = vperm.xlu0 %1341, %v1314
        %v1343 = vpop.permute.xlu0 %1342
        %v1345 = vmul.f32 %v1343, %v1338
        %v1346 = vmul.f32 %v1343, %v1339
        %v1347 = vmul.f32 %v1343, %v1340
        %1351 = vrot.lane.b32.xlu0 %v1345, 127
        %v1352 = vpop.permute.xlu0 %1351
        %1353 = vrot.lane.b32.xlu0 %v1346, 127
        %v1354 = vpop.permute.xlu0 %1353
        %1355 = vrot.lane.b32.xlu0 %v1347, 127
        %v1356 = vpop.permute.xlu0 %1355
        %v1357 = vsel %vm574, %v1352, %v1354
        %v1358 = vsel %vm574, %v1354, %v1356
        %v1361 = vadd.f32 %v1336, %v1357
        %v1362 = vadd.f32 %v1337, %v1358
        %v1363 = vld [vmem:[%s581] ss:$2 sm:$0x3]
        %v1365 = vlaneseq
        %v1366 = vshrl.u32 %v1365, 7
        %v1367 = vsub.s32 0, %v1366
        %v1368 = vrot.slane %v1363, %v1367
        %v1369 = vlaneseq
        %v1370 = vshrl.u32 %v1369, 7
        %v1371 = vsub.s32 1, %v1370
        %v1372 = vrot.slane %v1363, %v1371
        %1373 = vrot.lane.b32.xlu0 %v1368, 2
        %v1374 = vpop.permute.xlu0 %1373
        %1375 = vrot.lane.b32.xlu0 %v1372, 2
        %v1376 = vpop.permute.xlu0 %1375
        %v1377 = vsel %vm596, %v1374, %v1376
        %v1381 = vmul.f32 %v1338, %v1374
        %v1382 = vmul.f32 %v1339, %v1377
        %v1383 = vmul.f32 %v1340, %v1376
        %1384 = vset.pattern.permute.xlu0 2
        %1385 = vperm.xlu0 %1384, %v1314
        %v1386 = vpop.permute.xlu0 %1385
        %v1388 = vmul.f32 %v1386, %v1381
        %v1389 = vmul.f32 %v1386, %v1382
        %v1390 = vmul.f32 %v1386, %v1383
        %1394 = vrot.lane.b32.xlu0 %v1388, 126
        %v1395 = vpop.permute.xlu0 %1394
        %1396 = vrot.lane.b32.xlu0 %v1389, 126
        %v1397 = vpop.permute.xlu0 %1396
        %1398 = vrot.lane.b32.xlu0 %v1390, 126
        %v1399 = vpop.permute.xlu0 %1398
        %v1400 = vsel %vm620, %v1395, %v1397
        %v1401 = vsel %vm620, %v1397, %v1399
        %v1404 = vadd.f32 %v1361, %v1400
        %v1405 = vadd.f32 %v1362, %v1401
        %1406 = vrot.lane.b32.xlu0 %v1322, 16
        %v1407 = vpop.permute.xlu0 %1406
        %1408 = vrot.lane.b32.xlu0 %v1326, 16
        %v1409 = vpop.permute.xlu0 %1408
        %v1410 = vsel %vm631, %v1407, %v1409
        %v1414 = vmul.f32 %v1338, %v1407
        %v1415 = vmul.f32 %v1339, %v1410
        %v1416 = vmul.f32 %v1340, %v1409
        %1417 = vset.pattern.permute.xlu0 3
        %1418 = vperm.xlu0 %1417, %v1314
        %v1419 = vpop.permute.xlu0 %1418
        %v1421 = vmul.f32 %v1419, %v1414
        %v1422 = vmul.f32 %v1419, %v1415
        %v1423 = vmul.f32 %v1419, %v1416
        %1427 = vrot.lane.b32.xlu0 %v1421, 112
        %v1428 = vpop.permute.xlu0 %1427
        %1429 = vrot.lane.b32.xlu0 %v1422, 112
        %v1430 = vpop.permute.xlu0 %1429
        %1431 = vrot.lane.b32.xlu0 %v1423, 112
        %v1432 = vpop.permute.xlu0 %1431
        %v1433 = vsel %vm655, %v1428, %v1430
        %v1434 = vsel %vm655, %v1430, %v1432
        %v1437 = vadd.f32 %v1404, %v1433
        %v1438 = vadd.f32 %v1405, %v1434
        %1439 = vset.pattern.permute.xlu0 4
        %1440 = vperm.xlu0 %1439, %v1314
        %v1441 = vpop.permute.xlu0 %1440
        %v1443 = vmul.f32 %v1441, %v1338
        %v1444 = vmul.f32 %v1441, %v1339
        %v1445 = vmul.f32 %v1441, %v1340
        %1449 = vrot.lane.b32.xlu0 %v1443, 111
        %v1450 = vpop.permute.xlu0 %1449
        %1451 = vrot.lane.b32.xlu0 %v1444, 111
        %v1452 = vpop.permute.xlu0 %1451
        %1453 = vrot.lane.b32.xlu0 %v1445, 111
        %v1454 = vpop.permute.xlu0 %1453
        %v1455 = vsel %vm678, %v1450, %v1452
        %v1456 = vsel %vm678, %v1452, %v1454
        %v1459 = vadd.f32 %v1437, %v1455
        %v1460 = vadd.f32 %v1438, %v1456
        %1461 = vrot.lane.b32.xlu0 %v1368, 18
        %v1462 = vpop.permute.xlu0 %1461
        %1463 = vrot.lane.b32.xlu0 %v1372, 18
        %v1464 = vpop.permute.xlu0 %1463
        %v1465 = vsel %vm689, %v1462, %v1464
        %v1469 = vmul.f32 %v1338, %v1462
        %v1470 = vmul.f32 %v1339, %v1465
        %v1471 = vmul.f32 %v1340, %v1464
        %1472 = vset.pattern.permute.xlu0 5
        %1473 = vperm.xlu0 %1472, %v1314
        %v1474 = vpop.permute.xlu0 %1473
        %v1476 = vmul.f32 %v1474, %v1469
        %v1477 = vmul.f32 %v1474, %v1470
        %v1478 = vmul.f32 %v1474, %v1471
        %1482 = vrot.lane.b32.xlu0 %v1476, 110
        %v1483 = vpop.permute.xlu0 %1482
        %1484 = vrot.lane.b32.xlu0 %v1477, 110
        %v1485 = vpop.permute.xlu0 %1484
        %1486 = vrot.lane.b32.xlu0 %v1478, 110
        %v1487 = vpop.permute.xlu0 %1486
        %v1488 = vsel %vm713, %v1483, %v1485
        %v1489 = vsel %vm713, %v1485, %v1487
        %v1492 = vadd.f32 %v1459, %v1488
        %v1493 = vadd.f32 %v1460, %v1489
        %1494 = vrot.lane.b32.xlu0 %v1322, 32
        %v1495 = vpop.permute.xlu0 %1494
        %1496 = vrot.lane.b32.xlu0 %v1326, 32
        %v1497 = vpop.permute.xlu0 %1496
        %v1498 = vsel %vm724, %v1495, %v1497
        %v1502 = vmul.f32 %v1338, %v1495
        %v1503 = vmul.f32 %v1339, %v1498
        %v1504 = vmul.f32 %v1340, %v1497
        %1505 = vset.pattern.permute.xlu0 6
        %1506 = vperm.xlu0 %1505, %v1314
        %v1507 = vpop.permute.xlu0 %1506
        %v1509 = vmul.f32 %v1507, %v1502
        %v1510 = vmul.f32 %v1507, %v1503
        %v1511 = vmul.f32 %v1507, %v1504
        %1515 = vrot.lane.b32.xlu0 %v1509, 96
        %v1516 = vpop.permute.xlu0 %1515
        %1517 = vrot.lane.b32.xlu0 %v1510, 96
        %v1518 = vpop.permute.xlu0 %1517
        %1519 = vrot.lane.b32.xlu0 %v1511, 96
        %v1520 = vpop.permute.xlu0 %1519
        %v1521 = vsel %vm748, %v1516, %v1518
        %v1522 = vsel %vm748, %v1518, %v1520
        %v1525 = vadd.f32 %v1492, %v1521
        %v1526 = vadd.f32 %v1493, %v1522
        %1527 = vset.pattern.permute.xlu0 7
        %1528 = vperm.xlu0 %1527, %v1314
        %v1529 = vpop.permute.xlu0 %1528
        %v1531 = vmul.f32 %v1529, %v1338
        %v1532 = vmul.f32 %v1529, %v1339
        %v1533 = vmul.f32 %v1529, %v1340
        %1537 = vrot.lane.b32.xlu0 %v1531, 95
        %v1538 = vpop.permute.xlu0 %1537
        %1539 = vrot.lane.b32.xlu0 %v1532, 95
        %v1540 = vpop.permute.xlu0 %1539
        %1541 = vrot.lane.b32.xlu0 %v1533, 95
        %v1542 = vpop.permute.xlu0 %1541
        %v1543 = vsel %vm771, %v1538, %v1540
        %v1544 = vsel %vm771, %v1540, %v1542
        %v1547 = vadd.f32 %v1525, %v1543
        %v1548 = vadd.f32 %v1526, %v1544
        %1549 = vrot.lane.b32.xlu0 %v1368, 34
        %v1550 = vpop.permute.xlu0 %1549
        %1551 = vrot.lane.b32.xlu0 %v1372, 34
        %v1552 = vpop.permute.xlu0 %1551
        %v1553 = vsel %vm782, %v1550, %v1552
        %v1557 = vmul.f32 %v1338, %v1550
        %v1558 = vmul.f32 %v1339, %v1553
        %v1559 = vmul.f32 %v1340, %v1552
        %1560 = vset.pattern.permute.xlu0 8
        %1561 = vperm.xlu0 %1560, %v1314
        %v1562 = vpop.permute.xlu0 %1561
        %v1564 = vmul.f32 %v1562, %v1557
        %v1565 = vmul.f32 %v1562, %v1558
        %v1566 = vmul.f32 %v1562, %v1559
        %1570 = vrot.lane.b32.xlu0 %v1564, 94
        %v1571 = vpop.permute.xlu0 %1570
        %1572 = vrot.lane.b32.xlu0 %v1565, 94
        %v1573 = vpop.permute.xlu0 %1572
        %1574 = vrot.lane.b32.xlu0 %v1566, 94
        %v1575 = vpop.permute.xlu0 %1574
        %v1576 = vsel %vm806, %v1571, %v1573
        %v1577 = vsel %vm806, %v1573, %v1575
        %v1580 = vadd.f32 %v1547, %v1576
        %v1581 = vadd.f32 %v1548, %v1577
        %v1582 = vld [vmem:[%s6] sm:$0xff]
        %v1583 = vld [vmem:[%s6 + $0x8] sm:$0xff]
        %v1584 = vld [vmem:[%s7] sm:$0xff]
        %v1585 = vld [vmem:[%s7 + $0x8] sm:$0xff]
        %1587 = vset.pattern.permute.xlu0 0
        %1588 = vperm.xlu0 %1587, %v1584
        %v1589 = vpop.permute.xlu0 %1588
        %1592 = vset.pattern.permute.xlu0 0
        %1593 = vperm.xlu0 %1592, %v1585
        %v1594 = vpop.permute.xlu0 %1593
        %v1597 = vsel %vm828, %v1582, 0
        %v1600 = vsel %vm828, %v1583, 0
        %v1602 = vand.u32 %v1581, 4294901760
        %1603 = vmatprep.subr.mxu0 %v1602
        %v1604 = vand.u32 %v1580, 4294901760
        %1605 = vmatpush1.msra.mxu0 %v1604
        %1606 = vmatprep.subr.mxu0 0.0
        %1607 = vmatpush1.msra.mxu0 0.0
        %1608 = vmatprep.subr.mxu0 0.0
        %1609 = vmatpush1.msra.mxu0 0.0
        %1610 = vmatprep.subr.mxu0 0.0
        %1611 = vmatpush1.msra.mxu0 0.0
        %1612 = vmatprep.subr.mxu0 0.0
        %1613 = vmatpush1.msra.mxu0 0.0
        %1614 = vmatprep.subr.mxu0 0.0
        %1615 = vmatpush1.msra.mxu0 0.0
        %1616 = vmatprep.subr.mxu0 0.0
        %1617 = vmatpush1.msra.mxu0 0.0
        %1618 = vmatprep.subr.mxu0 0.0
        %1619 = vmatpush1.msra.mxu0 0.0
        %1620 = vmatprep.subr.mxu0 0.0
        %1621 = vmatpush1.msra.mxu0 0.0
        %1622 = vmatprep.subr.mxu0 0.0
        %1623 = vmatpush1.msra.mxu0 0.0
        %1624 = vmatprep.subr.mxu0 0.0
        %1625 = vmatpush1.msra.mxu0 0.0
        %1626 = vmatprep.subr.mxu0 0.0
        %1627 = vmatpush1.msra.mxu0 0.0
        %1628 = vmatprep.subr.mxu0 0.0
        %1629 = vmatpush1.msra.mxu0 0.0
        %1630 = vmatprep.subr.mxu0 0.0
        %1631 = vmatpush1.msra.mxu0 0.0
        %1632 = vmatprep.subr.mxu0 0.0
        %1633 = vmatpush1.msra.mxu0 0.0
        %1634 = vmatprep.subr.mxu0 0.0
        %1635 = vmatpush1.msra.mxu0 0.0
        %1636 = vmatprep.subr.mxu0 0.0
        %1637 = vmatpush1.msra.mxu0 0.0
        %1638 = vmatprep.subr.mxu0 0.0
        %1639 = vmatpush1.msra.mxu0 0.0
        %1640 = vmatprep.subr.mxu0 0.0
        %1641 = vmatpush1.msra.mxu0 0.0
        %1642 = vmatprep.subr.mxu0 0.0
        %1643 = vmatpush1.msra.mxu0 0.0
        %1644 = vmatprep.subr.mxu0 0.0
        %1645 = vmatpush1.msra.mxu0 0.0
        %1646 = vmatprep.subr.mxu0 0.0
        %1647 = vmatpush1.msra.mxu0 0.0
        %1648 = vmatprep.subr.mxu0 0.0
        %1649 = vmatpush1.msra.mxu0 0.0
        %1650 = vmatprep.subr.mxu0 0.0
        %1651 = vmatpush1.msra.mxu0 0.0
        %1652 = vmatprep.subr.mxu0 0.0
        %1653 = vmatpush1.msra.mxu0 0.0
        %1654 = vmatprep.subr.mxu0 0.0
        %1655 = vmatpush1.msra.mxu0 0.0
        %1656 = vmatprep.subr.mxu0 0.0
        %1657 = vmatpush1.msra.mxu0 0.0
        %1658 = vmatprep.subr.mxu0 0.0
        %1659 = vmatpush1.msra.mxu0 0.0
        %1660 = vmatprep.subr.mxu0 0.0
        %1661 = vmatpush1.msra.mxu0 0.0
        %1662 = vmatprep.subr.mxu0 0.0
        %1663 = vmatpush1.msra.mxu0 0.0
        %1664 = vmatprep.subr.mxu0 0.0
        %1665 = vmatpush1.msra.mxu0 0.0
        %1666 = vmatprep.subr.mxu0 0.0
        %1667 = vmatpush1.msra.mxu0 0.0
        %1668 = vmatprep.mubr.f32.mxu0 0.0
        %v1669 = vand.u32 %v1597, 4294901760
        %v1670 = vsub.f32 %v1597, %v1669
        %v1671 = vand.u32 %v1670, 4294901760
        %v1672 = vsub.f32 %v1670, %v1671
        %v1673 = vand.u32 %v1672, 4294901760
        %1674 = vmatmul.mubr.f32.gmra.mrb[0].mxu0 %v1673
        %v1675 = vpop.f32.mrb[0].mxu0
        %v1676 = vadd.f32 %v1589, %v1675
        %v1677 = vpop.f32.mrb[0].mxu0
        %v1678 = vadd.f32 %v1589, %v1677
        %1679 = vmatprep.mubr.f32.mxu0 0.0
        %v1680 = vand.u32 %v1600, 4294901760
        %v1681 = vsub.f32 %v1600, %v1680
        %v1682 = vand.u32 %v1681, 4294901760
        %v1683 = vsub.f32 %v1681, %v1682
        %v1684 = vand.u32 %v1683, 4294901760
        %1685 = vmatmul.mubr.f32.gmra.mrb[0].mxu0 %v1684
        %v1686 = vpop.f32.mrb[0].mxu0
        %v1687 = vadd.f32 %v1594, %v1686
        %v1688 = vpop.f32.mrb[0].mxu0
        %v1689 = vadd.f32 %v1594, %v1688
        %1690 = vdwg.mxu0
        %v1691 = vand.u32 %v1581, 4294901760
        %v1692 = vsub.f32 %v1581, %v1691
        %v1693 = vand.u32 %v1692, 4294901760
        %v1694 = vsub.f32 %v1692, %v1693
        %v1695 = vand.u32 %v1694, 4294901760
        %1696 = vmatprep.subr.mxu0 %v1695
        %v1697 = vand.u32 %v1580, 4294901760
        %v1698 = vsub.f32 %v1580, %v1697
        %v1699 = vand.u32 %v1698, 4294901760
        %v1700 = vsub.f32 %v1698, %v1699
        %v1701 = vand.u32 %v1700, 4294901760
        %1702 = vmatpush1.msra.mxu0 %v1701
        %1703 = vmatprep.subr.mxu0 0.0
        %1704 = vmatpush1.msra.mxu0 0.0
        %1705 = vmatprep.subr.mxu0 0.0
        %1706 = vmatpush1.msra.mxu0 0.0
        %1707 = vmatprep.subr.mxu0 0.0
        %1708 = vmatpush1.msra.mxu0 0.0
        %1709 = vmatprep.subr.mxu0 0.0
        %1710 = vmatpush1.msra.mxu0 0.0
        %1711 = vmatprep.subr.mxu0 0.0
        %1712 = vmatpush1.msra.mxu0 0.0
        %1713 = vmatprep.subr.mxu0 0.0
        %1714 = vmatpush1.msra.mxu0 0.0
        %1715 = vmatprep.subr.mxu0 0.0
        %1716 = vmatpush1.msra.mxu0 0.0
        %1717 = vmatprep.subr.mxu0 0.0
        %1718 = vmatpush1.msra.mxu0 0.0
        %1719 = vmatprep.subr.mxu0 0.0
        %1720 = vmatpush1.msra.mxu0 0.0
        %1721 = vmatprep.subr.mxu0 0.0
        %1722 = vmatpush1.msra.mxu0 0.0
        %1723 = vmatprep.subr.mxu0 0.0
        %1724 = vmatpush1.msra.mxu0 0.0
        %1725 = vmatprep.subr.mxu0 0.0
        %1726 = vmatpush1.msra.mxu0 0.0
        %1727 = vmatprep.subr.mxu0 0.0
        %1728 = vmatpush1.msra.mxu0 0.0
        %1729 = vmatprep.subr.mxu0 0.0
        %1730 = vmatpush1.msra.mxu0 0.0
        %1731 = vmatprep.subr.mxu0 0.0
        %1732 = vmatpush1.msra.mxu0 0.0
        %1733 = vmatprep.subr.mxu0 0.0
        %1734 = vmatpush1.msra.mxu0 0.0
        %1735 = vmatprep.subr.mxu0 0.0
        %1736 = vmatpush1.msra.mxu0 0.0
        %1737 = vmatprep.subr.mxu0 0.0
        %1738 = vmatpush1.msra.mxu0 0.0
        %1739 = vmatprep.subr.mxu0 0.0
        %1740 = vmatpush1.msra.mxu0 0.0
        %1741 = vmatprep.subr.mxu0 0.0
        %1742 = vmatpush1.msra.mxu0 0.0
        %1743 = vmatprep.subr.mxu0 0.0
        %1744 = vmatpush1.msra.mxu0 0.0
        %1745 = vmatprep.subr.mxu0 0.0
        %1746 = vmatpush1.msra.mxu0 0.0
        %1747 = vmatprep.subr.mxu0 0.0
        %1748 = vmatpush1.msra.mxu0 0.0
        %1749 = vmatprep.subr.mxu0 0.0
        %1750 = vmatpush1.msra.mxu0 0.0
        %1751 = vmatprep.subr.mxu0 0.0
        %1752 = vmatpush1.msra.mxu0 0.0
        %1753 = vmatprep.subr.mxu0 0.0
        %1754 = vmatpush1.msra.mxu0 0.0
        %1755 = vmatprep.subr.mxu0 0.0
        %1756 = vmatpush1.msra.mxu0 0.0
        %1757 = vmatprep.subr.mxu0 0.0
        %1758 = vmatpush1.msra.mxu0 0.0
        %1759 = vmatprep.subr.mxu0 0.0
        %1760 = vmatpush1.msra.mxu0 0.0
        %1761 = vmatprep.subr.mxu0 0.0
        %1762 = vmatpush1.msra.mxu0 0.0
        %1763 = vmatprep.subr.mxu0 0.0
        %1764 = vmatpush1.msra.mxu0 0.0
        %1765 = vmatprep.mubr.f32.mxu0 0.0
        %v1766 = vand.u32 %v1597, 4294901760
        %1767 = vmatmul.mubr.f32.gmra.mrb[0].mxu0 %v1766
        %v1768 = vpop.f32.mrb[0].mxu0
        %v1769 = vadd.f32 %v1676, %v1768
        %v1770 = vpop.f32.mrb[0].mxu0
        %v1771 = vadd.f32 %v1678, %v1770
        %1772 = vmatprep.mubr.f32.mxu0 0.0
        %v1773 = vand.u32 %v1600, 4294901760
        %1774 = vmatmul.mubr.f32.gmra.mrb[0].mxu0 %v1773
        %v1775 = vpop.f32.mrb[0].mxu0
        %v1776 = vadd.f32 %v1687, %v1775
        %v1777 = vpop.f32.mrb[0].mxu0
        %v1778 = vadd.f32 %v1689, %v1777
        %1779 = vdwg.mxu0
        %v1780 = vand.u32 %v1581, 4294901760
        %v1781 = vsub.f32 %v1581, %v1780
        %1782 = vmatprep.subr.mxu0 %v1781
        %v1783 = vand.u32 %v1580, 4294901760
        %v1784 = vsub.f32 %v1580, %v1783
        %1785 = vmatpush1.msra.mxu0 %v1784
        %1786 = vmatprep.subr.mxu0 0.0
        %1787 = vmatpush1.msra.mxu0 0.0
        %1788 = vmatprep.subr.mxu0 0.0
        %1789 = vmatpush1.msra.mxu0 0.0
        %1790 = vmatprep.subr.mxu0 0.0
        %1791 = vmatpush1.msra.mxu0 0.0
        %1792 = vmatprep.subr.mxu0 0.0
        %1793 = vmatpush1.msra.mxu0 0.0
        %1794 = vmatprep.subr.mxu0 0.0
        %1795 = vmatpush1.msra.mxu0 0.0
        %1796 = vmatprep.subr.mxu0 0.0
        %1797 = vmatpush1.msra.mxu0 0.0
        %1798 = vmatprep.subr.mxu0 0.0
        %1799 = vmatpush1.msra.mxu0 0.0
        %1800 = vmatprep.subr.mxu0 0.0
        %1801 = vmatpush1.msra.mxu0 0.0
        %1802 = vmatprep.subr.mxu0 0.0
        %1803 = vmatpush1.msra.mxu0 0.0
        %1804 = vmatprep.subr.mxu0 0.0
        %1805 = vmatpush1.msra.mxu0 0.0
        %1806 = vmatprep.subr.mxu0 0.0
        %1807 = vmatpush1.msra.mxu0 0.0
        %1808 = vmatprep.subr.mxu0 0.0
        %1809 = vmatpush1.msra.mxu0 0.0
        %1810 = vmatprep.subr.mxu0 0.0
        %1811 = vmatpush1.msra.mxu0 0.0
        %1812 = vmatprep.subr.mxu0 0.0
        %1813 = vmatpush1.msra.mxu0 0.0
        %1814 = vmatprep.subr.mxu0 0.0
        %1815 = vmatpush1.msra.mxu0 0.0
        %1816 = vmatprep.subr.mxu0 0.0
        %1817 = vmatpush1.msra.mxu0 0.0
        %1818 = vmatprep.subr.mxu0 0.0
        %1819 = vmatpush1.msra.mxu0 0.0
        %1820 = vmatprep.subr.mxu0 0.0
        %1821 = vmatpush1.msra.mxu0 0.0
        %1822 = vmatprep.subr.mxu0 0.0
        %1823 = vmatpush1.msra.mxu0 0.0
        %1824 = vmatprep.subr.mxu0 0.0
        %1825 = vmatpush1.msra.mxu0 0.0
        %1826 = vmatprep.subr.mxu0 0.0
        %1827 = vmatpush1.msra.mxu0 0.0
        %1828 = vmatprep.subr.mxu0 0.0
        %1829 = vmatpush1.msra.mxu0 0.0
        %1830 = vmatprep.subr.mxu0 0.0
        %1831 = vmatpush1.msra.mxu0 0.0
        %1832 = vmatprep.subr.mxu0 0.0
        %1833 = vmatpush1.msra.mxu0 0.0
        %1834 = vmatprep.subr.mxu0 0.0
        %1835 = vmatpush1.msra.mxu0 0.0
        %1836 = vmatprep.subr.mxu0 0.0
        %1837 = vmatpush1.msra.mxu0 0.0
        %1838 = vmatprep.subr.mxu0 0.0
        %1839 = vmatpush1.msra.mxu0 0.0
        %1840 = vmatprep.subr.mxu0 0.0
        %1841 = vmatpush1.msra.mxu0 0.0
        %1842 = vmatprep.subr.mxu0 0.0
        %1843 = vmatpush1.msra.mxu0 0.0
        %1844 = vmatprep.subr.mxu0 0.0
        %1845 = vmatpush1.msra.mxu0 0.0
        %1846 = vmatprep.subr.mxu0 0.0
        %1847 = vmatpush1.msra.mxu0 0.0
        %1848 = vmatprep.mubr.f32.mxu0 0.0
        %v1849 = vand.u32 %v1597, 4294901760
        %v1850 = vsub.f32 %v1597, %v1849
        %1851 = vmatmul.mubr.f32.gmra.mrb[0].mxu0 %v1850
        %v1852 = vpop.f32.mrb[0].mxu0
        %v1853 = vadd.f32 %v1769, %v1852
        %v1854 = vpop.f32.mrb[0].mxu0
        %v1855 = vadd.f32 %v1771, %v1854
        %1856 = vmatprep.mubr.f32.mxu0 0.0
        %v1857 = vand.u32 %v1600, 4294901760
        %v1858 = vsub.f32 %v1600, %v1857
        %1859 = vmatmul.mubr.f32.gmra.mrb[0].mxu0 %v1858
        %v1860 = vpop.f32.mrb[0].mxu0
        %v1861 = vadd.f32 %v1776, %v1860
        %v1862 = vpop.f32.mrb[0].mxu0
        %v1863 = vadd.f32 %v1778, %v1862
        %1864 = vdwg.mxu0
        %v1865 = vand.u32 %v1581, 4294901760
        %1866 = vmatprep.subr.mxu0 %v1865
        %v1867 = vand.u32 %v1580, 4294901760
        %1868 = vmatpush1.msra.mxu0 %v1867
        %1869 = vmatprep.subr.mxu0 0.0
        %1870 = vmatpush1.msra.mxu0 0.0
        %1871 = vmatprep.subr.mxu0 0.0
        %1872 = vmatpush1.msra.mxu0 0.0
        %1873 = vmatprep.subr.mxu0 0.0
        %1874 = vmatpush1.msra.mxu0 0.0
        %1875 = vmatprep.subr.mxu0 0.0
        %1876 = vmatpush1.msra.mxu0 0.0
        %1877 = vmatprep.subr.mxu0 0.0
        %1878 = vmatpush1.msra.mxu0 0.0
        %1879 = vmatprep.subr.mxu0 0.0
        %1880 = vmatpush1.msra.mxu0 0.0
        %1881 = vmatprep.subr.mxu0 0.0
        %1882 = vmatpush1.msra.mxu0 0.0
        %1883 = vmatprep.subr.mxu0 0.0
        %1884 = vmatpush1.msra.mxu0 0.0
        %1885 = vmatprep.subr.mxu0 0.0
        %1886 = vmatpush1.msra.mxu0 0.0
        %1887 = vmatprep.subr.mxu0 0.0
        %1888 = vmatpush1.msra.mxu0 0.0
        %1889 = vmatprep.subr.mxu0 0.0
        %1890 = vmatpush1.msra.mxu0 0.0
        %1891 = vmatprep.subr.mxu0 0.0
        %1892 = vmatpush1.msra.mxu0 0.0
        %1893 = vmatprep.subr.mxu0 0.0
        %1894 = vmatpush1.msra.mxu0 0.0
        %1895 = vmatprep.subr.mxu0 0.0
        %1896 = vmatpush1.msra.mxu0 0.0
        %1897 = vmatprep.subr.mxu0 0.0
        %1898 = vmatpush1.msra.mxu0 0.0
        %1899 = vmatprep.subr.mxu0 0.0
        %1900 = vmatpush1.msra.mxu0 0.0
        %1901 = vmatprep.subr.mxu0 0.0
        %1902 = vmatpush1.msra.mxu0 0.0
        %1903 = vmatprep.subr.mxu0 0.0
        %1904 = vmatpush1.msra.mxu0 0.0
        %1905 = vmatprep.subr.mxu0 0.0
        %1906 = vmatpush1.msra.mxu0 0.0
        %1907 = vmatprep.subr.mxu0 0.0
        %1908 = vmatpush1.msra.mxu0 0.0
        %1909 = vmatprep.subr.mxu0 0.0
        %1910 = vmatpush1.msra.mxu0 0.0
        %1911 = vmatprep.subr.mxu0 0.0
        %1912 = vmatpush1.msra.mxu0 0.0
        %1913 = vmatprep.subr.mxu0 0.0
        %1914 = vmatpush1.msra.mxu0 0.0
        %1915 = vmatprep.subr.mxu0 0.0
        %1916 = vmatpush1.msra.mxu0 0.0
        %1917 = vmatprep.subr.mxu0 0.0
        %1918 = vmatpush1.msra.mxu0 0.0
        %1919 = vmatprep.subr.mxu0 0.0
        %1920 = vmatpush1.msra.mxu0 0.0
        %1921 = vmatprep.subr.mxu0 0.0
        %1922 = vmatpush1.msra.mxu0 0.0
        %1923 = vmatprep.subr.mxu0 0.0
        %1924 = vmatpush1.msra.mxu0 0.0
        %1925 = vmatprep.subr.mxu0 0.0
        %1926 = vmatpush1.msra.mxu0 0.0
        %1927 = vmatprep.subr.mxu0 0.0
        %1928 = vmatpush1.msra.mxu0 0.0
        %1929 = vmatprep.subr.mxu0 0.0
        %1930 = vmatpush1.msra.mxu0 0.0
        %1931 = vmatprep.mubr.f32.mxu0 0.0
        %v1932 = vand.u32 %v1597, 4294901760
        %v1933 = vsub.f32 %v1597, %v1932
        %v1934 = vand.u32 %v1933, 4294901760
        %1935 = vmatmul.mubr.f32.gmra.mrb[0].mxu0 %v1934
        %v1936 = vpop.f32.mrb[0].mxu0
        %v1937 = vadd.f32 %v1853, %v1936
        %v1938 = vpop.f32.mrb[0].mxu0
        %v1939 = vadd.f32 %v1855, %v1938
        %1940 = vmatprep.mubr.f32.mxu0 0.0
        %v1941 = vand.u32 %v1600, 4294901760
        %v1942 = vsub.f32 %v1600, %v1941
        %v1943 = vand.u32 %v1942, 4294901760
        %1944 = vmatmul.mubr.f32.gmra.mrb[0].mxu0 %v1943
        %v1945 = vpop.f32.mrb[0].mxu0
        %v1946 = vadd.f32 %v1861, %v1945
        %v1947 = vpop.f32.mrb[0].mxu0
        %v1948 = vadd.f32 %v1863, %v1947
        %1949 = vdwg.mxu0
        %v1950 = vand.u32 %v1581, 4294901760
        %v1951 = vsub.f32 %v1581, %v1950
        %v1952 = vand.u32 %v1951, 4294901760
        %1953 = vmatprep.subr.mxu0 %v1952
        %v1954 = vand.u32 %v1580, 4294901760
        %v1955 = vsub.f32 %v1580, %v1954
        %v1956 = vand.u32 %v1955, 4294901760
        %1957 = vmatpush1.msra.mxu0 %v1956
        %1958 = vmatprep.subr.mxu0 0.0
        %1959 = vmatpush1.msra.mxu0 0.0
        %1960 = vmatprep.subr.mxu0 0.0
        %1961 = vmatpush1.msra.mxu0 0.0
        %1962 = vmatprep.subr.mxu0 0.0
        %1963 = vmatpush1.msra.mxu0 0.0
        %1964 = vmatprep.subr.mxu0 0.0
        %1965 = vmatpush1.msra.mxu0 0.0
        %1966 = vmatprep.subr.mxu0 0.0
        %1967 = vmatpush1.msra.mxu0 0.0
        %1968 = vmatprep.subr.mxu0 0.0
        %1969 = vmatpush1.msra.mxu0 0.0
        %1970 = vmatprep.subr.mxu0 0.0
        %1971 = vmatpush1.msra.mxu0 0.0
        %1972 = vmatprep.subr.mxu0 0.0
        %1973 = vmatpush1.msra.mxu0 0.0
        %1974 = vmatprep.subr.mxu0 0.0
        %1975 = vmatpush1.msra.mxu0 0.0
        %1976 = vmatprep.subr.mxu0 0.0
        %1977 = vmatpush1.msra.mxu0 0.0
        %1978 = vmatprep.subr.mxu0 0.0
        %1979 = vmatpush1.msra.mxu0 0.0
        %1980 = vmatprep.subr.mxu0 0.0
        %1981 = vmatpush1.msra.mxu0 0.0
        %1982 = vmatprep.subr.mxu0 0.0
        %1983 = vmatpush1.msra.mxu0 0.0
        %1984 = vmatprep.subr.mxu0 0.0
        %1985 = vmatpush1.msra.mxu0 0.0
        %1986 = vmatprep.subr.mxu0 0.0
        %1987 = vmatpush1.msra.mxu0 0.0
        %1988 = vmatprep.subr.mxu0 0.0
        %1989 = vmatpush1.msra.mxu0 0.0
        %1990 = vmatprep.subr.mxu0 0.0
        %1991 = vmatpush1.msra.mxu0 0.0
        %1992 = vmatprep.subr.mxu0 0.0
        %1993 = vmatpush1.msra.mxu0 0.0
        %1994 = vmatprep.subr.mxu0 0.0
        %1995 = vmatpush1.msra.mxu0 0.0
        %1996 = vmatprep.subr.mxu0 0.0
        %1997 = vmatpush1.msra.mxu0 0.0
        %1998 = vmatprep.subr.mxu0 0.0
        %1999 = vmatpush1.msra.mxu0 0.0
        %2000 = vmatprep.subr.mxu0 0.0
        %2001 = vmatpush1.msra.mxu0 0.0
        %2002 = vmatprep.subr.mxu0 0.0
        %2003 = vmatpush1.msra.mxu0 0.0
        %2004 = vmatprep.subr.mxu0 0.0
        %2005 = vmatpush1.msra.mxu0 0.0
        %2006 = vmatprep.subr.mxu0 0.0
        %2007 = vmatpush1.msra.mxu0 0.0
        %2008 = vmatprep.subr.mxu0 0.0
        %2009 = vmatpush1.msra.mxu0 0.0
        %2010 = vmatprep.subr.mxu0 0.0
        %2011 = vmatpush1.msra.mxu0 0.0
        %2012 = vmatprep.subr.mxu0 0.0
        %2013 = vmatpush1.msra.mxu0 0.0
        %2014 = vmatprep.subr.mxu0 0.0
        %2015 = vmatpush1.msra.mxu0 0.0
        %2016 = vmatprep.subr.mxu0 0.0
        %2017 = vmatpush1.msra.mxu0 0.0
        %2018 = vmatprep.subr.mxu0 0.0
        %2019 = vmatpush1.msra.mxu0 0.0
        %2020 = vmatprep.mubr.f32.mxu0 0.0
        %v2021 = vand.u32 %v1597, 4294901760
        %2022 = vmatmul.mubr.f32.gmra.mrb[0].mxu0 %v2021
        %v2023 = vpop.f32.mrb[0].mxu0
        %v2024 = vadd.f32 %v1937, %v2023
        %v2025 = vpop.f32.mrb[0].mxu0
        %v2026 = vadd.f32 %v1939, %v2025
        %2027 = vmatprep.mubr.f32.mxu0 0.0
        %v2028 = vand.u32 %v1600, 4294901760
        %2029 = vmatmul.mubr.f32.gmra.mrb[0].mxu0 %v2028
        %v2030 = vpop.f32.mrb[0].mxu0
        %v2031 = vadd.f32 %v1946, %v2030
        %v2032 = vpop.f32.mrb[0].mxu0
        %v2033 = vadd.f32 %v1948, %v2032
        %2034 = vdwg.mxu0
        %v2035 = vand.u32 %v1581, 4294901760
        %2036 = vmatprep.subr.mxu0 %v2035
        %v2037 = vand.u32 %v1580, 4294901760
        %2038 = vmatpush1.msra.mxu0 %v2037
        %2039 = vmatprep.subr.mxu0 0.0
        %2040 = vmatpush1.msra.mxu0 0.0
        %2041 = vmatprep.subr.mxu0 0.0
        %2042 = vmatpush1.msra.mxu0 0.0
        %2043 = vmatprep.subr.mxu0 0.0
        %2044 = vmatpush1.msra.mxu0 0.0
        %2045 = vmatprep.subr.mxu0 0.0
        %2046 = vmatpush1.msra.mxu0 0.0
        %2047 = vmatprep.subr.mxu0 0.0
        %2048 = vmatpush1.msra.mxu0 0.0
        %2049 = vmatprep.subr.mxu0 0.0
        %2050 = vmatpush1.msra.mxu0 0.0
        %2051 = vmatprep.subr.mxu0 0.0
        %2052 = vmatpush1.msra.mxu0 0.0
        %2053 = vmatprep.subr.mxu0 0.0
        %2054 = vmatpush1.msra.mxu0 0.0
        %2055 = vmatprep.subr.mxu0 0.0
        %2056 = vmatpush1.msra.mxu0 0.0
        %2057 = vmatprep.subr.mxu0 0.0
        %2058 = vmatpush1.msra.mxu0 0.0
        %2059 = vmatprep.subr.mxu0 0.0
        %2060 = vmatpush1.msra.mxu0 0.0
        %2061 = vmatprep.subr.mxu0 0.0
        %2062 = vmatpush1.msra.mxu0 0.0
        %2063 = vmatprep.subr.mxu0 0.0
        %2064 = vmatpush1.msra.mxu0 0.0
        %2065 = vmatprep.subr.mxu0 0.0
        %2066 = vmatpush1.msra.mxu0 0.0
        %2067 = vmatprep.subr.mxu0 0.0
        %2068 = vmatpush1.msra.mxu0 0.0
        %2069 = vmatprep.subr.mxu0 0.0
        %2070 = vmatpush1.msra.mxu0 0.0
        %2071 = vmatprep.subr.mxu0 0.0
        %2072 = vmatpush1.msra.mxu0 0.0
        %2073 = vmatprep.subr.mxu0 0.0
        %2074 = vmatpush1.msra.mxu0 0.0
        %2075 = vmatprep.subr.mxu0 0.0
        %2076 = vmatpush1.msra.mxu0 0.0
        %2077 = vmatprep.subr.mxu0 0.0
        %2078 = vmatpush1.msra.mxu0 0.0
        %2079 = vmatprep.subr.mxu0 0.0
        %2080 = vmatpush1.msra.mxu0 0.0
        %2081 = vmatprep.subr.mxu0 0.0
        %2082 = vmatpush1.msra.mxu0 0.0
        %2083 = vmatprep.subr.mxu0 0.0
        %2084 = vmatpush1.msra.mxu0 0.0
        %2085 = vmatprep.subr.mxu0 0.0
        %2086 = vmatpush1.msra.mxu0 0.0
        %2087 = vmatprep.subr.mxu0 0.0
        %2088 = vmatpush1.msra.mxu0 0.0
        %2089 = vmatprep.subr.mxu0 0.0
        %2090 = vmatpush1.msra.mxu0 0.0
        %2091 = vmatprep.subr.mxu0 0.0
        %2092 = vmatpush1.msra.mxu0 0.0
        %2093 = vmatprep.subr.mxu0 0.0
        %2094 = vmatpush1.msra.mxu0 0.0
        %2095 = vmatprep.subr.mxu0 0.0
        %2096 = vmatpush1.msra.mxu0 0.0
        %2097 = vmatprep.subr.mxu0 0.0
        %2098 = vmatpush1.msra.mxu0 0.0
        %2099 = vmatprep.subr.mxu0 0.0
        %2100 = vmatpush1.msra.mxu0 0.0
        %2101 = vmatprep.mubr.f32.mxu0 0.0
        %v2102 = vand.u32 %v1597, 4294901760
        %2103 = vmatmul.mubr.f32.gmra.mrb[0].mxu0 %v2102
        %v2104 = vpop.f32.mrb[0].mxu0
        %v2105 = vadd.f32 %v2024, %v2104
        %v2106 = vpop.f32.mrb[0].mxu0
        %v2107 = vadd.f32 %v2026, %v2106
        %2108 = vmatprep.mubr.f32.mxu0 0.0
        %v2109 = vand.u32 %v1600, 4294901760
        %2110 = vmatmul.mubr.f32.gmra.mrb[0].mxu0 %v2109
        %v2111 = vpop.f32.mrb[0].mxu0
        %v2112 = vadd.f32 %v2031, %v2111
        %v2113 = vpop.f32.mrb[0].mxu0
        %v2114 = vadd.f32 %v2033, %v2113
        %2115 = vdwg.mxu0
        %v2116 = vmax.f32 %v2105, 0.0
        %v2117 = vmax.f32 %v2107, 0.0
        %v2118 = vmax.f32 %v2112, 0.0
        %v2119 = vmax.f32 %v2114, 0.0
        %v2120 = vmin.f32 %v2116, 6.0
        %v2121 = vmin.f32 %v2117, 6.0
        %v2122 = vmin.f32 %v2118, 6.0
        %v2123 = vmin.f32 %v2119, 6.0
        %2128 = vrot.lane.b32.xlu0 %v2120, 17
        %v2129 = vpop.permute.xlu0 %2128
        %2130 = vrot.lane.b32.xlu0 %v2121, 17
        %v2131 = vpop.permute.xlu0 %2130
        %2132 = vrot.lane.b32.xlu0 %v2122, 17
        %v2133 = vpop.permute.xlu0 %2132
        %2134 = vrot.lane.b32.xlu0 %v2123, 17
        %v2135 = vpop.permute.xlu0 %2134
        %v2136 = vsel %vm507, %v2129, %v2131
        %v2137 = vsel %vm507, %v2133, %v2135
        %2144 = vst.msk [vmem:[#allocation3] sm:$0xff] %vm527, %v2129
        %2145 = vst [vmem:[#allocation3 + $0x8] sm:$0xff] %v2136
        %2146 = vst.msk [vmem:[#allocation3 + $0x10] sm:$0xff] %vm507, %v2131
        %2147 = vst.msk [vmem:[#allocation3 + $0x18] sm:$0xff] %vm527, %v2133
        %2148 = vst [vmem:[#allocation3 + $0x20] sm:$0xff] %v2137
        %2149 = vst.msk [vmem:[#allocation3 + $0x28] sm:$0xff] %vm507, %v2135
        %v2150 = vld [vmem:[#allocation3] sm:$0xff]
        %v2151 = vld [vmem:[#allocation3 + $0x8] sm:$0xff]
        %v2152 = vld [vmem:[#allocation3 + $0x18] sm:$0xff]
        %v2153 = vld [vmem:[#allocation3 + $0x20] sm:$0xff]
        %v2154 = vld [vmem:[#allocation12] ss:$2 sm:$0x3]
        %v2156 = vlaneseq
        %v2157 = vshrl.u32 %v2156, 7
        %v2158 = vsub.s32 0, %v2157
        %v2159 = vrot.slane %v2154, %v2158
        %v2160 = vlaneseq
        %v2161 = vshrl.u32 %v2160, 7
        %v2162 = vsub.s32 1, %v2161
        %v2163 = vrot.slane %v2154, %v2162
        %v2166 = vmul.f32 %v2150, %v2159
        %v2167 = vmul.f32 %v2151, %v2163
        %v2168 = vmul.f32 %v2152, %v2159
        %v2169 = vmul.f32 %v2153, %v2163
        %v2170 = vld [vmem:[%s8] sm:$0xff]
        %v2171 = vld [vmem:[%s8 + $0x8] sm:$0xff]
        %v2172 = vld [vmem:[#allocation3 + $0x10] sm:$0xff]
        %v2173 = vld [vmem:[#allocation3 + $0x28] sm:$0xff]
        %s2174 = scalar_lea.vmem %s8, 16
        %v2175 = vld [vmem:[%s2174] sm:$0xff]
        %v2176 = vld [vmem:[%s2174 + $0x8] sm:$0xff]
        %2183 = vrot.lane.b32.xlu0 %v2150, 127
        %v2184 = vpop.permute.xlu0 %2183
        %2185 = vrot.lane.b32.xlu0 %v2151, 127
        %v2186 = vpop.permute.xlu0 %2185
        %2187 = vrot.lane.b32.xlu0 %v2172, 127
        %v2188 = vpop.permute.xlu0 %2187
        %2189 = vrot.lane.b32.xlu0 %v2152, 127
        %v2190 = vpop.permute.xlu0 %2189
        %2191 = vrot.lane.b32.xlu0 %v2153, 127
        %v2192 = vpop.permute.xlu0 %2191
        %2193 = vrot.lane.b32.xlu0 %v2173, 127
        %v2194 = vpop.permute.xlu0 %2193
        %v2195 = vsel %vm574, %v2184, %v2186
        %v2196 = vsel %vm574, %v2186, %v2188
        %v2197 = vsel %vm574, %v2190, %v2192
        %v2198 = vsel %vm574, %v2192, %v2194
        %v2204 = vsel %vm631, %v2175, 0
        %v2207 = vsel %vm631, %v2176, 0
        %v2209 = vand.u32 %v2196, 4294901760
        %2210 = vmatprep.subr.mxu0 %v2209
        %v2211 = vand.u32 %v2195, 4294901760
        %2212 = vmatpush1.msra.mxu0 %v2211
        %v2213 = vand.u32 %v2198, 4294901760
        %2214 = vmatprep.subr.mxu0 %v2213
        %v2215 = vand.u32 %v2197, 4294901760
        %2216 = vmatpush1.msra.mxu0 %v2215
        %2217 = vmatprep.subr.mxu0 0.0
        %2218 = vmatpush1.msra.mxu0 0.0
        %2219 = vmatprep.subr.mxu0 0.0
        %2220 = vmatpush1.msra.mxu0 0.0
        %2221 = vmatprep.subr.mxu0 0.0
        %2222 = vmatpush1.msra.mxu0 0.0
        %2223 = vmatprep.subr.mxu0 0.0
        %2224 = vmatpush1.msra.mxu0 0.0
        %2225 = vmatprep.subr.mxu0 0.0
        %2226 = vmatpush1.msra.mxu0 0.0
        %2227 = vmatprep.subr.mxu0 0.0
        %2228 = vmatpush1.msra.mxu0 0.0
        %2229 = vmatprep.subr.mxu0 0.0
        %2230 = vmatpush1.msra.mxu0 0.0
        %2231 = vmatprep.subr.mxu0 0.0
        %2232 = vmatpush1.msra.mxu0 0.0
        %2233 = vmatprep.subr.mxu0 0.0
        %2234 = vmatpush1.msra.mxu0 0.0
        %2235 = vmatprep.subr.mxu0 0.0
        %2236 = vmatpush1.msra.mxu0 0.0
        %2237 = vmatprep.subr.mxu0 0.0
        %2238 = vmatpush1.msra.mxu0 0.0
        %2239 = vmatprep.subr.mxu0 0.0
        %2240 = vmatpush1.msra.mxu0 0.0
        %2241 = vmatprep.subr.mxu0 0.0
        %2242 = vmatpush1.msra.mxu0 0.0
        %2243 = vmatprep.subr.mxu0 0.0
        %2244 = vmatpush1.msra.mxu0 0.0
        %2245 = vmatprep.subr.mxu0 0.0
        %2246 = vmatpush1.msra.mxu0 0.0
        %2247 = vmatprep.subr.mxu0 0.0
        %2248 = vmatpush1.msra.mxu0 0.0
        %2249 = vmatprep.subr.mxu0 0.0
        %2250 = vmatpush1.msra.mxu0 0.0
        %2251 = vmatprep.subr.mxu0 0.0
        %2252 = vmatpush1.msra.mxu0 0.0
        %2253 = vmatprep.subr.mxu0 0.0
        %2254 = vmatpush1.msra.mxu0 0.0
        %2255 = vmatprep.subr.mxu0 0.0
        %2256 = vmatpush1.msra.mxu0 0.0
        %2257 = vmatprep.subr.mxu0 0.0
        %2258 = vmatpush1.msra.mxu0 0.0
        %2259 = vmatprep.subr.mxu0 0.0
        %2260 = vmatpush1.msra.mxu0 0.0
        %2261 = vmatprep.subr.mxu0 0.0
        %2262 = vmatpush1.msra.mxu0 0.0
        %2263 = vmatprep.subr.mxu0 0.0
        %2264 = vmatpush1.msra.mxu0 0.0
        %2265 = vmatprep.subr.mxu0 0.0
        %2266 = vmatpush1.msra.mxu0 0.0
        %2267 = vmatprep.subr.mxu0 0.0
        %2268 = vmatpush1.msra.mxu0 0.0
        %2269 = vmatprep.subr.mxu0 0.0
        %2270 = vmatpush1.msra.mxu0 0.0
        %2271 = vmatprep.subr.mxu0 0.0
        %2272 = vmatpush1.msra.mxu0 0.0
        %2273 = vmatprep.subr.mxu0 0.0
        %2274 = vmatpush1.msra.mxu0 0.0
        %2275 = vmatprep.subr.mxu0 0.0
        %2276 = vmatpush1.msra.mxu0 0.0
        %2277 = vmatprep.mubr.f32.mxu0 0.0
        %v2278 = vand.u32 %v2204, 4294901760
        %v2279 = vsub.f32 %v2204, %v2278
        %v2280 = vand.u32 %v2279, 4294901760
        %v2281 = vsub.f32 %v2279, %v2280
        %v2282 = vand.u32 %v2281, 4294901760
        %2283 = vmatmul.mubr.f32.gmra.mrb[0].mxu0 %v2282
        %v2284 = vpop.f32.mrb[0].mxu0
        %v2285 = vadd.f32 0.0, %v2284
        %v2286 = vpop.f32.mrb[0].mxu0
        %v2287 = vadd.f32 0.0, %v2286
        %2288 = vmatprep.mubr.f32.mxu0 0.0
        %v2289 = vand.u32 %v2207, 4294901760
        %v2290 = vsub.f32 %v2207, %v2289
        %v2291 = vand.u32 %v2290, 4294901760
        %v2292 = vsub.f32 %v2290, %v2291
        %v2293 = vand.u32 %v2292, 4294901760
        %2294 = vmatmul.mubr.f32.gmra.mrb[0].mxu0 %v2293
        %v2295 = vpop.f32.mrb[0].mxu0
        %v2296 = vadd.f32 0.0, %v2295
        %v2297 = vpop.f32.mrb[0].mxu0
        %v2298 = vadd.f32 0.0, %v2297
        %2299 = vdwg.mxu0
        %v2300 = vand.u32 %v2196, 4294901760
        %v2301 = vsub.f32 %v2196, %v2300
        %v2302 = vand.u32 %v2301, 4294901760
        %v2303 = vsub.f32 %v2301, %v2302
        %v2304 = vand.u32 %v2303, 4294901760
        %2305 = vmatprep.subr.mxu0 %v2304
        %v2306 = vand.u32 %v2195, 4294901760
        %v2307 = vsub.f32 %v2195, %v2306
        %v2308 = vand.u32 %v2307, 4294901760
        %v2309 = vsub.f32 %v2307, %v2308
        %v2310 = vand.u32 %v2309, 4294901760
        %2311 = vmatpush1.msra.mxu0 %v2310
        %v2312 = vand.u32 %v2198, 4294901760
        %v2313 = vsub.f32 %v2198, %v2312
        %v2314 = vand.u32 %v2313, 4294901760
        %v2315 = vsub.f32 %v2313, %v2314
        %v2316 = vand.u32 %v2315, 4294901760
        %2317 = vmatprep.subr.mxu0 %v2316
        %v2318 = vand.u32 %v2197, 4294901760
        %v2319 = vsub.f32 %v2197, %v2318
        %v2320 = vand.u32 %v2319, 4294901760
        %v2321 = vsub.f32 %v2319, %v2320
        %v2322 = vand.u32 %v2321, 4294901760
        %2323 = vmatpush1.msra.mxu0 %v2322
        %2324 = vmatprep.subr.mxu0 0.0
        %2325 = vmatpush1.msra.mxu0 0.0
        %2326 = vmatprep.subr.mxu0 0.0
        %2327 = vmatpush1.msra.mxu0 0.0
        %2328 = vmatprep.subr.mxu0 0.0
        %2329 = vmatpush1.msra.mxu0 0.0
        %2330 = vmatprep.subr.mxu0 0.0
        %2331 = vmatpush1.msra.mxu0 0.0
        %2332 = vmatprep.subr.mxu0 0.0
        %2333 = vmatpush1.msra.mxu0 0.0
        %2334 = vmatprep.subr.mxu0 0.0
        %2335 = vmatpush1.msra.mxu0 0.0
        %2336 = vmatprep.subr.mxu0 0.0
        %2337 = vmatpush1.msra.mxu0 0.0
        %2338 = vmatprep.subr.mxu0 0.0
        %2339 = vmatpush1.msra.mxu0 0.0
        %2340 = vmatprep.subr.mxu0 0.0
        %2341 = vmatpush1.msra.mxu0 0.0
        %2342 = vmatprep.subr.mxu0 0.0
        %2343 = vmatpush1.msra.mxu0 0.0
        %2344 = vmatprep.subr.mxu0 0.0
        %2345 = vmatpush1.msra.mxu0 0.0
        %2346 = vmatprep.subr.mxu0 0.0
        %2347 = vmatpush1.msra.mxu0 0.0
        %2348 = vmatprep.subr.mxu0 0.0
        %2349 = vmatpush1.msra.mxu0 0.0
        %2350 = vmatprep.subr.mxu0 0.0
        %2351 = vmatpush1.msra.mxu0 0.0
        %2352 = vmatprep.subr.mxu0 0.0
        %2353 = vmatpush1.msra.mxu0 0.0
        %2354 = vmatprep.subr.mxu0 0.0
        %2355 = vmatpush1.msra.mxu0 0.0
        %2356 = vmatprep.subr.mxu0 0.0
        %2357 = vmatpush1.msra.mxu0 0.0
        %2358 = vmatprep.subr.mxu0 0.0
        %2359 = vmatpush1.msra.mxu0 0.0
        %2360 = vmatprep.subr.mxu0 0.0
        %2361 = vmatpush1.msra.mxu0 0.0
        %2362 = vmatprep.subr.mxu0 0.0
        %2363 = vmatpush1.msra.mxu0 0.0
        %2364 = vmatprep.subr.mxu0 0.0
        %2365 = vmatpush1.msra.mxu0 0.0
        %2366 = vmatprep.subr.mxu0 0.0
        %2367 = vmatpush1.msra.mxu0 0.0
        %2368 = vmatprep.subr.mxu0 0.0
        %2369 = vmatpush1.msra.mxu0 0.0
        %2370 = vmatprep.subr.mxu0 0.0
        %2371 = vmatpush1.msra.mxu0 0.0
        %2372 = vmatprep.subr.mxu0 0.0
        %2373 = vmatpush1.msra.mxu0 0.0
        %2374 = vmatprep.subr.mxu0 0.0
        %2375 = vmatpush1.msra.mxu0 0.0
        %2376 = vmatprep.subr.mxu0 0.0
        %2377 = vmatpush1.msra.mxu0 0.0
        %2378 = vmatprep.subr.mxu0 0.0
        %2379 = vmatpush1.msra.mxu0 0.0
        %2380 = vmatprep.subr.mxu0 0.0
        %2381 = vmatpush1.msra.mxu0 0.0
        %2382 = vmatprep.subr.mxu0 0.0
        %2383 = vmatpush1.msra.mxu0 0.0
        %2384 = vmatprep.mubr.f32.mxu0 0.0
        %v2385 = vand.u32 %v2204, 4294901760
        %2386 = vmatmul.mubr.f32.gmra.mrb[0].mxu0 %v2385
        %v2387 = vpop.f32.mrb[0].mxu0
        %v2388 = vadd.f32 %v2285, %v2387
        %v2389 = vpop.f32.mrb[0].mxu0
        %v2390 = vadd.f32 %v2287, %v2389
        %2391 = vmatprep.mubr.f32.mxu0 0.0
        %v2392 = vand.u32 %v2207, 4294901760
        %2393 = vmatmul.mubr.f32.gmra.mrb[0].mxu0 %v2392
        %v2394 = vpop.f32.mrb[0].mxu0
        %v2395 = vadd.f32 %v2296, %v2394
        %v2396 = vpop.f32.mrb[0].mxu0
        %v2397 = vadd.f32 %v2298, %v2396
        %2398 = vdwg.mxu0
        %v2399 = vand.u32 %v2196, 4294901760
        %v2400 = vsub.f32 %v2196, %v2399
        %2401 = vmatprep.subr.mxu0 %v2400
        %v2402 = vand.u32 %v2195, 4294901760
        %v2403 = vsub.f32 %v2195, %v2402
        %2404 = vmatpush1.msra.mxu0 %v2403
        %v2405 = vand.u32 %v2198, 4294901760
        %v2406 = vsub.f32 %v2198, %v2405
        %2407 = vmatprep.subr.mxu0 %v2406
        %v2408 = vand.u32 %v2197, 4294901760
        %v2409 = vsub.f32 %v2197, %v2408
        %2410 = vmatpush1.msra.mxu0 %v2409
        %2411 = vmatprep.subr.mxu0 0.0
        %2412 = vmatpush1.msra.mxu0 0.0
        %2413 = vmatprep.subr.mxu0 0.0
        %2414 = vmatpush1.msra.mxu0 0.0
        %2415 = vmatprep.subr.mxu0 0.0
        %2416 = vmatpush1.msra.mxu0 0.0
        %2417 = vmatprep.subr.mxu0 0.0
        %2418 = vmatpush1.msra.mxu0 0.0
        %2419 = vmatprep.subr.mxu0 0.0
        %2420 = vmatpush1.msra.mxu0 0.0
        %2421 = vmatprep.subr.mxu0 0.0
        %2422 = vmatpush1.msra.mxu0 0.0
        %2423 = vmatprep.subr.mxu0 0.0
        %2424 = vmatpush1.msra.mxu0 0.0
        %2425 = vmatprep.subr.mxu0 0.0
        %2426 = vmatpush1.msra.mxu0 0.0
        %2427 = vmatprep.subr.mxu0 0.0
        %2428 = vmatpush1.msra.mxu0 0.0
        %2429 = vmatprep.subr.mxu0 0.0
        %2430 = vmatpush1.msra.mxu0 0.0
        %2431 = vmatprep.subr.mxu0 0.0
        %2432 = vmatpush1.msra.mxu0 0.0
        %2433 = vmatprep.subr.mxu0 0.0
        %2434 = vmatpush1.msra.mxu0 0.0
        %2435 = vmatprep.subr.mxu0 0.0
        %2436 = vmatpush1.msra.mxu0 0.0
        %2437 = vmatprep.subr.mxu0 0.0
        %2438 = vmatpush1.msra.mxu0 0.0
        %2439 = vmatprep.subr.mxu0 0.0
        %2440 = vmatpush1.msra.mxu0 0.0
        %2441 = vmatprep.subr.mxu0 0.0
        %2442 = vmatpush1.msra.mxu0 0.0
        %2443 = vmatprep.subr.mxu0 0.0
        %2444 = vmatpush1.msra.mxu0 0.0
        %2445 = vmatprep.subr.mxu0 0.0
        %2446 = vmatpush1.msra.mxu0 0.0
        %2447 = vmatprep.subr.mxu0 0.0
        %2448 = vmatpush1.msra.mxu0 0.0
        %2449 = vmatprep.subr.mxu0 0.0
        %2450 = vmatpush1.msra.mxu0 0.0
        %2451 = vmatprep.subr.mxu0 0.0
        %2452 = vmatpush1.msra.mxu0 0.0
        %2453 = vmatprep.subr.mxu0 0.0
        %2454 = vmatpush1.msra.mxu0 0.0
        %2455 = vmatprep.subr.mxu0 0.0
        %2456 = vmatpush1.msra.mxu0 0.0
        %2457 = vmatprep.subr.mxu0 0.0
        %2458 = vmatpush1.msra.mxu0 0.0
        %2459 = vmatprep.subr.mxu0 0.0
        %2460 = vmatpush1.msra.mxu0 0.0
        %2461 = vmatprep.subr.mxu0 0.0
        %2462 = vmatpush1.msra.mxu0 0.0
        %2463 = vmatprep.subr.mxu0 0.0
        %2464 = vmatpush1.msra.mxu0 0.0
        %2465 = vmatprep.subr.mxu0 0.0
        %2466 = vmatpush1.msra.mxu0 0.0
        %2467 = vmatprep.subr.mxu0 0.0
        %2468 = vmatpush1.msra.mxu0 0.0
        %2469 = vmatprep.subr.mxu0 0.0
        %2470 = vmatpush1.msra.mxu0 0.0
        %2471 = vmatprep.mubr.f32.mxu0 0.0
        %v2472 = vand.u32 %v2204, 4294901760
        %v2473 = vsub.f32 %v2204, %v2472
        %2474 = vmatmul.mubr.f32.gmra.mrb[0].mxu0 %v2473
        %v2475 = vpop.f32.mrb[0].mxu0
        %v2476 = vadd.f32 %v2388, %v2475
        %v2477 = vpop.f32.mrb[0].mxu0
        %v2478 = vadd.f32 %v2390, %v2477
        %2479 = vmatprep.mubr.f32.mxu0 0.0
        %v2480 = vand.u32 %v2207, 4294901760
        %v2481 = vsub.f32 %v2207, %v2480
        %2482 = vmatmul.mubr.f32.gmra.mrb[0].mxu0 %v2481
        %v2483 = vpop.f32.mrb[0].mxu0
        %v2484 = vadd.f32 %v2395, %v2483
        %v2485 = vpop.f32.mrb[0].mxu0
        %v2486 = vadd.f32 %v2397, %v2485
        %2487 = vdwg.mxu0
        %v2488 = vand.u32 %v2196, 4294901760
        %2489 = vmatprep.subr.mxu0 %v2488
        %v2490 = vand.u32 %v2195, 4294901760
        %2491 = vmatpush1.msra.mxu0 %v2490
        %v2492 = vand.u32 %v2198, 4294901760
        %2493 = vmatprep.subr.mxu0 %v2492
        %v2494 = vand.u32 %v2197, 4294901760
        %2495 = vmatpush1.msra.mxu0 %v2494
        %2496 = vmatprep.subr.mxu0 0.0
        %2497 = vmatpush1.msra.mxu0 0.0
        %2498 = vmatprep.subr.mxu0 0.0
        %2499 = vmatpush1.msra.mxu0 0.0
        %2500 = vmatprep.subr.mxu0 0.0
        %2501 = vmatpush1.msra.mxu0 0.0
        %2502 = vmatprep.subr.mxu0 0.0
        %2503 = vmatpush1.msra.mxu0 0.0
        %2504 = vmatprep.subr.mxu0 0.0
        %2505 = vmatpush1.msra.mxu0 0.0
        %2506 = vmatprep.subr.mxu0 0.0
        %2507 = vmatpush1.msra.mxu0 0.0
        %2508 = vmatprep.subr.mxu0 0.0
        %2509 = vmatpush1.msra.mxu0 0.0
        %2510 = vmatprep.subr.mxu0 0.0
        %2511 = vmatpush1.msra.mxu0 0.0
        %2512 = vmatprep.subr.mxu0 0.0
        %2513 = vmatpush1.msra.mxu0 0.0
        %2514 = vmatprep.subr.mxu0 0.0
        %2515 = vmatpush1.msra.mxu0 0.0
        %2516 = vmatprep.subr.mxu0 0.0
        %2517 = vmatpush1.msra.mxu0 0.0
        %2518 = vmatprep.subr.mxu0 0.0
        %2519 = vmatpush1.msra.mxu0 0.0
        %2520 = vmatprep.subr.mxu0 0.0
        %2521 = vmatpush1.msra.mxu0 0.0
        %2522 = vmatprep.subr.mxu0 0.0
        %2523 = vmatpush1.msra.mxu0 0.0
        %2524 = vmatprep.subr.mxu0 0.0
        %2525 = vmatpush1.msra.mxu0 0.0
        %2526 = vmatprep.subr.mxu0 0.0
        %2527 = vmatpush1.msra.mxu0 0.0
        %2528 = vmatprep.subr.mxu0 0.0
        %2529 = vmatpush1.msra.mxu0 0.0
        %2530 = vmatprep.subr.mxu0 0.0
        %2531 = vmatpush1.msra.mxu0 0.0
        %2532 = vmatprep.subr.mxu0 0.0
        %2533 = vmatpush1.msra.mxu0 0.0
        %2534 = vmatprep.subr.mxu0 0.0
        %2535 = vmatpush1.msra.mxu0 0.0
        %2536 = vmatprep.subr.mxu0 0.0
        %2537 = vmatpush1.msra.mxu0 0.0
        %2538 = vmatprep.subr.mxu0 0.0
        %2539 = vmatpush1.msra.mxu0 0.0
        %2540 = vmatprep.subr.mxu0 0.0
        %2541 = vmatpush1.msra.mxu0 0.0
        %2542 = vmatprep.subr.mxu0 0.0
        %2543 = vmatpush1.msra.mxu0 0.0
        %2544 = vmatprep.subr.mxu0 0.0
        %2545 = vmatpush1.msra.mxu0 0.0
        %2546 = vmatprep.subr.mxu0 0.0
        %2547 = vmatpush1.msra.mxu0 0.0
        %2548 = vmatprep.subr.mxu0 0.0
        %2549 = vmatpush1.msra.mxu0 0.0
        %2550 = vmatprep.subr.mxu0 0.0
        %2551 = vmatpush1.msra.mxu0 0.0
        %2552 = vmatprep.subr.mxu0 0.0
        %2553 = vmatpush1.msra.mxu0 0.0
        %2554 = vmatprep.subr.mxu0 0.0
        %2555 = vmatpush1.msra.mxu0 0.0
        %2556 = vmatprep.mubr.f32.mxu0 0.0
        %v2557 = vand.u32 %v2204, 4294901760
        %v2558 = vsub.f32 %v2204, %v2557
        %v2559 = vand.u32 %v2558, 4294901760
        %2560 = vmatmul.mubr.f32.gmra.mrb[0].mxu0 %v2559
        %v2561 = vpop.f32.mrb[0].mxu0
        %v2562 = vadd.f32 %v2476, %v2561
        %v2563 = vpop.f32.mrb[0].mxu0
        %v2564 = vadd.f32 %v2478, %v2563
        %2565 = vmatprep.mubr.f32.mxu0 0.0
        %v2566 = vand.u32 %v2207, 4294901760
        %v2567 = vsub.f32 %v2207, %v2566
        %v2568 = vand.u32 %v2567, 4294901760
        %2569 = vmatmul.mubr.f32.gmra.mrb[0].mxu0 %v2568
        %v2570 = vpop.f32.mrb[0].mxu0
        %v2571 = vadd.f32 %v2484, %v2570
        %v2572 = vpop.f32.mrb[0].mxu0
        %v2573 = vadd.f32 %v2486, %v2572
        %2574 = vdwg.mxu0
        %v2575 = vand.u32 %v2196, 4294901760
        %v2576 = vsub.f32 %v2196, %v2575
        %v2577 = vand.u32 %v2576, 4294901760
        %2578 = vmatprep.subr.mxu0 %v2577
        %v2579 = vand.u32 %v2195, 4294901760
        %v2580 = vsub.f32 %v2195, %v2579
        %v2581 = vand.u32 %v2580, 4294901760
        %2582 = vmatpush1.msra.mxu0 %v2581
        %v2583 = vand.u32 %v2198, 4294901760
        %v2584 = vsub.f32 %v2198, %v2583
        %v2585 = vand.u32 %v2584, 4294901760
        %2586 = vmatprep.subr.mxu0 %v2585
        %v2587 = vand.u32 %v2197, 4294901760
        %v2588 = vsub.f32 %v2197, %v2587
        %v2589 = vand.u32 %v2588, 4294901760
        %2590 = vmatpush1.msra.mxu0 %v2589
        %2591 = vmatprep.subr.mxu0 0.0
        %2592 = vmatpush1.msra.mxu0 0.0
        %2593 = vmatprep.subr.mxu0 0.0
        %2594 = vmatpush1.msra.mxu0 0.0
        %2595 = vmatprep.subr.mxu0 0.0
        %2596 = vmatpush1.msra.mxu0 0.0
        %2597 = vmatprep.subr.mxu0 0.0
        %2598 = vmatpush1.msra.mxu0 0.0
        %2599 = vmatprep.subr.mxu0 0.0
        %2600 = vmatpush1.msra.mxu0 0.0
        %2601 = vmatprep.subr.mxu0 0.0
        %2602 = vmatpush1.msra.mxu0 0.0
        %2603 = vmatprep.subr.mxu0 0.0
        %2604 = vmatpush1.msra.mxu0 0.0
        %2605 = vmatprep.subr.mxu0 0.0
        %2606 = vmatpush1.msra.mxu0 0.0
        %2607 = vmatprep.subr.mxu0 0.0
        %2608 = vmatpush1.msra.mxu0 0.0
        %2609 = vmatprep.subr.mxu0 0.0
        %2610 = vmatpush1.msra.mxu0 0.0
        %2611 = vmatprep.subr.mxu0 0.0
        %2612 = vmatpush1.msra.mxu0 0.0
        %2613 = vmatprep.subr.mxu0 0.0
        %2614 = vmatpush1.msra.mxu0 0.0
        %2615 = vmatprep.subr.mxu0 0.0
        %2616 = vmatpush1.msra.mxu0 0.0
        %2617 = vmatprep.subr.mxu0 0.0
        %2618 = vmatpush1.msra.mxu0 0.0
        %2619 = vmatprep.subr.mxu0 0.0
        %2620 = vmatpush1.msra.mxu0 0.0
        %2621 = vmatprep.subr.mxu0 0.0
        %2622 = vmatpush1.msra.mxu0 0.0
        %2623 = vmatprep.subr.mxu0 0.0
        %2624 = vmatpush1.msra.mxu0 0.0
        %2625 = vmatprep.subr.mxu0 0.0
        %2626 = vmatpush1.msra.mxu0 0.0
        %2627 = vmatprep.subr.mxu0 0.0
        %2628 = vmatpush1.msra.mxu0 0.0
        %2629 = vmatprep.subr.mxu0 0.0
        %2630 = vmatpush1.msra.mxu0 0.0
        %2631 = vmatprep.subr.mxu0 0.0
        %2632 = vmatpush1.msra.mxu0 0.0
        %2633 = vmatprep.subr.mxu0 0.0
        %2634 = vmatpush1.msra.mxu0 0.0
        %2635 = vmatprep.subr.mxu0 0.0
        %2636 = vmatpush1.msra.mxu0 0.0
        %2637 = vmatprep.subr.mxu0 0.0
        %2638 = vmatpush1.msra.mxu0 0.0
        %2639 = vmatprep.subr.mxu0 0.0
        %2640 = vmatpush1.msra.mxu0 0.0
        %2641 = vmatprep.subr.mxu0 0.0
        %2642 = vmatpush1.msra.mxu0 0.0
        %2643 = vmatprep.subr.mxu0 0.0
        %2644 = vmatpush1.msra.mxu0 0.0
        %2645 = vmatprep.subr.mxu0 0.0
        %2646 = vmatpush1.msra.mxu0 0.0
        %2647 = vmatprep.subr.mxu0 0.0
        %2648 = vmatpush1.msra.mxu0 0.0
        %2649 = vmatprep.subr.mxu0 0.0
        %2650 = vmatpush1.msra.mxu0 0.0
        %2651 = vmatprep.mubr.f32.mxu0 0.0
        %v2652 = vand.u32 %v2204, 4294901760
        %2653 = vmatmul.mubr.f32.gmra.mrb[0].mxu0 %v2652
        %v2654 = vpop.f32.mrb[0].mxu0
        %v2655 = vadd.f32 %v2562, %v2654
        %v2656 = vpop.f32.mrb[0].mxu0
        %v2657 = vadd.f32 %v2564, %v2656
        %2658 = vmatprep.mubr.f32.mxu0 0.0
        %v2659 = vand.u32 %v2207, 4294901760
        %2660 = vmatmul.mubr.f32.gmra.mrb[0].mxu0 %v2659
        %v2661 = vpop.f32.mrb[0].mxu0
        %v2662 = vadd.f32 %v2571, %v2661
        %v2663 = vpop.f32.mrb[0].mxu0
        %v2664 = vadd.f32 %v2573, %v2663
        %2665 = vdwg.mxu0
        %v2666 = vand.u32 %v2196, 4294901760
        %2667 = vmatprep.subr.mxu0 %v2666
        %v2668 = vand.u32 %v2195, 4294901760
        %2669 = vmatpush1.msra.mxu0 %v2668
        %v2670 = vand.u32 %v2198, 4294901760
        %2671 = vmatprep.subr.mxu0 %v2670
        %v2672 = vand.u32 %v2197, 4294901760
        %2673 = vmatpush1.msra.mxu0 %v2672
        %2674 = vmatprep.subr.mxu0 0.0
        %2675 = vmatpush1.msra.mxu0 0.0
        %2676 = vmatprep.subr.mxu0 0.0
        %2677 = vmatpush1.msra.mxu0 0.0
        %2678 = vmatprep.subr.mxu0 0.0
        %2679 = vmatpush1.msra.mxu0 0.0
        %2680 = vmatprep.subr.mxu0 0.0
        %2681 = vmatpush1.msra.mxu0 0.0
        %2682 = vmatprep.subr.mxu0 0.0
        %2683 = vmatpush1.msra.mxu0 0.0
        %2684 = vmatprep.subr.mxu0 0.0
        %2685 = vmatpush1.msra.mxu0 0.0
        %2686 = vmatprep.subr.mxu0 0.0
        %2687 = vmatpush1.msra.mxu0 0.0
        %2688 = vmatprep.subr.mxu0 0.0
        %2689 = vmatpush1.msra.mxu0 0.0
        %2690 = vmatprep.subr.mxu0 0.0
        %2691 = vmatpush1.msra.mxu0 0.0
        %2692 = vmatprep.subr.mxu0 0.0
        %2693 = vmatpush1.msra.mxu0 0.0
        %2694 = vmatprep.subr.mxu0 0.0
        %2695 = vmatpush1.msra.mxu0 0.0
        %2696 = vmatprep.subr.mxu0 0.0
        %2697 = vmatpush1.msra.mxu0 0.0
        %2698 = vmatprep.subr.mxu0 0.0
        %2699 = vmatpush1.msra.mxu0 0.0
        %2700 = vmatprep.subr.mxu0 0.0
        %2701 = vmatpush1.msra.mxu0 0.0
        %2702 = vmatprep.subr.mxu0 0.0
        %2703 = vmatpush1.msra.mxu0 0.0
        %2704 = vmatprep.subr.mxu0 0.0
        %2705 = vmatpush1.msra.mxu0 0.0
        %2706 = vmatprep.subr.mxu0 0.0
        %2707 = vmatpush1.msra.mxu0 0.0
        %2708 = vmatprep.subr.mxu0 0.0
        %2709 = vmatpush1.msra.mxu0 0.0
        %2710 = vmatprep.subr.mxu0 0.0
        %2711 = vmatpush1.msra.mxu0 0.0
        %2712 = vmatprep.subr.mxu0 0.0
        %2713 = vmatpush1.msra.mxu0 0.0
        %2714 = vmatprep.subr.mxu0 0.0
        %2715 = vmatpush1.msra.mxu0 0.0
        %2716 = vmatprep.subr.mxu0 0.0
        %2717 = vmatpush1.msra.mxu0 0.0
        %2718 = vmatprep.subr.mxu0 0.0
        %2719 = vmatpush1.msra.mxu0 0.0
        %2720 = vmatprep.subr.mxu0 0.0
        %2721 = vmatpush1.msra.mxu0 0.0
        %2722 = vmatprep.subr.mxu0 0.0
        %2723 = vmatpush1.msra.mxu0 0.0
        %2724 = vmatprep.subr.mxu0 0.0
        %2725 = vmatpush1.msra.mxu0 0.0
        %2726 = vmatprep.subr.mxu0 0.0
        %2727 = vmatpush1.msra.mxu0 0.0
        %2728 = vmatprep.subr.mxu0 0.0
        %2729 = vmatpush1.msra.mxu0 0.0
        %2730 = vmatprep.subr.mxu0 0.0
        %2731 = vmatpush1.msra.mxu0 0.0
        %2732 = vmatprep.subr.mxu0 0.0
        %2733 = vmatpush1.msra.mxu0 0.0
        %2734 = vmatprep.mubr.f32.mxu0 0.0
        %v2735 = vand.u32 %v2204, 4294901760
        %2736 = vmatmul.mubr.f32.gmra.mrb[0].mxu0 %v2735
        %v2737 = vpop.f32.mrb[0].mxu0
        %v2738 = vadd.f32 %v2655, %v2737
        %v2739 = vpop.f32.mrb[0].mxu0
        %v2740 = vadd.f32 %v2657, %v2739
        %2741 = vmatprep.mubr.f32.mxu0 0.0
        %v2742 = vand.u32 %v2207, 4294901760
        %2743 = vmatmul.mubr.f32.gmra.mrb[0].mxu0 %v2742
        %v2744 = vpop.f32.mrb[0].mxu0
        %v2745 = vadd.f32 %v2662, %v2744
        %v2746 = vpop.f32.mrb[0].mxu0
        %v2747 = vadd.f32 %v2664, %v2746
        %2748 = vdwg.mxu0
        %v2750 = vsel %vm631, %v2170, 0
        %v2753 = vsel %vm631, %v2171, 0
        %v2755 = vand.u32 %v2167, 4294901760
        %2756 = vmatprep.subr.mxu0 %v2755
        %v2757 = vand.u32 %v2166, 4294901760
        %2758 = vmatpush1.msra.mxu0 %v2757
        %v2759 = vand.u32 %v2169, 4294901760
        %2760 = vmatprep.subr.mxu0 %v2759
        %v2761 = vand.u32 %v2168, 4294901760
        %2762 = vmatpush1.msra.mxu0 %v2761
        %2763 = vmatprep.subr.mxu0 0.0
        %2764 = vmatpush1.msra.mxu0 0.0
        %2765 = vmatprep.subr.mxu0 0.0
        %2766 = vmatpush1.msra.mxu0 0.0
        %2767 = vmatprep.subr.mxu0 0.0
        %2768 = vmatpush1.msra.mxu0 0.0
        %2769 = vmatprep.subr.mxu0 0.0
        %2770 = vmatpush1.msra.mxu0 0.0
        %2771 = vmatprep.subr.mxu0 0.0
        %2772 = vmatpush1.msra.mxu0 0.0
        %2773 = vmatprep.subr.mxu0 0.0
        %2774 = vmatpush1.msra.mxu0 0.0
        %2775 = vmatprep.subr.mxu0 0.0
        %2776 = vmatpush1.msra.mxu0 0.0
        %2777 = vmatprep.subr.mxu0 0.0
        %2778 = vmatpush1.msra.mxu0 0.0
        %2779 = vmatprep.subr.mxu0 0.0
        %2780 = vmatpush1.msra.mxu0 0.0
        %2781 = vmatprep.subr.mxu0 0.0
        %2782 = vmatpush1.msra.mxu0 0.0
        %2783 = vmatprep.subr.mxu0 0.0
        %2784 = vmatpush1.msra.mxu0 0.0
        %2785 = vmatprep.subr.mxu0 0.0
        %2786 = vmatpush1.msra.mxu0 0.0
        %2787 = vmatprep.subr.mxu0 0.0
        %2788 = vmatpush1.msra.mxu0 0.0
        %2789 = vmatprep.subr.mxu0 0.0
        %2790 = vmatpush1.msra.mxu0 0.0
        %2791 = vmatprep.subr.mxu0 0.0
        %2792 = vmatpush1.msra.mxu0 0.0
        %2793 = vmatprep.subr.mxu0 0.0
        %2794 = vmatpush1.msra.mxu0 0.0
        %2795 = vmatprep.subr.mxu0 0.0
        %2796 = vmatpush1.msra.mxu0 0.0
        %2797 = vmatprep.subr.mxu0 0.0
        %2798 = vmatpush1.msra.mxu0 0.0
        %2799 = vmatprep.subr.mxu0 0.0
        %2800 = vmatpush1.msra.mxu0 0.0
        %2801 = vmatprep.subr.mxu0 0.0
        %2802 = vmatpush1.msra.mxu0 0.0
        %2803 = vmatprep.subr.mxu0 0.0
        %2804 = vmatpush1.msra.mxu0 0.0
        %2805 = vmatprep.subr.mxu0 0.0
        %2806 = vmatpush1.msra.mxu0 0.0
        %2807 = vmatprep.subr.mxu0 0.0
        %2808 = vmatpush1.msra.mxu0 0.0
        %2809 = vmatprep.subr.mxu0 0.0
        %2810 = vmatpush1.msra.mxu0 0.0
        %2811 = vmatprep.subr.mxu0 0.0
        %2812 = vmatpush1.msra.mxu0 0.0
        %2813 = vmatprep.subr.mxu0 0.0
        %2814 = vmatpush1.msra.mxu0 0.0
        %2815 = vmatprep.subr.mxu0 0.0
        %2816 = vmatpush1.msra.mxu0 0.0
        %2817 = vmatprep.subr.mxu0 0.0
        %2818 = vmatpush1.msra.mxu0 0.0
        %2819 = vmatprep.subr.mxu0 0.0
        %2820 = vmatpush1.msra.mxu0 0.0
        %2821 = vmatprep.subr.mxu0 0.0
        %2822 = vmatpush1.msra.mxu0 0.0
        %2823 = vmatprep.mubr.f32.mxu0 0.0
        %v2824 = vand.u32 %v2750, 4294901760
        %v2825 = vsub.f32 %v2750, %v2824
        %v2826 = vand.u32 %v2825, 4294901760
        %v2827 = vsub.f32 %v2825, %v2826
        %v2828 = vand.u32 %v2827, 4294901760
        %2829 = vmatmul.mubr.f32.gmra.mrb[0].mxu0 %v2828
        %v2830 = vpop.f32.mrb[0].mxu0
        %v2831 = vadd.f32 %v2738, %v2830
        %v2832 = vpop.f32.mrb[0].mxu0
        %v2833 = vadd.f32 %v2740, %v2832
        %2834 = vmatprep.mubr.f32.mxu0 0.0
        %v2835 = vand.u32 %v2753, 4294901760
        %v2836 = vsub.f32 %v2753, %v2835
        %v2837 = vand.u32 %v2836, 4294901760
        %v2838 = vsub.f32 %v2836, %v2837
        %v2839 = vand.u32 %v2838, 4294901760
        %2840 = vmatmul.mubr.f32.gmra.mrb[0].mxu0 %v2839
        %v2841 = vpop.f32.mrb[0].mxu0
        %v2842 = vadd.f32 %v2745, %v2841
        %v2843 = vpop.f32.mrb[0].mxu0
        %v2844 = vadd.f32 %v2747, %v2843
        %2845 = vdwg.mxu0
        %v2846 = vand.u32 %v2167, 4294901760
        %v2847 = vsub.f32 %v2167, %v2846
        %v2848 = vand.u32 %v2847, 4294901760
        %v2849 = vsub.f32 %v2847, %v2848
        %v2850 = vand.u32 %v2849, 4294901760
        %2851 = vmatprep.subr.mxu0 %v2850
        %v2852 = vand.u32 %v2166, 4294901760
        %v2853 = vsub.f32 %v2166, %v2852
        %v2854 = vand.u32 %v2853, 4294901760
        %v2855 = vsub.f32 %v2853, %v2854
        %v2856 = vand.u32 %v2855, 4294901760
        %2857 = vmatpush1.msra.mxu0 %v2856
        %v2858 = vand.u32 %v2169, 4294901760
        %v2859 = vsub.f32 %v2169, %v2858
        %v2860 = vand.u32 %v2859, 4294901760
        %v2861 = vsub.f32 %v2859, %v2860
        %v2862 = vand.u32 %v2861, 4294901760
        %2863 = vmatprep.subr.mxu0 %v2862
        %v2864 = vand.u32 %v2168, 4294901760
        %v2865 = vsub.f32 %v2168, %v2864
        %v2866 = vand.u32 %v2865, 4294901760
        %v2867 = vsub.f32 %v2865, %v2866
        %v2868 = vand.u32 %v2867, 4294901760
        %2869 = vmatpush1.msra.mxu0 %v2868
        %2870 = vmatprep.subr.mxu0 0.0
        %2871 = vmatpush1.msra.mxu0 0.0
        %2872 = vmatprep.subr.mxu0 0.0
        %2873 = vmatpush1.msra.mxu0 0.0
        %2874 = vmatprep.subr.mxu0 0.0
        %2875 = vmatpush1.msra.mxu0 0.0
        %2876 = vmatprep.subr.mxu0 0.0
        %2877 = vmatpush1.msra.mxu0 0.0
        %2878 = vmatprep.subr.mxu0 0.0
        %2879 = vmatpush1.msra.mxu0 0.0
        %2880 = vmatprep.subr.mxu0 0.0
        %2881 = vmatpush1.msra.mxu0 0.0
        %2882 = vmatprep.subr.mxu0 0.0
        %2883 = vmatpush1.msra.mxu0 0.0
        %2884 = vmatprep.subr.mxu0 0.0
        %2885 = vmatpush1.msra.mxu0 0.0
        %2886 = vmatprep.subr.mxu0 0.0
        %2887 = vmatpush1.msra.mxu0 0.0
        %2888 = vmatprep.subr.mxu0 0.0
        %2889 = vmatpush1.msra.mxu0 0.0
        %2890 = vmatprep.subr.mxu0 0.0
        %2891 = vmatpush1.msra.mxu0 0.0
        %2892 = vmatprep.subr.mxu0 0.0
        %2893 = vmatpush1.msra.mxu0 0.0
        %2894 = vmatprep.subr.mxu0 0.0
        %2895 = vmatpush1.msra.mxu0 0.0
        %2896 = vmatprep.subr.mxu0 0.0
        %2897 = vmatpush1.msra.mxu0 0.0
        %2898 = vmatprep.subr.mxu0 0.0
        %2899 = vmatpush1.msra.mxu0 0.0
        %2900 = vmatprep.subr.mxu0 0.0
        %2901 = vmatpush1.msra.mxu0 0.0
        %2902 = vmatprep.subr.mxu0 0.0
        %2903 = vmatpush1.msra.mxu0 0.0
        %2904 = vmatprep.subr.mxu0 0.0
        %2905 = vmatpush1.msra.mxu0 0.0
        %2906 = vmatprep.subr.mxu0 0.0
        %2907 = vmatpush1.msra.mxu0 0.0
        %2908 = vmatprep.subr.mxu0 0.0
        %2909 = vmatpush1.msra.mxu0 0.0
        %2910 = vmatprep.subr.mxu0 0.0
        %2911 = vmatpush1.msra.mxu0 0.0
        %2912 = vmatprep.subr.mxu0 0.0
        %2913 = vmatpush1.msra.mxu0 0.0
        %2914 = vmatprep.subr.mxu0 0.0
        %2915 = vmatpush1.msra.mxu0 0.0
        %2916 = vmatprep.subr.mxu0 0.0
        %2917 = vmatpush1.msra.mxu0 0.0
        %2918 = vmatprep.subr.mxu0 0.0
        %2919 = vmatpush1.msra.mxu0 0.0
        %2920 = vmatprep.subr.mxu0 0.0
        %2921 = vmatpush1.msra.mxu0 0.0
        %2922 = vmatprep.subr.mxu0 0.0
        %2923 = vmatpush1.msra.mxu0 0.0
        %2924 = vmatprep.subr.mxu0 0.0
        %2925 = vmatpush1.msra.mxu0 0.0
        %2926 = vmatprep.subr.mxu0 0.0
        %2927 = vmatpush1.msra.mxu0 0.0
        %2928 = vmatprep.subr.mxu0 0.0
        %2929 = vmatpush1.msra.mxu0 0.0
        %2930 = vmatprep.mubr.f32.mxu0 0.0
        %v2931 = vand.u32 %v2750, 4294901760
        %2932 = vmatmul.mubr.f32.gmra.mrb[0].mxu0 %v2931
        %v2933 = vpop.f32.mrb[0].mxu0
        %v2934 = vadd.f32 %v2831, %v2933
        %v2935 = vpop.f32.mrb[0].mxu0
        %v2936 = vadd.f32 %v2833, %v2935
        %2937 = vmatprep.mubr.f32.mxu0 0.0
        %v2938 = vand.u32 %v2753, 4294901760
        %2939 = vmatmul.mubr.f32.gmra.mrb[0].mxu0 %v2938
        %v2940 = vpop.f32.mrb[0].mxu0
        %v2941 = vadd.f32 %v2842, %v2940
        %v2942 = vpop.f32.mrb[0].mxu0
        %v2943 = vadd.f32 %v2844, %v2942
        %2944 = vdwg.mxu0
        %v2945 = vand.u32 %v2167, 4294901760
        %v2946 = vsub.f32 %v2167, %v2945
        %2947 = vmatprep.subr.mxu0 %v2946
        %v2948 = vand.u32 %v2166, 4294901760
        %v2949 = vsub.f32 %v2166, %v2948
        %2950 = vmatpush1.msra.mxu0 %v2949
        %v2951 = vand.u32 %v2169, 4294901760
        %v2952 = vsub.f32 %v2169, %v2951
        %2953 = vmatprep.subr.mxu0 %v2952
        %v2954 = vand.u32 %v2168, 4294901760
        %v2955 = vsub.f32 %v2168, %v2954
        %2956 = vmatpush1.msra.mxu0 %v2955
        %2957 = vmatprep.subr.mxu0 0.0
        %2958 = vmatpush1.msra.mxu0 0.0
        %2959 = vmatprep.subr.mxu0 0.0
        %2960 = vmatpush1.msra.mxu0 0.0
        %2961 = vmatprep.subr.mxu0 0.0
        %2962 = vmatpush1.msra.mxu0 0.0
        %2963 = vmatprep.subr.mxu0 0.0
        %2964 = vmatpush1.msra.mxu0 0.0
        %2965 = vmatprep.subr.mxu0 0.0
        %2966 = vmatpush1.msra.mxu0 0.0
        %2967 = vmatprep.subr.mxu0 0.0
        %2968 = vmatpush1.msra.mxu0 0.0
        %2969 = vmatprep.subr.mxu0 0.0
        %2970 = vmatpush1.msra.mxu0 0.0
        %2971 = vmatprep.subr.mxu0 0.0
        %2972 = vmatpush1.msra.mxu0 0.0
        %2973 = vmatprep.subr.mxu0 0.0
        %2974 = vmatpush1.msra.mxu0 0.0
        %2975 = vmatprep.subr.mxu0 0.0
        %2976 = vmatpush1.msra.mxu0 0.0
        %2977 = vmatprep.subr.mxu0 0.0
        %2978 = vmatpush1.msra.mxu0 0.0
        %2979 = vmatprep.subr.mxu0 0.0
        %2980 = vmatpush1.msra.mxu0 0.0
        %2981 = vmatprep.subr.mxu0 0.0
        %2982 = vmatpush1.msra.mxu0 0.0
        %2983 = vmatprep.subr.mxu0 0.0
        %2984 = vmatpush1.msra.mxu0 0.0
        %2985 = vmatprep.subr.mxu0 0.0
        %2986 = vmatpush1.msra.mxu0 0.0
        %2987 = vmatprep.subr.mxu0 0.0
        %2988 = vmatpush1.msra.mxu0 0.0
        %2989 = vmatprep.subr.mxu0 0.0
        %2990 = vmatpush1.msra.mxu0 0.0
        %2991 = vmatprep.subr.mxu0 0.0
        %2992 = vmatpush1.msra.mxu0 0.0
        %2993 = vmatprep.subr.mxu0 0.0
        %2994 = vmatpush1.msra.mxu0 0.0
        %2995 = vmatprep.subr.mxu0 0.0
        %2996 = vmatpush1.msra.mxu0 0.0
        %2997 = vmatprep.subr.mxu0 0.0
        %2998 = vmatpush1.msra.mxu0 0.0
        %2999 = vmatprep.subr.mxu0 0.0
        %3000 = vmatpush1.msra.mxu0 0.0
        %3001 = vmatprep.subr.mxu0 0.0
        %3002 = vmatpush1.msra.mxu0 0.0
        %3003 = vmatprep.subr.mxu0 0.0
        %3004 = vmatpush1.msra.mxu0 0.0
        %3005 = vmatprep.subr.mxu0 0.0
        %3006 = vmatpush1.msra.mxu0 0.0
        %3007 = vmatprep.subr.mxu0 0.0
        %3008 = vmatpush1.msra.mxu0 0.0
        %3009 = vmatprep.subr.mxu0 0.0
        %3010 = vmatpush1.msra.mxu0 0.0
        %3011 = vmatprep.subr.mxu0 0.0
        %3012 = vmatpush1.msra.mxu0 0.0
        %3013 = vmatprep.subr.mxu0 0.0
        %3014 = vmatpush1.msra.mxu0 0.0
        %3015 = vmatprep.subr.mxu0 0.0
        %3016 = vmatpush1.msra.mxu0 0.0
        %3017 = vmatprep.mubr.f32.mxu0 0.0
        %v3018 = vand.u32 %v2750, 4294901760
        %v3019 = vsub.f32 %v2750, %v3018
        %3020 = vmatmul.mubr.f32.gmra.mrb[0].mxu0 %v3019
        %v3021 = vpop.f32.mrb[0].mxu0
        %v3022 = vadd.f32 %v2934, %v3021
        %v3023 = vpop.f32.mrb[0].mxu0
        %v3024 = vadd.f32 %v2936, %v3023
        %3025 = vmatprep.mubr.f32.mxu0 0.0
        %v3026 = vand.u32 %v2753, 4294901760
        %v3027 = vsub.f32 %v2753, %v3026
        %3028 = vmatmul.mubr.f32.gmra.mrb[0].mxu0 %v3027
        %v3029 = vpop.f32.mrb[0].mxu0
        %v3030 = vadd.f32 %v2941, %v3029
        %v3031 = vpop.f32.mrb[0].mxu0
        %v3032 = vadd.f32 %v2943, %v3031
        %3033 = vdwg.mxu0
        %v3034 = vand.u32 %v2167, 4294901760
        %3035 = vmatprep.subr.mxu0 %v3034
        %v3036 = vand.u32 %v2166, 4294901760
        %3037 = vmatpush1.msra.mxu0 %v3036
        %v3038 = vand.u32 %v2169, 4294901760
        %3039 = vmatprep.subr.mxu0 %v3038
        %v3040 = vand.u32 %v2168, 4294901760
        %3041 = vmatpush1.msra.mxu0 %v3040
        %3042 = vmatprep.subr.mxu0 0.0
        %3043 = vmatpush1.msra.mxu0 0.0
        %3044 = vmatprep.subr.mxu0 0.0
        %3045 = vmatpush1.msra.mxu0 0.0
        %3046 = vmatprep.subr.mxu0 0.0
        %3047 = vmatpush1.msra.mxu0 0.0
        %3048 = vmatprep.subr.mxu0 0.0
        %3049 = vmatpush1.msra.mxu0 0.0
        %3050 = vmatprep.subr.mxu0 0.0
        %3051 = vmatpush1.msra.mxu0 0.0
        %3052 = vmatprep.subr.mxu0 0.0
        %3053 = vmatpush1.msra.mxu0 0.0
        %3054 = vmatprep.subr.mxu0 0.0
        %3055 = vmatpush1.msra.mxu0 0.0
        %3056 = vmatprep.subr.mxu0 0.0
        %3057 = vmatpush1.msra.mxu0 0.0
        %3058 = vmatprep.subr.mxu0 0.0
        %3059 = vmatpush1.msra.mxu0 0.0
        %3060 = vmatprep.subr.mxu0 0.0
        %3061 = vmatpush1.msra.mxu0 0.0
        %3062 = vmatprep.subr.mxu0 0.0
        %3063 = vmatpush1.msra.mxu0 0.0
        %3064 = vmatprep.subr.mxu0 0.0
        %3065 = vmatpush1.msra.mxu0 0.0
        %3066 = vmatprep.subr.mxu0 0.0
        %3067 = vmatpush1.msra.mxu0 0.0
        %3068 = vmatprep.subr.mxu0 0.0
        %3069 = vmatpush1.msra.mxu0 0.0
        %3070 = vmatprep.subr.mxu0 0.0
        %3071 = vmatpush1.msra.mxu0 0.0
        %3072 = vmatprep.subr.mxu0 0.0
        %3073 = vmatpush1.msra.mxu0 0.0
        %3074 = vmatprep.subr.mxu0 0.0
        %3075 = vmatpush1.msra.mxu0 0.0
        %3076 = vmatprep.subr.mxu0 0.0
        %3077 = vmatpush1.msra.mxu0 0.0
        %3078 = vmatprep.subr.mxu0 0.0
        %3079 = vmatpush1.msra.mxu0 0.0
        %3080 = vmatprep.subr.mxu0 0.0
        %3081 = vmatpush1.msra.mxu0 0.0
        %3082 = vmatprep.subr.mxu0 0.0
        %3083 = vmatpush1.msra.mxu0 0.0
        %3084 = vmatprep.subr.mxu0 0.0
        %3085 = vmatpush1.msra.mxu0 0.0
        %3086 = vmatprep.subr.mxu0 0.0
        %3087 = vmatpush1.msra.mxu0 0.0
        %3088 = vmatprep.subr.mxu0 0.0
        %3089 = vmatpush1.msra.mxu0 0.0
        %3090 = vmatprep.subr.mxu0 0.0
        %3091 = vmatpush1.msra.mxu0 0.0
        %3092 = vmatprep.subr.mxu0 0.0
        %3093 = vmatpush1.msra.mxu0 0.0
        %3094 = vmatprep.subr.mxu0 0.0
        %3095 = vmatpush1.msra.mxu0 0.0
        %3096 = vmatprep.subr.mxu0 0.0
        %3097 = vmatpush1.msra.mxu0 0.0
        %3098 = vmatprep.subr.mxu0 0.0
        %3099 = vmatpush1.msra.mxu0 0.0
        %3100 = vmatprep.subr.mxu0 0.0
        %3101 = vmatpush1.msra.mxu0 0.0
        %3102 = vmatprep.mubr.f32.mxu0 0.0
        %v3103 = vand.u32 %v2750, 4294901760
        %v3104 = vsub.f32 %v2750, %v3103
        %v3105 = vand.u32 %v3104, 4294901760
        %3106 = vmatmul.mubr.f32.gmra.mrb[0].mxu0 %v3105
        %v3107 = vpop.f32.mrb[0].mxu0
        %v3108 = vadd.f32 %v3022, %v3107
        %v3109 = vpop.f32.mrb[0].mxu0
        %v3110 = vadd.f32 %v3024, %v3109
        %3111 = vmatprep.mubr.f32.mxu0 0.0
        %v3112 = vand.u32 %v2753, 4294901760
        %v3113 = vsub.f32 %v2753, %v3112
        %v3114 = vand.u32 %v3113, 4294901760
        %3115 = vmatmul.mubr.f32.gmra.mrb[0].mxu0 %v3114
        %v3116 = vpop.f32.mrb[0].mxu0
        %v3117 = vadd.f32 %v3030, %v3116
        %v3118 = vpop.f32.mrb[0].mxu0
        %v3119 = vadd.f32 %v3032, %v3118
        %3120 = vdwg.mxu0
        %v3121 = vand.u32 %v2167, 4294901760
        %v3122 = vsub.f32 %v2167, %v3121
        %v3123 = vand.u32 %v3122, 4294901760
        %3124 = vmatprep.subr.mxu0 %v3123
        %v3125 = vand.u32 %v2166, 4294901760
        %v3126 = vsub.f32 %v2166, %v3125
        %v3127 = vand.u32 %v3126, 4294901760
        %3128 = vmatpush1.msra.mxu0 %v3127
        %v3129 = vand.u32 %v2169, 4294901760
        %v3130 = vsub.f32 %v2169, %v3129
        %v3131 = vand.u32 %v3130, 4294901760
        %3132 = vmatprep.subr.mxu0 %v3131
        %v3133 = vand.u32 %v2168, 4294901760
        %v3134 = vsub.f32 %v2168, %v3133
        %v3135 = vand.u32 %v3134, 4294901760
        %3136 = vmatpush1.msra.mxu0 %v3135
        %3137 = vmatprep.subr.mxu0 0.0
        %3138 = vmatpush1.msra.mxu0 0.0
        %3139 = vmatprep.subr.mxu0 0.0
        %3140 = vmatpush1.msra.mxu0 0.0
        %3141 = vmatprep.subr.mxu0 0.0
        %3142 = vmatpush1.msra.mxu0 0.0
        %3143 = vmatprep.subr.mxu0 0.0
        %3144 = vmatpush1.msra.mxu0 0.0
        %3145 = vmatprep.subr.mxu0 0.0
        %3146 = vmatpush1.msra.mxu0 0.0
        %3147 = vmatprep.subr.mxu0 0.0
        %3148 = vmatpush1.msra.mxu0 0.0
        %3149 = vmatprep.subr.mxu0 0.0
        %3150 = vmatpush1.msra.mxu0 0.0
        %3151 = vmatprep.subr.mxu0 0.0
        %3152 = vmatpush1.msra.mxu0 0.0
        %3153 = vmatprep.subr.mxu0 0.0
        %3154 = vmatpush1.msra.mxu0 0.0
        %3155 = vmatprep.subr.mxu0 0.0
        %3156 = vmatpush1.msra.mxu0 0.0
        %3157 = vmatprep.subr.mxu0 0.0
        %3158 = vmatpush1.msra.mxu0 0.0
        %3159 = vmatprep.subr.mxu0 0.0
        %3160 = vmatpush1.msra.mxu0 0.0
        %3161 = vmatprep.subr.mxu0 0.0
        %3162 = vmatpush1.msra.mxu0 0.0
        %3163 = vmatprep.subr.mxu0 0.0
        %3164 = vmatpush1.msra.mxu0 0.0
        %3165 = vmatprep.subr.mxu0 0.0
        %3166 = vmatpush1.msra.mxu0 0.0
        %3167 = vmatprep.subr.mxu0 0.0
        %3168 = vmatpush1.msra.mxu0 0.0
        %3169 = vmatprep.subr.mxu0 0.0
        %3170 = vmatpush1.msra.mxu0 0.0
        %3171 = vmatprep.subr.mxu0 0.0
        %3172 = vmatpush1.msra.mxu0 0.0
        %3173 = vmatprep.subr.mxu0 0.0
        %3174 = vmatpush1.msra.mxu0 0.0
        %3175 = vmatprep.subr.mxu0 0.0
        %3176 = vmatpush1.msra.mxu0 0.0
        %3177 = vmatprep.subr.mxu0 0.0
        %3178 = vmatpush1.msra.mxu0 0.0
        %3179 = vmatprep.subr.mxu0 0.0
        %3180 = vmatpush1.msra.mxu0 0.0
        %3181 = vmatprep.subr.mxu0 0.0
        %3182 = vmatpush1.msra.mxu0 0.0
        %3183 = vmatprep.subr.mxu0 0.0
        %3184 = vmatpush1.msra.mxu0 0.0
        %3185 = vmatprep.subr.mxu0 0.0
        %3186 = vmatpush1.msra.mxu0 0.0
        %3187 = vmatprep.subr.mxu0 0.0
        %3188 = vmatpush1.msra.mxu0 0.0
        %3189 = vmatprep.subr.mxu0 0.0
        %3190 = vmatpush1.msra.mxu0 0.0
        %3191 = vmatprep.subr.mxu0 0.0
        %3192 = vmatpush1.msra.mxu0 0.0
        %3193 = vmatprep.subr.mxu0 0.0
        %3194 = vmatpush1.msra.mxu0 0.0
        %3195 = vmatprep.subr.mxu0 0.0
        %3196 = vmatpush1.msra.mxu0 0.0
        %3197 = vmatprep.mubr.f32.mxu0 0.0
        %v3198 = vand.u32 %v2750, 4294901760
        %3199 = vmatmul.mubr.f32.gmra.mrb[0].mxu0 %v3198
        %v3200 = vpop.f32.mrb[0].mxu0
        %v3201 = vadd.f32 %v3108, %v3200
        %v3202 = vpop.f32.mrb[0].mxu0
        %v3203 = vadd.f32 %v3110, %v3202
        %3204 = vmatprep.mubr.f32.mxu0 0.0
        %v3205 = vand.u32 %v2753, 4294901760
        %3206 = vmatmul.mubr.f32.gmra.mrb[0].mxu0 %v3205
        %v3207 = vpop.f32.mrb[0].mxu0
        %v3208 = vadd.f32 %v3117, %v3207
        %v3209 = vpop.f32.mrb[0].mxu0
        %v3210 = vadd.f32 %v3119, %v3209
        %3211 = vdwg.mxu0
        %v3212 = vand.u32 %v2167, 4294901760
        %3213 = vmatprep.subr.mxu0 %v3212
        %v3214 = vand.u32 %v2166, 4294901760
        %3215 = vmatpush1.msra.mxu0 %v3214
        %v3216 = vand.u32 %v2169, 4294901760
        %3217 = vmatprep.subr.mxu0 %v3216
        %v3218 = vand.u32 %v2168, 4294901760
        %3219 = vmatpush1.msra.mxu0 %v3218
        %3220 = vmatprep.subr.mxu0 0.0
        %3221 = vmatpush1.msra.mxu0 0.0
        %3222 = vmatprep.subr.mxu0 0.0
        %3223 = vmatpush1.msra.mxu0 0.0
        %3224 = vmatprep.subr.mxu0 0.0
        %3225 = vmatpush1.msra.mxu0 0.0
        %3226 = vmatprep.subr.mxu0 0.0
        %3227 = vmatpush1.msra.mxu0 0.0
        %3228 = vmatprep.subr.mxu0 0.0
        %3229 = vmatpush1.msra.mxu0 0.0
        %3230 = vmatprep.subr.mxu0 0.0
        %3231 = vmatpush1.msra.mxu0 0.0
        %3232 = vmatprep.subr.mxu0 0.0
        %3233 = vmatpush1.msra.mxu0 0.0
        %3234 = vmatprep.subr.mxu0 0.0
        %3235 = vmatpush1.msra.mxu0 0.0
        %3236 = vmatprep.subr.mxu0 0.0
        %3237 = vmatpush1.msra.mxu0 0.0
        %3238 = vmatprep.subr.mxu0 0.0
        %3239 = vmatpush1.msra.mxu0 0.0
        %3240 = vmatprep.subr.mxu0 0.0
        %3241 = vmatpush1.msra.mxu0 0.0
        %3242 = vmatprep.subr.mxu0 0.0
        %3243 = vmatpush1.msra.mxu0 0.0
        %3244 = vmatprep.subr.mxu0 0.0
        %3245 = vmatpush1.msra.mxu0 0.0
        %3246 = vmatprep.subr.mxu0 0.0
        %3247 = vmatpush1.msra.mxu0 0.0
        %3248 = vmatprep.subr.mxu0 0.0
        %3249 = vmatpush1.msra.mxu0 0.0
        %3250 = vmatprep.subr.mxu0 0.0
        %3251 = vmatpush1.msra.mxu0 0.0
        %3252 = vmatprep.subr.mxu0 0.0
        %3253 = vmatpush1.msra.mxu0 0.0
        %3254 = vmatprep.subr.mxu0 0.0
        %3255 = vmatpush1.msra.mxu0 0.0
        %3256 = vmatprep.subr.mxu0 0.0
        %3257 = vmatpush1.msra.mxu0 0.0
        %3258 = vmatprep.subr.mxu0 0.0
        %3259 = vmatpush1.msra.mxu0 0.0
        %3260 = vmatprep.subr.mxu0 0.0
        %3261 = vmatpush1.msra.mxu0 0.0
        %3262 = vmatprep.subr.mxu0 0.0
        %3263 = vmatpush1.msra.mxu0 0.0
        %3264 = vmatprep.subr.mxu0 0.0
        %3265 = vmatpush1.msra.mxu0 0.0
        %3266 = vmatprep.subr.mxu0 0.0
        %3267 = vmatpush1.msra.mxu0 0.0
        %3268 = vmatprep.subr.mxu0 0.0
        %3269 = vmatpush1.msra.mxu0 0.0
        %3270 = vmatprep.subr.mxu0 0.0
        %3271 = vmatpush1.msra.mxu0 0.0
        %3272 = vmatprep.subr.mxu0 0.0
        %3273 = vmatpush1.msra.mxu0 0.0
        %3274 = vmatprep.subr.mxu0 0.0
        %3275 = vmatpush1.msra.mxu0 0.0
        %3276 = vmatprep.subr.mxu0 0.0
        %3277 = vmatpush1.msra.mxu0 0.0
        %3278 = vmatprep.subr.mxu0 0.0
        %3279 = vmatpush1.msra.mxu0 0.0
        %3280 = vmatprep.mubr.f32.mxu0 0.0
        %v3281 = vand.u32 %v2750, 4294901760
        %3282 = vmatmul.mubr.f32.gmra.mrb[0].mxu0 %v3281
        %v3283 = vpop.f32.mrb[0].mxu0
        %v3284 = vadd.f32 %v3201, %v3283
        %v3285 = vpop.f32.mrb[0].mxu0
        %v3286 = vadd.f32 %v3203, %v3285
        %3287 = vmatprep.mubr.f32.mxu0 0.0
        %v3288 = vand.u32 %v2753, 4294901760
        %3289 = vmatmul.mubr.f32.gmra.mrb[0].mxu0 %v3288
        %v3290 = vpop.f32.mrb[0].mxu0
        %v3291 = vadd.f32 %v3208, %v3290
        %v3292 = vpop.f32.mrb[0].mxu0
        %v3293 = vadd.f32 %v3210, %v3292
        %3294 = vdwg.mxu0
        %v3295 = vld [vmem:[%s581] ss:$2 sm:$0x3]
        %v3297 = vlaneseq
        %v3298 = vshrl.u32 %v3297, 7
        %v3299 = vsub.s32 0, %v3298
        %v3300 = vrot.slane %v3295, %v3299
        %v3301 = vlaneseq
        %v3302 = vshrl.u32 %v3301, 7
        %v3303 = vsub.s32 1, %v3302
        %v3304 = vrot.slane %v3295, %v3303
        %3305 = vrot.lane.b32.xlu0 %v3300, 2
        %v3306 = vpop.permute.xlu0 %3305
        %3307 = vrot.lane.b32.xlu0 %v3304, 2
        %v3308 = vpop.permute.xlu0 %3307
        %v3309 = vsel %vm596, %v3306, %v3308
        %v3313 = vmul.f32 %v2150, %v3306
        %v3314 = vmul.f32 %v2151, %v3309
        %v3315 = vmul.f32 %v2172, %v3308
        %v3316 = vmul.f32 %v2152, %v3306
        %v3317 = vmul.f32 %v2153, %v3309
        %v3318 = vmul.f32 %v2173, %v3308
        %s3319 = scalar_lea.vmem %s8, 32
        %v3320 = vld [vmem:[%s3319] sm:$0xff]
        %v3321 = vld [vmem:[%s3319 + $0x8] sm:$0xff]
        %3328 = vrot.lane.b32.xlu0 %v3313, 126
        %v3329 = vpop.permute.xlu0 %3328
        %3330 = vrot.lane.b32.xlu0 %v3314, 126
        %v3331 = vpop.permute.xlu0 %3330
        %3332 = vrot.lane.b32.xlu0 %v3315, 126
        %v3333 = vpop.permute.xlu0 %3332
        %3334 = vrot.lane.b32.xlu0 %v3316, 126
        %v3335 = vpop.permute.xlu0 %3334
        %3336 = vrot.lane.b32.xlu0 %v3317, 126
        %v3337 = vpop.permute.xlu0 %3336
        %3338 = vrot.lane.b32.xlu0 %v3318, 126
        %v3339 = vpop.permute.xlu0 %3338
        %v3340 = vsel %vm620, %v3329, %v3331
        %v3341 = vsel %vm620, %v3331, %v3333
        %v3342 = vsel %vm620, %v3335, %v3337
        %v3343 = vsel %vm620, %v3337, %v3339
        %v3349 = vsel %vm631, %v3320, 0
        %v3352 = vsel %vm631, %v3321, 0
        %v3354 = vand.u32 %v3341, 4294901760
        %3355 = vmatprep.subr.mxu0 %v3354
        %v3356 = vand.u32 %v3340, 4294901760
        %3357 = vmatpush1.msra.mxu0 %v3356
        %v3358 = vand.u32 %v3343, 4294901760
        %3359 = vmatprep.subr.mxu0 %v3358
        %v3360 = vand.u32 %v3342, 4294901760
        %3361 = vmatpush1.msra.mxu0 %v3360
        %3362 = vmatprep.subr.mxu0 0.0
        %3363 = vmatpush1.msra.mxu0 0.0
        %3364 = vmatprep.subr.mxu0 0.0
        %3365 = vmatpush1.msra.mxu0 0.0
        %3366 = vmatprep.subr.mxu0 0.0
        %3367 = vmatpush1.msra.mxu0 0.0
        %3368 = vmatprep.subr.mxu0 0.0
        %3369 = vmatpush1.msra.mxu0 0.0
        %3370 = vmatprep.subr.mxu0 0.0
        %3371 = vmatpush1.msra.mxu0 0.0
        %3372 = vmatprep.subr.mxu0 0.0
        %3373 = vmatpush1.msra.mxu0 0.0
        %3374 = vmatprep.subr.mxu0 0.0
        %3375 = vmatpush1.msra.mxu0 0.0
        %3376 = vmatprep.subr.mxu0 0.0
        %3377 = vmatpush1.msra.mxu0 0.0
        %3378 = vmatprep.subr.mxu0 0.0
        %3379 = vmatpush1.msra.mxu0 0.0
        %3380 = vmatprep.subr.mxu0 0.0
        %3381 = vmatpush1.msra.mxu0 0.0
        %3382 = vmatprep.subr.mxu0 0.0
        %3383 = vmatpush1.msra.mxu0 0.0
        %3384 = vmatprep.subr.mxu0 0.0
        %3385 = vmatpush1.msra.mxu0 0.0
        %3386 = vmatprep.subr.mxu0 0.0
        %3387 = vmatpush1.msra.mxu0 0.0
        %3388 = vmatprep.subr.mxu0 0.0
        %3389 = vmatpush1.msra.mxu0 0.0
        %3390 = vmatprep.subr.mxu0 0.0
        %3391 = vmatpush1.msra.mxu0 0.0
        %3392 = vmatprep.subr.mxu0 0.0
        %3393 = vmatpush1.msra.mxu0 0.0
        %3394 = vmatprep.subr.mxu0 0.0
        %3395 = vmatpush1.msra.mxu0 0.0
        %3396 = vmatprep.subr.mxu0 0.0
        %3397 = vmatpush1.msra.mxu0 0.0
        %3398 = vmatprep.subr.mxu0 0.0
        %3399 = vmatpush1.msra.mxu0 0.0
        %3400 = vmatprep.subr.mxu0 0.0
        %3401 = vmatpush1.msra.mxu0 0.0
        %3402 = vmatprep.subr.mxu0 0.0
        %3403 = vmatpush1.msra.mxu0 0.0
        %3404 = vmatprep.subr.mxu0 0.0
        %3405 = vmatpush1.msra.mxu0 0.0
        %3406 = vmatprep.subr.mxu0 0.0
        %3407 = vmatpush1.msra.mxu0 0.0
        %3408 = vmatprep.subr.mxu0 0.0
        %3409 = vmatpush1.msra.mxu0 0.0
        %3410 = vmatprep.subr.mxu0 0.0
        %3411 = vmatpush1.msra.mxu0 0.0
        %3412 = vmatprep.subr.mxu0 0.0
        %3413 = vmatpush1.msra.mxu0 0.0
        %3414 = vmatprep.subr.mxu0 0.0
        %3415 = vmatpush1.msra.mxu0 0.0
        %3416 = vmatprep.subr.mxu0 0.0
        %3417 = vmatpush1.msra.mxu0 0.0
        %3418 = vmatprep.subr.mxu0 0.0
        %3419 = vmatpush1.msra.mxu0 0.0
        %3420 = vmatprep.subr.mxu0 0.0
        %3421 = vmatpush1.msra.mxu0 0.0
        %3422 = vmatprep.mubr.f32.mxu0 0.0
        %v3423 = vand.u32 %v3349, 4294901760
        %v3424 = vsub.f32 %v3349, %v3423
        %v3425 = vand.u32 %v3424, 4294901760
        %v3426 = vsub.f32 %v3424, %v3425
        %v3427 = vand.u32 %v3426, 4294901760
        %3428 = vmatmul.mubr.f32.gmra.mrb[0].mxu0 %v3427
        %v3429 = vpop.f32.mrb[0].mxu0
        %v3430 = vadd.f32 0.0, %v3429
        %v3431 = vpop.f32.mrb[0].mxu0
        %v3432 = vadd.f32 0.0, %v3431
        %3433 = vmatprep.mubr.f32.mxu0 0.0
        %v3434 = vand.u32 %v3352, 4294901760
        %v3435 = vsub.f32 %v3352, %v3434
        %v3436 = vand.u32 %v3435, 4294901760
        %v3437 = vsub.f32 %v3435, %v3436
        %v3438 = vand.u32 %v3437, 4294901760
        %3439 = vmatmul.mubr.f32.gmra.mrb[0].mxu0 %v3438
        %v3440 = vpop.f32.mrb[0].mxu0
        %v3441 = vadd.f32 0.0, %v3440
        %v3442 = vpop.f32.mrb[0].mxu0
        %v3443 = vadd.f32 0.0, %v3442
        %3444 = vdwg.mxu0
        %v3445 = vand.u32 %v3341, 4294901760
        %v3446 = vsub.f32 %v3341, %v3445
        %v3447 = vand.u32 %v3446, 4294901760
        %v3448 = vsub.f32 %v3446, %v3447
        %v3449 = vand.u32 %v3448, 4294901760
        %3450 = vmatprep.subr.mxu0 %v3449
        %v3451 = vand.u32 %v3340, 4294901760
        %v3452 = vsub.f32 %v3340, %v3451
        %v3453 = vand.u32 %v3452, 4294901760
        %v3454 = vsub.f32 %v3452, %v3453
        %v3455 = vand.u32 %v3454, 4294901760
        %3456 = vmatpush1.msra.mxu0 %v3455
        %v3457 = vand.u32 %v3343, 4294901760
        %v3458 = vsub.f32 %v3343, %v3457
        %v3459 = vand.u32 %v3458, 4294901760
        %v3460 = vsub.f32 %v3458, %v3459
        %v3461 = vand.u32 %v3460, 4294901760
        %3462 = vmatprep.subr.mxu0 %v3461
        %v3463 = vand.u32 %v3342, 4294901760
        %v3464 = vsub.f32 %v3342, %v3463
        %v3465 = vand.u32 %v3464, 4294901760
        %v3466 = vsub.f32 %v3464, %v3465
        %v3467 = vand.u32 %v3466, 4294901760
        %3468 = vmatpush1.msra.mxu0 %v3467
        %3469 = vmatprep.subr.mxu0 0.0
        %3470 = vmatpush1.msra.mxu0 0.0
        %3471 = vmatprep.subr.mxu0 0.0
        %3472 = vmatpush1.msra.mxu0 0.0
        %3473 = vmatprep.subr.mxu0 0.0
        %3474 = vmatpush1.msra.mxu0 0.0
        %3475 = vmatprep.subr.mxu0 0.0
        %3476 = vmatpush1.msra.mxu0 0.0
        %3477 = vmatprep.subr.mxu0 0.0
        %3478 = vmatpush1.msra.mxu0 0.0
        %3479 = vmatprep.subr.mxu0 0.0
        %3480 = vmatpush1.msra.mxu0 0.0
        %3481 = vmatprep.subr.mxu0 0.0
        %3482 = vmatpush1.msra.mxu0 0.0
        %3483 = vmatprep.subr.mxu0 0.0
        %3484 = vmatpush1.msra.mxu0 0.0
        %3485 = vmatprep.subr.mxu0 0.0
        %3486 = vmatpush1.msra.mxu0 0.0
        %3487 = vmatprep.subr.mxu0 0.0
        %3488 = vmatpush1.msra.mxu0 0.0
        %3489 = vmatprep.subr.mxu0 0.0
        %3490 = vmatpush1.msra.mxu0 0.0
        %3491 = vmatprep.subr.mxu0 0.0
        %3492 = vmatpush1.msra.mxu0 0.0
        %3493 = vmatprep.subr.mxu0 0.0
        %3494 = vmatpush1.msra.mxu0 0.0
        %3495 = vmatprep.subr.mxu0 0.0
        %3496 = vmatpush1.msra.mxu0 0.0
        %3497 = vmatprep.subr.mxu0 0.0
        %3498 = vmatpush1.msra.mxu0 0.0
        %3499 = vmatprep.subr.mxu0 0.0
        %3500 = vmatpush1.msra.mxu0 0.0
        %3501 = vmatprep.subr.mxu0 0.0
        %3502 = vmatpush1.msra.mxu0 0.0
        %3503 = vmatprep.subr.mxu0 0.0
        %3504 = vmatpush1.msra.mxu0 0.0
        %3505 = vmatprep.subr.mxu0 0.0
        %3506 = vmatpush1.msra.mxu0 0.0
        %3507 = vmatprep.subr.mxu0 0.0
        %3508 = vmatpush1.msra.mxu0 0.0
        %3509 = vmatprep.subr.mxu0 0.0
        %3510 = vmatpush1.msra.mxu0 0.0
        %3511 = vmatprep.subr.mxu0 0.0
        %3512 = vmatpush1.msra.mxu0 0.0
        %3513 = vmatprep.subr.mxu0 0.0
        %3514 = vmatpush1.msra.mxu0 0.0
        %3515 = vmatprep.subr.mxu0 0.0
        %3516 = vmatpush1.msra.mxu0 0.0
        %3517 = vmatprep.subr.mxu0 0.0
        %3518 = vmatpush1.msra.mxu0 0.0
        %3519 = vmatprep.subr.mxu0 0.0
        %3520 = vmatpush1.msra.mxu0 0.0
        %3521 = vmatprep.subr.mxu0 0.0
        %3522 = vmatpush1.msra.mxu0 0.0
        %3523 = vmatprep.subr.mxu0 0.0
        %3524 = vmatpush1.msra.mxu0 0.0
        %3525 = vmatprep.subr.mxu0 0.0
        %3526 = vmatpush1.msra.mxu0 0.0
        %3527 = vmatprep.subr.mxu0 0.0
        %3528 = vmatpush1.msra.mxu0 0.0
        %3529 = vmatprep.mubr.f32.mxu0 0.0
        %v3530 = vand.u32 %v3349, 4294901760
        %3531 = vmatmul.mubr.f32.gmra.mrb[0].mxu0 %v3530
        %v3532 = vpop.f32.mrb[0].mxu0
        %v3533 = vadd.f32 %v3430, %v3532
        %v3534 = vpop.f32.mrb[0].mxu0
        %v3535 = vadd.f32 %v3432, %v3534
        %3536 = vmatprep.mubr.f32.mxu0 0.0
        %v3537 = vand.u32 %v3352, 4294901760
        %3538 = vmatmul.mubr.f32.gmra.mrb[0].mxu0 %v3537
        %v3539 = vpop.f32.mrb[0].mxu0
        %v3540 = vadd.f32 %v3441, %v3539
        %v3541 = vpop.f32.mrb[0].mxu0
        %v3542 = vadd.f32 %v3443, %v3541
        %3543 = vdwg.mxu0
        %v3544 = vand.u32 %v3341, 4294901760
        %v3545 = vsub.f32 %v3341, %v3544
        %3546 = vmatprep.subr.mxu0 %v3545
        %v3547 = vand.u32 %v3340, 4294901760
        %v3548 = vsub.f32 %v3340, %v3547
        %3549 = vmatpush1.msra.mxu0 %v3548
        %v3550 = vand.u32 %v3343, 4294901760
        %v3551 = vsub.f32 %v3343, %v3550
        %3552 = vmatprep.subr.mxu0 %v3551
        %v3553 = vand.u32 %v3342, 4294901760
        %v3554 = vsub.f32 %v3342, %v3553
        %3555 = vmatpush1.msra.mxu0 %v3554
        %3556 = vmatprep.subr.mxu0 0.0
        %3557 = vmatpush1.msra.mxu0 0.0
        %3558 = vmatprep.subr.mxu0 0.0
        %3559 = vmatpush1.msra.mxu0 0.0
        %3560 = vmatprep.subr.mxu0 0.0
        %3561 = vmatpush1.msra.mxu0 0.0
        %3562 = vmatprep.subr.mxu0 0.0
        %3563 = vmatpush1.msra.mxu0 0.0
        %3564 = vmatprep.subr.mxu0 0.0
        %3565 = vmatpush1.msra.mxu0 0.0
        %3566 = vmatprep.subr.mxu0 0.0
        %3567 = vmatpush1.msra.mxu0 0.0
        %3568 = vmatprep.subr.mxu0 0.0
        %3569 = vmatpush1.msra.mxu0 0.0
        %3570 = vmatprep.subr.mxu0 0.0
        %3571 = vmatpush1.msra.mxu0 0.0
        %3572 = vmatprep.subr.mxu0 0.0
        %3573 = vmatpush1.msra.mxu0 0.0
        %3574 = vmatprep.subr.mxu0 0.0
        %3575 = vmatpush1.msra.mxu0 0.0
        %3576 = vmatprep.subr.mxu0 0.0
        %3577 = vmatpush1.msra.mxu0 0.0
        %3578 = vmatprep.subr.mxu0 0.0
        %3579 = vmatpush1.msra.mxu0 0.0
        %3580 = vmatprep.subr.mxu0 0.0
        %3581 = vmatpush1.msra.mxu0 0.0
        %3582 = vmatprep.subr.mxu0 0.0
        %3583 = vmatpush1.msra.mxu0 0.0
        %3584 = vmatprep.subr.mxu0 0.0
        %3585 = vmatpush1.msra.mxu0 0.0
        %3586 = vmatprep.subr.mxu0 0.0
        %3587 = vmatpush1.msra.mxu0 0.0
        %3588 = vmatprep.subr.mxu0 0.0
        %3589 = vmatpush1.msra.mxu0 0.0
        %3590 = vmatprep.subr.mxu0 0.0
        %3591 = vmatpush1.msra.mxu0 0.0
        %3592 = vmatprep.subr.mxu0 0.0
        %3593 = vmatpush1.msra.mxu0 0.0
        %3594 = vmatprep.subr.mxu0 0.0
        %3595 = vmatpush1.msra.mxu0 0.0
        %3596 = vmatprep.subr.mxu0 0.0
        %3597 = vmatpush1.msra.mxu0 0.0
        %3598 = vmatprep.subr.mxu0 0.0
        %3599 = vmatpush1.msra.mxu0 0.0
        %3600 = vmatprep.subr.mxu0 0.0
        %3601 = vmatpush1.msra.mxu0 0.0
        %3602 = vmatprep.subr.mxu0 0.0
        %3603 = vmatpush1.msra.mxu0 0.0
        %3604 = vmatprep.subr.mxu0 0.0
        %3605 = vmatpush1.msra.mxu0 0.0
        %3606 = vmatprep.subr.mxu0 0.0
        %3607 = vmatpush1.msra.mxu0 0.0
        %3608 = vmatprep.subr.mxu0 0.0
        %3609 = vmatpush1.msra.mxu0 0.0
        %3610 = vmatprep.subr.mxu0 0.0
        %3611 = vmatpush1.msra.mxu0 0.0
        %3612 = vmatprep.subr.mxu0 0.0
        %3613 = vmatpush1.msra.mxu0 0.0
        %3614 = vmatprep.subr.mxu0 0.0
        %3615 = vmatpush1.msra.mxu0 0.0
        %3616 = vmatprep.mubr.f32.mxu0 0.0
        %v3617 = vand.u32 %v3349, 4294901760
        %v3618 = vsub.f32 %v3349, %v3617
        %3619 = vmatmul.mubr.f32.gmra.mrb[0].mxu0 %v3618
        %v3620 = vpop.f32.mrb[0].mxu0
        %v3621 = vadd.f32 %v3533, %v3620
        %v3622 = vpop.f32.mrb[0].mxu0
        %v3623 = vadd.f32 %v3535, %v3622
        %3624 = vmatprep.mubr.f32.mxu0 0.0
        %v3625 = vand.u32 %v3352, 4294901760
        %v3626 = vsub.f32 %v3352, %v3625
        %3627 = vmatmul.mubr.f32.gmra.mrb[0].mxu0 %v3626
        %v3628 = vpop.f32.mrb[0].mxu0
        %v3629 = vadd.f32 %v3540, %v3628
        %v3630 = vpop.f32.mrb[0].mxu0
        %v3631 = vadd.f32 %v3542, %v3630
        %3632 = vdwg.mxu0
        %v3633 = vand.u32 %v3341, 4294901760
        %3634 = vmatprep.subr.mxu0 %v3633
        %v3635 = vand.u32 %v3340, 4294901760
        %3636 = vmatpush1.msra.mxu0 %v3635
        %v3637 = vand.u32 %v3343, 4294901760
        %3638 = vmatprep.subr.mxu0 %v3637
        %v3639 = vand.u32 %v3342, 4294901760
        %3640 = vmatpush1.msra.mxu0 %v3639
        %3641 = vmatprep.subr.mxu0 0.0
        %3642 = vmatpush1.msra.mxu0 0.0
        %3643 = vmatprep.subr.mxu0 0.0
        %3644 = vmatpush1.msra.mxu0 0.0
        %3645 = vmatprep.subr.mxu0 0.0
        %3646 = vmatpush1.msra.mxu0 0.0
        %3647 = vmatprep.subr.mxu0 0.0
        %3648 = vmatpush1.msra.mxu0 0.0
        %3649 = vmatprep.subr.mxu0 0.0
        %3650 = vmatpush1.msra.mxu0 0.0
        %3651 = vmatprep.subr.mxu0 0.0
        %3652 = vmatpush1.msra.mxu0 0.0
        %3653 = vmatprep.subr.mxu0 0.0
        %3654 = vmatpush1.msra.mxu0 0.0
        %3655 = vmatprep.subr.mxu0 0.0
        %3656 = vmatpush1.msra.mxu0 0.0
        %3657 = vmatprep.subr.mxu0 0.0
        %3658 = vmatpush1.msra.mxu0 0.0
        %3659 = vmatprep.subr.mxu0 0.0
        %3660 = vmatpush1.msra.mxu0 0.0
        %3661 = vmatprep.subr.mxu0 0.0
        %3662 = vmatpush1.msra.mxu0 0.0
        %3663 = vmatprep.subr.mxu0 0.0
        %3664 = vmatpush1.msra.mxu0 0.0
        %3665 = vmatprep.subr.mxu0 0.0
        %3666 = vmatpush1.msra.mxu0 0.0
        %3667 = vmatprep.subr.mxu0 0.0
        %3668 = vmatpush1.msra.mxu0 0.0
        %3669 = vmatprep.subr.mxu0 0.0
        %3670 = vmatpush1.msra.mxu0 0.0
        %3671 = vmatprep.subr.mxu0 0.0
        %3672 = vmatpush1.msra.mxu0 0.0
        %3673 = vmatprep.subr.mxu0 0.0
        %3674 = vmatpush1.msra.mxu0 0.0
        %3675 = vmatprep.subr.mxu0 0.0
        %3676 = vmatpush1.msra.mxu0 0.0
        %3677 = vmatprep.subr.mxu0 0.0
        %3678 = vmatpush1.msra.mxu0 0.0
        %3679 = vmatprep.subr.mxu0 0.0
        %3680 = vmatpush1.msra.mxu0 0.0
        %3681 = vmatprep.subr.mxu0 0.0
        %3682 = vmatpush1.msra.mxu0 0.0
        %3683 = vmatprep.subr.mxu0 0.0
        %3684 = vmatpush1.msra.mxu0 0.0
        %3685 = vmatprep.subr.mxu0 0.0
        %3686 = vmatpush1.msra.mxu0 0.0
        %3687 = vmatprep.subr.mxu0 0.0
        %3688 = vmatpush1.msra.mxu0 0.0
        %3689 = vmatprep.subr.mxu0 0.0
        %3690 = vmatpush1.msra.mxu0 0.0
        %3691 = vmatprep.subr.mxu0 0.0
        %3692 = vmatpush1.msra.mxu0 0.0
        %3693 = vmatprep.subr.mxu0 0.0
        %3694 = vmatpush1.msra.mxu0 0.0
        %3695 = vmatprep.subr.mxu0 0.0
        %3696 = vmatpush1.msra.mxu0 0.0
        %3697 = vmatprep.subr.mxu0 0.0
        %3698 = vmatpush1.msra.mxu0 0.0
        %3699 = vmatprep.subr.mxu0 0.0
        %3700 = vmatpush1.msra.mxu0 0.0
        %3701 = vmatprep.mubr.f32.mxu0 0.0
        %v3702 = vand.u32 %v3349, 4294901760
        %v3703 = vsub.f32 %v3349, %v3702
        %v3704 = vand.u32 %v3703, 4294901760
        %3705 = vmatmul.mubr.f32.gmra.mrb[0].mxu0 %v3704
        %v3706 = vpop.f32.mrb[0].mxu0
        %v3707 = vadd.f32 %v3621, %v3706
        %v3708 = vpop.f32.mrb[0].mxu0
        %v3709 = vadd.f32 %v3623, %v3708
        %3710 = vmatprep.mubr.f32.mxu0 0.0
        %v3711 = vand.u32 %v3352, 4294901760
        %v3712 = vsub.f32 %v3352, %v3711
        %v3713 = vand.u32 %v3712, 4294901760
        %3714 = vmatmul.mubr.f32.gmra.mrb[0].mxu0 %v3713
        %v3715 = vpop.f32.mrb[0].mxu0
        %v3716 = vadd.f32 %v3629, %v3715
        %v3717 = vpop.f32.mrb[0].mxu0
        %v3718 = vadd.f32 %v3631, %v3717
        %3719 = vdwg.mxu0
        %v3720 = vand.u32 %v3341, 4294901760
        %v3721 = vsub.f32 %v3341, %v3720
        %v3722 = vand.u32 %v3721, 4294901760
        %3723 = vmatprep.subr.mxu0 %v3722
        %v3724 = vand.u32 %v3340, 4294901760
        %v3725 = vsub.f32 %v3340, %v3724
        %v3726 = vand.u32 %v3725, 4294901760
        %3727 = vmatpush1.msra.mxu0 %v3726
        %v3728 = vand.u32 %v3343, 4294901760
        %v3729 = vsub.f32 %v3343, %v3728
        %v3730 = vand.u32 %v3729, 4294901760
        %3731 = vmatprep.subr.mxu0 %v3730
        %v3732 = vand.u32 %v3342, 4294901760
        %v3733 = vsub.f32 %v3342, %v3732
        %v3734 = vand.u32 %v3733, 4294901760
        %3735 = vmatpush1.msra.mxu0 %v3734
        %3736 = vmatprep.subr.mxu0 0.0
        %3737 = vmatpush1.msra.mxu0 0.0
        %3738 = vmatprep.subr.mxu0 0.0
        %3739 = vmatpush1.msra.mxu0 0.0
        %3740 = vmatprep.subr.mxu0 0.0
        %3741 = vmatpush1.msra.mxu0 0.0
        %3742 = vmatprep.subr.mxu0 0.0
        %3743 = vmatpush1.msra.mxu0 0.0
        %3744 = vmatprep.subr.mxu0 0.0
        %3745 = vmatpush1.msra.mxu0 0.0
        %3746 = vmatprep.subr.mxu0 0.0
        %3747 = vmatpush1.msra.mxu0 0.0
        %3748 = vmatprep.subr.mxu0 0.0
        %3749 = vmatpush1.msra.mxu0 0.0
        %3750 = vmatprep.subr.mxu0 0.0
        %3751 = vmatpush1.msra.mxu0 0.0
        %3752 = vmatprep.subr.mxu0 0.0
        %3753 = vmatpush1.msra.mxu0 0.0
        %3754 = vmatprep.subr.mxu0 0.0
        %3755 = vmatpush1.msra.mxu0 0.0
        %3756 = vmatprep.subr.mxu0 0.0
        %3757 = vmatpush1.msra.mxu0 0.0
        %3758 = vmatprep.subr.mxu0 0.0
        %3759 = vmatpush1.msra.mxu0 0.0
        %3760 = vmatprep.subr.mxu0 0.0
        %3761 = vmatpush1.msra.mxu0 0.0
        %3762 = vmatprep.subr.mxu0 0.0
        %3763 = vmatpush1.msra.mxu0 0.0
        %3764 = vmatprep.subr.mxu0 0.0
        %3765 = vmatpush1.msra.mxu0 0.0
        %3766 = vmatprep.subr.mxu0 0.0
        %3767 = vmatpush1.msra.mxu0 0.0
        %3768 = vmatprep.subr.mxu0 0.0
        %3769 = vmatpush1.msra.mxu0 0.0
        %3770 = vmatprep.subr.mxu0 0.0
        %3771 = vmatpush1.msra.mxu0 0.0
        %3772 = vmatprep.subr.mxu0 0.0
        %3773 = vmatpush1.msra.mxu0 0.0
        %3774 = vmatprep.subr.mxu0 0.0
        %3775 = vmatpush1.msra.mxu0 0.0
        %3776 = vmatprep.subr.mxu0 0.0
        %3777 = vmatpush1.msra.mxu0 0.0
        %3778 = vmatprep.subr.mxu0 0.0
        %3779 = vmatpush1.msra.mxu0 0.0
        %3780 = vmatprep.subr.mxu0 0.0
        %3781 = vmatpush1.msra.mxu0 0.0
        %3782 = vmatprep.subr.mxu0 0.0
        %3783 = vmatpush1.msra.mxu0 0.0
        %3784 = vmatprep.subr.mxu0 0.0
        %3785 = vmatpush1.msra.mxu0 0.0
        %3786 = vmatprep.subr.mxu0 0.0
        %3787 = vmatpush1.msra.mxu0 0.0
        %3788 = vmatprep.subr.mxu0 0.0
        %3789 = vmatpush1.msra.mxu0 0.0
        %3790 = vmatprep.subr.mxu0 0.0
        %3791 = vmatpush1.msra.mxu0 0.0
        %3792 = vmatprep.subr.mxu0 0.0
        %3793 = vmatpush1.msra.mxu0 0.0
        %3794 = vmatprep.subr.mxu0 0.0
        %3795 = vmatpush1.msra.mxu0 0.0
        %3796 = vmatprep.mubr.f32.mxu0 0.0
        %v3797 = vand.u32 %v3349, 4294901760
        %3798 = vmatmul.mubr.f32.gmra.mrb[0].mxu0 %v3797
        %v3799 = vpop.f32.mrb[0].mxu0
        %v3800 = vadd.f32 %v3707, %v3799
        %v3801 = vpop.f32.mrb[0].mxu0
        %v3802 = vadd.f32 %v3709, %v3801
        %3803 = vmatprep.mubr.f32.mxu0 0.0
        %v3804 = vand.u32 %v3352, 4294901760
        %3805 = vmatmul.mubr.f32.gmra.mrb[0].mxu0 %v3804
        %v3806 = vpop.f32.mrb[0].mxu0
        %v3807 = vadd.f32 %v3716, %v3806
        %v3808 = vpop.f32.mrb[0].mxu0
        %v3809 = vadd.f32 %v3718, %v3808
        %3810 = vdwg.mxu0
        %v3811 = vand.u32 %v3341, 4294901760
        %3812 = vmatprep.subr.mxu0 %v3811
        %v3813 = vand.u32 %v3340, 4294901760
        %3814 = vmatpush1.msra.mxu0 %v3813
        %v3815 = vand.u32 %v3343, 4294901760
        %3816 = vmatprep.subr.mxu0 %v3815
        %v3817 = vand.u32 %v3342, 4294901760
        %3818 = vmatpush1.msra.mxu0 %v3817
        %3819 = vmatprep.subr.mxu0 0.0
        %3820 = vmatpush1.msra.mxu0 0.0
        %3821 = vmatprep.subr.mxu0 0.0
        %3822 = vmatpush1.msra.mxu0 0.0
        %3823 = vmatprep.subr.mxu0 0.0
        %3824 = vmatpush1.msra.mxu0 0.0
        %3825 = vmatprep.subr.mxu0 0.0
        %3826 = vmatpush1.msra.mxu0 0.0
        %3827 = vmatprep.subr.mxu0 0.0
        %3828 = vmatpush1.msra.mxu0 0.0
        %3829 = vmatprep.subr.mxu0 0.0
        %3830 = vmatpush1.msra.mxu0 0.0
        %3831 = vmatprep.subr.mxu0 0.0
        %3832 = vmatpush1.msra.mxu0 0.0
        %3833 = vmatprep.subr.mxu0 0.0
        %3834 = vmatpush1.msra.mxu0 0.0
        %3835 = vmatprep.subr.mxu0 0.0
        %3836 = vmatpush1.msra.mxu0 0.0
        %3837 = vmatprep.subr.mxu0 0.0
        %3838 = vmatpush1.msra.mxu0 0.0
        %3839 = vmatprep.subr.mxu0 0.0
        %3840 = vmatpush1.msra.mxu0 0.0
        %3841 = vmatprep.subr.mxu0 0.0
        %3842 = vmatpush1.msra.mxu0 0.0
        %3843 = vmatprep.subr.mxu0 0.0
        %3844 = vmatpush1.msra.mxu0 0.0
        %3845 = vmatprep.subr.mxu0 0.0
        %3846 = vmatpush1.msra.mxu0 0.0
        %3847 = vmatprep.subr.mxu0 0.0
        %3848 = vmatpush1.msra.mxu0 0.0
        %3849 = vmatprep.subr.mxu0 0.0
        %3850 = vmatpush1.msra.mxu0 0.0
        %3851 = vmatprep.subr.mxu0 0.0
        %3852 = vmatpush1.msra.mxu0 0.0
        %3853 = vmatprep.subr.mxu0 0.0
        %3854 = vmatpush1.msra.mxu0 0.0
        %3855 = vmatprep.subr.mxu0 0.0
        %3856 = vmatpush1.msra.mxu0 0.0
        %3857 = vmatprep.subr.mxu0 0.0
        %3858 = vmatpush1.msra.mxu0 0.0
        %3859 = vmatprep.subr.mxu0 0.0
        %3860 = vmatpush1.msra.mxu0 0.0
        %3861 = vmatprep.subr.mxu0 0.0
        %3862 = vmatpush1.msra.mxu0 0.0
        %3863 = vmatprep.subr.mxu0 0.0
        %3864 = vmatpush1.msra.mxu0 0.0
        %3865 = vmatprep.subr.mxu0 0.0
        %3866 = vmatpush1.msra.mxu0 0.0
        %3867 = vmatprep.subr.mxu0 0.0
        %3868 = vmatpush1.msra.mxu0 0.0
        %3869 = vmatprep.subr.mxu0 0.0
        %3870 = vmatpush1.msra.mxu0 0.0
        %3871 = vmatprep.subr.mxu0 0.0
        %3872 = vmatpush1.msra.mxu0 0.0
        %3873 = vmatprep.subr.mxu0 0.0
        %3874 = vmatpush1.msra.mxu0 0.0
        %3875 = vmatprep.subr.mxu0 0.0
        %3876 = vmatpush1.msra.mxu0 0.0
        %3877 = vmatprep.subr.mxu0 0.0
        %3878 = vmatpush1.msra.mxu0 0.0
        %3879 = vmatprep.mubr.f32.mxu0 0.0
        %v3880 = vand.u32 %v3349, 4294901760
        %3881 = vmatmul.mubr.f32.gmra.mrb[0].mxu0 %v3880
        %v3882 = vpop.f32.mrb[0].mxu0
        %v3883 = vadd.f32 %v3800, %v3882
        %v3884 = vpop.f32.mrb[0].mxu0
        %v3885 = vadd.f32 %v3802, %v3884
        %3886 = vmatprep.mubr.f32.mxu0 0.0
        %v3887 = vand.u32 %v3352, 4294901760
        %3888 = vmatmul.mubr.f32.gmra.mrb[0].mxu0 %v3887
        %v3889 = vpop.f32.mrb[0].mxu0
        %v3890 = vadd.f32 %v3807, %v3889
        %v3891 = vpop.f32.mrb[0].mxu0
        %v3892 = vadd.f32 %v3809, %v3891
        %3893 = vdwg.mxu0
        %v3894 = vadd.f32 %v3284, %v3883
        %v3895 = vadd.f32 %v3286, %v3885
        %v3896 = vadd.f32 %v3291, %v3890
        %v3897 = vadd.f32 %v3293, %v3892
        %3898 = vrot.lane.b32.xlu0 %v2159, 16
        %v3899 = vpop.permute.xlu0 %3898
        %3900 = vrot.lane.b32.xlu0 %v2163, 16
        %v3901 = vpop.permute.xlu0 %3900
        %v3902 = vsel %vm631, %v3899, %v3901
        %v3906 = vmul.f32 %v2150, %v3899
        %v3907 = vmul.f32 %v2151, %v3902
        %v3908 = vmul.f32 %v2172, %v3901
        %v3909 = vmul.f32 %v2152, %v3899
        %v3910 = vmul.f32 %v2153, %v3902
        %v3911 = vmul.f32 %v2173, %v3901
        %s3912 = scalar_lea.vmem %s8, 48
        %v3913 = vld [vmem:[%s3912] sm:$0xff]
        %v3914 = vld [vmem:[%s3912 + $0x8] sm:$0xff]
        %3921 = vrot.lane.b32.xlu0 %v3906, 112
        %v3922 = vpop.permute.xlu0 %3921
        %3923 = vrot.lane.b32.xlu0 %v3907, 112
        %v3924 = vpop.permute.xlu0 %3923
        %3925 = vrot.lane.b32.xlu0 %v3908, 112
        %v3926 = vpop.permute.xlu0 %3925
        %3927 = vrot.lane.b32.xlu0 %v3909, 112
        %v3928 = vpop.permute.xlu0 %3927
        %3929 = vrot.lane.b32.xlu0 %v3910, 112
        %v3930 = vpop.permute.xlu0 %3929
        %3931 = vrot.lane.b32.xlu0 %v3911, 112
        %v3932 = vpop.permute.xlu0 %3931
        %v3933 = vsel %vm655, %v3922, %v3924
        %v3934 = vsel %vm655, %v3924, %v3926
        %v3935 = vsel %vm655, %v3928, %v3930
        %v3936 = vsel %vm655, %v3930, %v3932
        %v3942 = vsel %vm631, %v3913, 0
        %v3945 = vsel %vm631, %v3914, 0
        %v3947 = vand.u32 %v3934, 4294901760
        %3948 = vmatprep.subr.mxu0 %v3947
        %v3949 = vand.u32 %v3933, 4294901760
        %3950 = vmatpush1.msra.mxu0 %v3949
        %v3951 = vand.u32 %v3936, 4294901760
        %3952 = vmatprep.subr.mxu0 %v3951
        %v3953 = vand.u32 %v3935, 4294901760
        %3954 = vmatpush1.msra.mxu0 %v3953
        %3955 = vmatprep.subr.mxu0 0.0
        %3956 = vmatpush1.msra.mxu0 0.0
        %3957 = vmatprep.subr.mxu0 0.0
        %3958 = vmatpush1.msra.mxu0 0.0
        %3959 = vmatprep.subr.mxu0 0.0
        %3960 = vmatpush1.msra.mxu0 0.0
        %3961 = vmatprep.subr.mxu0 0.0
        %3962 = vmatpush1.msra.mxu0 0.0
        %3963 = vmatprep.subr.mxu0 0.0
        %3964 = vmatpush1.msra.mxu0 0.0
        %3965 = vmatprep.subr.mxu0 0.0
        %3966 = vmatpush1.msra.mxu0 0.0
        %3967 = vmatprep.subr.mxu0 0.0
        %3968 = vmatpush1.msra.mxu0 0.0
        %3969 = vmatprep.subr.mxu0 0.0
        %3970 = vmatpush1.msra.mxu0 0.0
        %3971 = vmatprep.subr.mxu0 0.0
        %3972 = vmatpush1.msra.mxu0 0.0
        %3973 = vmatprep.subr.mxu0 0.0
        %3974 = vmatpush1.msra.mxu0 0.0
        %3975 = vmatprep.subr.mxu0 0.0
        %3976 = vmatpush1.msra.mxu0 0.0
        %3977 = vmatprep.subr.mxu0 0.0
        %3978 = vmatpush1.msra.mxu0 0.0
        %3979 = vmatprep.subr.mxu0 0.0
        %3980 = vmatpush1.msra.mxu0 0.0
        %3981 = vmatprep.subr.mxu0 0.0
        %3982 = vmatpush1.msra.mxu0 0.0
        %3983 = vmatprep.subr.mxu0 0.0
        %3984 = vmatpush1.msra.mxu0 0.0
        %3985 = vmatprep.subr.mxu0 0.0
        %3986 = vmatpush1.msra.mxu0 0.0
        %3987 = vmatprep.subr.mxu0 0.0
        %3988 = vmatpush1.msra.mxu0 0.0
        %3989 = vmatprep.subr.mxu0 0.0
        %3990 = vmatpush1.msra.mxu0 0.0
        %3991 = vmatprep.subr.mxu0 0.0
        %3992 = vmatpush1.msra.mxu0 0.0
        %3993 = vmatprep.subr.mxu0 0.0
        %3994 = vmatpush1.msra.mxu0 0.0
        %3995 = vmatprep.subr.mxu0 0.0
        %3996 = vmatpush1.msra.mxu0 0.0
        %3997 = vmatprep.subr.mxu0 0.0
        %3998 = vmatpush1.msra.mxu0 0.0
        %3999 = vmatprep.subr.mxu0 0.0
        %4000 = vmatpush1.msra.mxu0 0.0
        %4001 = vmatprep.subr.mxu0 0.0
        %4002 = vmatpush1.msra.mxu0 0.0
        %4003 = vmatprep.subr.mxu0 0.0
        %4004 = vmatpush1.msra.mxu0 0.0
        %4005 = vmatprep.subr.mxu0 0.0
        %4006 = vmatpush1.msra.mxu0 0.0
        %4007 = vmatprep.subr.mxu0 0.0
        %4008 = vmatpush1.msra.mxu0 0.0
        %4009 = vmatprep.subr.mxu0 0.0
        %4010 = vmatpush1.msra.mxu0 0.0
        %4011 = vmatprep.subr.mxu0 0.0
        %4012 = vmatpush1.msra.mxu0 0.0
        %4013 = vmatprep.subr.mxu0 0.0
        %4014 = vmatpush1.msra.mxu0 0.0
        %4015 = vmatprep.mubr.f32.mxu0 0.0
        %v4016 = vand.u32 %v3942, 4294901760
        %v4017 = vsub.f32 %v3942, %v4016
        %v4018 = vand.u32 %v4017, 4294901760
        %v4019 = vsub.f32 %v4017, %v4018
        %v4020 = vand.u32 %v4019, 4294901760
        %4021 = vmatmul.mubr.f32.gmra.mrb[0].mxu0 %v4020
        %v4022 = vpop.f32.mrb[0].mxu0
        %v4023 = vadd.f32 0.0, %v4022
        %v4024 = vpop.f32.mrb[0].mxu0
        %v4025 = vadd.f32 0.0, %v4024
        %4026 = vmatprep.mubr.f32.mxu0 0.0
        %v4027 = vand.u32 %v3945, 4294901760
        %v4028 = vsub.f32 %v3945, %v4027
        %v4029 = vand.u32 %v4028, 4294901760
        %v4030 = vsub.f32 %v4028, %v4029
        %v4031 = vand.u32 %v4030, 4294901760
        %4032 = vmatmul.mubr.f32.gmra.mrb[0].mxu0 %v4031
        %v4033 = vpop.f32.mrb[0].mxu0
        %v4034 = vadd.f32 0.0, %v4033
        %v4035 = vpop.f32.mrb[0].mxu0
        %v4036 = vadd.f32 0.0, %v4035
        %4037 = vdwg.mxu0
        %v4038 = vand.u32 %v3934, 4294901760
        %v4039 = vsub.f32 %v3934, %v4038
        %v4040 = vand.u32 %v4039, 4294901760
        %v4041 = vsub.f32 %v4039, %v4040
        %v4042 = vand.u32 %v4041, 4294901760
        %4043 = vmatprep.subr.mxu0 %v4042
        %v4044 = vand.u32 %v3933, 4294901760
        %v4045 = vsub.f32 %v3933, %v4044
        %v4046 = vand.u32 %v4045, 4294901760
        %v4047 = vsub.f32 %v4045, %v4046
        %v4048 = vand.u32 %v4047, 4294901760
        %4049 = vmatpush1.msra.mxu0 %v4048
        %v4050 = vand.u32 %v3936, 4294901760
        %v4051 = vsub.f32 %v3936, %v4050
        %v4052 = vand.u32 %v4051, 4294901760
        %v4053 = vsub.f32 %v4051, %v4052
        %v4054 = vand.u32 %v4053, 4294901760
        %4055 = vmatprep.subr.mxu0 %v4054
        %v4056 = vand.u32 %v3935, 4294901760
        %v4057 = vsub.f32 %v3935, %v4056
        %v4058 = vand.u32 %v4057, 4294901760
        %v4059 = vsub.f32 %v4057, %v4058
        %v4060 = vand.u32 %v4059, 4294901760
        %4061 = vmatpush1.msra.mxu0 %v4060
        %4062 = vmatprep.subr.mxu0 0.0
        %4063 = vmatpush1.msra.mxu0 0.0
        %4064 = vmatprep.subr.mxu0 0.0
        %4065 = vmatpush1.msra.mxu0 0.0
        %4066 = vmatprep.subr.mxu0 0.0
        %4067 = vmatpush1.msra.mxu0 0.0
        %4068 = vmatprep.subr.mxu0 0.0
        %4069 = vmatpush1.msra.mxu0 0.0
        %4070 = vmatprep.subr.mxu0 0.0
        %4071 = vmatpush1.msra.mxu0 0.0
        %4072 = vmatprep.subr.mxu0 0.0
        %4073 = vmatpush1.msra.mxu0 0.0
        %4074 = vmatprep.subr.mxu0 0.0
        %4075 = vmatpush1.msra.mxu0 0.0
        %4076 = vmatprep.subr.mxu0 0.0
        %4077 = vmatpush1.msra.mxu0 0.0
        %4078 = vmatprep.subr.mxu0 0.0
        %4079 = vmatpush1.msra.mxu0 0.0
        %4080 = vmatprep.subr.mxu0 0.0
        %4081 = vmatpush1.msra.mxu0 0.0
        %4082 = vmatprep.subr.mxu0 0.0
        %4083 = vmatpush1.msra.mxu0 0.0
        %4084 = vmatprep.subr.mxu0 0.0
        %4085 = vmatpush1.msra.mxu0 0.0
        %4086 = vmatprep.subr.mxu0 0.0
        %4087 = vmatpush1.msra.mxu0 0.0
        %4088 = vmatprep.subr.mxu0 0.0
        %4089 = vmatpush1.msra.mxu0 0.0
        %4090 = vmatprep.subr.mxu0 0.0
        %4091 = vmatpush1.msra.mxu0 0.0
        %4092 = vmatprep.subr.mxu0 0.0
        %4093 = vmatpush1.msra.mxu0 0.0
        %4094 = vmatprep.subr.mxu0 0.0
        %4095 = vmatpush1.msra.mxu0 0.0
        %4096 = vmatprep.subr.mxu0 0.0
        %4097 = vmatpush1.msra.mxu0 0.0
        %4098 = vmatprep.subr.mxu0 0.0
        %4099 = vmatpush1.msra.mxu0 0.0
        %4100 = vmatprep.subr.mxu0 0.0
        %4101 = vmatpush1.msra.mxu0 0.0
        %4102 = vmatprep.subr.mxu0 0.0
        %4103 = vmatpush1.msra.mxu0 0.0
        %4104 = vmatprep.subr.mxu0 0.0
        %4105 = vmatpush1.msra.mxu0 0.0
        %4106 = vmatprep.subr.mxu0 0.0
        %4107 = vmatpush1.msra.mxu0 0.0
        %4108 = vmatprep.subr.mxu0 0.0
        %4109 = vmatpush1.msra.mxu0 0.0
        %4110 = vmatprep.subr.mxu0 0.0
        %4111 = vmatpush1.msra.mxu0 0.0
        %4112 = vmatprep.subr.mxu0 0.0
        %4113 = vmatpush1.msra.mxu0 0.0
        %4114 = vmatprep.subr.mxu0 0.0
        %4115 = vmatpush1.msra.mxu0 0.0
        %4116 = vmatprep.subr.mxu0 0.0
        %4117 = vmatpush1.msra.mxu0 0.0
        %4118 = vmatprep.subr.mxu0 0.0
        %4119 = vmatpush1.msra.mxu0 0.0
        %4120 = vmatprep.subr.mxu0 0.0
        %4121 = vmatpush1.msra.mxu0 0.0
        %4122 = vmatprep.mubr.f32.mxu0 0.0
        %v4123 = vand.u32 %v3942, 4294901760
        %4124 = vmatmul.mubr.f32.gmra.mrb[0].mxu0 %v4123
        %v4125 = vpop.f32.mrb[0].mxu0
        %v4126 = vadd.f32 %v4023, %v4125
        %v4127 = vpop.f32.mrb[0].mxu0
        %v4128 = vadd.f32 %v4025, %v4127
        %4129 = vmatprep.mubr.f32.mxu0 0.0
        %v4130 = vand.u32 %v3945, 4294901760
        %4131 = vmatmul.mubr.f32.gmra.mrb[0].mxu0 %v4130
        %v4132 = vpop.f32.mrb[0].mxu0
        %v4133 = vadd.f32 %v4034, %v4132
        %v4134 = vpop.f32.mrb[0].mxu0
        %v4135 = vadd.f32 %v4036, %v4134
        %4136 = vdwg.mxu0
        %v4137 = vand.u32 %v3934, 4294901760
        %v4138 = vsub.f32 %v3934, %v4137
        %4139 = vmatprep.subr.mxu0 %v4138
        %v4140 = vand.u32 %v3933, 4294901760
        %v4141 = vsub.f32 %v3933, %v4140
        %4142 = vmatpush1.msra.mxu0 %v4141
        %v4143 = vand.u32 %v3936, 4294901760
        %v4144 = vsub.f32 %v3936, %v4143
        %4145 = vmatprep.subr.mxu0 %v4144
        %v4146 = vand.u32 %v3935, 4294901760
        %v4147 = vsub.f32 %v3935, %v4146
        %4148 = vmatpush1.msra.mxu0 %v4147
        %4149 = vmatprep.subr.mxu0 0.0
        %4150 = vmatpush1.msra.mxu0 0.0
        %4151 = vmatprep.subr.mxu0 0.0
        %4152 = vmatpush1.msra.mxu0 0.0
        %4153 = vmatprep.subr.mxu0 0.0
        %4154 = vmatpush1.msra.mxu0 0.0
        %4155 = vmatprep.subr.mxu0 0.0
        %4156 = vmatpush1.msra.mxu0 0.0
        %4157 = vmatprep.subr.mxu0 0.0
        %4158 = vmatpush1.msra.mxu0 0.0
        %4159 = vmatprep.subr.mxu0 0.0
        %4160 = vmatpush1.msra.mxu0 0.0
        %4161 = vmatprep.subr.mxu0 0.0
        %4162 = vmatpush1.msra.mxu0 0.0
        %4163 = vmatprep.subr.mxu0 0.0
        %4164 = vmatpush1.msra.mxu0 0.0
        %4165 = vmatprep.subr.mxu0 0.0
        %4166 = vmatpush1.msra.mxu0 0.0
        %4167 = vmatprep.subr.mxu0 0.0
        %4168 = vmatpush1.msra.mxu0 0.0
        %4169 = vmatprep.subr.mxu0 0.0
        %4170 = vmatpush1.msra.mxu0 0.0
        %4171 = vmatprep.subr.mxu0 0.0
        %4172 = vmatpush1.msra.mxu0 0.0
        %4173 = vmatprep.subr.mxu0 0.0
        %4174 = vmatpush1.msra.mxu0 0.0
        %4175 = vmatprep.subr.mxu0 0.0
        %4176 = vmatpush1.msra.mxu0 0.0
        %4177 = vmatprep.subr.mxu0 0.0
        %4178 = vmatpush1.msra.mxu0 0.0
        %4179 = vmatprep.subr.mxu0 0.0
        %4180 = vmatpush1.msra.mxu0 0.0
        %4181 = vmatprep.subr.mxu0 0.0
        %4182 = vmatpush1.msra.mxu0 0.0
        %4183 = vmatprep.subr.mxu0 0.0
        %4184 = vmatpush1.msra.mxu0 0.0
        %4185 = vmatprep.subr.mxu0 0.0
        %4186 = vmatpush1.msra.mxu0 0.0
        %4187 = vmatprep.subr.mxu0 0.0
        %4188 = vmatpush1.msra.mxu0 0.0
        %4189 = vmatprep.subr.mxu0 0.0
        %4190 = vmatpush1.msra.mxu0 0.0
        %4191 = vmatprep.subr.mxu0 0.0
        %4192 = vmatpush1.msra.mxu0 0.0
        %4193 = vmatprep.subr.mxu0 0.0
        %4194 = vmatpush1.msra.mxu0 0.0
        %4195 = vmatprep.subr.mxu0 0.0
        %4196 = vmatpush1.msra.mxu0 0.0
        %4197 = vmatprep.subr.mxu0 0.0
        %4198 = vmatpush1.msra.mxu0 0.0
        %4199 = vmatprep.subr.mxu0 0.0
        %4200 = vmatpush1.msra.mxu0 0.0
        %4201 = vmatprep.subr.mxu0 0.0
        %4202 = vmatpush1.msra.mxu0 0.0
        %4203 = vmatprep.subr.mxu0 0.0
        %4204 = vmatpush1.msra.mxu0 0.0
        %4205 = vmatprep.subr.mxu0 0.0
        %4206 = vmatpush1.msra.mxu0 0.0
        %4207 = vmatprep.subr.mxu0 0.0
        %4208 = vmatpush1.msra.mxu0 0.0
        %4209 = vmatprep.mubr.f32.mxu0 0.0
        %v4210 = vand.u32 %v3942, 4294901760
        %v4211 = vsub.f32 %v3942, %v4210
        %4212 = vmatmul.mubr.f32.gmra.mrb[0].mxu0 %v4211
        %v4213 = vpop.f32.mrb[0].mxu0
        %v4214 = vadd.f32 %v4126, %v4213
        %v4215 = vpop.f32.mrb[0].mxu0
        %v4216 = vadd.f32 %v4128, %v4215
        %4217 = vmatprep.mubr.f32.mxu0 0.0
        %v4218 = vand.u32 %v3945, 4294901760
        %v4219 = vsub.f32 %v3945, %v4218
        %4220 = vmatmul.mubr.f32.gmra.mrb[0].mxu0 %v4219
        %v4221 = vpop.f32.mrb[0].mxu0
        %v4222 = vadd.f32 %v4133, %v4221
        %v4223 = vpop.f32.mrb[0].mxu0
        %v4224 = vadd.f32 %v4135, %v4223
        %4225 = vdwg.mxu0
        %v4226 = vand.u32 %v3934, 4294901760
        %4227 = vmatprep.subr.mxu0 %v4226
        %v4228 = vand.u32 %v3933, 4294901760
        %4229 = vmatpush1.msra.mxu0 %v4228
        %v4230 = vand.u32 %v3936, 4294901760
        %4231 = vmatprep.subr.mxu0 %v4230
        %v4232 = vand.u32 %v3935, 4294901760
        %4233 = vmatpush1.msra.mxu0 %v4232
        %4234 = vmatprep.subr.mxu0 0.0
        %4235 = vmatpush1.msra.mxu0 0.0
        %4236 = vmatprep.subr.mxu0 0.0
        %4237 = vmatpush1.msra.mxu0 0.0
        %4238 = vmatprep.subr.mxu0 0.0
        %4239 = vmatpush1.msra.mxu0 0.0
        %4240 = vmatprep.subr.mxu0 0.0
        %4241 = vmatpush1.msra.mxu0 0.0
        %4242 = vmatprep.subr.mxu0 0.0
        %4243 = vmatpush1.msra.mxu0 0.0
        %4244 = vmatprep.subr.mxu0 0.0
        %4245 = vmatpush1.msra.mxu0 0.0
        %4246 = vmatprep.subr.mxu0 0.0
        %4247 = vmatpush1.msra.mxu0 0.0
        %4248 = vmatprep.subr.mxu0 0.0
        %4249 = vmatpush1.msra.mxu0 0.0
        %4250 = vmatprep.subr.mxu0 0.0
        %4251 = vmatpush1.msra.mxu0 0.0
        %4252 = vmatprep.subr.mxu0 0.0
        %4253 = vmatpush1.msra.mxu0 0.0
        %4254 = vmatprep.subr.mxu0 0.0
        %4255 = vmatpush1.msra.mxu0 0.0
        %4256 = vmatprep.subr.mxu0 0.0
        %4257 = vmatpush1.msra.mxu0 0.0
        %4258 = vmatprep.subr.mxu0 0.0
        %4259 = vmatpush1.msra.mxu0 0.0
        %4260 = vmatprep.subr.mxu0 0.0
        %4261 = vmatpush1.msra.mxu0 0.0
        %4262 = vmatprep.subr.mxu0 0.0
        %4263 = vmatpush1.msra.mxu0 0.0
        %4264 = vmatprep.subr.mxu0 0.0
        %4265 = vmatpush1.msra.mxu0 0.0
        %4266 = vmatprep.subr.mxu0 0.0
        %4267 = vmatpush1.msra.mxu0 0.0
        %4268 = vmatprep.subr.mxu0 0.0
        %4269 = vmatpush1.msra.mxu0 0.0
        %4270 = vmatprep.subr.mxu0 0.0
        %4271 = vmatpush1.msra.mxu0 0.0
        %4272 = vmatprep.subr.mxu0 0.0
        %4273 = vmatpush1.msra.mxu0 0.0
        %4274 = vmatprep.subr.mxu0 0.0
        %4275 = vmatpush1.msra.mxu0 0.0
        %4276 = vmatprep.subr.mxu0 0.0
        %4277 = vmatpush1.msra.mxu0 0.0
        %4278 = vmatprep.subr.mxu0 0.0
        %4279 = vmatpush1.msra.mxu0 0.0
        %4280 = vmatprep.subr.mxu0 0.0
        %4281 = vmatpush1.msra.mxu0 0.0
        %4282 = vmatprep.subr.mxu0 0.0
        %4283 = vmatpush1.msra.mxu0 0.0
        %4284 = vmatprep.subr.mxu0 0.0
        %4285 = vmatpush1.msra.mxu0 0.0
        %4286 = vmatprep.subr.mxu0 0.0
        %4287 = vmatpush1.msra.mxu0 0.0
        %4288 = vmatprep.subr.mxu0 0.0
        %4289 = vmatpush1.msra.mxu0 0.0
        %4290 = vmatprep.subr.mxu0 0.0
        %4291 = vmatpush1.msra.mxu0 0.0
        %4292 = vmatprep.subr.mxu0 0.0
        %4293 = vmatpush1.msra.mxu0 0.0
        %4294 = vmatprep.mubr.f32.mxu0 0.0
        %v4295 = vand.u32 %v3942, 4294901760
        %v4296 = vsub.f32 %v3942, %v4295
        %v4297 = vand.u32 %v4296, 4294901760
        %4298 = vmatmul.mubr.f32.gmra.mrb[0].mxu0 %v4297
        %v4299 = vpop.f32.mrb[0].mxu0
        %v4300 = vadd.f32 %v4214, %v4299
        %v4301 = vpop.f32.mrb[0].mxu0
        %v4302 = vadd.f32 %v4216, %v4301
        %4303 = vmatprep.mubr.f32.mxu0 0.0
        %v4304 = vand.u32 %v3945, 4294901760
        %v4305 = vsub.f32 %v3945, %v4304
        %v4306 = vand.u32 %v4305, 4294901760
        %4307 = vmatmul.mubr.f32.gmra.mrb[0].mxu0 %v4306
        %v4308 = vpop.f32.mrb[0].mxu0
        %v4309 = vadd.f32 %v4222, %v4308
        %v4310 = vpop.f32.mrb[0].mxu0
        %v4311 = vadd.f32 %v4224, %v4310
        %4312 = vdwg.mxu0
        %v4313 = vand.u32 %v3934, 4294901760
        %v4314 = vsub.f32 %v3934, %v4313
        %v4315 = vand.u32 %v4314, 4294901760
        %4316 = vmatprep.subr.mxu0 %v4315
        %v4317 = vand.u32 %v3933, 4294901760
        %v4318 = vsub.f32 %v3933, %v4317
        %v4319 = vand.u32 %v4318, 4294901760
        %4320 = vmatpush1.msra.mxu0 %v4319
        %v4321 = vand.u32 %v3936, 4294901760
        %v4322 = vsub.f32 %v3936, %v4321
        %v4323 = vand.u32 %v4322, 4294901760
        %4324 = vmatprep.subr.mxu0 %v4323
        %v4325 = vand.u32 %v3935, 4294901760
        %v4326 = vsub.f32 %v3935, %v4325
        %v4327 = vand.u32 %v4326, 4294901760
        %4328 = vmatpush1.msra.mxu0 %v4327
        %4329 = vmatprep.subr.mxu0 0.0
        %4330 = vmatpush1.msra.mxu0 0.0
        %4331 = vmatprep.subr.mxu0 0.0
        %4332 = vmatpush1.msra.mxu0 0.0
        %4333 = vmatprep.subr.mxu0 0.0
        %4334 = vmatpush1.msra.mxu0 0.0
        %4335 = vmatprep.subr.mxu0 0.0
        %4336 = vmatpush1.msra.mxu0 0.0
        %4337 = vmatprep.subr.mxu0 0.0
        %4338 = vmatpush1.msra.mxu0 0.0
        %4339 = vmatprep.subr.mxu0 0.0
        %4340 = vmatpush1.msra.mxu0 0.0
        %4341 = vmatprep.subr.mxu0 0.0
        %4342 = vmatpush1.msra.mxu0 0.0
        %4343 = vmatprep.subr.mxu0 0.0
        %4344 = vmatpush1.msra.mxu0 0.0
        %4345 = vmatprep.subr.mxu0 0.0
        %4346 = vmatpush1.msra.mxu0 0.0
        %4347 = vmatprep.subr.mxu0 0.0
        %4348 = vmatpush1.msra.mxu0 0.0
        %4349 = vmatprep.subr.mxu0 0.0
        %4350 = vmatpush1.msra.mxu0 0.0
        %4351 = vmatprep.subr.mxu0 0.0
        %4352 = vmatpush1.msra.mxu0 0.0
        %4353 = vmatprep.subr.mxu0 0.0
        %4354 = vmatpush1.msra.mxu0 0.0
        %4355 = vmatprep.subr.mxu0 0.0
        %4356 = vmatpush1.msra.mxu0 0.0
        %4357 = vmatprep.subr.mxu0 0.0
        %4358 = vmatpush1.msra.mxu0 0.0
        %4359 = vmatprep.subr.mxu0 0.0
        %4360 = vmatpush1.msra.mxu0 0.0
        %4361 = vmatprep.subr.mxu0 0.0
        %4362 = vmatpush1.msra.mxu0 0.0
        %4363 = vmatprep.subr.mxu0 0.0
        %4364 = vmatpush1.msra.mxu0 0.0
        %4365 = vmatprep.subr.mxu0 0.0
        %4366 = vmatpush1.msra.mxu0 0.0
        %4367 = vmatprep.subr.mxu0 0.0
        %4368 = vmatpush1.msra.mxu0 0.0
        %4369 = vmatprep.subr.mxu0 0.0
        %4370 = vmatpush1.msra.mxu0 0.0
        %4371 = vmatprep.subr.mxu0 0.0
        %4372 = vmatpush1.msra.mxu0 0.0
        %4373 = vmatprep.subr.mxu0 0.0
        %4374 = vmatpush1.msra.mxu0 0.0
        %4375 = vmatprep.subr.mxu0 0.0
        %4376 = vmatpush1.msra.mxu0 0.0
        %4377 = vmatprep.subr.mxu0 0.0
        %4378 = vmatpush1.msra.mxu0 0.0
        %4379 = vmatprep.subr.mxu0 0.0
        %4380 = vmatpush1.msra.mxu0 0.0
        %4381 = vmatprep.subr.mxu0 0.0
        %4382 = vmatpush1.msra.mxu0 0.0
        %4383 = vmatprep.subr.mxu0 0.0
        %4384 = vmatpush1.msra.mxu0 0.0
        %4385 = vmatprep.subr.mxu0 0.0
        %4386 = vmatpush1.msra.mxu0 0.0
        %4387 = vmatprep.subr.mxu0 0.0
        %4388 = vmatpush1.msra.mxu0 0.0
        %4389 = vmatprep.mubr.f32.mxu0 0.0
        %v4390 = vand.u32 %v3942, 4294901760
        %4391 = vmatmul.mubr.f32.gmra.mrb[0].mxu0 %v4390
        %v4392 = vpop.f32.mrb[0].mxu0
        %v4393 = vadd.f32 %v4300, %v4392
        %v4394 = vpop.f32.mrb[0].mxu0
        %v4395 = vadd.f32 %v4302, %v4394
        %4396 = vmatprep.mubr.f32.mxu0 0.0
        %v4397 = vand.u32 %v3945, 4294901760
        %4398 = vmatmul.mubr.f32.gmra.mrb[0].mxu0 %v4397
        %v4399 = vpop.f32.mrb[0].mxu0
        %v4400 = vadd.f32 %v4309, %v4399
        %v4401 = vpop.f32.mrb[0].mxu0
        %v4402 = vadd.f32 %v4311, %v4401
        %4403 = vdwg.mxu0
        %v4404 = vand.u32 %v3934, 4294901760
        %4405 = vmatprep.subr.mxu0 %v4404
        %v4406 = vand.u32 %v3933, 4294901760
        %4407 = vmatpush1.msra.mxu0 %v4406
        %v4408 = vand.u32 %v3936, 4294901760
        %4409 = vmatprep.subr.mxu0 %v4408
        %v4410 = vand.u32 %v3935, 4294901760
        %4411 = vmatpush1.msra.mxu0 %v4410
        %4412 = vmatprep.subr.mxu0 0.0
        %4413 = vmatpush1.msra.mxu0 0.0
        %4414 = vmatprep.subr.mxu0 0.0
        %4415 = vmatpush1.msra.mxu0 0.0
        %4416 = vmatprep.subr.mxu0 0.0
        %4417 = vmatpush1.msra.mxu0 0.0
        %4418 = vmatprep.subr.mxu0 0.0
        %4419 = vmatpush1.msra.mxu0 0.0
        %4420 = vmatprep.subr.mxu0 0.0
        %4421 = vmatpush1.msra.mxu0 0.0
        %4422 = vmatprep.subr.mxu0 0.0
        %4423 = vmatpush1.msra.mxu0 0.0
        %4424 = vmatprep.subr.mxu0 0.0
        %4425 = vmatpush1.msra.mxu0 0.0
        %4426 = vmatprep.subr.mxu0 0.0
        %4427 = vmatpush1.msra.mxu0 0.0
        %4428 = vmatprep.subr.mxu0 0.0
        %4429 = vmatpush1.msra.mxu0 0.0
        %4430 = vmatprep.subr.mxu0 0.0
        %4431 = vmatpush1.msra.mxu0 0.0
        %4432 = vmatprep.subr.mxu0 0.0
        %4433 = vmatpush1.msra.mxu0 0.0
        %4434 = vmatprep.subr.mxu0 0.0
        %4435 = vmatpush1.msra.mxu0 0.0
        %4436 = vmatprep.subr.mxu0 0.0
        %4437 = vmatpush1.msra.mxu0 0.0
        %4438 = vmatprep.subr.mxu0 0.0
        %4439 = vmatpush1.msra.mxu0 0.0
        %4440 = vmatprep.subr.mxu0 0.0
        %4441 = vmatpush1.msra.mxu0 0.0
        %4442 = vmatprep.subr.mxu0 0.0
        %4443 = vmatpush1.msra.mxu0 0.0
        %4444 = vmatprep.subr.mxu0 0.0
        %4445 = vmatpush1.msra.mxu0 0.0
        %4446 = vmatprep.subr.mxu0 0.0
        %4447 = vmatpush1.msra.mxu0 0.0
        %4448 = vmatprep.subr.mxu0 0.0
        %4449 = vmatpush1.msra.mxu0 0.0
        %4450 = vmatprep.subr.mxu0 0.0
        %4451 = vmatpush1.msra.mxu0 0.0
        %4452 = vmatprep.subr.mxu0 0.0
        %4453 = vmatpush1.msra.mxu0 0.0
        %4454 = vmatprep.subr.mxu0 0.0
        %4455 = vmatpush1.msra.mxu0 0.0
        %4456 = vmatprep.subr.mxu0 0.0
        %4457 = vmatpush1.msra.mxu0 0.0
        %4458 = vmatprep.subr.mxu0 0.0
        %4459 = vmatpush1.msra.mxu0 0.0
        %4460 = vmatprep.subr.mxu0 0.0
        %4461 = vmatpush1.msra.mxu0 0.0
        %4462 = vmatprep.subr.mxu0 0.0
        %4463 = vmatpush1.msra.mxu0 0.0
        %4464 = vmatprep.subr.mxu0 0.0
        %4465 = vmatpush1.msra.mxu0 0.0
        %4466 = vmatprep.subr.mxu0 0.0
        %4467 = vmatpush1.msra.mxu0 0.0
        %4468 = vmatprep.subr.mxu0 0.0
        %4469 = vmatpush1.msra.mxu0 0.0
        %4470 = vmatprep.subr.mxu0 0.0
        %4471 = vmatpush1.msra.mxu0 0.0
        %4472 = vmatprep.mubr.f32.mxu0 0.0
        %v4473 = vand.u32 %v3942, 4294901760
        %4474 = vmatmul.mubr.f32.gmra.mrb[0].mxu0 %v4473
        %v4475 = vpop.f32.mrb[0].mxu0
        %v4476 = vadd.f32 %v4393, %v4475
        %v4477 = vpop.f32.mrb[0].mxu0
        %v4478 = vadd.f32 %v4395, %v4477
        %4479 = vmatprep.mubr.f32.mxu0 0.0
        %v4480 = vand.u32 %v3945, 4294901760
        %4481 = vmatmul.mubr.f32.gmra.mrb[0].mxu0 %v4480
        %v4482 = vpop.f32.mrb[0].mxu0
        %v4483 = vadd.f32 %v4400, %v4482
        %v4484 = vpop.f32.mrb[0].mxu0
        %v4485 = vadd.f32 %v4402, %v4484
        %4486 = vdwg.mxu0
        %v4487 = vadd.f32 %v3894, %v4476
        %v4488 = vadd.f32 %v3895, %v4478
        %v4489 = vadd.f32 %v3896, %v4483
        %v4490 = vadd.f32 %v3897, %v4485
        %s4491 = scalar_lea.vmem %s8, 64
        %v4492 = vld [vmem:[%s4491] sm:$0xff]
        %v4493 = vld [vmem:[%s4491 + $0x8] sm:$0xff]
        %4494 = vrot.lane.b32.xlu0 %v2150, 111
        %v4495 = vpop.permute.xlu0 %4494
        %4496 = vrot.lane.b32.xlu0 %v2151, 111
        %v4497 = vpop.permute.xlu0 %4496
        %4498 = vrot.lane.b32.xlu0 %v2172, 111
        %v4499 = vpop.permute.xlu0 %4498
        %4500 = vrot.lane.b32.xlu0 %v2152, 111
        %v4501 = vpop.permute.xlu0 %4500
        %4502 = vrot.lane.b32.xlu0 %v2153, 111
        %v4503 = vpop.permute.xlu0 %4502
        %4504 = vrot.lane.b32.xlu0 %v2173, 111
        %v4505 = vpop.permute.xlu0 %4504
        %v4506 = vsel %vm678, %v4495, %v4497
        %v4507 = vsel %vm678, %v4497, %v4499
        %v4508 = vsel %vm678, %v4501, %v4503
        %v4509 = vsel %vm678, %v4503, %v4505
        %v4515 = vsel %vm631, %v4492, 0
        %v4518 = vsel %vm631, %v4493, 0
        %v4520 = vand.u32 %v4507, 4294901760
        %4521 = vmatprep.subr.mxu0 %v4520
        %v4522 = vand.u32 %v4506, 4294901760
        %4523 = vmatpush1.msra.mxu0 %v4522
        %v4524 = vand.u32 %v4509, 4294901760
        %4525 = vmatprep.subr.mxu0 %v4524
        %v4526 = vand.u32 %v4508, 4294901760
        %4527 = vmatpush1.msra.mxu0 %v4526
        %4528 = vmatprep.subr.mxu0 0.0
        %4529 = vmatpush1.msra.mxu0 0.0
        %4530 = vmatprep.subr.mxu0 0.0
        %4531 = vmatpush1.msra.mxu0 0.0
        %4532 = vmatprep.subr.mxu0 0.0
        %4533 = vmatpush1.msra.mxu0 0.0
        %4534 = vmatprep.subr.mxu0 0.0
        %4535 = vmatpush1.msra.mxu0 0.0
        %4536 = vmatprep.subr.mxu0 0.0
        %4537 = vmatpush1.msra.mxu0 0.0
        %4538 = vmatprep.subr.mxu0 0.0
        %4539 = vmatpush1.msra.mxu0 0.0
        %4540 = vmatprep.subr.mxu0 0.0
        %4541 = vmatpush1.msra.mxu0 0.0
        %4542 = vmatprep.subr.mxu0 0.0
        %4543 = vmatpush1.msra.mxu0 0.0
        %4544 = vmatprep.subr.mxu0 0.0
        %4545 = vmatpush1.msra.mxu0 0.0
        %4546 = vmatprep.subr.mxu0 0.0
        %4547 = vmatpush1.msra.mxu0 0.0
        %4548 = vmatprep.subr.mxu0 0.0
        %4549 = vmatpush1.msra.mxu0 0.0
        %4550 = vmatprep.subr.mxu0 0.0
        %4551 = vmatpush1.msra.mxu0 0.0
        %4552 = vmatprep.subr.mxu0 0.0
        %4553 = vmatpush1.msra.mxu0 0.0
        %4554 = vmatprep.subr.mxu0 0.0
        %4555 = vmatpush1.msra.mxu0 0.0
        %4556 = vmatprep.subr.mxu0 0.0
        %4557 = vmatpush1.msra.mxu0 0.0
        %4558 = vmatprep.subr.mxu0 0.0
        %4559 = vmatpush1.msra.mxu0 0.0
        %4560 = vmatprep.subr.mxu0 0.0
        %4561 = vmatpush1.msra.mxu0 0.0
        %4562 = vmatprep.subr.mxu0 0.0
        %4563 = vmatpush1.msra.mxu0 0.0
        %4564 = vmatprep.subr.mxu0 0.0
        %4565 = vmatpush1.msra.mxu0 0.0
        %4566 = vmatprep.subr.mxu0 0.0
        %4567 = vmatpush1.msra.mxu0 0.0
        %4568 = vmatprep.subr.mxu0 0.0
        %4569 = vmatpush1.msra.mxu0 0.0
        %4570 = vmatprep.subr.mxu0 0.0
        %4571 = vmatpush1.msra.mxu0 0.0
        %4572 = vmatprep.subr.mxu0 0.0
        %4573 = vmatpush1.msra.mxu0 0.0
        %4574 = vmatprep.subr.mxu0 0.0
        %4575 = vmatpush1.msra.mxu0 0.0
        %4576 = vmatprep.subr.mxu0 0.0
        %4577 = vmatpush1.msra.mxu0 0.0
        %4578 = vmatprep.subr.mxu0 0.0
        %4579 = vmatpush1.msra.mxu0 0.0
        %4580 = vmatprep.subr.mxu0 0.0
        %4581 = vmatpush1.msra.mxu0 0.0
        %4582 = vmatprep.subr.mxu0 0.0
        %4583 = vmatpush1.msra.mxu0 0.0
        %4584 = vmatprep.subr.mxu0 0.0
        %4585 = vmatpush1.msra.mxu0 0.0
        %4586 = vmatprep.subr.mxu0 0.0
        %4587 = vmatpush1.msra.mxu0 0.0
        %4588 = vmatprep.mubr.f32.mxu0 0.0
        %v4589 = vand.u32 %v4515, 4294901760
        %v4590 = vsub.f32 %v4515, %v4589
        %v4591 = vand.u32 %v4590, 4294901760
        %v4592 = vsub.f32 %v4590, %v4591
        %v4593 = vand.u32 %v4592, 4294901760
        %4594 = vmatmul.mubr.f32.gmra.mrb[0].mxu0 %v4593
        %v4595 = vpop.f32.mrb[0].mxu0
        %v4596 = vadd.f32 0.0, %v4595
        %v4597 = vpop.f32.mrb[0].mxu0
        %v4598 = vadd.f32 0.0, %v4597
        %4599 = vmatprep.mubr.f32.mxu0 0.0
        %v4600 = vand.u32 %v4518, 4294901760
        %v4601 = vsub.f32 %v4518, %v4600
        %v4602 = vand.u32 %v4601, 4294901760
        %v4603 = vsub.f32 %v4601, %v4602
        %v4604 = vand.u32 %v4603, 4294901760
        %4605 = vmatmul.mubr.f32.gmra.mrb[0].mxu0 %v4604
        %v4606 = vpop.f32.mrb[0].mxu0
        %v4607 = vadd.f32 0.0, %v4606
        %v4608 = vpop.f32.mrb[0].mxu0
        %v4609 = vadd.f32 0.0, %v4608
        %4610 = vdwg.mxu0
        %v4611 = vand.u32 %v4507, 4294901760
        %v4612 = vsub.f32 %v4507, %v4611
        %v4613 = vand.u32 %v4612, 4294901760
        %v4614 = vsub.f32 %v4612, %v4613
        %v4615 = vand.u32 %v4614, 4294901760
        %4616 = vmatprep.subr.mxu0 %v4615
        %v4617 = vand.u32 %v4506, 4294901760
        %v4618 = vsub.f32 %v4506, %v4617
        %v4619 = vand.u32 %v4618, 4294901760
        %v4620 = vsub.f32 %v4618, %v4619
        %v4621 = vand.u32 %v4620, 4294901760
        %4622 = vmatpush1.msra.mxu0 %v4621
        %v4623 = vand.u32 %v4509, 4294901760
        %v4624 = vsub.f32 %v4509, %v4623
        %v4625 = vand.u32 %v4624, 4294901760
        %v4626 = vsub.f32 %v4624, %v4625
        %v4627 = vand.u32 %v4626, 4294901760
        %4628 = vmatprep.subr.mxu0 %v4627
        %v4629 = vand.u32 %v4508, 4294901760
        %v4630 = vsub.f32 %v4508, %v4629
        %v4631 = vand.u32 %v4630, 4294901760
        %v4632 = vsub.f32 %v4630, %v4631
        %v4633 = vand.u32 %v4632, 4294901760
        %4634 = vmatpush1.msra.mxu0 %v4633
        %4635 = vmatprep.subr.mxu0 0.0
        %4636 = vmatpush1.msra.mxu0 0.0
        %4637 = vmatprep.subr.mxu0 0.0
        %4638 = vmatpush1.msra.mxu0 0.0
        %4639 = vmatprep.subr.mxu0 0.0
        %4640 = vmatpush1.msra.mxu0 0.0
        %4641 = vmatprep.subr.mxu0 0.0
        %4642 = vmatpush1.msra.mxu0 0.0
        %4643 = vmatprep.subr.mxu0 0.0
        %4644 = vmatpush1.msra.mxu0 0.0
        %4645 = vmatprep.subr.mxu0 0.0
        %4646 = vmatpush1.msra.mxu0 0.0
        %4647 = vmatprep.subr.mxu0 0.0
        %4648 = vmatpush1.msra.mxu0 0.0
        %4649 = vmatprep.subr.mxu0 0.0
        %4650 = vmatpush1.msra.mxu0 0.0
        %4651 = vmatprep.subr.mxu0 0.0
        %4652 = vmatpush1.msra.mxu0 0.0
        %4653 = vmatprep.subr.mxu0 0.0
        %4654 = vmatpush1.msra.mxu0 0.0
        %4655 = vmatprep.subr.mxu0 0.0
        %4656 = vmatpush1.msra.mxu0 0.0
        %4657 = vmatprep.subr.mxu0 0.0
        %4658 = vmatpush1.msra.mxu0 0.0
        %4659 = vmatprep.subr.mxu0 0.0
        %4660 = vmatpush1.msra.mxu0 0.0
        %4661 = vmatprep.subr.mxu0 0.0
        %4662 = vmatpush1.msra.mxu0 0.0
        %4663 = vmatprep.subr.mxu0 0.0
        %4664 = vmatpush1.msra.mxu0 0.0
        %4665 = vmatprep.subr.mxu0 0.0
        %4666 = vmatpush1.msra.mxu0 0.0
        %4667 = vmatprep.subr.mxu0 0.0
        %4668 = vmatpush1.msra.mxu0 0.0
        %4669 = vmatprep.subr.mxu0 0.0
        %4670 = vmatpush1.msra.mxu0 0.0
        %4671 = vmatprep.subr.mxu0 0.0
        %4672 = vmatpush1.msra.mxu0 0.0
        %4673 = vmatprep.subr.mxu0 0.0
        %4674 = vmatpush1.msra.mxu0 0.0
        %4675 = vmatprep.subr.mxu0 0.0
        %4676 = vmatpush1.msra.mxu0 0.0
        %4677 = vmatprep.subr.mxu0 0.0
        %4678 = vmatpush1.msra.mxu0 0.0
        %4679 = vmatprep.subr.mxu0 0.0
        %4680 = vmatpush1.msra.mxu0 0.0
        %4681 = vmatprep.subr.mxu0 0.0
        %4682 = vmatpush1.msra.mxu0 0.0
        %4683 = vmatprep.subr.mxu0 0.0
        %4684 = vmatpush1.msra.mxu0 0.0
        %4685 = vmatprep.subr.mxu0 0.0
        %4686 = vmatpush1.msra.mxu0 0.0
        %4687 = vmatprep.subr.mxu0 0.0
        %4688 = vmatpush1.msra.mxu0 0.0
        %4689 = vmatprep.subr.mxu0 0.0
        %4690 = vmatpush1.msra.mxu0 0.0
        %4691 = vmatprep.subr.mxu0 0.0
        %4692 = vmatpush1.msra.mxu0 0.0
        %4693 = vmatprep.subr.mxu0 0.0
        %4694 = vmatpush1.msra.mxu0 0.0
        %4695 = vmatprep.mubr.f32.mxu0 0.0
        %v4696 = vand.u32 %v4515, 4294901760
        %4697 = vmatmul.mubr.f32.gmra.mrb[0].mxu0 %v4696
        %v4698 = vpop.f32.mrb[0].mxu0
        %v4699 = vadd.f32 %v4596, %v4698
        %v4700 = vpop.f32.mrb[0].mxu0
        %v4701 = vadd.f32 %v4598, %v4700
        %4702 = vmatprep.mubr.f32.mxu0 0.0
        %v4703 = vand.u32 %v4518, 4294901760
        %4704 = vmatmul.mubr.f32.gmra.mrb[0].mxu0 %v4703
        %v4705 = vpop.f32.mrb[0].mxu0
        %v4706 = vadd.f32 %v4607, %v4705
        %v4707 = vpop.f32.mrb[0].mxu0
        %v4708 = vadd.f32 %v4609, %v4707
        %4709 = vdwg.mxu0
        %v4710 = vand.u32 %v4507, 4294901760
        %v4711 = vsub.f32 %v4507, %v4710
        %4712 = vmatprep.subr.mxu0 %v4711
        %v4713 = vand.u32 %v4506, 4294901760
        %v4714 = vsub.f32 %v4506, %v4713
        %4715 = vmatpush1.msra.mxu0 %v4714
        %v4716 = vand.u32 %v4509, 4294901760
        %v4717 = vsub.f32 %v4509, %v4716
        %4718 = vmatprep.subr.mxu0 %v4717
        %v4719 = vand.u32 %v4508, 4294901760
        %v4720 = vsub.f32 %v4508, %v4719
        %4721 = vmatpush1.msra.mxu0 %v4720
        %4722 = vmatprep.subr.mxu0 0.0
        %4723 = vmatpush1.msra.mxu0 0.0
        %4724 = vmatprep.subr.mxu0 0.0
        %4725 = vmatpush1.msra.mxu0 0.0
        %4726 = vmatprep.subr.mxu0 0.0
        %4727 = vmatpush1.msra.mxu0 0.0
        %4728 = vmatprep.subr.mxu0 0.0
        %4729 = vmatpush1.msra.mxu0 0.0
        %4730 = vmatprep.subr.mxu0 0.0
        %4731 = vmatpush1.msra.mxu0 0.0
        %4732 = vmatprep.subr.mxu0 0.0
        %4733 = vmatpush1.msra.mxu0 0.0
        %4734 = vmatprep.subr.mxu0 0.0
        %4735 = vmatpush1.msra.mxu0 0.0
        %4736 = vmatprep.subr.mxu0 0.0
        %4737 = vmatpush1.msra.mxu0 0.0
        %4738 = vmatprep.subr.mxu0 0.0
        %4739 = vmatpush1.msra.mxu0 0.0
        %4740 = vmatprep.subr.mxu0 0.0
        %4741 = vmatpush1.msra.mxu0 0.0
        %4742 = vmatprep.subr.mxu0 0.0
        %4743 = vmatpush1.msra.mxu0 0.0
        %4744 = vmatprep.subr.mxu0 0.0
        %4745 = vmatpush1.msra.mxu0 0.0
        %4746 = vmatprep.subr.mxu0 0.0
        %4747 = vmatpush1.msra.mxu0 0.0
        %4748 = vmatprep.subr.mxu0 0.0
        %4749 = vmatpush1.msra.mxu0 0.0
        %4750 = vmatprep.subr.mxu0 0.0
        %4751 = vmatpush1.msra.mxu0 0.0
        %4752 = vmatprep.subr.mxu0 0.0
        %4753 = vmatpush1.msra.mxu0 0.0
        %4754 = vmatprep.subr.mxu0 0.0
        %4755 = vmatpush1.msra.mxu0 0.0
        %4756 = vmatprep.subr.mxu0 0.0
        %4757 = vmatpush1.msra.mxu0 0.0
        %4758 = vmatprep.subr.mxu0 0.0
        %4759 = vmatpush1.msra.mxu0 0.0
        %4760 = vmatprep.subr.mxu0 0.0
        %4761 = vmatpush1.msra.mxu0 0.0
        %4762 = vmatprep.subr.mxu0 0.0
        %4763 = vmatpush1.msra.mxu0 0.0
        %4764 = vmatprep.subr.mxu0 0.0
        %4765 = vmatpush1.msra.mxu0 0.0
        %4766 = vmatprep.subr.mxu0 0.0
        %4767 = vmatpush1.msra.mxu0 0.0
        %4768 = vmatprep.subr.mxu0 0.0
        %4769 = vmatpush1.msra.mxu0 0.0
        %4770 = vmatprep.subr.mxu0 0.0
        %4771 = vmatpush1.msra.mxu0 0.0
        %4772 = vmatprep.subr.mxu0 0.0
        %4773 = vmatpush1.msra.mxu0 0.0
        %4774 = vmatprep.subr.mxu0 0.0
        %4775 = vmatpush1.msra.mxu0 0.0
        %4776 = vmatprep.subr.mxu0 0.0
        %4777 = vmatpush1.msra.mxu0 0.0
        %4778 = vmatprep.subr.mxu0 0.0
        %4779 = vmatpush1.msra.mxu0 0.0
        %4780 = vmatprep.subr.mxu0 0.0
        %4781 = vmatpush1.msra.mxu0 0.0
        %4782 = vmatprep.mubr.f32.mxu0 0.0
        %v4783 = vand.u32 %v4515, 4294901760
        %v4784 = vsub.f32 %v4515, %v4783
        %4785 = vmatmul.mubr.f32.gmra.mrb[0].mxu0 %v4784
        %v4786 = vpop.f32.mrb[0].mxu0
        %v4787 = vadd.f32 %v4699, %v4786
        %v4788 = vpop.f32.mrb[0].mxu0
        %v4789 = vadd.f32 %v4701, %v4788
        %4790 = vmatprep.mubr.f32.mxu0 0.0
        %v4791 = vand.u32 %v4518, 4294901760
        %v4792 = vsub.f32 %v4518, %v4791
        %4793 = vmatmul.mubr.f32.gmra.mrb[0].mxu0 %v4792
        %v4794 = vpop.f32.mrb[0].mxu0
        %v4795 = vadd.f32 %v4706, %v4794
        %v4796 = vpop.f32.mrb[0].mxu0
        %v4797 = vadd.f32 %v4708, %v4796
        %4798 = vdwg.mxu0
        %v4799 = vand.u32 %v4507, 4294901760
        %4800 = vmatprep.subr.mxu0 %v4799
        %v4801 = vand.u32 %v4506, 4294901760
        %4802 = vmatpush1.msra.mxu0 %v4801
        %v4803 = vand.u32 %v4509, 4294901760
        %4804 = vmatprep.subr.mxu0 %v4803
        %v4805 = vand.u32 %v4508, 4294901760
        %4806 = vmatpush1.msra.mxu0 %v4805
        %4807 = vmatprep.subr.mxu0 0.0
        %4808 = vmatpush1.msra.mxu0 0.0
        %4809 = vmatprep.subr.mxu0 0.0
        %4810 = vmatpush1.msra.mxu0 0.0
        %4811 = vmatprep.subr.mxu0 0.0
        %4812 = vmatpush1.msra.mxu0 0.0
        %4813 = vmatprep.subr.mxu0 0.0
        %4814 = vmatpush1.msra.mxu0 0.0
        %4815 = vmatprep.subr.mxu0 0.0
        %4816 = vmatpush1.msra.mxu0 0.0
        %4817 = vmatprep.subr.mxu0 0.0
        %4818 = vmatpush1.msra.mxu0 0.0
        %4819 = vmatprep.subr.mxu0 0.0
        %4820 = vmatpush1.msra.mxu0 0.0
        %4821 = vmatprep.subr.mxu0 0.0
        %4822 = vmatpush1.msra.mxu0 0.0
        %4823 = vmatprep.subr.mxu0 0.0
        %4824 = vmatpush1.msra.mxu0 0.0
        %4825 = vmatprep.subr.mxu0 0.0
        %4826 = vmatpush1.msra.mxu0 0.0
        %4827 = vmatprep.subr.mxu0 0.0
        %4828 = vmatpush1.msra.mxu0 0.0
        %4829 = vmatprep.subr.mxu0 0.0
        %4830 = vmatpush1.msra.mxu0 0.0
        %4831 = vmatprep.subr.mxu0 0.0
        %4832 = vmatpush1.msra.mxu0 0.0
        %4833 = vmatprep.subr.mxu0 0.0
        %4834 = vmatpush1.msra.mxu0 0.0
        %4835 = vmatprep.subr.mxu0 0.0
        %4836 = vmatpush1.msra.mxu0 0.0
        %4837 = vmatprep.subr.mxu0 0.0
        %4838 = vmatpush1.msra.mxu0 0.0
        %4839 = vmatprep.subr.mxu0 0.0
        %4840 = vmatpush1.msra.mxu0 0.0
        %4841 = vmatprep.subr.mxu0 0.0
        %4842 = vmatpush1.msra.mxu0 0.0
        %4843 = vmatprep.subr.mxu0 0.0
        %4844 = vmatpush1.msra.mxu0 0.0
        %4845 = vmatprep.subr.mxu0 0.0
        %4846 = vmatpush1.msra.mxu0 0.0
        %4847 = vmatprep.subr.mxu0 0.0
        %4848 = vmatpush1.msra.mxu0 0.0
        %4849 = vmatprep.subr.mxu0 0.0
        %4850 = vmatpush1.msra.mxu0 0.0
        %4851 = vmatprep.subr.mxu0 0.0
        %4852 = vmatpush1.msra.mxu0 0.0
        %4853 = vmatprep.subr.mxu0 0.0
        %4854 = vmatpush1.msra.mxu0 0.0
        %4855 = vmatprep.subr.mxu0 0.0
        %4856 = vmatpush1.msra.mxu0 0.0
        %4857 = vmatprep.subr.mxu0 0.0
        %4858 = vmatpush1.msra.mxu0 0.0
        %4859 = vmatprep.subr.mxu0 0.0
        %4860 = vmatpush1.msra.mxu0 0.0
        %4861 = vmatprep.subr.mxu0 0.0
        %4862 = vmatpush1.msra.mxu0 0.0
        %4863 = vmatprep.subr.mxu0 0.0
        %4864 = vmatpush1.msra.mxu0 0.0
        %4865 = vmatprep.subr.mxu0 0.0
        %4866 = vmatpush1.msra.mxu0 0.0
        %4867 = vmatprep.mubr.f32.mxu0 0.0
        %v4868 = vand.u32 %v4515, 4294901760
        %v4869 = vsub.f32 %v4515, %v4868
        %v4870 = vand.u32 %v4869, 4294901760
        %4871 = vmatmul.mubr.f32.gmra.mrb[0].mxu0 %v4870
        %v4872 = vpop.f32.mrb[0].mxu0
        %v4873 = vadd.f32 %v4787, %v4872
        %v4874 = vpop.f32.mrb[0].mxu0
        %v4875 = vadd.f32 %v4789, %v4874
        %4876 = vmatprep.mubr.f32.mxu0 0.0
        %v4877 = vand.u32 %v4518, 4294901760
        %v4878 = vsub.f32 %v4518, %v4877
        %v4879 = vand.u32 %v4878, 4294901760
        %4880 = vmatmul.mubr.f32.gmra.mrb[0].mxu0 %v4879
        %v4881 = vpop.f32.mrb[0].mxu0
        %v4882 = vadd.f32 %v4795, %v4881
        %v4883 = vpop.f32.mrb[0].mxu0
        %v4884 = vadd.f32 %v4797, %v4883
        %4885 = vdwg.mxu0
        %v4886 = vand.u32 %v4507, 4294901760
        %v4887 = vsub.f32 %v4507, %v4886
        %v4888 = vand.u32 %v4887, 4294901760
        %4889 = vmatprep.subr.mxu0 %v4888
        %v4890 = vand.u32 %v4506, 4294901760
        %v4891 = vsub.f32 %v4506, %v4890
        %v4892 = vand.u32 %v4891, 4294901760
        %4893 = vmatpush1.msra.mxu0 %v4892
        %v4894 = vand.u32 %v4509, 4294901760
        %v4895 = vsub.f32 %v4509, %v4894
        %v4896 = vand.u32 %v4895, 4294901760
        %4897 = vmatprep.subr.mxu0 %v4896
        %v4898 = vand.u32 %v4508, 4294901760
        %v4899 = vsub.f32 %v4508, %v4898
        %v4900 = vand.u32 %v4899, 4294901760
        %4901 = vmatpush1.msra.mxu0 %v4900
        %4902 = vmatprep.subr.mxu0 0.0
        %4903 = vmatpush1.msra.mxu0 0.0
        %4904 = vmatprep.subr.mxu0 0.0
        %4905 = vmatpush1.msra.mxu0 0.0
        %4906 = vmatprep.subr.mxu0 0.0
        %4907 = vmatpush1.msra.mxu0 0.0
        %4908 = vmatprep.subr.mxu0 0.0
        %4909 = vmatpush1.msra.mxu0 0.0
        %4910 = vmatprep.subr.mxu0 0.0
        %4911 = vmatpush1.msra.mxu0 0.0
        %4912 = vmatprep.subr.mxu0 0.0
        %4913 = vmatpush1.msra.mxu0 0.0
        %4914 = vmatprep.subr.mxu0 0.0
        %4915 = vmatpush1.msra.mxu0 0.0
        %4916 = vmatprep.subr.mxu0 0.0
        %4917 = vmatpush1.msra.mxu0 0.0
        %4918 = vmatprep.subr.mxu0 0.0
        %4919 = vmatpush1.msra.mxu0 0.0
        %4920 = vmatprep.subr.mxu0 0.0
        %4921 = vmatpush1.msra.mxu0 0.0
        %4922 = vmatprep.subr.mxu0 0.0
        %4923 = vmatpush1.msra.mxu0 0.0
        %4924 = vmatprep.subr.mxu0 0.0
        %4925 = vmatpush1.msra.mxu0 0.0
        %4926 = vmatprep.subr.mxu0 0.0
        %4927 = vmatpush1.msra.mxu0 0.0
        %4928 = vmatprep.subr.mxu0 0.0
        %4929 = vmatpush1.msra.mxu0 0.0
        %4930 = vmatprep.subr.mxu0 0.0
        %4931 = vmatpush1.msra.mxu0 0.0
        %4932 = vmatprep.subr.mxu0 0.0
        %4933 = vmatpush1.msra.mxu0 0.0
        %4934 = vmatprep.subr.mxu0 0.0
        %4935 = vmatpush1.msra.mxu0 0.0
        %4936 = vmatprep.subr.mxu0 0.0
        %4937 = vmatpush1.msra.mxu0 0.0
        %4938 = vmatprep.subr.mxu0 0.0
        %4939 = vmatpush1.msra.mxu0 0.0
        %4940 = vmatprep.subr.mxu0 0.0
        %4941 = vmatpush1.msra.mxu0 0.0
        %4942 = vmatprep.subr.mxu0 0.0
        %4943 = vmatpush1.msra.mxu0 0.0
        %4944 = vmatprep.subr.mxu0 0.0
        %4945 = vmatpush1.msra.mxu0 0.0
        %4946 = vmatprep.subr.mxu0 0.0
        %4947 = vmatpush1.msra.mxu0 0.0
        %4948 = vmatprep.subr.mxu0 0.0
        %4949 = vmatpush1.msra.mxu0 0.0
        %4950 = vmatprep.subr.mxu0 0.0
        %4951 = vmatpush1.msra.mxu0 0.0
        %4952 = vmatprep.subr.mxu0 0.0
        %4953 = vmatpush1.msra.mxu0 0.0
        %4954 = vmatprep.subr.mxu0 0.0
        %4955 = vmatpush1.msra.mxu0 0.0
        %4956 = vmatprep.subr.mxu0 0.0
        %4957 = vmatpush1.msra.mxu0 0.0
        %4958 = vmatprep.subr.mxu0 0.0
        %4959 = vmatpush1.msra.mxu0 0.0
        %4960 = vmatprep.subr.mxu0 0.0
        %4961 = vmatpush1.msra.mxu0 0.0
        %4962 = vmatprep.mubr.f32.mxu0 0.0
        %v4963 = vand.u32 %v4515, 4294901760
        %4964 = vmatmul.mubr.f32.gmra.mrb[0].mxu0 %v4963
        %v4965 = vpop.f32.mrb[0].mxu0
        %v4966 = vadd.f32 %v4873, %v4965
        %v4967 = vpop.f32.mrb[0].mxu0
        %v4968 = vadd.f32 %v4875, %v4967
        %4969 = vmatprep.mubr.f32.mxu0 0.0
        %v4970 = vand.u32 %v4518, 4294901760
        %4971 = vmatmul.mubr.f32.gmra.mrb[0].mxu0 %v4970
        %v4972 = vpop.f32.mrb[0].mxu0
        %v4973 = vadd.f32 %v4882, %v4972
        %v4974 = vpop.f32.mrb[0].mxu0
        %v4975 = vadd.f32 %v4884, %v4974
        %4976 = vdwg.mxu0
        %v4977 = vand.u32 %v4507, 4294901760
        %4978 = vmatprep.subr.mxu0 %v4977
        %v4979 = vand.u32 %v4506, 4294901760
        %4980 = vmatpush1.msra.mxu0 %v4979
        %v4981 = vand.u32 %v4509, 4294901760
        %4982 = vmatprep.subr.mxu0 %v4981
        %v4983 = vand.u32 %v4508, 4294901760
        %4984 = vmatpush1.msra.mxu0 %v4983
        %4985 = vmatprep.subr.mxu0 0.0
        %4986 = vmatpush1.msra.mxu0 0.0
        %4987 = vmatprep.subr.mxu0 0.0
        %4988 = vmatpush1.msra.mxu0 0.0
        %4989 = vmatprep.subr.mxu0 0.0
        %4990 = vmatpush1.msra.mxu0 0.0
        %4991 = vmatprep.subr.mxu0 0.0
        %4992 = vmatpush1.msra.mxu0 0.0
        %4993 = vmatprep.subr.mxu0 0.0
        %4994 = vmatpush1.msra.mxu0 0.0
        %4995 = vmatprep.subr.mxu0 0.0
        %4996 = vmatpush1.msra.mxu0 0.0
        %4997 = vmatprep.subr.mxu0 0.0
        %4998 = vmatpush1.msra.mxu0 0.0
        %4999 = vmatprep.subr.mxu0 0.0
        %5000 = vmatpush1.msra.mxu0 0.0
        %5001 = vmatprep.subr.mxu0 0.0
        %5002 = vmatpush1.msra.mxu0 0.0
        %5003 = vmatprep.subr.mxu0 0.0
        %5004 = vmatpush1.msra.mxu0 0.0
        %5005 = vmatprep.subr.mxu0 0.0
        %5006 = vmatpush1.msra.mxu0 0.0
        %5007 = vmatprep.subr.mxu0 0.0
        %5008 = vmatpush1.msra.mxu0 0.0
        %5009 = vmatprep.subr.mxu0 0.0
        %5010 = vmatpush1.msra.mxu0 0.0
        %5011 = vmatprep.subr.mxu0 0.0
        %5012 = vmatpush1.msra.mxu0 0.0
        %5013 = vmatprep.subr.mxu0 0.0
        %5014 = vmatpush1.msra.mxu0 0.0
        %5015 = vmatprep.subr.mxu0 0.0
        %5016 = vmatpush1.msra.mxu0 0.0
        %5017 = vmatprep.subr.mxu0 0.0
        %5018 = vmatpush1.msra.mxu0 0.0
        %5019 = vmatprep.subr.mxu0 0.0
        %5020 = vmatpush1.msra.mxu0 0.0
        %5021 = vmatprep.subr.mxu0 0.0
        %5022 = vmatpush1.msra.mxu0 0.0
        %5023 = vmatprep.subr.mxu0 0.0
        %5024 = vmatpush1.msra.mxu0 0.0
        %5025 = vmatprep.subr.mxu0 0.0
        %5026 = vmatpush1.msra.mxu0 0.0
        %5027 = vmatprep.subr.mxu0 0.0
        %5028 = vmatpush1.msra.mxu0 0.0
        %5029 = vmatprep.subr.mxu0 0.0
        %5030 = vmatpush1.msra.mxu0 0.0
        %5031 = vmatprep.subr.mxu0 0.0
        %5032 = vmatpush1.msra.mxu0 0.0
        %5033 = vmatprep.subr.mxu0 0.0
        %5034 = vmatpush1.msra.mxu0 0.0
        %5035 = vmatprep.subr.mxu0 0.0
        %5036 = vmatpush1.msra.mxu0 0.0
        %5037 = vmatprep.subr.mxu0 0.0
        %5038 = vmatpush1.msra.mxu0 0.0
        %5039 = vmatprep.subr.mxu0 0.0
        %5040 = vmatpush1.msra.mxu0 0.0
        %5041 = vmatprep.subr.mxu0 0.0
        %5042 = vmatpush1.msra.mxu0 0.0
        %5043 = vmatprep.subr.mxu0 0.0
        %5044 = vmatpush1.msra.mxu0 0.0
        %5045 = vmatprep.mubr.f32.mxu0 0.0
        %v5046 = vand.u32 %v4515, 4294901760
        %5047 = vmatmul.mubr.f32.gmra.mrb[0].mxu0 %v5046
        %v5048 = vpop.f32.mrb[0].mxu0
        %v5049 = vadd.f32 %v4966, %v5048
        %v5050 = vpop.f32.mrb[0].mxu0
        %v5051 = vadd.f32 %v4968, %v5050
        %5052 = vmatprep.mubr.f32.mxu0 0.0
        %v5053 = vand.u32 %v4518, 4294901760
        %5054 = vmatmul.mubr.f32.gmra.mrb[0].mxu0 %v5053
        %v5055 = vpop.f32.mrb[0].mxu0
        %v5056 = vadd.f32 %v4973, %v5055
        %v5057 = vpop.f32.mrb[0].mxu0
        %v5058 = vadd.f32 %v4975, %v5057
        %5059 = vdwg.mxu0
        %v5060 = vadd.f32 %v4487, %v5049
        %v5061 = vadd.f32 %v4488, %v5051
        %v5062 = vadd.f32 %v4489, %v5056
        %v5063 = vadd.f32 %v4490, %v5058
        %5064 = vrot.lane.b32.xlu0 %v3300, 18
        %v5065 = vpop.permute.xlu0 %5064
        %5066 = vrot.lane.b32.xlu0 %v3304, 18
        %v5067 = vpop.permute.xlu0 %5066
        %v5068 = vsel %vm689, %v5065, %v5067
        %v5072 = vmul.f32 %v2150, %v5065
        %v5073 = vmul.f32 %v2151, %v5068
        %v5074 = vmul.f32 %v2172, %v5067
        %v5075 = vmul.f32 %v2152, %v5065
        %v5076 = vmul.f32 %v2153, %v5068
        %v5077 = vmul.f32 %v2173, %v5067
        %s5078 = scalar_lea.vmem %s8, 80
        %v5079 = vld [vmem:[%s5078] sm:$0xff]
        %v5080 = vld [vmem:[%s5078 + $0x8] sm:$0xff]
        %5087 = vrot.lane.b32.xlu0 %v5072, 110
        %v5088 = vpop.permute.xlu0 %5087
        %5089 = vrot.lane.b32.xlu0 %v5073, 110
        %v5090 = vpop.permute.xlu0 %5089
        %5091 = vrot.lane.b32.xlu0 %v5074, 110
        %v5092 = vpop.permute.xlu0 %5091
        %5093 = vrot.lane.b32.xlu0 %v5075, 110
        %v5094 = vpop.permute.xlu0 %5093
        %5095 = vrot.lane.b32.xlu0 %v5076, 110
        %v5096 = vpop.permute.xlu0 %5095
        %5097 = vrot.lane.b32.xlu0 %v5077, 110
        %v5098 = vpop.permute.xlu0 %5097
        %v5099 = vsel %vm713, %v5088, %v5090
        %v5100 = vsel %vm713, %v5090, %v5092
        %v5101 = vsel %vm713, %v5094, %v5096
        %v5102 = vsel %vm713, %v5096, %v5098
        %v5108 = vsel %vm631, %v5079, 0
        %v5111 = vsel %vm631, %v5080, 0
        %v5113 = vand.u32 %v5100, 4294901760
        %5114 = vmatprep.subr.mxu0 %v5113
        %v5115 = vand.u32 %v5099, 4294901760
        %5116 = vmatpush1.msra.mxu0 %v5115
        %v5117 = vand.u32 %v5102, 4294901760
        %5118 = vmatprep.subr.mxu0 %v5117
        %v5119 = vand.u32 %v5101, 4294901760
        %5120 = vmatpush1.msra.mxu0 %v5119
        %5121 = vmatprep.subr.mxu0 0.0
        %5122 = vmatpush1.msra.mxu0 0.0
        %5123 = vmatprep.subr.mxu0 0.0
        %5124 = vmatpush1.msra.mxu0 0.0
        %5125 = vmatprep.subr.mxu0 0.0
        %5126 = vmatpush1.msra.mxu0 0.0
        %5127 = vmatprep.subr.mxu0 0.0
        %5128 = vmatpush1.msra.mxu0 0.0
        %5129 = vmatprep.subr.mxu0 0.0
        %5130 = vmatpush1.msra.mxu0 0.0
        %5131 = vmatprep.subr.mxu0 0.0
        %5132 = vmatpush1.msra.mxu0 0.0
        %5133 = vmatprep.subr.mxu0 0.0
        %5134 = vmatpush1.msra.mxu0 0.0
        %5135 = vmatprep.subr.mxu0 0.0
        %5136 = vmatpush1.msra.mxu0 0.0
        %5137 = vmatprep.subr.mxu0 0.0
        %5138 = vmatpush1.msra.mxu0 0.0
        %5139 = vmatprep.subr.mxu0 0.0
        %5140 = vmatpush1.msra.mxu0 0.0
        %5141 = vmatprep.subr.mxu0 0.0
        %5142 = vmatpush1.msra.mxu0 0.0
        %5143 = vmatprep.subr.mxu0 0.0
        %5144 = vmatpush1.msra.mxu0 0.0
        %5145 = vmatprep.subr.mxu0 0.0
        %5146 = vmatpush1.msra.mxu0 0.0
        %5147 = vmatprep.subr.mxu0 0.0
        %5148 = vmatpush1.msra.mxu0 0.0
        %5149 = vmatprep.subr.mxu0 0.0
        %5150 = vmatpush1.msra.mxu0 0.0
        %5151 = vmatprep.subr.mxu0 0.0
        %5152 = vmatpush1.msra.mxu0 0.0
        %5153 = vmatprep.subr.mxu0 0.0
        %5154 = vmatpush1.msra.mxu0 0.0
        %5155 = vmatprep.subr.mxu0 0.0
        %5156 = vmatpush1.msra.mxu0 0.0
        %5157 = vmatprep.subr.mxu0 0.0
        %5158 = vmatpush1.msra.mxu0 0.0
        %5159 = vmatprep.subr.mxu0 0.0
        %5160 = vmatpush1.msra.mxu0 0.0
        %5161 = vmatprep.subr.mxu0 0.0
        %5162 = vmatpush1.msra.mxu0 0.0
        %5163 = vmatprep.subr.mxu0 0.0
        %5164 = vmatpush1.msra.mxu0 0.0
        %5165 = vmatprep.subr.mxu0 0.0
        %5166 = vmatpush1.msra.mxu0 0.0
        %5167 = vmatprep.subr.mxu0 0.0
        %5168 = vmatpush1.msra.mxu0 0.0
        %5169 = vmatprep.subr.mxu0 0.0
        %5170 = vmatpush1.msra.mxu0 0.0
        %5171 = vmatprep.subr.mxu0 0.0
        %5172 = vmatpush1.msra.mxu0 0.0
        %5173 = vmatprep.subr.mxu0 0.0
        %5174 = vmatpush1.msra.mxu0 0.0
        %5175 = vmatprep.subr.mxu0 0.0
        %5176 = vmatpush1.msra.mxu0 0.0
        %5177 = vmatprep.subr.mxu0 0.0
        %5178 = vmatpush1.msra.mxu0 0.0
        %5179 = vmatprep.subr.mxu0 0.0
        %5180 = vmatpush1.msra.mxu0 0.0
        %5181 = vmatprep.mubr.f32.mxu0 0.0
        %v5182 = vand.u32 %v5108, 4294901760
        %v5183 = vsub.f32 %v5108, %v5182
        %v5184 = vand.u32 %v5183, 4294901760
        %v5185 = vsub.f32 %v5183, %v5184
        %v5186 = vand.u32 %v5185, 4294901760
        %5187 = vmatmul.mubr.f32.gmra.mrb[0].mxu0 %v5186
        %v5188 = vpop.f32.mrb[0].mxu0
        %v5189 = vadd.f32 0.0, %v5188
        %v5190 = vpop.f32.mrb[0].mxu0
        %v5191 = vadd.f32 0.0, %v5190
        %5192 = vmatprep.mubr.f32.mxu0 0.0
        %v5193 = vand.u32 %v5111, 4294901760
        %v5194 = vsub.f32 %v5111, %v5193
        %v5195 = vand.u32 %v5194, 4294901760
        %v5196 = vsub.f32 %v5194, %v5195
        %v5197 = vand.u32 %v5196, 4294901760
        %5198 = vmatmul.mubr.f32.gmra.mrb[0].mxu0 %v5197
        %v5199 = vpop.f32.mrb[0].mxu0
        %v5200 = vadd.f32 0.0, %v5199
        %v5201 = vpop.f32.mrb[0].mxu0
        %v5202 = vadd.f32 0.0, %v5201
        %5203 = vdwg.mxu0
        %v5204 = vand.u32 %v5100, 4294901760
        %v5205 = vsub.f32 %v5100, %v5204
        %v5206 = vand.u32 %v5205, 4294901760
        %v5207 = vsub.f32 %v5205, %v5206
        %v5208 = vand.u32 %v5207, 4294901760
        %5209 = vmatprep.subr.mxu0 %v5208
        %v5210 = vand.u32 %v5099, 4294901760
        %v5211 = vsub.f32 %v5099, %v5210
        %v5212 = vand.u32 %v5211, 4294901760
        %v5213 = vsub.f32 %v5211, %v5212
        %v5214 = vand.u32 %v5213, 4294901760
        %5215 = vmatpush1.msra.mxu0 %v5214
        %v5216 = vand.u32 %v5102, 4294901760
        %v5217 = vsub.f32 %v5102, %v5216
        %v5218 = vand.u32 %v5217, 4294901760
        %v5219 = vsub.f32 %v5217, %v5218
        %v5220 = vand.u32 %v5219, 4294901760
        %5221 = vmatprep.subr.mxu0 %v5220
        %v5222 = vand.u32 %v5101, 4294901760
        %v5223 = vsub.f32 %v5101, %v5222
        %v5224 = vand.u32 %v5223, 4294901760
        %v5225 = vsub.f32 %v5223, %v5224
        %v5226 = vand.u32 %v5225, 4294901760
        %5227 = vmatpush1.msra.mxu0 %v5226
        %5228 = vmatprep.subr.mxu0 0.0
        %5229 = vmatpush1.msra.mxu0 0.0
        %5230 = vmatprep.subr.mxu0 0.0
        %5231 = vmatpush1.msra.mxu0 0.0
        %5232 = vmatprep.subr.mxu0 0.0
        %5233 = vmatpush1.msra.mxu0 0.0
        %5234 = vmatprep.subr.mxu0 0.0
        %5235 = vmatpush1.msra.mxu0 0.0
        %5236 = vmatprep.subr.mxu0 0.0
        %5237 = vmatpush1.msra.mxu0 0.0
        %5238 = vmatprep.subr.mxu0 0.0
        %5239 = vmatpush1.msra.mxu0 0.0
        %5240 = vmatprep.subr.mxu0 0.0
        %5241 = vmatpush1.msra.mxu0 0.0
        %5242 = vmatprep.subr.mxu0 0.0
        %5243 = vmatpush1.msra.mxu0 0.0
        %5244 = vmatprep.subr.mxu0 0.0
        %5245 = vmatpush1.msra.mxu0 0.0
        %5246 = vmatprep.subr.mxu0 0.0
        %5247 = vmatpush1.msra.mxu0 0.0
        %5248 = vmatprep.subr.mxu0 0.0
        %5249 = vmatpush1.msra.mxu0 0.0
        %5250 = vmatprep.subr.mxu0 0.0
        %5251 = vmatpush1.msra.mxu0 0.0
        %5252 = vmatprep.subr.mxu0 0.0
        %5253 = vmatpush1.msra.mxu0 0.0
        %5254 = vmatprep.subr.mxu0 0.0
        %5255 = vmatpush1.msra.mxu0 0.0
        %5256 = vmatprep.subr.mxu0 0.0
        %5257 = vmatpush1.msra.mxu0 0.0
        %5258 = vmatprep.subr.mxu0 0.0
        %5259 = vmatpush1.msra.mxu0 0.0
        %5260 = vmatprep.subr.mxu0 0.0
        %5261 = vmatpush1.msra.mxu0 0.0
        %5262 = vmatprep.subr.mxu0 0.0
        %5263 = vmatpush1.msra.mxu0 0.0
        %5264 = vmatprep.subr.mxu0 0.0
        %5265 = vmatpush1.msra.mxu0 0.0
        %5266 = vmatprep.subr.mxu0 0.0
        %5267 = vmatpush1.msra.mxu0 0.0
        %5268 = vmatprep.subr.mxu0 0.0
        %5269 = vmatpush1.msra.mxu0 0.0
        %5270 = vmatprep.subr.mxu0 0.0
        %5271 = vmatpush1.msra.mxu0 0.0
        %5272 = vmatprep.subr.mxu0 0.0
        %5273 = vmatpush1.msra.mxu0 0.0
        %5274 = vmatprep.subr.mxu0 0.0
        %5275 = vmatpush1.msra.mxu0 0.0
        %5276 = vmatprep.subr.mxu0 0.0
        %5277 = vmatpush1.msra.mxu0 0.0
        %5278 = vmatprep.subr.mxu0 0.0
        %5279 = vmatpush1.msra.mxu0 0.0
        %5280 = vmatprep.subr.mxu0 0.0
        %5281 = vmatpush1.msra.mxu0 0.0
        %5282 = vmatprep.subr.mxu0 0.0
        %5283 = vmatpush1.msra.mxu0 0.0
        %5284 = vmatprep.subr.mxu0 0.0
        %5285 = vmatpush1.msra.mxu0 0.0
        %5286 = vmatprep.subr.mxu0 0.0
        %5287 = vmatpush1.msra.mxu0 0.0
        %5288 = vmatprep.mubr.f32.mxu0 0.0
        %v5289 = vand.u32 %v5108, 4294901760
        %5290 = vmatmul.mubr.f32.gmra.mrb[0].mxu0 %v5289
        %v5291 = vpop.f32.mrb[0].mxu0
        %v5292 = vadd.f32 %v5189, %v5291
        %v5293 = vpop.f32.mrb[0].mxu0
        %v5294 = vadd.f32 %v5191, %v5293
        %5295 = vmatprep.mubr.f32.mxu0 0.0
        %v5296 = vand.u32 %v5111, 4294901760
        %5297 = vmatmul.mubr.f32.gmra.mrb[0].mxu0 %v5296
        %v5298 = vpop.f32.mrb[0].mxu0
        %v5299 = vadd.f32 %v5200, %v5298
        %v5300 = vpop.f32.mrb[0].mxu0
        %v5301 = vadd.f32 %v5202, %v5300
        %5302 = vdwg.mxu0
        %v5303 = vand.u32 %v5100, 4294901760
        %v5304 = vsub.f32 %v5100, %v5303
        %5305 = vmatprep.subr.mxu0 %v5304
        %v5306 = vand.u32 %v5099, 4294901760
        %v5307 = vsub.f32 %v5099, %v5306
        %5308 = vmatpush1.msra.mxu0 %v5307
        %v5309 = vand.u32 %v5102, 4294901760
        %v5310 = vsub.f32 %v5102, %v5309
        %5311 = vmatprep.subr.mxu0 %v5310
        %v5312 = vand.u32 %v5101, 4294901760
        %v5313 = vsub.f32 %v5101, %v5312
        %5314 = vmatpush1.msra.mxu0 %v5313
        %5315 = vmatprep.subr.mxu0 0.0
        %5316 = vmatpush1.msra.mxu0 0.0
        %5317 = vmatprep.subr.mxu0 0.0
        %5318 = vmatpush1.msra.mxu0 0.0
        %5319 = vmatprep.subr.mxu0 0.0
        %5320 = vmatpush1.msra.mxu0 0.0
        %5321 = vmatprep.subr.mxu0 0.0
        %5322 = vmatpush1.msra.mxu0 0.0
        %5323 = vmatprep.subr.mxu0 0.0
        %5324 = vmatpush1.msra.mxu0 0.0
        %5325 = vmatprep.subr.mxu0 0.0
        %5326 = vmatpush1.msra.mxu0 0.0
        %5327 = vmatprep.subr.mxu0 0.0
        %5328 = vmatpush1.msra.mxu0 0.0
        %5329 = vmatprep.subr.mxu0 0.0
        %5330 = vmatpush1.msra.mxu0 0.0
        %5331 = vmatprep.subr.mxu0 0.0
        %5332 = vmatpush1.msra.mxu0 0.0
        %5333 = vmatprep.subr.mxu0 0.0
        %5334 = vmatpush1.msra.mxu0 0.0
        %5335 = vmatprep.subr.mxu0 0.0
        %5336 = vmatpush1.msra.mxu0 0.0
        %5337 = vmatprep.subr.mxu0 0.0
        %5338 = vmatpush1.msra.mxu0 0.0
        %5339 = vmatprep.subr.mxu0 0.0
        %5340 = vmatpush1.msra.mxu0 0.0
        %5341 = vmatprep.subr.mxu0 0.0
        %5342 = vmatpush1.msra.mxu0 0.0
        %5343 = vmatprep.subr.mxu0 0.0
        %5344 = vmatpush1.msra.mxu0 0.0
        %5345 = vmatprep.subr.mxu0 0.0
        %5346 = vmatpush1.msra.mxu0 0.0
        %5347 = vmatprep.subr.mxu0 0.0
        %5348 = vmatpush1.msra.mxu0 0.0
        %5349 = vmatprep.subr.mxu0 0.0
        %5350 = vmatpush1.msra.mxu0 0.0
        %5351 = vmatprep.subr.mxu0 0.0
        %5352 = vmatpush1.msra.mxu0 0.0
        %5353 = vmatprep.subr.mxu0 0.0
        %5354 = vmatpush1.msra.mxu0 0.0
        %5355 = vmatprep.subr.mxu0 0.0
        %5356 = vmatpush1.msra.mxu0 0.0
        %5357 = vmatprep.subr.mxu0 0.0
        %5358 = vmatpush1.msra.mxu0 0.0
        %5359 = vmatprep.subr.mxu0 0.0
        %5360 = vmatpush1.msra.mxu0 0.0
        %5361 = vmatprep.subr.mxu0 0.0
        %5362 = vmatpush1.msra.mxu0 0.0
        %5363 = vmatprep.subr.mxu0 0.0
        %5364 = vmatpush1.msra.mxu0 0.0
        %5365 = vmatprep.subr.mxu0 0.0
        %5366 = vmatpush1.msra.mxu0 0.0
        %5367 = vmatprep.subr.mxu0 0.0
        %5368 = vmatpush1.msra.mxu0 0.0
        %5369 = vmatprep.subr.mxu0 0.0
        %5370 = vmatpush1.msra.mxu0 0.0
        %5371 = vmatprep.subr.mxu0 0.0
        %5372 = vmatpush1.msra.mxu0 0.0
        %5373 = vmatprep.subr.mxu0 0.0
        %5374 = vmatpush1.msra.mxu0 0.0
        %5375 = vmatprep.mubr.f32.mxu0 0.0
        %v5376 = vand.u32 %v5108, 4294901760
        %v5377 = vsub.f32 %v5108, %v5376
        %5378 = vmatmul.mubr.f32.gmra.mrb[0].mxu0 %v5377
        %v5379 = vpop.f32.mrb[0].mxu0
        %v5380 = vadd.f32 %v5292, %v5379
        %v5381 = vpop.f32.mrb[0].mxu0
        %v5382 = vadd.f32 %v5294, %v5381
        %5383 = vmatprep.mubr.f32.mxu0 0.0
        %v5384 = vand.u32 %v5111, 4294901760
        %v5385 = vsub.f32 %v5111, %v5384
        %5386 = vmatmul.mubr.f32.gmra.mrb[0].mxu0 %v5385
        %v5387 = vpop.f32.mrb[0].mxu0
        %v5388 = vadd.f32 %v5299, %v5387
        %v5389 = vpop.f32.mrb[0].mxu0
        %v5390 = vadd.f32 %v5301, %v5389
        %5391 = vdwg.mxu0
        %v5392 = vand.u32 %v5100, 4294901760
        %5393 = vmatprep.subr.mxu0 %v5392
        %v5394 = vand.u32 %v5099, 4294901760
        %5395 = vmatpush1.msra.mxu0 %v5394
        %v5396 = vand.u32 %v5102, 4294901760
        %5397 = vmatprep.subr.mxu0 %v5396
        %v5398 = vand.u32 %v5101, 4294901760
        %5399 = vmatpush1.msra.mxu0 %v5398
        %5400 = vmatprep.subr.mxu0 0.0
        %5401 = vmatpush1.msra.mxu0 0.0
        %5402 = vmatprep.subr.mxu0 0.0
        %5403 = vmatpush1.msra.mxu0 0.0
        %5404 = vmatprep.subr.mxu0 0.0
        %5405 = vmatpush1.msra.mxu0 0.0
        %5406 = vmatprep.subr.mxu0 0.0
        %5407 = vmatpush1.msra.mxu0 0.0
        %5408 = vmatprep.subr.mxu0 0.0
        %5409 = vmatpush1.msra.mxu0 0.0
        %5410 = vmatprep.subr.mxu0 0.0
        %5411 = vmatpush1.msra.mxu0 0.0
        %5412 = vmatprep.subr.mxu0 0.0
        %5413 = vmatpush1.msra.mxu0 0.0
        %5414 = vmatprep.subr.mxu0 0.0
        %5415 = vmatpush1.msra.mxu0 0.0
        %5416 = vmatprep.subr.mxu0 0.0
        %5417 = vmatpush1.msra.mxu0 0.0
        %5418 = vmatprep.subr.mxu0 0.0
        %5419 = vmatpush1.msra.mxu0 0.0
        %5420 = vmatprep.subr.mxu0 0.0
        %5421 = vmatpush1.msra.mxu0 0.0
        %5422 = vmatprep.subr.mxu0 0.0
        %5423 = vmatpush1.msra.mxu0 0.0
        %5424 = vmatprep.subr.mxu0 0.0
        %5425 = vmatpush1.msra.mxu0 0.0
        %5426 = vmatprep.subr.mxu0 0.0
        %5427 = vmatpush1.msra.mxu0 0.0
        %5428 = vmatprep.subr.mxu0 0.0
        %5429 = vmatpush1.msra.mxu0 0.0
        %5430 = vmatprep.subr.mxu0 0.0
        %5431 = vmatpush1.msra.mxu0 0.0
        %5432 = vmatprep.subr.mxu0 0.0
        %5433 = vmatpush1.msra.mxu0 0.0
        %5434 = vmatprep.subr.mxu0 0.0
        %5435 = vmatpush1.msra.mxu0 0.0
        %5436 = vmatprep.subr.mxu0 0.0
        %5437 = vmatpush1.msra.mxu0 0.0
        %5438 = vmatprep.subr.mxu0 0.0
        %5439 = vmatpush1.msra.mxu0 0.0
        %5440 = vmatprep.subr.mxu0 0.0
        %5441 = vmatpush1.msra.mxu0 0.0
        %5442 = vmatprep.subr.mxu0 0.0
        %5443 = vmatpush1.msra.mxu0 0.0
        %5444 = vmatprep.subr.mxu0 0.0
        %5445 = vmatpush1.msra.mxu0 0.0
        %5446 = vmatprep.subr.mxu0 0.0
        %5447 = vmatpush1.msra.mxu0 0.0
        %5448 = vmatprep.subr.mxu0 0.0
        %5449 = vmatpush1.msra.mxu0 0.0
        %5450 = vmatprep.subr.mxu0 0.0
        %5451 = vmatpush1.msra.mxu0 0.0
        %5452 = vmatprep.subr.mxu0 0.0
        %5453 = vmatpush1.msra.mxu0 0.0
        %5454 = vmatprep.subr.mxu0 0.0
        %5455 = vmatpush1.msra.mxu0 0.0
        %5456 = vmatprep.subr.mxu0 0.0
        %5457 = vmatpush1.msra.mxu0 0.0
        %5458 = vmatprep.subr.mxu0 0.0
        %5459 = vmatpush1.msra.mxu0 0.0
        %5460 = vmatprep.mubr.f32.mxu0 0.0
        %v5461 = vand.u32 %v5108, 4294901760
        %v5462 = vsub.f32 %v5108, %v5461
        %v5463 = vand.u32 %v5462, 4294901760
        %5464 = vmatmul.mubr.f32.gmra.mrb[0].mxu0 %v5463
        %v5465 = vpop.f32.mrb[0].mxu0
        %v5466 = vadd.f32 %v5380, %v5465
        %v5467 = vpop.f32.mrb[0].mxu0
        %v5468 = vadd.f32 %v5382, %v5467
        %5469 = vmatprep.mubr.f32.mxu0 0.0
        %v5470 = vand.u32 %v5111, 4294901760
        %v5471 = vsub.f32 %v5111, %v5470
        %v5472 = vand.u32 %v5471, 4294901760
        %5473 = vmatmul.mubr.f32.gmra.mrb[0].mxu0 %v5472
        %v5474 = vpop.f32.mrb[0].mxu0
        %v5475 = vadd.f32 %v5388, %v5474
        %v5476 = vpop.f32.mrb[0].mxu0
        %v5477 = vadd.f32 %v5390, %v5476
        %5478 = vdwg.mxu0
        %v5479 = vand.u32 %v5100, 4294901760
        %v5480 = vsub.f32 %v5100, %v5479
        %v5481 = vand.u32 %v5480, 4294901760
        %5482 = vmatprep.subr.mxu0 %v5481
        %v5483 = vand.u32 %v5099, 4294901760
        %v5484 = vsub.f32 %v5099, %v5483
        %v5485 = vand.u32 %v5484, 4294901760
        %5486 = vmatpush1.msra.mxu0 %v5485
        %v5487 = vand.u32 %v5102, 4294901760
        %v5488 = vsub.f32 %v5102, %v5487
        %v5489 = vand.u32 %v5488, 4294901760
        %5490 = vmatprep.subr.mxu0 %v5489
        %v5491 = vand.u32 %v5101, 4294901760
        %v5492 = vsub.f32 %v5101, %v5491
        %v5493 = vand.u32 %v5492, 4294901760
        %5494 = vmatpush1.msra.mxu0 %v5493
        %5495 = vmatprep.subr.mxu0 0.0
        %5496 = vmatpush1.msra.mxu0 0.0
        %5497 = vmatprep.subr.mxu0 0.0
        %5498 = vmatpush1.msra.mxu0 0.0
        %5499 = vmatprep.subr.mxu0 0.0
        %5500 = vmatpush1.msra.mxu0 0.0
        %5501 = vmatprep.subr.mxu0 0.0
        %5502 = vmatpush1.msra.mxu0 0.0
        %5503 = vmatprep.subr.mxu0 0.0
        %5504 = vmatpush1.msra.mxu0 0.0
        %5505 = vmatprep.subr.mxu0 0.0
        %5506 = vmatpush1.msra.mxu0 0.0
        %5507 = vmatprep.subr.mxu0 0.0
        %5508 = vmatpush1.msra.mxu0 0.0
        %5509 = vmatprep.subr.mxu0 0.0
        %5510 = vmatpush1.msra.mxu0 0.0
        %5511 = vmatprep.subr.mxu0 0.0
        %5512 = vmatpush1.msra.mxu0 0.0
        %5513 = vmatprep.subr.mxu0 0.0
        %5514 = vmatpush1.msra.mxu0 0.0
        %5515 = vmatprep.subr.mxu0 0.0
        %5516 = vmatpush1.msra.mxu0 0.0
        %5517 = vmatprep.subr.mxu0 0.0
        %5518 = vmatpush1.msra.mxu0 0.0
        %5519 = vmatprep.subr.mxu0 0.0
        %5520 = vmatpush1.msra.mxu0 0.0
        %5521 = vmatprep.subr.mxu0 0.0
        %5522 = vmatpush1.msra.mxu0 0.0
        %5523 = vmatprep.subr.mxu0 0.0
        %5524 = vmatpush1.msra.mxu0 0.0
        %5525 = vmatprep.subr.mxu0 0.0
        %5526 = vmatpush1.msra.mxu0 0.0
        %5527 = vmatprep.subr.mxu0 0.0
        %5528 = vmatpush1.msra.mxu0 0.0
        %5529 = vmatprep.subr.mxu0 0.0
        %5530 = vmatpush1.msra.mxu0 0.0
        %5531 = vmatprep.subr.mxu0 0.0
        %5532 = vmatpush1.msra.mxu0 0.0
        %5533 = vmatprep.subr.mxu0 0.0
        %5534 = vmatpush1.msra.mxu0 0.0
        %5535 = vmatprep.subr.mxu0 0.0
        %5536 = vmatpush1.msra.mxu0 0.0
        %5537 = vmatprep.subr.mxu0 0.0
        %5538 = vmatpush1.msra.mxu0 0.0
        %5539 = vmatprep.subr.mxu0 0.0
        %5540 = vmatpush1.msra.mxu0 0.0
        %5541 = vmatprep.subr.mxu0 0.0
        %5542 = vmatpush1.msra.mxu0 0.0
        %5543 = vmatprep.subr.mxu0 0.0
        %5544 = vmatpush1.msra.mxu0 0.0
        %5545 = vmatprep.subr.mxu0 0.0
        %5546 = vmatpush1.msra.mxu0 0.0
        %5547 = vmatprep.subr.mxu0 0.0
        %5548 = vmatpush1.msra.mxu0 0.0
        %5549 = vmatprep.subr.mxu0 0.0
        %5550 = vmatpush1.msra.mxu0 0.0
        %5551 = vmatprep.subr.mxu0 0.0
        %5552 = vmatpush1.msra.mxu0 0.0
        %5553 = vmatprep.subr.mxu0 0.0
        %5554 = vmatpush1.msra.mxu0 0.0
        %5555 = vmatprep.mubr.f32.mxu0 0.0
        %v5556 = vand.u32 %v5108, 4294901760
        %5557 = vmatmul.mubr.f32.gmra.mrb[0].mxu0 %v5556
        %v5558 = vpop.f32.mrb[0].mxu0
        %v5559 = vadd.f32 %v5466, %v5558
        %v5560 = vpop.f32.mrb[0].mxu0
        %v5561 = vadd.f32 %v5468, %v5560
        %5562 = vmatprep.mubr.f32.mxu0 0.0
        %v5563 = vand.u32 %v5111, 4294901760
        %5564 = vmatmul.mubr.f32.gmra.mrb[0].mxu0 %v5563
        %v5565 = vpop.f32.mrb[0].mxu0
        %v5566 = vadd.f32 %v5475, %v5565
        %v5567 = vpop.f32.mrb[0].mxu0
        %v5568 = vadd.f32 %v5477, %v5567
        %5569 = vdwg.mxu0
        %v5570 = vand.u32 %v5100, 4294901760
        %5571 = vmatprep.subr.mxu0 %v5570
        %v5572 = vand.u32 %v5099, 4294901760
        %5573 = vmatpush1.msra.mxu0 %v5572
        %v5574 = vand.u32 %v5102, 4294901760
        %5575 = vmatprep.subr.mxu0 %v5574
        %v5576 = vand.u32 %v5101, 4294901760
        %5577 = vmatpush1.msra.mxu0 %v5576
        %5578 = vmatprep.subr.mxu0 0.0
        %5579 = vmatpush1.msra.mxu0 0.0
        %5580 = vmatprep.subr.mxu0 0.0
        %5581 = vmatpush1.msra.mxu0 0.0
        %5582 = vmatprep.subr.mxu0 0.0
        %5583 = vmatpush1.msra.mxu0 0.0
        %5584 = vmatprep.subr.mxu0 0.0
        %5585 = vmatpush1.msra.mxu0 0.0
        %5586 = vmatprep.subr.mxu0 0.0
        %5587 = vmatpush1.msra.mxu0 0.0
        %5588 = vmatprep.subr.mxu0 0.0
        %5589 = vmatpush1.msra.mxu0 0.0
        %5590 = vmatprep.subr.mxu0 0.0
        %5591 = vmatpush1.msra.mxu0 0.0
        %5592 = vmatprep.subr.mxu0 0.0
        %5593 = vmatpush1.msra.mxu0 0.0
        %5594 = vmatprep.subr.mxu0 0.0
        %5595 = vmatpush1.msra.mxu0 0.0
        %5596 = vmatprep.subr.mxu0 0.0
        %5597 = vmatpush1.msra.mxu0 0.0
        %5598 = vmatprep.subr.mxu0 0.0
        %5599 = vmatpush1.msra.mxu0 0.0
        %5600 = vmatprep.subr.mxu0 0.0
        %5601 = vmatpush1.msra.mxu0 0.0
        %5602 = vmatprep.subr.mxu0 0.0
        %5603 = vmatpush1.msra.mxu0 0.0
        %5604 = vmatprep.subr.mxu0 0.0
        %5605 = vmatpush1.msra.mxu0 0.0
        %5606 = vmatprep.subr.mxu0 0.0
        %5607 = vmatpush1.msra.mxu0 0.0
        %5608 = vmatprep.subr.mxu0 0.0
        %5609 = vmatpush1.msra.mxu0 0.0
        %5610 = vmatprep.subr.mxu0 0.0
        %5611 = vmatpush1.msra.mxu0 0.0
        %5612 = vmatprep.subr.mxu0 0.0
        %5613 = vmatpush1.msra.mxu0 0.0
        %5614 = vmatprep.subr.mxu0 0.0
        %5615 = vmatpush1.msra.mxu0 0.0
        %5616 = vmatprep.subr.mxu0 0.0
        %5617 = vmatpush1.msra.mxu0 0.0
        %5618 = vmatprep.subr.mxu0 0.0
        %5619 = vmatpush1.msra.mxu0 0.0
        %5620 = vmatprep.subr.mxu0 0.0
        %5621 = vmatpush1.msra.mxu0 0.0
        %5622 = vmatprep.subr.mxu0 0.0
        %5623 = vmatpush1.msra.mxu0 0.0
        %5624 = vmatprep.subr.mxu0 0.0
        %5625 = vmatpush1.msra.mxu0 0.0
        %5626 = vmatprep.subr.mxu0 0.0
        %5627 = vmatpush1.msra.mxu0 0.0
        %5628 = vmatprep.subr.mxu0 0.0
        %5629 = vmatpush1.msra.mxu0 0.0
        %5630 = vmatprep.subr.mxu0 0.0
        %5631 = vmatpush1.msra.mxu0 0.0
        %5632 = vmatprep.subr.mxu0 0.0
        %5633 = vmatpush1.msra.mxu0 0.0
        %5634 = vmatprep.subr.mxu0 0.0
        %5635 = vmatpush1.msra.mxu0 0.0
        %5636 = vmatprep.subr.mxu0 0.0
        %5637 = vmatpush1.msra.mxu0 0.0
        %5638 = vmatprep.mubr.f32.mxu0 0.0
        %v5639 = vand.u32 %v5108, 4294901760
        %5640 = vmatmul.mubr.f32.gmra.mrb[0].mxu0 %v5639
        %v5641 = vpop.f32.mrb[0].mxu0
        %v5642 = vadd.f32 %v5559, %v5641
        %v5643 = vpop.f32.mrb[0].mxu0
        %v5644 = vadd.f32 %v5561, %v5643
        %5645 = vmatprep.mubr.f32.mxu0 0.0
        %v5646 = vand.u32 %v5111, 4294901760
        %5647 = vmatmul.mubr.f32.gmra.mrb[0].mxu0 %v5646
        %v5648 = vpop.f32.mrb[0].mxu0
        %v5649 = vadd.f32 %v5566, %v5648
        %v5650 = vpop.f32.mrb[0].mxu0
        %v5651 = vadd.f32 %v5568, %v5650
        %5652 = vdwg.mxu0
        %v5653 = vadd.f32 %v5060, %v5642
        %v5654 = vadd.f32 %v5061, %v5644
        %v5655 = vadd.f32 %v5062, %v5649
        %v5656 = vadd.f32 %v5063, %v5651
        %5657 = vrot.lane.b32.xlu0 %v2159, 32
        %v5658 = vpop.permute.xlu0 %5657
        %5659 = vrot.lane.b32.xlu0 %v2163, 32
        %v5660 = vpop.permute.xlu0 %5659
        %v5661 = vsel %vm724, %v5658, %v5660
        %v5665 = vmul.f32 %v2150, %v5658
        %v5666 = vmul.f32 %v2151, %v5661
        %v5667 = vmul.f32 %v2172, %v5660
        %v5668 = vmul.f32 %v2152, %v5658
        %v5669 = vmul.f32 %v2153, %v5661
        %v5670 = vmul.f32 %v2173, %v5660
        %s5671 = scalar_lea.vmem %s8, 96
        %v5672 = vld [vmem:[%s5671] sm:$0xff]
        %v5673 = vld [vmem:[%s5671 + $0x8] sm:$0xff]
        %5680 = vrot.lane.b32.xlu0 %v5665, 96
        %v5681 = vpop.permute.xlu0 %5680
        %5682 = vrot.lane.b32.xlu0 %v5666, 96
        %v5683 = vpop.permute.xlu0 %5682
        %5684 = vrot.lane.b32.xlu0 %v5667, 96
        %v5685 = vpop.permute.xlu0 %5684
        %5686 = vrot.lane.b32.xlu0 %v5668, 96
        %v5687 = vpop.permute.xlu0 %5686
        %5688 = vrot.lane.b32.xlu0 %v5669, 96
        %v5689 = vpop.permute.xlu0 %5688
        %5690 = vrot.lane.b32.xlu0 %v5670, 96
        %v5691 = vpop.permute.xlu0 %5690
        %v5692 = vsel %vm748, %v5681, %v5683
        %v5693 = vsel %vm748, %v5683, %v5685
        %v5694 = vsel %vm748, %v5687, %v5689
        %v5695 = vsel %vm748, %v5689, %v5691
        %v5701 = vsel %vm631, %v5672, 0
        %v5704 = vsel %vm631, %v5673, 0
        %v5706 = vand.u32 %v5693, 4294901760
        %5707 = vmatprep.subr.mxu0 %v5706
        %v5708 = vand.u32 %v5692, 4294901760
        %5709 = vmatpush1.msra.mxu0 %v5708
        %v5710 = vand.u32 %v5695, 4294901760
        %5711 = vmatprep.subr.mxu0 %v5710
        %v5712 = vand.u32 %v5694, 4294901760
        %5713 = vmatpush1.msra.mxu0 %v5712
        %5714 = vmatprep.subr.mxu0 0.0
        %5715 = vmatpush1.msra.mxu0 0.0
        %5716 = vmatprep.subr.mxu0 0.0
        %5717 = vmatpush1.msra.mxu0 0.0
        %5718 = vmatprep.subr.mxu0 0.0
        %5719 = vmatpush1.msra.mxu0 0.0
        %5720 = vmatprep.subr.mxu0 0.0
        %5721 = vmatpush1.msra.mxu0 0.0
        %5722 = vmatprep.subr.mxu0 0.0
        %5723 = vmatpush1.msra.mxu0 0.0
        %5724 = vmatprep.subr.mxu0 0.0
        %5725 = vmatpush1.msra.mxu0 0.0
        %5726 = vmatprep.subr.mxu0 0.0
        %5727 = vmatpush1.msra.mxu0 0.0
        %5728 = vmatprep.subr.mxu0 0.0
        %5729 = vmatpush1.msra.mxu0 0.0
        %5730 = vmatprep.subr.mxu0 0.0
        %5731 = vmatpush1.msra.mxu0 0.0
        %5732 = vmatprep.subr.mxu0 0.0
        %5733 = vmatpush1.msra.mxu0 0.0
        %5734 = vmatprep.subr.mxu0 0.0
        %5735 = vmatpush1.msra.mxu0 0.0
        %5736 = vmatprep.subr.mxu0 0.0
        %5737 = vmatpush1.msra.mxu0 0.0
        %5738 = vmatprep.subr.mxu0 0.0
        %5739 = vmatpush1.msra.mxu0 0.0
        %5740 = vmatprep.subr.mxu0 0.0
        %5741 = vmatpush1.msra.mxu0 0.0
        %5742 = vmatprep.subr.mxu0 0.0
        %5743 = vmatpush1.msra.mxu0 0.0
        %5744 = vmatprep.subr.mxu0 0.0
        %5745 = vmatpush1.msra.mxu0 0.0
        %5746 = vmatprep.subr.mxu0 0.0
        %5747 = vmatpush1.msra.mxu0 0.0
        %5748 = vmatprep.subr.mxu0 0.0
        %5749 = vmatpush1.msra.mxu0 0.0
        %5750 = vmatprep.subr.mxu0 0.0
        %5751 = vmatpush1.msra.mxu0 0.0
        %5752 = vmatprep.subr.mxu0 0.0
        %5753 = vmatpush1.msra.mxu0 0.0
        %5754 = vmatprep.subr.mxu0 0.0
        %5755 = vmatpush1.msra.mxu0 0.0
        %5756 = vmatprep.subr.mxu0 0.0
        %5757 = vmatpush1.msra.mxu0 0.0
        %5758 = vmatprep.subr.mxu0 0.0
        %5759 = vmatpush1.msra.mxu0 0.0
        %5760 = vmatprep.subr.mxu0 0.0
        %5761 = vmatpush1.msra.mxu0 0.0
        %5762 = vmatprep.subr.mxu0 0.0
        %5763 = vmatpush1.msra.mxu0 0.0
        %5764 = vmatprep.subr.mxu0 0.0
        %5765 = vmatpush1.msra.mxu0 0.0
        %5766 = vmatprep.subr.mxu0 0.0
        %5767 = vmatpush1.msra.mxu0 0.0
        %5768 = vmatprep.subr.mxu0 0.0
        %5769 = vmatpush1.msra.mxu0 0.0
        %5770 = vmatprep.subr.mxu0 0.0
        %5771 = vmatpush1.msra.mxu0 0.0
        %5772 = vmatprep.subr.mxu0 0.0
        %5773 = vmatpush1.msra.mxu0 0.0
        %5774 = vmatprep.mubr.f32.mxu0 0.0
        %v5775 = vand.u32 %v5701, 4294901760
        %v5776 = vsub.f32 %v5701, %v5775
        %v5777 = vand.u32 %v5776, 4294901760
        %v5778 = vsub.f32 %v5776, %v5777
        %v5779 = vand.u32 %v5778, 4294901760
        %5780 = vmatmul.mubr.f32.gmra.mrb[0].mxu0 %v5779
        %v5781 = vpop.f32.mrb[0].mxu0
        %v5782 = vadd.f32 0.0, %v5781
        %v5783 = vpop.f32.mrb[0].mxu0
        %v5784 = vadd.f32 0.0, %v5783
        %5785 = vmatprep.mubr.f32.mxu0 0.0
        %v5786 = vand.u32 %v5704, 4294901760
        %v5787 = vsub.f32 %v5704, %v5786
        %v5788 = vand.u32 %v5787, 4294901760
        %v5789 = vsub.f32 %v5787, %v5788
        %v5790 = vand.u32 %v5789, 4294901760
        %5791 = vmatmul.mubr.f32.gmra.mrb[0].mxu0 %v5790
        %v5792 = vpop.f32.mrb[0].mxu0
        %v5793 = vadd.f32 0.0, %v5792
        %v5794 = vpop.f32.mrb[0].mxu0
        %v5795 = vadd.f32 0.0, %v5794
        %5796 = vdwg.mxu0
        %v5797 = vand.u32 %v5693, 4294901760
        %v5798 = vsub.f32 %v5693, %v5797
        %v5799 = vand.u32 %v5798, 4294901760
        %v5800 = vsub.f32 %v5798, %v5799
        %v5801 = vand.u32 %v5800, 4294901760
        %5802 = vmatprep.subr.mxu0 %v5801
        %v5803 = vand.u32 %v5692, 4294901760
        %v5804 = vsub.f32 %v5692, %v5803
        %v5805 = vand.u32 %v5804, 4294901760
        %v5806 = vsub.f32 %v5804, %v5805
        %v5807 = vand.u32 %v5806, 4294901760
        %5808 = vmatpush1.msra.mxu0 %v5807
        %v5809 = vand.u32 %v5695, 4294901760
        %v5810 = vsub.f32 %v5695, %v5809
        %v5811 = vand.u32 %v5810, 4294901760
        %v5812 = vsub.f32 %v5810, %v5811
        %v5813 = vand.u32 %v5812, 4294901760
        %5814 = vmatprep.subr.mxu0 %v5813
        %v5815 = vand.u32 %v5694, 4294901760
        %v5816 = vsub.f32 %v5694, %v5815
        %v5817 = vand.u32 %v5816, 4294901760
        %v5818 = vsub.f32 %v5816, %v5817
        %v5819 = vand.u32 %v5818, 4294901760
        %5820 = vmatpush1.msra.mxu0 %v5819
        %5821 = vmatprep.subr.mxu0 0.0
        %5822 = vmatpush1.msra.mxu0 0.0
        %5823 = vmatprep.subr.mxu0 0.0
        %5824 = vmatpush1.msra.mxu0 0.0
        %5825 = vmatprep.subr.mxu0 0.0
        %5826 = vmatpush1.msra.mxu0 0.0
        %5827 = vmatprep.subr.mxu0 0.0
        %5828 = vmatpush1.msra.mxu0 0.0
        %5829 = vmatprep.subr.mxu0 0.0
        %5830 = vmatpush1.msra.mxu0 0.0
        %5831 = vmatprep.subr.mxu0 0.0
        %5832 = vmatpush1.msra.mxu0 0.0
        %5833 = vmatprep.subr.mxu0 0.0
        %5834 = vmatpush1.msra.mxu0 0.0
        %5835 = vmatprep.subr.mxu0 0.0
        %5836 = vmatpush1.msra.mxu0 0.0
        %5837 = vmatprep.subr.mxu0 0.0
        %5838 = vmatpush1.msra.mxu0 0.0
        %5839 = vmatprep.subr.mxu0 0.0
        %5840 = vmatpush1.msra.mxu0 0.0
        %5841 = vmatprep.subr.mxu0 0.0
        %5842 = vmatpush1.msra.mxu0 0.0
        %5843 = vmatprep.subr.mxu0 0.0
        %5844 = vmatpush1.msra.mxu0 0.0
        %5845 = vmatprep.subr.mxu0 0.0
        %5846 = vmatpush1.msra.mxu0 0.0
        %5847 = vmatprep.subr.mxu0 0.0
        %5848 = vmatpush1.msra.mxu0 0.0
        %5849 = vmatprep.subr.mxu0 0.0
        %5850 = vmatpush1.msra.mxu0 0.0
        %5851 = vmatprep.subr.mxu0 0.0
        %5852 = vmatpush1.msra.mxu0 0.0
        %5853 = vmatprep.subr.mxu0 0.0
        %5854 = vmatpush1.msra.mxu0 0.0
        %5855 = vmatprep.subr.mxu0 0.0
        %5856 = vmatpush1.msra.mxu0 0.0
        %5857 = vmatprep.subr.mxu0 0.0
        %5858 = vmatpush1.msra.mxu0 0.0
        %5859 = vmatprep.subr.mxu0 0.0
        %5860 = vmatpush1.msra.mxu0 0.0
        %5861 = vmatprep.subr.mxu0 0.0
        %5862 = vmatpush1.msra.mxu0 0.0
        %5863 = vmatprep.subr.mxu0 0.0
        %5864 = vmatpush1.msra.mxu0 0.0
        %5865 = vmatprep.subr.mxu0 0.0
        %5866 = vmatpush1.msra.mxu0 0.0
        %5867 = vmatprep.subr.mxu0 0.0
        %5868 = vmatpush1.msra.mxu0 0.0
        %5869 = vmatprep.subr.mxu0 0.0
        %5870 = vmatpush1.msra.mxu0 0.0
        %5871 = vmatprep.subr.mxu0 0.0
        %5872 = vmatpush1.msra.mxu0 0.0
        %5873 = vmatprep.subr.mxu0 0.0
        %5874 = vmatpush1.msra.mxu0 0.0
        %5875 = vmatprep.subr.mxu0 0.0
        %5876 = vmatpush1.msra.mxu0 0.0
        %5877 = vmatprep.subr.mxu0 0.0
        %5878 = vmatpush1.msra.mxu0 0.0
        %5879 = vmatprep.subr.mxu0 0.0
        %5880 = vmatpush1.msra.mxu0 0.0
        %5881 = vmatprep.mubr.f32.mxu0 0.0
        %v5882 = vand.u32 %v5701, 4294901760
        %5883 = vmatmul.mubr.f32.gmra.mrb[0].mxu0 %v5882
        %v5884 = vpop.f32.mrb[0].mxu0
        %v5885 = vadd.f32 %v5782, %v5884
        %v5886 = vpop.f32.mrb[0].mxu0
        %v5887 = vadd.f32 %v5784, %v5886
        %5888 = vmatprep.mubr.f32.mxu0 0.0
        %v5889 = vand.u32 %v5704, 4294901760
        %5890 = vmatmul.mubr.f32.gmra.mrb[0].mxu0 %v5889
        %v5891 = vpop.f32.mrb[0].mxu0
        %v5892 = vadd.f32 %v5793, %v5891
        %v5893 = vpop.f32.mrb[0].mxu0
        %v5894 = vadd.f32 %v5795, %v5893
        %5895 = vdwg.mxu0
        %v5896 = vand.u32 %v5693, 4294901760
        %v5897 = vsub.f32 %v5693, %v5896
        %5898 = vmatprep.subr.mxu0 %v5897
        %v5899 = vand.u32 %v5692, 4294901760
        %v5900 = vsub.f32 %v5692, %v5899
        %5901 = vmatpush1.msra.mxu0 %v5900
        %v5902 = vand.u32 %v5695, 4294901760
        %v5903 = vsub.f32 %v5695, %v5902
        %5904 = vmatprep.subr.mxu0 %v5903
        %v5905 = vand.u32 %v5694, 4294901760
        %v5906 = vsub.f32 %v5694, %v5905
        %5907 = vmatpush1.msra.mxu0 %v5906
        %5908 = vmatprep.subr.mxu0 0.0
        %5909 = vmatpush1.msra.mxu0 0.0
        %5910 = vmatprep.subr.mxu0 0.0
        %5911 = vmatpush1.msra.mxu0 0.0
        %5912 = vmatprep.subr.mxu0 0.0
        %5913 = vmatpush1.msra.mxu0 0.0
        %5914 = vmatprep.subr.mxu0 0.0
        %5915 = vmatpush1.msra.mxu0 0.0
        %5916 = vmatprep.subr.mxu0 0.0
        %5917 = vmatpush1.msra.mxu0 0.0
        %5918 = vmatprep.subr.mxu0 0.0
        %5919 = vmatpush1.msra.mxu0 0.0
        %5920 = vmatprep.subr.mxu0 0.0
        %5921 = vmatpush1.msra.mxu0 0.0
        %5922 = vmatprep.subr.mxu0 0.0
        %5923 = vmatpush1.msra.mxu0 0.0
        %5924 = vmatprep.subr.mxu0 0.0
        %5925 = vmatpush1.msra.mxu0 0.0
        %5926 = vmatprep.subr.mxu0 0.0
        %5927 = vmatpush1.msra.mxu0 0.0
        %5928 = vmatprep.subr.mxu0 0.0
        %5929 = vmatpush1.msra.mxu0 0.0
        %5930 = vmatprep.subr.mxu0 0.0
        %5931 = vmatpush1.msra.mxu0 0.0
        %5932 = vmatprep.subr.mxu0 0.0
        %5933 = vmatpush1.msra.mxu0 0.0
        %5934 = vmatprep.subr.mxu0 0.0
        %5935 = vmatpush1.msra.mxu0 0.0
        %5936 = vmatprep.subr.mxu0 0.0
        %5937 = vmatpush1.msra.mxu0 0.0
        %5938 = vmatprep.subr.mxu0 0.0
        %5939 = vmatpush1.msra.mxu0 0.0
        %5940 = vmatprep.subr.mxu0 0.0
        %5941 = vmatpush1.msra.mxu0 0.0
        %5942 = vmatprep.subr.mxu0 0.0
        %5943 = vmatpush1.msra.mxu0 0.0
        %5944 = vmatprep.subr.mxu0 0.0
        %5945 = vmatpush1.msra.mxu0 0.0
        %5946 = vmatprep.subr.mxu0 0.0
        %5947 = vmatpush1.msra.mxu0 0.0
        %5948 = vmatprep.subr.mxu0 0.0
        %5949 = vmatpush1.msra.mxu0 0.0
        %5950 = vmatprep.subr.mxu0 0.0
        %5951 = vmatpush1.msra.mxu0 0.0
        %5952 = vmatprep.subr.mxu0 0.0
        %5953 = vmatpush1.msra.mxu0 0.0
        %5954 = vmatprep.subr.mxu0 0.0
        %5955 = vmatpush1.msra.mxu0 0.0
        %5956 = vmatprep.subr.mxu0 0.0
        %5957 = vmatpush1.msra.mxu0 0.0
        %5958 = vmatprep.subr.mxu0 0.0
        %5959 = vmatpush1.msra.mxu0 0.0
        %5960 = vmatprep.subr.mxu0 0.0
        %5961 = vmatpush1.msra.mxu0 0.0
        %5962 = vmatprep.subr.mxu0 0.0
        %5963 = vmatpush1.msra.mxu0 0.0
        %5964 = vmatprep.subr.mxu0 0.0
        %5965 = vmatpush1.msra.mxu0 0.0
        %5966 = vmatprep.subr.mxu0 0.0
        %5967 = vmatpush1.msra.mxu0 0.0
        %5968 = vmatprep.mubr.f32.mxu0 0.0
        %v5969 = vand.u32 %v5701, 4294901760
        %v5970 = vsub.f32 %v5701, %v5969
        %5971 = vmatmul.mubr.f32.gmra.mrb[0].mxu0 %v5970
        %v5972 = vpop.f32.mrb[0].mxu0
        %v5973 = vadd.f32 %v5885, %v5972
        %v5974 = vpop.f32.mrb[0].mxu0
        %v5975 = vadd.f32 %v5887, %v5974
        %5976 = vmatprep.mubr.f32.mxu0 0.0
        %v5977 = vand.u32 %v5704, 4294901760
        %v5978 = vsub.f32 %v5704, %v5977
        %5979 = vmatmul.mubr.f32.gmra.mrb[0].mxu0 %v5978
        %v5980 = vpop.f32.mrb[0].mxu0
        %v5981 = vadd.f32 %v5892, %v5980
        %v5982 = vpop.f32.mrb[0].mxu0
        %v5983 = vadd.f32 %v5894, %v5982
        %5984 = vdwg.mxu0
        %v5985 = vand.u32 %v5693, 4294901760
        %5986 = vmatprep.subr.mxu0 %v5985
        %v5987 = vand.u32 %v5692, 4294901760
        %5988 = vmatpush1.msra.mxu0 %v5987
        %v5989 = vand.u32 %v5695, 4294901760
        %5990 = vmatprep.subr.mxu0 %v5989
        %v5991 = vand.u32 %v5694, 4294901760
        %5992 = vmatpush1.msra.mxu0 %v5991
        %5993 = vmatprep.subr.mxu0 0.0
        %5994 = vmatpush1.msra.mxu0 0.0
        %5995 = vmatprep.subr.mxu0 0.0
        %5996 = vmatpush1.msra.mxu0 0.0
        %5997 = vmatprep.subr.mxu0 0.0
        %5998 = vmatpush1.msra.mxu0 0.0
        %5999 = vmatprep.subr.mxu0 0.0
        %6000 = vmatpush1.msra.mxu0 0.0
        %6001 = vmatprep.subr.mxu0 0.0
        %6002 = vmatpush1.msra.mxu0 0.0
        %6003 = vmatprep.subr.mxu0 0.0
        %6004 = vmatpush1.msra.mxu0 0.0
        %6005 = vmatprep.subr.mxu0 0.0
        %6006 = vmatpush1.msra.mxu0 0.0
        %6007 = vmatprep.subr.mxu0 0.0
        %6008 = vmatpush1.msra.mxu0 0.0
        %6009 = vmatprep.subr.mxu0 0.0
        %6010 = vmatpush1.msra.mxu0 0.0
        %6011 = vmatprep.subr.mxu0 0.0
        %6012 = vmatpush1.msra.mxu0 0.0
        %6013 = vmatprep.subr.mxu0 0.0
        %6014 = vmatpush1.msra.mxu0 0.0
        %6015 = vmatprep.subr.mxu0 0.0
        %6016 = vmatpush1.msra.mxu0 0.0
        %6017 = vmatprep.subr.mxu0 0.0
        %6018 = vmatpush1.msra.mxu0 0.0
        %6019 = vmatprep.subr.mxu0 0.0
        %6020 = vmatpush1.msra.mxu0 0.0
        %6021 = vmatprep.subr.mxu0 0.0
        %6022 = vmatpush1.msra.mxu0 0.0
        %6023 = vmatprep.subr.mxu0 0.0
        %6024 = vmatpush1.msra.mxu0 0.0
        %6025 = vmatprep.subr.mxu0 0.0
        %6026 = vmatpush1.msra.mxu0 0.0
        %6027 = vmatprep.subr.mxu0 0.0
        %6028 = vmatpush1.msra.mxu0 0.0
        %6029 = vmatprep.subr.mxu0 0.0
        %6030 = vmatpush1.msra.mxu0 0.0
        %6031 = vmatprep.subr.mxu0 0.0
        %6032 = vmatpush1.msra.mxu0 0.0
        %6033 = vmatprep.subr.mxu0 0.0
        %6034 = vmatpush1.msra.mxu0 0.0
        %6035 = vmatprep.subr.mxu0 0.0
        %6036 = vmatpush1.msra.mxu0 0.0
        %6037 = vmatprep.subr.mxu0 0.0
        %6038 = vmatpush1.msra.mxu0 0.0
        %6039 = vmatprep.subr.mxu0 0.0
        %6040 = vmatpush1.msra.mxu0 0.0
        %6041 = vmatprep.subr.mxu0 0.0
        %6042 = vmatpush1.msra.mxu0 0.0
        %6043 = vmatprep.subr.mxu0 0.0
        %6044 = vmatpush1.msra.mxu0 0.0
        %6045 = vmatprep.subr.mxu0 0.0
        %6046 = vmatpush1.msra.mxu0 0.0
        %6047 = vmatprep.subr.mxu0 0.0
        %6048 = vmatpush1.msra.mxu0 0.0
        %6049 = vmatprep.subr.mxu0 0.0
        %6050 = vmatpush1.msra.mxu0 0.0
        %6051 = vmatprep.subr.mxu0 0.0
        %6052 = vmatpush1.msra.mxu0 0.0
        %6053 = vmatprep.mubr.f32.mxu0 0.0
        %v6054 = vand.u32 %v5701, 4294901760
        %v6055 = vsub.f32 %v5701, %v6054
        %v6056 = vand.u32 %v6055, 4294901760
        %6057 = vmatmul.mubr.f32.gmra.mrb[0].mxu0 %v6056
        %v6058 = vpop.f32.mrb[0].mxu0
        %v6059 = vadd.f32 %v5973, %v6058
        %v6060 = vpop.f32.mrb[0].mxu0
        %v6061 = vadd.f32 %v5975, %v6060
        %6062 = vmatprep.mubr.f32.mxu0 0.0
        %v6063 = vand.u32 %v5704, 4294901760
        %v6064 = vsub.f32 %v5704, %v6063
        %v6065 = vand.u32 %v6064, 4294901760
        %6066 = vmatmul.mubr.f32.gmra.mrb[0].mxu0 %v6065
        %v6067 = vpop.f32.mrb[0].mxu0
        %v6068 = vadd.f32 %v5981, %v6067
        %v6069 = vpop.f32.mrb[0].mxu0
        %v6070 = vadd.f32 %v5983, %v6069
        %6071 = vdwg.mxu0
        %v6072 = vand.u32 %v5693, 4294901760
        %v6073 = vsub.f32 %v5693, %v6072
        %v6074 = vand.u32 %v6073, 4294901760
        %6075 = vmatprep.subr.mxu0 %v6074
        %v6076 = vand.u32 %v5692, 4294901760
        %v6077 = vsub.f32 %v5692, %v6076
        %v6078 = vand.u32 %v6077, 4294901760
        %6079 = vmatpush1.msra.mxu0 %v6078
        %v6080 = vand.u32 %v5695, 4294901760
        %v6081 = vsub.f32 %v5695, %v6080
        %v6082 = vand.u32 %v6081, 4294901760
        %6083 = vmatprep.subr.mxu0 %v6082
        %v6084 = vand.u32 %v5694, 4294901760
        %v6085 = vsub.f32 %v5694, %v6084
        %v6086 = vand.u32 %v6085, 4294901760
        %6087 = vmatpush1.msra.mxu0 %v6086
        %6088 = vmatprep.subr.mxu0 0.0
        %6089 = vmatpush1.msra.mxu0 0.0
        %6090 = vmatprep.subr.mxu0 0.0
        %6091 = vmatpush1.msra.mxu0 0.0
        %6092 = vmatprep.subr.mxu0 0.0
        %6093 = vmatpush1.msra.mxu0 0.0
        %6094 = vmatprep.subr.mxu0 0.0
        %6095 = vmatpush1.msra.mxu0 0.0
        %6096 = vmatprep.subr.mxu0 0.0
        %6097 = vmatpush1.msra.mxu0 0.0
        %6098 = vmatprep.subr.mxu0 0.0
        %6099 = vmatpush1.msra.mxu0 0.0
        %6100 = vmatprep.subr.mxu0 0.0
        %6101 = vmatpush1.msra.mxu0 0.0
        %6102 = vmatprep.subr.mxu0 0.0
        %6103 = vmatpush1.msra.mxu0 0.0
        %6104 = vmatprep.subr.mxu0 0.0
        %6105 = vmatpush1.msra.mxu0 0.0
        %6106 = vmatprep.subr.mxu0 0.0
        %6107 = vmatpush1.msra.mxu0 0.0
        %6108 = vmatprep.subr.mxu0 0.0
        %6109 = vmatpush1.msra.mxu0 0.0
        %6110 = vmatprep.subr.mxu0 0.0
        %6111 = vmatpush1.msra.mxu0 0.0
        %6112 = vmatprep.subr.mxu0 0.0
        %6113 = vmatpush1.msra.mxu0 0.0
        %6114 = vmatprep.subr.mxu0 0.0
        %6115 = vmatpush1.msra.mxu0 0.0
        %6116 = vmatprep.subr.mxu0 0.0
        %6117 = vmatpush1.msra.mxu0 0.0
        %6118 = vmatprep.subr.mxu0 0.0
        %6119 = vmatpush1.msra.mxu0 0.0
        %6120 = vmatprep.subr.mxu0 0.0
        %6121 = vmatpush1.msra.mxu0 0.0
        %6122 = vmatprep.subr.mxu0 0.0
        %6123 = vmatpush1.msra.mxu0 0.0
        %6124 = vmatprep.subr.mxu0 0.0
        %6125 = vmatpush1.msra.mxu0 0.0
        %6126 = vmatprep.subr.mxu0 0.0
        %6127 = vmatpush1.msra.mxu0 0.0
        %6128 = vmatprep.subr.mxu0 0.0
        %6129 = vmatpush1.msra.mxu0 0.0
        %6130 = vmatprep.subr.mxu0 0.0
        %6131 = vmatpush1.msra.mxu0 0.0
        %6132 = vmatprep.subr.mxu0 0.0
        %6133 = vmatpush1.msra.mxu0 0.0
        %6134 = vmatprep.subr.mxu0 0.0
        %6135 = vmatpush1.msra.mxu0 0.0
        %6136 = vmatprep.subr.mxu0 0.0
        %6137 = vmatpush1.msra.mxu0 0.0
        %6138 = vmatprep.subr.mxu0 0.0
        %6139 = vmatpush1.msra.mxu0 0.0
        %6140 = vmatprep.subr.mxu0 0.0
        %6141 = vmatpush1.msra.mxu0 0.0
        %6142 = vmatprep.subr.mxu0 0.0
        %6143 = vmatpush1.msra.mxu0 0.0
        %6144 = vmatprep.subr.mxu0 0.0
        %6145 = vmatpush1.msra.mxu0 0.0
        %6146 = vmatprep.subr.mxu0 0.0
        %6147 = vmatpush1.msra.mxu0 0.0
        %6148 = vmatprep.mubr.f32.mxu0 0.0
        %v6149 = vand.u32 %v5701, 4294901760
        %6150 = vmatmul.mubr.f32.gmra.mrb[0].mxu0 %v6149
        %v6151 = vpop.f32.mrb[0].mxu0
        %v6152 = vadd.f32 %v6059, %v6151
        %v6153 = vpop.f32.mrb[0].mxu0
        %v6154 = vadd.f32 %v6061, %v6153
        %6155 = vmatprep.mubr.f32.mxu0 0.0
        %v6156 = vand.u32 %v5704, 4294901760
        %6157 = vmatmul.mubr.f32.gmra.mrb[0].mxu0 %v6156
        %v6158 = vpop.f32.mrb[0].mxu0
        %v6159 = vadd.f32 %v6068, %v6158
        %v6160 = vpop.f32.mrb[0].mxu0
        %v6161 = vadd.f32 %v6070, %v6160
        %6162 = vdwg.mxu0
        %v6163 = vand.u32 %v5693, 4294901760
        %6164 = vmatprep.subr.mxu0 %v6163
        %v6165 = vand.u32 %v5692, 4294901760
        %6166 = vmatpush1.msra.mxu0 %v6165
        %v6167 = vand.u32 %v5695, 4294901760
        %6168 = vmatprep.subr.mxu0 %v6167
        %v6169 = vand.u32 %v5694, 4294901760
        %6170 = vmatpush1.msra.mxu0 %v6169
        %6171 = vmatprep.subr.mxu0 0.0
        %6172 = vmatpush1.msra.mxu0 0.0
        %6173 = vmatprep.subr.mxu0 0.0
        %6174 = vmatpush1.msra.mxu0 0.0
        %6175 = vmatprep.subr.mxu0 0.0
        %6176 = vmatpush1.msra.mxu0 0.0
        %6177 = vmatprep.subr.mxu0 0.0
        %6178 = vmatpush1.msra.mxu0 0.0
        %6179 = vmatprep.subr.mxu0 0.0
        %6180 = vmatpush1.msra.mxu0 0.0
        %6181 = vmatprep.subr.mxu0 0.0
        %6182 = vmatpush1.msra.mxu0 0.0
        %6183 = vmatprep.subr.mxu0 0.0
        %6184 = vmatpush1.msra.mxu0 0.0
        %6185 = vmatprep.subr.mxu0 0.0
        %6186 = vmatpush1.msra.mxu0 0.0
        %6187 = vmatprep.subr.mxu0 0.0
        %6188 = vmatpush1.msra.mxu0 0.0
        %6189 = vmatprep.subr.mxu0 0.0
        %6190 = vmatpush1.msra.mxu0 0.0
        %6191 = vmatprep.subr.mxu0 0.0
        %6192 = vmatpush1.msra.mxu0 0.0
        %6193 = vmatprep.subr.mxu0 0.0
        %6194 = vmatpush1.msra.mxu0 0.0
        %6195 = vmatprep.subr.mxu0 0.0
        %6196 = vmatpush1.msra.mxu0 0.0
        %6197 = vmatprep.subr.mxu0 0.0
        %6198 = vmatpush1.msra.mxu0 0.0
        %6199 = vmatprep.subr.mxu0 0.0
        %6200 = vmatpush1.msra.mxu0 0.0
        %6201 = vmatprep.subr.mxu0 0.0
        %6202 = vmatpush1.msra.mxu0 0.0
        %6203 = vmatprep.subr.mxu0 0.0
        %6204 = vmatpush1.msra.mxu0 0.0
        %6205 = vmatprep.subr.mxu0 0.0
        %6206 = vmatpush1.msra.mxu0 0.0
        %6207 = vmatprep.subr.mxu0 0.0
        %6208 = vmatpush1.msra.mxu0 0.0
        %6209 = vmatprep.subr.mxu0 0.0
        %6210 = vmatpush1.msra.mxu0 0.0
        %6211 = vmatprep.subr.mxu0 0.0
        %6212 = vmatpush1.msra.mxu0 0.0
        %6213 = vmatprep.subr.mxu0 0.0
        %6214 = vmatpush1.msra.mxu0 0.0
        %6215 = vmatprep.subr.mxu0 0.0
        %6216 = vmatpush1.msra.mxu0 0.0
        %6217 = vmatprep.subr.mxu0 0.0
        %6218 = vmatpush1.msra.mxu0 0.0
        %6219 = vmatprep.subr.mxu0 0.0
        %6220 = vmatpush1.msra.mxu0 0.0
        %6221 = vmatprep.subr.mxu0 0.0
        %6222 = vmatpush1.msra.mxu0 0.0
        %6223 = vmatprep.subr.mxu0 0.0
        %6224 = vmatpush1.msra.mxu0 0.0
        %6225 = vmatprep.subr.mxu0 0.0
        %6226 = vmatpush1.msra.mxu0 0.0
        %6227 = vmatprep.subr.mxu0 0.0
        %6228 = vmatpush1.msra.mxu0 0.0
        %6229 = vmatprep.subr.mxu0 0.0
        %6230 = vmatpush1.msra.mxu0 0.0
        %6231 = vmatprep.mubr.f32.mxu0 0.0
        %v6232 = vand.u32 %v5701, 4294901760
        %6233 = vmatmul.mubr.f32.gmra.mrb[0].mxu0 %v6232
        %v6234 = vpop.f32.mrb[0].mxu0
        %v6235 = vadd.f32 %v6152, %v6234
        %v6236 = vpop.f32.mrb[0].mxu0
        %v6237 = vadd.f32 %v6154, %v6236
        %6238 = vmatprep.mubr.f32.mxu0 0.0
        %v6239 = vand.u32 %v5704, 4294901760
        %6240 = vmatmul.mubr.f32.gmra.mrb[0].mxu0 %v6239
        %v6241 = vpop.f32.mrb[0].mxu0
        %v6242 = vadd.f32 %v6159, %v6241
        %v6243 = vpop.f32.mrb[0].mxu0
        %v6244 = vadd.f32 %v6161, %v6243
        %6245 = vdwg.mxu0
        %v6246 = vadd.f32 %v5653, %v6235
        %v6247 = vadd.f32 %v5654, %v6237
        %v6248 = vadd.f32 %v5655, %v6242
        %v6249 = vadd.f32 %v5656, %v6244
        %s6250 = scalar_lea.vmem %s8, 112
        %v6251 = vld [vmem:[%s6250] sm:$0xff]
        %v6252 = vld [vmem:[%s6250 + $0x8] sm:$0xff]
        %6253 = vrot.lane.b32.xlu0 %v2150, 95
        %v6254 = vpop.permute.xlu0 %6253
        %6255 = vrot.lane.b32.xlu0 %v2151, 95
        %v6256 = vpop.permute.xlu0 %6255
        %6257 = vrot.lane.b32.xlu0 %v2172, 95
        %v6258 = vpop.permute.xlu0 %6257
        %6259 = vrot.lane.b32.xlu0 %v2152, 95
        %v6260 = vpop.permute.xlu0 %6259
        %6261 = vrot.lane.b32.xlu0 %v2153, 95
        %v6262 = vpop.permute.xlu0 %6261
        %6263 = vrot.lane.b32.xlu0 %v2173, 95
        %v6264 = vpop.permute.xlu0 %6263
        %v6265 = vsel %vm771, %v6254, %v6256
        %v6266 = vsel %vm771, %v6256, %v6258
        %v6267 = vsel %vm771, %v6260, %v6262
        %v6268 = vsel %vm771, %v6262, %v6264
        %v6274 = vsel %vm631, %v6251, 0
        %v6277 = vsel %vm631, %v6252, 0
        %v6279 = vand.u32 %v6266, 4294901760
        %6280 = vmatprep.subr.mxu0 %v6279
        %v6281 = vand.u32 %v6265, 4294901760
        %6282 = vmatpush1.msra.mxu0 %v6281
        %v6283 = vand.u32 %v6268, 4294901760
        %6284 = vmatprep.subr.mxu0 %v6283
        %v6285 = vand.u32 %v6267, 4294901760
        %6286 = vmatpush1.msra.mxu0 %v6285
        %6287 = vmatprep.subr.mxu0 0.0
        %6288 = vmatpush1.msra.mxu0 0.0
        %6289 = vmatprep.subr.mxu0 0.0
        %6290 = vmatpush1.msra.mxu0 0.0
        %6291 = vmatprep.subr.mxu0 0.0
        %6292 = vmatpush1.msra.mxu0 0.0
        %6293 = vmatprep.subr.mxu0 0.0
        %6294 = vmatpush1.msra.mxu0 0.0
        %6295 = vmatprep.subr.mxu0 0.0
        %6296 = vmatpush1.msra.mxu0 0.0
        %6297 = vmatprep.subr.mxu0 0.0
        %6298 = vmatpush1.msra.mxu0 0.0
        %6299 = vmatprep.subr.mxu0 0.0
        %6300 = vmatpush1.msra.mxu0 0.0
        %6301 = vmatprep.subr.mxu0 0.0
        %6302 = vmatpush1.msra.mxu0 0.0
        %6303 = vmatprep.subr.mxu0 0.0
        %6304 = vmatpush1.msra.mxu0 0.0
        %6305 = vmatprep.subr.mxu0 0.0
        %6306 = vmatpush1.msra.mxu0 0.0
        %6307 = vmatprep.subr.mxu0 0.0
        %6308 = vmatpush1.msra.mxu0 0.0
        %6309 = vmatprep.subr.mxu0 0.0
        %6310 = vmatpush1.msra.mxu0 0.0
        %6311 = vmatprep.subr.mxu0 0.0
        %6312 = vmatpush1.msra.mxu0 0.0
        %6313 = vmatprep.subr.mxu0 0.0
        %6314 = vmatpush1.msra.mxu0 0.0
        %6315 = vmatprep.subr.mxu0 0.0
        %6316 = vmatpush1.msra.mxu0 0.0
        %6317 = vmatprep.subr.mxu0 0.0
        %6318 = vmatpush1.msra.mxu0 0.0
        %6319 = vmatprep.subr.mxu0 0.0
        %6320 = vmatpush1.msra.mxu0 0.0
        %6321 = vmatprep.subr.mxu0 0.0
        %6322 = vmatpush1.msra.mxu0 0.0
        %6323 = vmatprep.subr.mxu0 0.0
        %6324 = vmatpush1.msra.mxu0 0.0
        %6325 = vmatprep.subr.mxu0 0.0
        %6326 = vmatpush1.msra.mxu0 0.0
        %6327 = vmatprep.subr.mxu0 0.0
        %6328 = vmatpush1.msra.mxu0 0.0
        %6329 = vmatprep.subr.mxu0 0.0
        %6330 = vmatpush1.msra.mxu0 0.0
        %6331 = vmatprep.subr.mxu0 0.0
        %6332 = vmatpush1.msra.mxu0 0.0
        %6333 = vmatprep.subr.mxu0 0.0
        %6334 = vmatpush1.msra.mxu0 0.0
        %6335 = vmatprep.subr.mxu0 0.0
        %6336 = vmatpush1.msra.mxu0 0.0
        %6337 = vmatprep.subr.mxu0 0.0
        %6338 = vmatpush1.msra.mxu0 0.0
        %6339 = vmatprep.subr.mxu0 0.0
        %6340 = vmatpush1.msra.mxu0 0.0
        %6341 = vmatprep.subr.mxu0 0.0
        %6342 = vmatpush1.msra.mxu0 0.0
        %6343 = vmatprep.subr.mxu0 0.0
        %6344 = vmatpush1.msra.mxu0 0.0
        %6345 = vmatprep.subr.mxu0 0.0
        %6346 = vmatpush1.msra.mxu0 0.0
        %6347 = vmatprep.mubr.f32.mxu0 0.0
        %v6348 = vand.u32 %v6274, 4294901760
        %v6349 = vsub.f32 %v6274, %v6348
        %v6350 = vand.u32 %v6349, 4294901760
        %v6351 = vsub.f32 %v6349, %v6350
        %v6352 = vand.u32 %v6351, 4294901760
        %6353 = vmatmul.mubr.f32.gmra.mrb[0].mxu0 %v6352
        %v6354 = vpop.f32.mrb[0].mxu0
        %v6355 = vadd.f32 0.0, %v6354
        %v6356 = vpop.f32.mrb[0].mxu0
        %v6357 = vadd.f32 0.0, %v6356
        %6358 = vmatprep.mubr.f32.mxu0 0.0
        %v6359 = vand.u32 %v6277, 4294901760
        %v6360 = vsub.f32 %v6277, %v6359
        %v6361 = vand.u32 %v6360, 4294901760
        %v6362 = vsub.f32 %v6360, %v6361
        %v6363 = vand.u32 %v6362, 4294901760
        %6364 = vmatmul.mubr.f32.gmra.mrb[0].mxu0 %v6363
        %v6365 = vpop.f32.mrb[0].mxu0
        %v6366 = vadd.f32 0.0, %v6365
        %v6367 = vpop.f32.mrb[0].mxu0
        %v6368 = vadd.f32 0.0, %v6367
        %6369 = vdwg.mxu0
        %v6370 = vand.u32 %v6266, 4294901760
        %v6371 = vsub.f32 %v6266, %v6370
        %v6372 = vand.u32 %v6371, 4294901760
        %v6373 = vsub.f32 %v6371, %v6372
        %v6374 = vand.u32 %v6373, 4294901760
        %6375 = vmatprep.subr.mxu0 %v6374
        %v6376 = vand.u32 %v6265, 4294901760
        %v6377 = vsub.f32 %v6265, %v6376
        %v6378 = vand.u32 %v6377, 4294901760
        %v6379 = vsub.f32 %v6377, %v6378
        %v6380 = vand.u32 %v6379, 4294901760
        %6381 = vmatpush1.msra.mxu0 %v6380
        %v6382 = vand.u32 %v6268, 4294901760
        %v6383 = vsub.f32 %v6268, %v6382
        %v6384 = vand.u32 %v6383, 4294901760
        %v6385 = vsub.f32 %v6383, %v6384
        %v6386 = vand.u32 %v6385, 4294901760
        %6387 = vmatprep.subr.mxu0 %v6386
        %v6388 = vand.u32 %v6267, 4294901760
        %v6389 = vsub.f32 %v6267, %v6388
        %v6390 = vand.u32 %v6389, 4294901760
        %v6391 = vsub.f32 %v6389, %v6390
        %v6392 = vand.u32 %v6391, 4294901760
        %6393 = vmatpush1.msra.mxu0 %v6392
        %6394 = vmatprep.subr.mxu0 0.0
        %6395 = vmatpush1.msra.mxu0 0.0
        %6396 = vmatprep.subr.mxu0 0.0
        %6397 = vmatpush1.msra.mxu0 0.0
        %6398 = vmatprep.subr.mxu0 0.0
        %6399 = vmatpush1.msra.mxu0 0.0
        %6400 = vmatprep.subr.mxu0 0.0
        %6401 = vmatpush1.msra.mxu0 0.0
        %6402 = vmatprep.subr.mxu0 0.0
        %6403 = vmatpush1.msra.mxu0 0.0
        %6404 = vmatprep.subr.mxu0 0.0
        %6405 = vmatpush1.msra.mxu0 0.0
        %6406 = vmatprep.subr.mxu0 0.0
        %6407 = vmatpush1.msra.mxu0 0.0
        %6408 = vmatprep.subr.mxu0 0.0
        %6409 = vmatpush1.msra.mxu0 0.0
        %6410 = vmatprep.subr.mxu0 0.0
        %6411 = vmatpush1.msra.mxu0 0.0
        %6412 = vmatprep.subr.mxu0 0.0
        %6413 = vmatpush1.msra.mxu0 0.0
        %6414 = vmatprep.subr.mxu0 0.0
        %6415 = vmatpush1.msra.mxu0 0.0
        %6416 = vmatprep.subr.mxu0 0.0
        %6417 = vmatpush1.msra.mxu0 0.0
        %6418 = vmatprep.subr.mxu0 0.0
        %6419 = vmatpush1.msra.mxu0 0.0
        %6420 = vmatprep.subr.mxu0 0.0
        %6421 = vmatpush1.msra.mxu0 0.0
        %6422 = vmatprep.subr.mxu0 0.0
        %6423 = vmatpush1.msra.mxu0 0.0
        %6424 = vmatprep.subr.mxu0 0.0
        %6425 = vmatpush1.msra.mxu0 0.0
        %6426 = vmatprep.subr.mxu0 0.0
        %6427 = vmatpush1.msra.mxu0 0.0
        %6428 = vmatprep.subr.mxu0 0.0
        %6429 = vmatpush1.msra.mxu0 0.0
        %6430 = vmatprep.subr.mxu0 0.0
        %6431 = vmatpush1.msra.mxu0 0.0
        %6432 = vmatprep.subr.mxu0 0.0
        %6433 = vmatpush1.msra.mxu0 0.0
        %6434 = vmatprep.subr.mxu0 0.0
        %6435 = vmatpush1.msra.mxu0 0.0
        %6436 = vmatprep.subr.mxu0 0.0
        %6437 = vmatpush1.msra.mxu0 0.0
        %6438 = vmatprep.subr.mxu0 0.0
        %6439 = vmatpush1.msra.mxu0 0.0
        %6440 = vmatprep.subr.mxu0 0.0
        %6441 = vmatpush1.msra.mxu0 0.0
        %6442 = vmatprep.subr.mxu0 0.0
        %6443 = vmatpush1.msra.mxu0 0.0
        %6444 = vmatprep.subr.mxu0 0.0
        %6445 = vmatpush1.msra.mxu0 0.0
        %6446 = vmatprep.subr.mxu0 0.0
        %6447 = vmatpush1.msra.mxu0 0.0
        %6448 = vmatprep.subr.mxu0 0.0
        %6449 = vmatpush1.msra.mxu0 0.0
        %6450 = vmatprep.subr.mxu0 0.0
        %6451 = vmatpush1.msra.mxu0 0.0
        %6452 = vmatprep.subr.mxu0 0.0
        %6453 = vmatpush1.msra.mxu0 0.0
        %6454 = vmatprep.mubr.f32.mxu0 0.0
        %v6455 = vand.u32 %v6274, 4294901760
        %6456 = vmatmul.mubr.f32.gmra.mrb[0].mxu0 %v6455
        %v6457 = vpop.f32.mrb[0].mxu0
        %v6458 = vadd.f32 %v6355, %v6457
        %v6459 = vpop.f32.mrb[0].mxu0
        %v6460 = vadd.f32 %v6357, %v6459
        %6461 = vmatprep.mubr.f32.mxu0 0.0
        %v6462 = vand.u32 %v6277, 4294901760
        %6463 = vmatmul.mubr.f32.gmra.mrb[0].mxu0 %v6462
        %v6464 = vpop.f32.mrb[0].mxu0
        %v6465 = vadd.f32 %v6366, %v6464
        %v6466 = vpop.f32.mrb[0].mxu0
        %v6467 = vadd.f32 %v6368, %v6466
        %6468 = vdwg.mxu0
        %v6469 = vand.u32 %v6266, 4294901760
        %v6470 = vsub.f32 %v6266, %v6469
        %6471 = vmatprep.subr.mxu0 %v6470
        %v6472 = vand.u32 %v6265, 4294901760
        %v6473 = vsub.f32 %v6265, %v6472
        %6474 = vmatpush1.msra.mxu0 %v6473
        %v6475 = vand.u32 %v6268, 4294901760
        %v6476 = vsub.f32 %v6268, %v6475
        %6477 = vmatprep.subr.mxu0 %v6476
        %v6478 = vand.u32 %v6267, 4294901760
        %v6479 = vsub.f32 %v6267, %v6478
        %6480 = vmatpush1.msra.mxu0 %v6479
        %6481 = vmatprep.subr.mxu0 0.0
        %6482 = vmatpush1.msra.mxu0 0.0
        %6483 = vmatprep.subr.mxu0 0.0
        %6484 = vmatpush1.msra.mxu0 0.0
        %6485 = vmatprep.subr.mxu0 0.0
        %6486 = vmatpush1.msra.mxu0 0.0
        %6487 = vmatprep.subr.mxu0 0.0
        %6488 = vmatpush1.msra.mxu0 0.0
        %6489 = vmatprep.subr.mxu0 0.0
        %6490 = vmatpush1.msra.mxu0 0.0
        %6491 = vmatprep.subr.mxu0 0.0
        %6492 = vmatpush1.msra.mxu0 0.0
        %6493 = vmatprep.subr.mxu0 0.0
        %6494 = vmatpush1.msra.mxu0 0.0
        %6495 = vmatprep.subr.mxu0 0.0
        %6496 = vmatpush1.msra.mxu0 0.0
        %6497 = vmatprep.subr.mxu0 0.0
        %6498 = vmatpush1.msra.mxu0 0.0
        %6499 = vmatprep.subr.mxu0 0.0
        %6500 = vmatpush1.msra.mxu0 0.0
        %6501 = vmatprep.subr.mxu0 0.0
        %6502 = vmatpush1.msra.mxu0 0.0
        %6503 = vmatprep.subr.mxu0 0.0
        %6504 = vmatpush1.msra.mxu0 0.0
        %6505 = vmatprep.subr.mxu0 0.0
        %6506 = vmatpush1.msra.mxu0 0.0
        %6507 = vmatprep.subr.mxu0 0.0
        %6508 = vmatpush1.msra.mxu0 0.0
        %6509 = vmatprep.subr.mxu0 0.0
        %6510 = vmatpush1.msra.mxu0 0.0
        %6511 = vmatprep.subr.mxu0 0.0
        %6512 = vmatpush1.msra.mxu0 0.0
        %6513 = vmatprep.subr.mxu0 0.0
        %6514 = vmatpush1.msra.mxu0 0.0
        %6515 = vmatprep.subr.mxu0 0.0
        %6516 = vmatpush1.msra.mxu0 0.0
        %6517 = vmatprep.subr.mxu0 0.0
        %6518 = vmatpush1.msra.mxu0 0.0
        %6519 = vmatprep.subr.mxu0 0.0
        %6520 = vmatpush1.msra.mxu0 0.0
        %6521 = vmatprep.subr.mxu0 0.0
        %6522 = vmatpush1.msra.mxu0 0.0
        %6523 = vmatprep.subr.mxu0 0.0
        %6524 = vmatpush1.msra.mxu0 0.0
        %6525 = vmatprep.subr.mxu0 0.0
        %6526 = vmatpush1.msra.mxu0 0.0
        %6527 = vmatprep.subr.mxu0 0.0
        %6528 = vmatpush1.msra.mxu0 0.0
        %6529 = vmatprep.subr.mxu0 0.0
        %6530 = vmatpush1.msra.mxu0 0.0
        %6531 = vmatprep.subr.mxu0 0.0
        %6532 = vmatpush1.msra.mxu0 0.0
        %6533 = vmatprep.subr.mxu0 0.0
        %6534 = vmatpush1.msra.mxu0 0.0
        %6535 = vmatprep.subr.mxu0 0.0
        %6536 = vmatpush1.msra.mxu0 0.0
        %6537 = vmatprep.subr.mxu0 0.0
        %6538 = vmatpush1.msra.mxu0 0.0
        %6539 = vmatprep.subr.mxu0 0.0
        %6540 = vmatpush1.msra.mxu0 0.0
        %6541 = vmatprep.mubr.f32.mxu0 0.0
        %v6542 = vand.u32 %v6274, 4294901760
        %v6543 = vsub.f32 %v6274, %v6542
        %6544 = vmatmul.mubr.f32.gmra.mrb[0].mxu0 %v6543
        %v6545 = vpop.f32.mrb[0].mxu0
        %v6546 = vadd.f32 %v6458, %v6545
        %v6547 = vpop.f32.mrb[0].mxu0
        %v6548 = vadd.f32 %v6460, %v6547
        %6549 = vmatprep.mubr.f32.mxu0 0.0
        %v6550 = vand.u32 %v6277, 4294901760
        %v6551 = vsub.f32 %v6277, %v6550
        %6552 = vmatmul.mubr.f32.gmra.mrb[0].mxu0 %v6551
        %v6553 = vpop.f32.mrb[0].mxu0
        %v6554 = vadd.f32 %v6465, %v6553
        %v6555 = vpop.f32.mrb[0].mxu0
        %v6556 = vadd.f32 %v6467, %v6555
        %6557 = vdwg.mxu0
        %v6558 = vand.u32 %v6266, 4294901760
        %6559 = vmatprep.subr.mxu0 %v6558
        %v6560 = vand.u32 %v6265, 4294901760
        %6561 = vmatpush1.msra.mxu0 %v6560
        %v6562 = vand.u32 %v6268, 4294901760
        %6563 = vmatprep.subr.mxu0 %v6562
        %v6564 = vand.u32 %v6267, 4294901760
        %6565 = vmatpush1.msra.mxu0 %v6564
        %6566 = vmatprep.subr.mxu0 0.0
        %6567 = vmatpush1.msra.mxu0 0.0
        %6568 = vmatprep.subr.mxu0 0.0
        %6569 = vmatpush1.msra.mxu0 0.0
        %6570 = vmatprep.subr.mxu0 0.0
        %6571 = vmatpush1.msra.mxu0 0.0
        %6572 = vmatprep.subr.mxu0 0.0
        %6573 = vmatpush1.msra.mxu0 0.0
        %6574 = vmatprep.subr.mxu0 0.0
        %6575 = vmatpush1.msra.mxu0 0.0
        %6576 = vmatprep.subr.mxu0 0.0
        %6577 = vmatpush1.msra.mxu0 0.0
        %6578 = vmatprep.subr.mxu0 0.0
        %6579 = vmatpush1.msra.mxu0 0.0
        %6580 = vmatprep.subr.mxu0 0.0
        %6581 = vmatpush1.msra.mxu0 0.0
        %6582 = vmatprep.subr.mxu0 0.0
        %6583 = vmatpush1.msra.mxu0 0.0
        %6584 = vmatprep.subr.mxu0 0.0
        %6585 = vmatpush1.msra.mxu0 0.0
        %6586 = vmatprep.subr.mxu0 0.0
        %6587 = vmatpush1.msra.mxu0 0.0
        %6588 = vmatprep.subr.mxu0 0.0
        %6589 = vmatpush1.msra.mxu0 0.0
        %6590 = vmatprep.subr.mxu0 0.0
        %6591 = vmatpush1.msra.mxu0 0.0
        %6592 = vmatprep.subr.mxu0 0.0
        %6593 = vmatpush1.msra.mxu0 0.0
        %6594 = vmatprep.subr.mxu0 0.0
        %6595 = vmatpush1.msra.mxu0 0.0
        %6596 = vmatprep.subr.mxu0 0.0
        %6597 = vmatpush1.msra.mxu0 0.0
        %6598 = vmatprep.subr.mxu0 0.0
        %6599 = vmatpush1.msra.mxu0 0.0
        %6600 = vmatprep.subr.mxu0 0.0
        %6601 = vmatpush1.msra.mxu0 0.0
        %6602 = vmatprep.subr.mxu0 0.0
        %6603 = vmatpush1.msra.mxu0 0.0
        %6604 = vmatprep.subr.mxu0 0.0
        %6605 = vmatpush1.msra.mxu0 0.0
        %6606 = vmatprep.subr.mxu0 0.0
        %6607 = vmatpush1.msra.mxu0 0.0
        %6608 = vmatprep.subr.mxu0 0.0
        %6609 = vmatpush1.msra.mxu0 0.0
        %6610 = vmatprep.subr.mxu0 0.0
        %6611 = vmatpush1.msra.mxu0 0.0
        %6612 = vmatprep.subr.mxu0 0.0
        %6613 = vmatpush1.msra.mxu0 0.0
        %6614 = vmatprep.subr.mxu0 0.0
        %6615 = vmatpush1.msra.mxu0 0.0
        %6616 = vmatprep.subr.mxu0 0.0
        %6617 = vmatpush1.msra.mxu0 0.0
        %6618 = vmatprep.subr.mxu0 0.0
        %6619 = vmatpush1.msra.mxu0 0.0
        %6620 = vmatprep.subr.mxu0 0.0
        %6621 = vmatpush1.msra.mxu0 0.0
        %6622 = vmatprep.subr.mxu0 0.0
        %6623 = vmatpush1.msra.mxu0 0.0
        %6624 = vmatprep.subr.mxu0 0.0
        %6625 = vmatpush1.msra.mxu0 0.0
        %6626 = vmatprep.mubr.f32.mxu0 0.0
        %v6627 = vand.u32 %v6274, 4294901760
        %v6628 = vsub.f32 %v6274, %v6627
        %v6629 = vand.u32 %v6628, 4294901760
        %6630 = vmatmul.mubr.f32.gmra.mrb[0].mxu0 %v6629
        %v6631 = vpop.f32.mrb[0].mxu0
        %v6632 = vadd.f32 %v6546, %v6631
        %v6633 = vpop.f32.mrb[0].mxu0
        %v6634 = vadd.f32 %v6548, %v6633
        %6635 = vmatprep.mubr.f32.mxu0 0.0
        %v6636 = vand.u32 %v6277, 4294901760
        %v6637 = vsub.f32 %v6277, %v6636
        %v6638 = vand.u32 %v6637, 4294901760
        %6639 = vmatmul.mubr.f32.gmra.mrb[0].mxu0 %v6638
        %v6640 = vpop.f32.mrb[0].mxu0
        %v6641 = vadd.f32 %v6554, %v6640
        %v6642 = vpop.f32.mrb[0].mxu0
        %v6643 = vadd.f32 %v6556, %v6642
        %6644 = vdwg.mxu0
        %v6645 = vand.u32 %v6266, 4294901760
        %v6646 = vsub.f32 %v6266, %v6645
        %v6647 = vand.u32 %v6646, 4294901760
        %6648 = vmatprep.subr.mxu0 %v6647
        %v6649 = vand.u32 %v6265, 4294901760
        %v6650 = vsub.f32 %v6265, %v6649
        %v6651 = vand.u32 %v6650, 4294901760
        %6652 = vmatpush1.msra.mxu0 %v6651
        %v6653 = vand.u32 %v6268, 4294901760
        %v6654 = vsub.f32 %v6268, %v6653
        %v6655 = vand.u32 %v6654, 4294901760
        %6656 = vmatprep.subr.mxu0 %v6655
        %v6657 = vand.u32 %v6267, 4294901760
        %v6658 = vsub.f32 %v6267, %v6657
        %v6659 = vand.u32 %v6658, 4294901760
        %6660 = vmatpush1.msra.mxu0 %v6659
        %6661 = vmatprep.subr.mxu0 0.0
        %6662 = vmatpush1.msra.mxu0 0.0
        %6663 = vmatprep.subr.mxu0 0.0
        %6664 = vmatpush1.msra.mxu0 0.0
        %6665 = vmatprep.subr.mxu0 0.0
        %6666 = vmatpush1.msra.mxu0 0.0
        %6667 = vmatprep.subr.mxu0 0.0
        %6668 = vmatpush1.msra.mxu0 0.0
        %6669 = vmatprep.subr.mxu0 0.0
        %6670 = vmatpush1.msra.mxu0 0.0
        %6671 = vmatprep.subr.mxu0 0.0
        %6672 = vmatpush1.msra.mxu0 0.0
        %6673 = vmatprep.subr.mxu0 0.0
        %6674 = vmatpush1.msra.mxu0 0.0
        %6675 = vmatprep.subr.mxu0 0.0
        %6676 = vmatpush1.msra.mxu0 0.0
        %6677 = vmatprep.subr.mxu0 0.0
        %6678 = vmatpush1.msra.mxu0 0.0
        %6679 = vmatprep.subr.mxu0 0.0
        %6680 = vmatpush1.msra.mxu0 0.0
        %6681 = vmatprep.subr.mxu0 0.0
        %6682 = vmatpush1.msra.mxu0 0.0
        %6683 = vmatprep.subr.mxu0 0.0
        %6684 = vmatpush1.msra.mxu0 0.0
        %6685 = vmatprep.subr.mxu0 0.0
        %6686 = vmatpush1.msra.mxu0 0.0
        %6687 = vmatprep.subr.mxu0 0.0
        %6688 = vmatpush1.msra.mxu0 0.0
        %6689 = vmatprep.subr.mxu0 0.0
        %6690 = vmatpush1.msra.mxu0 0.0
        %6691 = vmatprep.subr.mxu0 0.0
        %6692 = vmatpush1.msra.mxu0 0.0
        %6693 = vmatprep.subr.mxu0 0.0
        %6694 = vmatpush1.msra.mxu0 0.0
        %6695 = vmatprep.subr.mxu0 0.0
        %6696 = vmatpush1.msra.mxu0 0.0
        %6697 = vmatprep.subr.mxu0 0.0
        %6698 = vmatpush1.msra.mxu0 0.0
        %6699 = vmatprep.subr.mxu0 0.0
        %6700 = vmatpush1.msra.mxu0 0.0
        %6701 = vmatprep.subr.mxu0 0.0
        %6702 = vmatpush1.msra.mxu0 0.0
        %6703 = vmatprep.subr.mxu0 0.0
        %6704 = vmatpush1.msra.mxu0 0.0
        %6705 = vmatprep.subr.mxu0 0.0
        %6706 = vmatpush1.msra.mxu0 0.0
        %6707 = vmatprep.subr.mxu0 0.0
        %6708 = vmatpush1.msra.mxu0 0.0
        %6709 = vmatprep.subr.mxu0 0.0
        %6710 = vmatpush1.msra.mxu0 0.0
        %6711 = vmatprep.subr.mxu0 0.0
        %6712 = vmatpush1.msra.mxu0 0.0
        %6713 = vmatprep.subr.mxu0 0.0
        %6714 = vmatpush1.msra.mxu0 0.0
        %6715 = vmatprep.subr.mxu0 0.0
        %6716 = vmatpush1.msra.mxu0 0.0
        %6717 = vmatprep.subr.mxu0 0.0
        %6718 = vmatpush1.msra.mxu0 0.0
        %6719 = vmatprep.subr.mxu0 0.0
        %6720 = vmatpush1.msra.mxu0 0.0
        %6721 = vmatprep.mubr.f32.mxu0 0.0
        %v6722 = vand.u32 %v6274, 4294901760
        %6723 = vmatmul.mubr.f32.gmra.mrb[0].mxu0 %v6722
        %v6724 = vpop.f32.mrb[0].mxu0
        %v6725 = vadd.f32 %v6632, %v6724
        %v6726 = vpop.f32.mrb[0].mxu0
        %v6727 = vadd.f32 %v6634, %v6726
        %6728 = vmatprep.mubr.f32.mxu0 0.0
        %v6729 = vand.u32 %v6277, 4294901760
        %6730 = vmatmul.mubr.f32.gmra.mrb[0].mxu0 %v6729
        %v6731 = vpop.f32.mrb[0].mxu0
        %v6732 = vadd.f32 %v6641, %v6731
        %v6733 = vpop.f32.mrb[0].mxu0
        %v6734 = vadd.f32 %v6643, %v6733
        %6735 = vdwg.mxu0
        %v6736 = vand.u32 %v6266, 4294901760
        %6737 = vmatprep.subr.mxu0 %v6736
        %v6738 = vand.u32 %v6265, 4294901760
        %6739 = vmatpush1.msra.mxu0 %v6738
        %v6740 = vand.u32 %v6268, 4294901760
        %6741 = vmatprep.subr.mxu0 %v6740
        %v6742 = vand.u32 %v6267, 4294901760
        %6743 = vmatpush1.msra.mxu0 %v6742
        %6744 = vmatprep.subr.mxu0 0.0
        %6745 = vmatpush1.msra.mxu0 0.0
        %6746 = vmatprep.subr.mxu0 0.0
        %6747 = vmatpush1.msra.mxu0 0.0
        %6748 = vmatprep.subr.mxu0 0.0
        %6749 = vmatpush1.msra.mxu0 0.0
        %6750 = vmatprep.subr.mxu0 0.0
        %6751 = vmatpush1.msra.mxu0 0.0
        %6752 = vmatprep.subr.mxu0 0.0
        %6753 = vmatpush1.msra.mxu0 0.0
        %6754 = vmatprep.subr.mxu0 0.0
        %6755 = vmatpush1.msra.mxu0 0.0
        %6756 = vmatprep.subr.mxu0 0.0
        %6757 = vmatpush1.msra.mxu0 0.0
        %6758 = vmatprep.subr.mxu0 0.0
        %6759 = vmatpush1.msra.mxu0 0.0
        %6760 = vmatprep.subr.mxu0 0.0
        %6761 = vmatpush1.msra.mxu0 0.0
        %6762 = vmatprep.subr.mxu0 0.0
        %6763 = vmatpush1.msra.mxu0 0.0
        %6764 = vmatprep.subr.mxu0 0.0
        %6765 = vmatpush1.msra.mxu0 0.0
        %6766 = vmatprep.subr.mxu0 0.0
        %6767 = vmatpush1.msra.mxu0 0.0
        %6768 = vmatprep.subr.mxu0 0.0
        %6769 = vmatpush1.msra.mxu0 0.0
        %6770 = vmatprep.subr.mxu0 0.0
        %6771 = vmatpush1.msra.mxu0 0.0
        %6772 = vmatprep.subr.mxu0 0.0
        %6773 = vmatpush1.msra.mxu0 0.0
        %6774 = vmatprep.subr.mxu0 0.0
        %6775 = vmatpush1.msra.mxu0 0.0
        %6776 = vmatprep.subr.mxu0 0.0
        %6777 = vmatpush1.msra.mxu0 0.0
        %6778 = vmatprep.subr.mxu0 0.0
        %6779 = vmatpush1.msra.mxu0 0.0
        %6780 = vmatprep.subr.mxu0 0.0
        %6781 = vmatpush1.msra.mxu0 0.0
        %6782 = vmatprep.subr.mxu0 0.0
        %6783 = vmatpush1.msra.mxu0 0.0
        %6784 = vmatprep.subr.mxu0 0.0
        %6785 = vmatpush1.msra.mxu0 0.0
        %6786 = vmatprep.subr.mxu0 0.0
        %6787 = vmatpush1.msra.mxu0 0.0
        %6788 = vmatprep.subr.mxu0 0.0
        %6789 = vmatpush1.msra.mxu0 0.0
        %6790 = vmatprep.subr.mxu0 0.0
        %6791 = vmatpush1.msra.mxu0 0.0
        %6792 = vmatprep.subr.mxu0 0.0
        %6793 = vmatpush1.msra.mxu0 0.0
        %6794 = vmatprep.subr.mxu0 0.0
        %6795 = vmatpush1.msra.mxu0 0.0
        %6796 = vmatprep.subr.mxu0 0.0
        %6797 = vmatpush1.msra.mxu0 0.0
        %6798 = vmatprep.subr.mxu0 0.0
        %6799 = vmatpush1.msra.mxu0 0.0
        %6800 = vmatprep.subr.mxu0 0.0
        %6801 = vmatpush1.msra.mxu0 0.0
        %6802 = vmatprep.subr.mxu0 0.0
        %6803 = vmatpush1.msra.mxu0 0.0
        %6804 = vmatprep.mubr.f32.mxu0 0.0
        %v6805 = vand.u32 %v6274, 4294901760
        %6806 = vmatmul.mubr.f32.gmra.mrb[0].mxu0 %v6805
        %v6807 = vpop.f32.mrb[0].mxu0
        %v6808 = vadd.f32 %v6725, %v6807
        %v6809 = vpop.f32.mrb[0].mxu0
        %v6810 = vadd.f32 %v6727, %v6809
        %6811 = vmatprep.mubr.f32.mxu0 0.0
        %v6812 = vand.u32 %v6277, 4294901760
        %6813 = vmatmul.mubr.f32.gmra.mrb[0].mxu0 %v6812
        %v6814 = vpop.f32.mrb[0].mxu0
        %v6815 = vadd.f32 %v6732, %v6814
        %v6816 = vpop.f32.mrb[0].mxu0
        %v6817 = vadd.f32 %v6734, %v6816
        %6818 = vdwg.mxu0
        %v6819 = vadd.f32 %v6246, %v6808
        %v6820 = vadd.f32 %v6247, %v6810
        %v6821 = vadd.f32 %v6248, %v6815
        %v6822 = vadd.f32 %v6249, %v6817
        %6823 = vrot.lane.b32.xlu0 %v3300, 34
        %v6824 = vpop.permute.xlu0 %6823
        %6825 = vrot.lane.b32.xlu0 %v3304, 34
        %v6826 = vpop.permute.xlu0 %6825
        %v6827 = vsel %vm782, %v6824, %v6826
        %v6831 = vmul.f32 %v2150, %v6824
        %v6832 = vmul.f32 %v2151, %v6827
        %v6833 = vmul.f32 %v2172, %v6826
        %v6834 = vmul.f32 %v2152, %v6824
        %v6835 = vmul.f32 %v2153, %v6827
        %v6836 = vmul.f32 %v2173, %v6826
        %s6837 = scalar_lea.vmem %s8, 128
        %v6838 = vld [vmem:[%s6837] sm:$0xff]
        %v6839 = vld [vmem:[%s6837 + $0x8] sm:$0xff]
        %6846 = vrot.lane.b32.xlu0 %v6831, 94
        %v6847 = vpop.permute.xlu0 %6846
        %6848 = vrot.lane.b32.xlu0 %v6832, 94
        %v6849 = vpop.permute.xlu0 %6848
        %6850 = vrot.lane.b32.xlu0 %v6833, 94
        %v6851 = vpop.permute.xlu0 %6850
        %6852 = vrot.lane.b32.xlu0 %v6834, 94
        %v6853 = vpop.permute.xlu0 %6852
        %6854 = vrot.lane.b32.xlu0 %v6835, 94
        %v6855 = vpop.permute.xlu0 %6854
        %6856 = vrot.lane.b32.xlu0 %v6836, 94
        %v6857 = vpop.permute.xlu0 %6856
        %v6858 = vsel %vm806, %v6847, %v6849
        %v6859 = vsel %vm806, %v6849, %v6851
        %v6860 = vsel %vm806, %v6853, %v6855
        %v6861 = vsel %vm806, %v6855, %v6857
        %v6867 = vsel %vm631, %v6838, 0
        %v6870 = vsel %vm631, %v6839, 0
        %v6872 = vand.u32 %v6859, 4294901760
        %6873 = vmatprep.subr.mxu0 %v6872
        %v6874 = vand.u32 %v6858, 4294901760
        %6875 = vmatpush1.msra.mxu0 %v6874
        %v6876 = vand.u32 %v6861, 4294901760
        %6877 = vmatprep.subr.mxu0 %v6876
        %v6878 = vand.u32 %v6860, 4294901760
        %6879 = vmatpush1.msra.mxu0 %v6878
        %6880 = vmatprep.subr.mxu0 0.0
        %6881 = vmatpush1.msra.mxu0 0.0
        %6882 = vmatprep.subr.mxu0 0.0
        %6883 = vmatpush1.msra.mxu0 0.0
        %6884 = vmatprep.subr.mxu0 0.0
        %6885 = vmatpush1.msra.mxu0 0.0
        %6886 = vmatprep.subr.mxu0 0.0
        %6887 = vmatpush1.msra.mxu0 0.0
        %6888 = vmatprep.subr.mxu0 0.0
        %6889 = vmatpush1.msra.mxu0 0.0
        %6890 = vmatprep.subr.mxu0 0.0
        %6891 = vmatpush1.msra.mxu0 0.0
        %6892 = vmatprep.subr.mxu0 0.0
        %6893 = vmatpush1.msra.mxu0 0.0
        %6894 = vmatprep.subr.mxu0 0.0
        %6895 = vmatpush1.msra.mxu0 0.0
        %6896 = vmatprep.subr.mxu0 0.0
        %6897 = vmatpush1.msra.mxu0 0.0
        %6898 = vmatprep.subr.mxu0 0.0
        %6899 = vmatpush1.msra.mxu0 0.0
        %6900 = vmatprep.subr.mxu0 0.0
        %6901 = vmatpush1.msra.mxu0 0.0
        %6902 = vmatprep.subr.mxu0 0.0
        %6903 = vmatpush1.msra.mxu0 0.0
        %6904 = vmatprep.subr.mxu0 0.0
        %6905 = vmatpush1.msra.mxu0 0.0
        %6906 = vmatprep.subr.mxu0 0.0
        %6907 = vmatpush1.msra.mxu0 0.0
        %6908 = vmatprep.subr.mxu0 0.0
        %6909 = vmatpush1.msra.mxu0 0.0
        %6910 = vmatprep.subr.mxu0 0.0
        %6911 = vmatpush1.msra.mxu0 0.0
        %6912 = vmatprep.subr.mxu0 0.0
        %6913 = vmatpush1.msra.mxu0 0.0
        %6914 = vmatprep.subr.mxu0 0.0
        %6915 = vmatpush1.msra.mxu0 0.0
        %6916 = vmatprep.subr.mxu0 0.0
        %6917 = vmatpush1.msra.mxu0 0.0
        %6918 = vmatprep.subr.mxu0 0.0
        %6919 = vmatpush1.msra.mxu0 0.0
        %6920 = vmatprep.subr.mxu0 0.0
        %6921 = vmatpush1.msra.mxu0 0.0
        %6922 = vmatprep.subr.mxu0 0.0
        %6923 = vmatpush1.msra.mxu0 0.0
        %6924 = vmatprep.subr.mxu0 0.0
        %6925 = vmatpush1.msra.mxu0 0.0
        %6926 = vmatprep.subr.mxu0 0.0
        %6927 = vmatpush1.msra.mxu0 0.0
        %6928 = vmatprep.subr.mxu0 0.0
        %6929 = vmatpush1.msra.mxu0 0.0
        %6930 = vmatprep.subr.mxu0 0.0
        %6931 = vmatpush1.msra.mxu0 0.0
        %6932 = vmatprep.subr.mxu0 0.0
        %6933 = vmatpush1.msra.mxu0 0.0
        %6934 = vmatprep.subr.mxu0 0.0
        %6935 = vmatpush1.msra.mxu0 0.0
        %6936 = vmatprep.subr.mxu0 0.0
        %6937 = vmatpush1.msra.mxu0 0.0
        %6938 = vmatprep.subr.mxu0 0.0
        %6939 = vmatpush1.msra.mxu0 0.0
        %6940 = vmatprep.mubr.f32.mxu0 0.0
        %v6941 = vand.u32 %v6867, 4294901760
        %v6942 = vsub.f32 %v6867, %v6941
        %v6943 = vand.u32 %v6942, 4294901760
        %v6944 = vsub.f32 %v6942, %v6943
        %v6945 = vand.u32 %v6944, 4294901760
        %6946 = vmatmul.mubr.f32.gmra.mrb[0].mxu0 %v6945
        %v6947 = vpop.f32.mrb[0].mxu0
        %v6948 = vadd.f32 0.0, %v6947
        %v6949 = vpop.f32.mrb[0].mxu0
        %v6950 = vadd.f32 0.0, %v6949
        %6951 = vmatprep.mubr.f32.mxu0 0.0
        %v6952 = vand.u32 %v6870, 4294901760
        %v6953 = vsub.f32 %v6870, %v6952
        %v6954 = vand.u32 %v6953, 4294901760
        %v6955 = vsub.f32 %v6953, %v6954
        %v6956 = vand.u32 %v6955, 4294901760
        %6957 = vmatmul.mubr.f32.gmra.mrb[0].mxu0 %v6956
        %v6958 = vpop.f32.mrb[0].mxu0
        %v6959 = vadd.f32 0.0, %v6958
        %v6960 = vpop.f32.mrb[0].mxu0
        %v6961 = vadd.f32 0.0, %v6960
        %6962 = vdwg.mxu0
        %v6963 = vand.u32 %v6859, 4294901760
        %v6964 = vsub.f32 %v6859, %v6963
        %v6965 = vand.u32 %v6964, 4294901760
        %v6966 = vsub.f32 %v6964, %v6965
        %v6967 = vand.u32 %v6966, 4294901760
        %6968 = vmatprep.subr.mxu0 %v6967
        %v6969 = vand.u32 %v6858, 4294901760
        %v6970 = vsub.f32 %v6858, %v6969
        %v6971 = vand.u32 %v6970, 4294901760
        %v6972 = vsub.f32 %v6970, %v6971
        %v6973 = vand.u32 %v6972, 4294901760
        %6974 = vmatpush1.msra.mxu0 %v6973
        %v6975 = vand.u32 %v6861, 4294901760
        %v6976 = vsub.f32 %v6861, %v6975
        %v6977 = vand.u32 %v6976, 4294901760
        %v6978 = vsub.f32 %v6976, %v6977
        %v6979 = vand.u32 %v6978, 4294901760
        %6980 = vmatprep.subr.mxu0 %v6979
        %v6981 = vand.u32 %v6860, 4294901760
        %v6982 = vsub.f32 %v6860, %v6981
        %v6983 = vand.u32 %v6982, 4294901760
        %v6984 = vsub.f32 %v6982, %v6983
        %v6985 = vand.u32 %v6984, 4294901760
        %6986 = vmatpush1.msra.mxu0 %v6985
        %6987 = vmatprep.subr.mxu0 0.0
        %6988 = vmatpush1.msra.mxu0 0.0
        %6989 = vmatprep.subr.mxu0 0.0
        %6990 = vmatpush1.msra.mxu0 0.0
        %6991 = vmatprep.subr.mxu0 0.0
        %6992 = vmatpush1.msra.mxu0 0.0
        %6993 = vmatprep.subr.mxu0 0.0
        %6994 = vmatpush1.msra.mxu0 0.0
        %6995 = vmatprep.subr.mxu0 0.0
        %6996 = vmatpush1.msra.mxu0 0.0
        %6997 = vmatprep.subr.mxu0 0.0
        %6998 = vmatpush1.msra.mxu0 0.0
        %6999 = vmatprep.subr.mxu0 0.0
        %7000 = vmatpush1.msra.mxu0 0.0
        %7001 = vmatprep.subr.mxu0 0.0
        %7002 = vmatpush1.msra.mxu0 0.0
        %7003 = vmatprep.subr.mxu0 0.0
        %7004 = vmatpush1.msra.mxu0 0.0
        %7005 = vmatprep.subr.mxu0 0.0
        %7006 = vmatpush1.msra.mxu0 0.0
        %7007 = vmatprep.subr.mxu0 0.0
        %7008 = vmatpush1.msra.mxu0 0.0
        %7009 = vmatprep.subr.mxu0 0.0
        %7010 = vmatpush1.msra.mxu0 0.0
        %7011 = vmatprep.subr.mxu0 0.0
        %7012 = vmatpush1.msra.mxu0 0.0
        %7013 = vmatprep.subr.mxu0 0.0
        %7014 = vmatpush1.msra.mxu0 0.0
        %7015 = vmatprep.subr.mxu0 0.0
        %7016 = vmatpush1.msra.mxu0 0.0
        %7017 = vmatprep.subr.mxu0 0.0
        %7018 = vmatpush1.msra.mxu0 0.0
        %7019 = vmatprep.subr.mxu0 0.0
        %7020 = vmatpush1.msra.mxu0 0.0
        %7021 = vmatprep.subr.mxu0 0.0
        %7022 = vmatpush1.msra.mxu0 0.0
        %7023 = vmatprep.subr.mxu0 0.0
        %7024 = vmatpush1.msra.mxu0 0.0
        %7025 = vmatprep.subr.mxu0 0.0
        %7026 = vmatpush1.msra.mxu0 0.0
        %7027 = vmatprep.subr.mxu0 0.0
        %7028 = vmatpush1.msra.mxu0 0.0
        %7029 = vmatprep.subr.mxu0 0.0
        %7030 = vmatpush1.msra.mxu0 0.0
        %7031 = vmatprep.subr.mxu0 0.0
        %7032 = vmatpush1.msra.mxu0 0.0
        %7033 = vmatprep.subr.mxu0 0.0
        %7034 = vmatpush1.msra.mxu0 0.0
        %7035 = vmatprep.subr.mxu0 0.0
        %7036 = vmatpush1.msra.mxu0 0.0
        %7037 = vmatprep.subr.mxu0 0.0
        %7038 = vmatpush1.msra.mxu0 0.0
        %7039 = vmatprep.subr.mxu0 0.0
        %7040 = vmatpush1.msra.mxu0 0.0
        %7041 = vmatprep.subr.mxu0 0.0
        %7042 = vmatpush1.msra.mxu0 0.0
        %7043 = vmatprep.subr.mxu0 0.0
        %7044 = vmatpush1.msra.mxu0 0.0
        %7045 = vmatprep.subr.mxu0 0.0
        %7046 = vmatpush1.msra.mxu0 0.0
        %7047 = vmatprep.mubr.f32.mxu0 0.0
        %v7048 = vand.u32 %v6867, 4294901760
        %7049 = vmatmul.mubr.f32.gmra.mrb[0].mxu0 %v7048
        %v7050 = vpop.f32.mrb[0].mxu0
        %v7051 = vadd.f32 %v6948, %v7050
        %v7052 = vpop.f32.mrb[0].mxu0
        %v7053 = vadd.f32 %v6950, %v7052
        %7054 = vmatprep.mubr.f32.mxu0 0.0
        %v7055 = vand.u32 %v6870, 4294901760
        %7056 = vmatmul.mubr.f32.gmra.mrb[0].mxu0 %v7055
        %v7057 = vpop.f32.mrb[0].mxu0
        %v7058 = vadd.f32 %v6959, %v7057
        %v7059 = vpop.f32.mrb[0].mxu0
        %v7060 = vadd.f32 %v6961, %v7059
        %7061 = vdwg.mxu0
        %v7062 = vand.u32 %v6859, 4294901760
        %v7063 = vsub.f32 %v6859, %v7062
        %7064 = vmatprep.subr.mxu0 %v7063
        %v7065 = vand.u32 %v6858, 4294901760
        %v7066 = vsub.f32 %v6858, %v7065
        %7067 = vmatpush1.msra.mxu0 %v7066
        %v7068 = vand.u32 %v6861, 4294901760
        %v7069 = vsub.f32 %v6861, %v7068
        %7070 = vmatprep.subr.mxu0 %v7069
        %v7071 = vand.u32 %v6860, 4294901760
        %v7072 = vsub.f32 %v6860, %v7071
        %7073 = vmatpush1.msra.mxu0 %v7072
        %7074 = vmatprep.subr.mxu0 0.0
        %7075 = vmatpush1.msra.mxu0 0.0
        %7076 = vmatprep.subr.mxu0 0.0
        %7077 = vmatpush1.msra.mxu0 0.0
        %7078 = vmatprep.subr.mxu0 0.0
        %7079 = vmatpush1.msra.mxu0 0.0
        %7080 = vmatprep.subr.mxu0 0.0
        %7081 = vmatpush1.msra.mxu0 0.0
        %7082 = vmatprep.subr.mxu0 0.0
        %7083 = vmatpush1.msra.mxu0 0.0
        %7084 = vmatprep.subr.mxu0 0.0
        %7085 = vmatpush1.msra.mxu0 0.0
        %7086 = vmatprep.subr.mxu0 0.0
        %7087 = vmatpush1.msra.mxu0 0.0
        %7088 = vmatprep.subr.mxu0 0.0
        %7089 = vmatpush1.msra.mxu0 0.0
        %7090 = vmatprep.subr.mxu0 0.0
        %7091 = vmatpush1.msra.mxu0 0.0
        %7092 = vmatprep.subr.mxu0 0.0
        %7093 = vmatpush1.msra.mxu0 0.0
        %7094 = vmatprep.subr.mxu0 0.0
        %7095 = vmatpush1.msra.mxu0 0.0
        %7096 = vmatprep.subr.mxu0 0.0
        %7097 = vmatpush1.msra.mxu0 0.0
        %7098 = vmatprep.subr.mxu0 0.0
        %7099 = vmatpush1.msra.mxu0 0.0
        %7100 = vmatprep.subr.mxu0 0.0
        %7101 = vmatpush1.msra.mxu0 0.0
        %7102 = vmatprep.subr.mxu0 0.0
        %7103 = vmatpush1.msra.mxu0 0.0
        %7104 = vmatprep.subr.mxu0 0.0
        %7105 = vmatpush1.msra.mxu0 0.0
        %7106 = vmatprep.subr.mxu0 0.0
        %7107 = vmatpush1.msra.mxu0 0.0
        %7108 = vmatprep.subr.mxu0 0.0
        %7109 = vmatpush1.msra.mxu0 0.0
        %7110 = vmatprep.subr.mxu0 0.0
        %7111 = vmatpush1.msra.mxu0 0.0
        %7112 = vmatprep.subr.mxu0 0.0
        %7113 = vmatpush1.msra.mxu0 0.0
        %7114 = vmatprep.subr.mxu0 0.0
        %7115 = vmatpush1.msra.mxu0 0.0
        %7116 = vmatprep.subr.mxu0 0.0
        %7117 = vmatpush1.msra.mxu0 0.0
        %7118 = vmatprep.subr.mxu0 0.0
        %7119 = vmatpush1.msra.mxu0 0.0
        %7120 = vmatprep.subr.mxu0 0.0
        %7121 = vmatpush1.msra.mxu0 0.0
        %7122 = vmatprep.subr.mxu0 0.0
        %7123 = vmatpush1.msra.mxu0 0.0
        %7124 = vmatprep.subr.mxu0 0.0
        %7125 = vmatpush1.msra.mxu0 0.0
        %7126 = vmatprep.subr.mxu0 0.0
        %7127 = vmatpush1.msra.mxu0 0.0
        %7128 = vmatprep.subr.mxu0 0.0
        %7129 = vmatpush1.msra.mxu0 0.0
        %7130 = vmatprep.subr.mxu0 0.0
        %7131 = vmatpush1.msra.mxu0 0.0
        %7132 = vmatprep.subr.mxu0 0.0
        %7133 = vmatpush1.msra.mxu0 0.0
        %7134 = vmatprep.mubr.f32.mxu0 0.0
        %v7135 = vand.u32 %v6867, 4294901760
        %v7136 = vsub.f32 %v6867, %v7135
        %7137 = vmatmul.mubr.f32.gmra.mrb[0].mxu0 %v7136
        %v7138 = vpop.f32.mrb[0].mxu0
        %v7139 = vadd.f32 %v7051, %v7138
        %v7140 = vpop.f32.mrb[0].mxu0
        %v7141 = vadd.f32 %v7053, %v7140
        %7142 = vmatprep.mubr.f32.mxu0 0.0
        %v7143 = vand.u32 %v6870, 4294901760
        %v7144 = vsub.f32 %v6870, %v7143
        %7145 = vmatmul.mubr.f32.gmra.mrb[0].mxu0 %v7144
        %v7146 = vpop.f32.mrb[0].mxu0
        %v7147 = vadd.f32 %v7058, %v7146
        %v7148 = vpop.f32.mrb[0].mxu0
        %v7149 = vadd.f32 %v7060, %v7148
        %7150 = vdwg.mxu0
        %v7151 = vand.u32 %v6859, 4294901760
        %7152 = vmatprep.subr.mxu0 %v7151
        %v7153 = vand.u32 %v6858, 4294901760
        %7154 = vmatpush1.msra.mxu0 %v7153
        %v7155 = vand.u32 %v6861, 4294901760
        %7156 = vmatprep.subr.mxu0 %v7155
        %v7157 = vand.u32 %v6860, 4294901760
        %7158 = vmatpush1.msra.mxu0 %v7157
        %7159 = vmatprep.subr.mxu0 0.0
        %7160 = vmatpush1.msra.mxu0 0.0
        %7161 = vmatprep.subr.mxu0 0.0
        %7162 = vmatpush1.msra.mxu0 0.0
        %7163 = vmatprep.subr.mxu0 0.0
        %7164 = vmatpush1.msra.mxu0 0.0
        %7165 = vmatprep.subr.mxu0 0.0
        %7166 = vmatpush1.msra.mxu0 0.0
        %7167 = vmatprep.subr.mxu0 0.0
        %7168 = vmatpush1.msra.mxu0 0.0
        %7169 = vmatprep.subr.mxu0 0.0
        %7170 = vmatpush1.msra.mxu0 0.0
        %7171 = vmatprep.subr.mxu0 0.0
        %7172 = vmatpush1.msra.mxu0 0.0
        %7173 = vmatprep.subr.mxu0 0.0
        %7174 = vmatpush1.msra.mxu0 0.0
        %7175 = vmatprep.subr.mxu0 0.0
        %7176 = vmatpush1.msra.mxu0 0.0
        %7177 = vmatprep.subr.mxu0 0.0
        %7178 = vmatpush1.msra.mxu0 0.0
        %7179 = vmatprep.subr.mxu0 0.0
        %7180 = vmatpush1.msra.mxu0 0.0
        %7181 = vmatprep.subr.mxu0 0.0
        %7182 = vmatpush1.msra.mxu0 0.0
        %7183 = vmatprep.subr.mxu0 0.0
        %7184 = vmatpush1.msra.mxu0 0.0
        %7185 = vmatprep.subr.mxu0 0.0
        %7186 = vmatpush1.msra.mxu0 0.0
        %7187 = vmatprep.subr.mxu0 0.0
        %7188 = vmatpush1.msra.mxu0 0.0
        %7189 = vmatprep.subr.mxu0 0.0
        %7190 = vmatpush1.msra.mxu0 0.0
        %7191 = vmatprep.subr.mxu0 0.0
        %7192 = vmatpush1.msra.mxu0 0.0
        %7193 = vmatprep.subr.mxu0 0.0
        %7194 = vmatpush1.msra.mxu0 0.0
        %7195 = vmatprep.subr.mxu0 0.0
        %7196 = vmatpush1.msra.mxu0 0.0
        %7197 = vmatprep.subr.mxu0 0.0
        %7198 = vmatpush1.msra.mxu0 0.0
        %7199 = vmatprep.subr.mxu0 0.0
        %7200 = vmatpush1.msra.mxu0 0.0
        %7201 = vmatprep.subr.mxu0 0.0
        %7202 = vmatpush1.msra.mxu0 0.0
        %7203 = vmatprep.subr.mxu0 0.0
        %7204 = vmatpush1.msra.mxu0 0.0
        %7205 = vmatprep.subr.mxu0 0.0
        %7206 = vmatpush1.msra.mxu0 0.0
        %7207 = vmatprep.subr.mxu0 0.0
        %7208 = vmatpush1.msra.mxu0 0.0
        %7209 = vmatprep.subr.mxu0 0.0
        %7210 = vmatpush1.msra.mxu0 0.0
        %7211 = vmatprep.subr.mxu0 0.0
        %7212 = vmatpush1.msra.mxu0 0.0
        %7213 = vmatprep.subr.mxu0 0.0
        %7214 = vmatpush1.msra.mxu0 0.0
        %7215 = vmatprep.subr.mxu0 0.0
        %7216 = vmatpush1.msra.mxu0 0.0
        %7217 = vmatprep.subr.mxu0 0.0
        %7218 = vmatpush1.msra.mxu0 0.0
        %7219 = vmatprep.mubr.f32.mxu0 0.0
        %v7220 = vand.u32 %v6867, 4294901760
        %v7221 = vsub.f32 %v6867, %v7220
        %v7222 = vand.u32 %v7221, 4294901760
        %7223 = vmatmul.mubr.f32.gmra.mrb[0].mxu0 %v7222
        %v7224 = vpop.f32.mrb[0].mxu0
        %v7225 = vadd.f32 %v7139, %v7224
        %v7226 = vpop.f32.mrb[0].mxu0
        %v7227 = vadd.f32 %v7141, %v7226
        %7228 = vmatprep.mubr.f32.mxu0 0.0
        %v7229 = vand.u32 %v6870, 4294901760
        %v7230 = vsub.f32 %v6870, %v7229
        %v7231 = vand.u32 %v7230, 4294901760
        %7232 = vmatmul.mubr.f32.gmra.mrb[0].mxu0 %v7231
        %v7233 = vpop.f32.mrb[0].mxu0
        %v7234 = vadd.f32 %v7147, %v7233
        %v7235 = vpop.f32.mrb[0].mxu0
        %v7236 = vadd.f32 %v7149, %v7235
        %7237 = vdwg.mxu0
        %v7238 = vand.u32 %v6859, 4294901760
        %v7239 = vsub.f32 %v6859, %v7238
        %v7240 = vand.u32 %v7239, 4294901760
        %7241 = vmatprep.subr.mxu0 %v7240
        %v7242 = vand.u32 %v6858, 4294901760
        %v7243 = vsub.f32 %v6858, %v7242
        %v7244 = vand.u32 %v7243, 4294901760
        %7245 = vmatpush1.msra.mxu0 %v7244
        %v7246 = vand.u32 %v6861, 4294901760
        %v7247 = vsub.f32 %v6861, %v7246
        %v7248 = vand.u32 %v7247, 4294901760
        %7249 = vmatprep.subr.mxu0 %v7248
        %v7250 = vand.u32 %v6860, 4294901760
        %v7251 = vsub.f32 %v6860, %v7250
        %v7252 = vand.u32 %v7251, 4294901760
        %7253 = vmatpush1.msra.mxu0 %v7252
        %7254 = vmatprep.subr.mxu0 0.0
        %7255 = vmatpush1.msra.mxu0 0.0
        %7256 = vmatprep.subr.mxu0 0.0
        %7257 = vmatpush1.msra.mxu0 0.0
        %7258 = vmatprep.subr.mxu0 0.0
        %7259 = vmatpush1.msra.mxu0 0.0
        %7260 = vmatprep.subr.mxu0 0.0
        %7261 = vmatpush1.msra.mxu0 0.0
        %7262 = vmatprep.subr.mxu0 0.0
        %7263 = vmatpush1.msra.mxu0 0.0
        %7264 = vmatprep.subr.mxu0 0.0
        %7265 = vmatpush1.msra.mxu0 0.0
        %7266 = vmatprep.subr.mxu0 0.0
        %7267 = vmatpush1.msra.mxu0 0.0
        %7268 = vmatprep.subr.mxu0 0.0
        %7269 = vmatpush1.msra.mxu0 0.0
        %7270 = vmatprep.subr.mxu0 0.0
        %7271 = vmatpush1.msra.mxu0 0.0
        %7272 = vmatprep.subr.mxu0 0.0
        %7273 = vmatpush1.msra.mxu0 0.0
        %7274 = vmatprep.subr.mxu0 0.0
        %7275 = vmatpush1.msra.mxu0 0.0
        %7276 = vmatprep.subr.mxu0 0.0
        %7277 = vmatpush1.msra.mxu0 0.0
        %7278 = vmatprep.subr.mxu0 0.0
        %7279 = vmatpush1.msra.mxu0 0.0
        %7280 = vmatprep.subr.mxu0 0.0
        %7281 = vmatpush1.msra.mxu0 0.0
        %7282 = vmatprep.subr.mxu0 0.0
        %7283 = vmatpush1.msra.mxu0 0.0
        %7284 = vmatprep.subr.mxu0 0.0
        %7285 = vmatpush1.msra.mxu0 0.0
        %7286 = vmatprep.subr.mxu0 0.0
        %7287 = vmatpush1.msra.mxu0 0.0
        %7288 = vmatprep.subr.mxu0 0.0
        %7289 = vmatpush1.msra.mxu0 0.0
        %7290 = vmatprep.subr.mxu0 0.0
        %7291 = vmatpush1.msra.mxu0 0.0
        %7292 = vmatprep.subr.mxu0 0.0
        %7293 = vmatpush1.msra.mxu0 0.0
        %7294 = vmatprep.subr.mxu0 0.0
        %7295 = vmatpush1.msra.mxu0 0.0
        %7296 = vmatprep.subr.mxu0 0.0
        %7297 = vmatpush1.msra.mxu0 0.0
        %7298 = vmatprep.subr.mxu0 0.0
        %7299 = vmatpush1.msra.mxu0 0.0
        %7300 = vmatprep.subr.mxu0 0.0
        %7301 = vmatpush1.msra.mxu0 0.0
        %7302 = vmatprep.subr.mxu0 0.0
        %7303 = vmatpush1.msra.mxu0 0.0
        %7304 = vmatprep.subr.mxu0 0.0
        %7305 = vmatpush1.msra.mxu0 0.0
        %7306 = vmatprep.subr.mxu0 0.0
        %7307 = vmatpush1.msra.mxu0 0.0
        %7308 = vmatprep.subr.mxu0 0.0
        %7309 = vmatpush1.msra.mxu0 0.0
        %7310 = vmatprep.subr.mxu0 0.0
        %7311 = vmatpush1.msra.mxu0 0.0
        %7312 = vmatprep.subr.mxu0 0.0
        %7313 = vmatpush1.msra.mxu0 0.0
        %7314 = vmatprep.mubr.f32.mxu0 0.0
        %v7315 = vand.u32 %v6867, 4294901760
        %7316 = vmatmul.mubr.f32.gmra.mrb[0].mxu0 %v7315
        %v7317 = vpop.f32.mrb[0].mxu0
        %v7318 = vadd.f32 %v7225, %v7317
        %v7319 = vpop.f32.mrb[0].mxu0
        %v7320 = vadd.f32 %v7227, %v7319
        %7321 = vmatprep.mubr.f32.mxu0 0.0
        %v7322 = vand.u32 %v6870, 4294901760
        %7323 = vmatmul.mubr.f32.gmra.mrb[0].mxu0 %v7322
        %v7324 = vpop.f32.mrb[0].mxu0
        %v7325 = vadd.f32 %v7234, %v7324
        %v7326 = vpop.f32.mrb[0].mxu0
        %v7327 = vadd.f32 %v7236, %v7326
        %7328 = vdwg.mxu0
        %v7329 = vand.u32 %v6859, 4294901760
        %7330 = vmatprep.subr.mxu0 %v7329
        %v7331 = vand.u32 %v6858, 4294901760
        %7332 = vmatpush1.msra.mxu0 %v7331
        %v7333 = vand.u32 %v6861, 4294901760
        %7334 = vmatprep.subr.mxu0 %v7333
        %v7335 = vand.u32 %v6860, 4294901760
        %7336 = vmatpush1.msra.mxu0 %v7335
        %7337 = vmatprep.subr.mxu0 0.0
        %7338 = vmatpush1.msra.mxu0 0.0
        %7339 = vmatprep.subr.mxu0 0.0
        %7340 = vmatpush1.msra.mxu0 0.0
        %7341 = vmatprep.subr.mxu0 0.0
        %7342 = vmatpush1.msra.mxu0 0.0
        %7343 = vmatprep.subr.mxu0 0.0
        %7344 = vmatpush1.msra.mxu0 0.0
        %7345 = vmatprep.subr.mxu0 0.0
        %7346 = vmatpush1.msra.mxu0 0.0
        %7347 = vmatprep.subr.mxu0 0.0
        %7348 = vmatpush1.msra.mxu0 0.0
        %7349 = vmatprep.subr.mxu0 0.0
        %7350 = vmatpush1.msra.mxu0 0.0
        %7351 = vmatprep.subr.mxu0 0.0
        %7352 = vmatpush1.msra.mxu0 0.0
        %7353 = vmatprep.subr.mxu0 0.0
        %7354 = vmatpush1.msra.mxu0 0.0
        %7355 = vmatprep.subr.mxu0 0.0
        %7356 = vmatpush1.msra.mxu0 0.0
        %7357 = vmatprep.subr.mxu0 0.0
        %7358 = vmatpush1.msra.mxu0 0.0
        %7359 = vmatprep.subr.mxu0 0.0
        %7360 = vmatpush1.msra.mxu0 0.0
        %7361 = vmatprep.subr.mxu0 0.0
        %7362 = vmatpush1.msra.mxu0 0.0
        %7363 = vmatprep.subr.mxu0 0.0
        %7364 = vmatpush1.msra.mxu0 0.0
        %7365 = vmatprep.subr.mxu0 0.0
        %7366 = vmatpush1.msra.mxu0 0.0
        %7367 = vmatprep.subr.mxu0 0.0
        %7368 = vmatpush1.msra.mxu0 0.0
        %7369 = vmatprep.subr.mxu0 0.0
        %7370 = vmatpush1.msra.mxu0 0.0
        %7371 = vmatprep.subr.mxu0 0.0
        %7372 = vmatpush1.msra.mxu0 0.0
        %7373 = vmatprep.subr.mxu0 0.0
        %7374 = vmatpush1.msra.mxu0 0.0
        %7375 = vmatprep.subr.mxu0 0.0
        %7376 = vmatpush1.msra.mxu0 0.0
        %7377 = vmatprep.subr.mxu0 0.0
        %7378 = vmatpush1.msra.mxu0 0.0
        %7379 = vmatprep.subr.mxu0 0.0
        %7380 = vmatpush1.msra.mxu0 0.0
        %7381 = vmatprep.subr.mxu0 0.0
        %7382 = vmatpush1.msra.mxu0 0.0
        %7383 = vmatprep.subr.mxu0 0.0
        %7384 = vmatpush1.msra.mxu0 0.0
        %7385 = vmatprep.subr.mxu0 0.0
        %7386 = vmatpush1.msra.mxu0 0.0
        %7387 = vmatprep.subr.mxu0 0.0
        %7388 = vmatpush1.msra.mxu0 0.0
        %7389 = vmatprep.subr.mxu0 0.0
        %7390 = vmatpush1.msra.mxu0 0.0
        %7391 = vmatprep.subr.mxu0 0.0
        %7392 = vmatpush1.msra.mxu0 0.0
        %7393 = vmatprep.subr.mxu0 0.0
        %7394 = vmatpush1.msra.mxu0 0.0
        %7395 = vmatprep.subr.mxu0 0.0
        %7396 = vmatpush1.msra.mxu0 0.0
        %7397 = vmatprep.mubr.f32.mxu0 0.0
        %v7398 = vand.u32 %v6867, 4294901760
        %7399 = vmatmul.mubr.f32.gmra.mrb[0].mxu0 %v7398
        %v7400 = vpop.f32.mrb[0].mxu0
        %v7401 = vadd.f32 %v7318, %v7400
        %v7402 = vpop.f32.mrb[0].mxu0
        %v7403 = vadd.f32 %v7320, %v7402
        %7404 = vmatprep.mubr.f32.mxu0 0.0
        %v7405 = vand.u32 %v6870, 4294901760
        %7406 = vmatmul.mubr.f32.gmra.mrb[0].mxu0 %v7405
        %v7407 = vpop.f32.mrb[0].mxu0
        %v7408 = vadd.f32 %v7325, %v7407
        %v7409 = vpop.f32.mrb[0].mxu0
        %v7410 = vadd.f32 %v7327, %v7409
        %7411 = vdwg.mxu0
        %v7412 = vadd.f32 %v6819, %v7401
        %v7413 = vadd.f32 %v6820, %v7403
        %v7414 = vadd.f32 %v6821, %v7408
        %v7415 = vadd.f32 %v6822, %v7410
        %v7416 = vld [vmem:[%s9] sm:$0xff]
        %v7417 = vld [vmem:[%s9 + $0x8] sm:$0xff]
        %7419 = vset.pattern.permute.xlu0 0
        %7420 = vperm.xlu0 %7419, %v7416
        %v7421 = vpop.permute.xlu0 %7420
        %7424 = vset.pattern.permute.xlu0 0
        %7425 = vperm.xlu0 %7424, %v7417
        %v7426 = vpop.permute.xlu0 %7425
        %v7428 = vadd.f32 %v7412, %v7421
        %v7429 = vadd.f32 %v7413, %v7421
        %v7430 = vadd.f32 %v7414, %v7426
        %v7431 = vadd.f32 %v7415, %v7426
        %v7432 = vmax.f32 %v7428, 0.0
        %v7433 = vmax.f32 %v7429, 0.0
        %v7434 = vmax.f32 %v7430, 0.0
        %v7435 = vmax.f32 %v7431, 0.0
        %v7436 = vld [vmem:[%s11] sm:$0xff]
        %v7437 = vld [vmem:[%s11 + $0x8] sm:$0xff]
        %v7438 = vld [vmem:[%s12] sm:$0xff]
        %v7439 = vld [vmem:[%s12 + $0x8] sm:$0xff]
        %7441 = vset.pattern.permute.xlu0 0
        %7442 = vperm.xlu0 %7441, %v7438
        %v7443 = vpop.permute.xlu0 %7442
        %7446 = vset.pattern.permute.xlu0 0
        %7447 = vperm.xlu0 %7446, %v7439
        %v7448 = vpop.permute.xlu0 %7447
        %v7451 = vsel %vm828, %v7436, 0
        %v7454 = vsel %vm828, %v7437, 0
        %v7456 = vand.u32 %v516, 4294901760
        %7457 = vmatprep.subr.mxu0 %v7456
        %v7458 = vand.u32 %v515, 4294901760
        %7459 = vmatpush1.msra.mxu0 %v7458
        %7460 = vmatprep.subr.mxu0 0.0
        %7461 = vmatpush1.msra.mxu0 0.0
        %7462 = vmatprep.subr.mxu0 0.0
        %7463 = vmatpush1.msra.mxu0 0.0
        %7464 = vmatprep.subr.mxu0 0.0
        %7465 = vmatpush1.msra.mxu0 0.0
        %7466 = vmatprep.subr.mxu0 0.0
        %7467 = vmatpush1.msra.mxu0 0.0
        %7468 = vmatprep.subr.mxu0 0.0
        %7469 = vmatpush1.msra.mxu0 0.0
        %7470 = vmatprep.subr.mxu0 0.0
        %7471 = vmatpush1.msra.mxu0 0.0
        %7472 = vmatprep.subr.mxu0 0.0
        %7473 = vmatpush1.msra.mxu0 0.0
        %7474 = vmatprep.subr.mxu0 0.0
        %7475 = vmatpush1.msra.mxu0 0.0
        %7476 = vmatprep.subr.mxu0 0.0
        %7477 = vmatpush1.msra.mxu0 0.0
        %7478 = vmatprep.subr.mxu0 0.0
        %7479 = vmatpush1.msra.mxu0 0.0
        %7480 = vmatprep.subr.mxu0 0.0
        %7481 = vmatpush1.msra.mxu0 0.0
        %7482 = vmatprep.subr.mxu0 0.0
        %7483 = vmatpush1.msra.mxu0 0.0
        %7484 = vmatprep.subr.mxu0 0.0
        %7485 = vmatpush1.msra.mxu0 0.0
        %7486 = vmatprep.subr.mxu0 0.0
        %7487 = vmatpush1.msra.mxu0 0.0
        %7488 = vmatprep.subr.mxu0 0.0
        %7489 = vmatpush1.msra.mxu0 0.0
        %7490 = vmatprep.subr.mxu0 0.0
        %7491 = vmatpush1.msra.mxu0 0.0
        %7492 = vmatprep.subr.mxu0 0.0
        %7493 = vmatpush1.msra.mxu0 0.0
        %7494 = vmatprep.subr.mxu0 0.0
        %7495 = vmatpush1.msra.mxu0 0.0
        %7496 = vmatprep.subr.mxu0 0.0
        %7497 = vmatpush1.msra.mxu0 0.0
        %7498 = vmatprep.subr.mxu0 0.0
        %7499 = vmatpush1.msra.mxu0 0.0
        %7500 = vmatprep.subr.mxu0 0.0
        %7501 = vmatpush1.msra.mxu0 0.0
        %7502 = vmatprep.subr.mxu0 0.0
        %7503 = vmatpush1.msra.mxu0 0.0
        %7504 = vmatprep.subr.mxu0 0.0
        %7505 = vmatpush1.msra.mxu0 0.0
        %7506 = vmatprep.subr.mxu0 0.0
        %7507 = vmatpush1.msra.mxu0 0.0
        %7508 = vmatprep.subr.mxu0 0.0
        %7509 = vmatpush1.msra.mxu0 0.0
        %7510 = vmatprep.subr.mxu0 0.0
        %7511 = vmatpush1.msra.mxu0 0.0
        %7512 = vmatprep.subr.mxu0 0.0
        %7513 = vmatpush1.msra.mxu0 0.0
        %7514 = vmatprep.subr.mxu0 0.0
        %7515 = vmatpush1.msra.mxu0 0.0
        %7516 = vmatprep.subr.mxu0 0.0
        %7517 = vmatpush1.msra.mxu0 0.0
        %7518 = vmatprep.subr.mxu0 0.0
        %7519 = vmatpush1.msra.mxu0 0.0
        %7520 = vmatprep.subr.mxu0 0.0
        %7521 = vmatpush1.msra.mxu0 0.0
        %7522 = vmatprep.mubr.f32.mxu0 0.0
        %v7523 = vand.u32 %v7451, 4294901760
        %v7524 = vsub.f32 %v7451, %v7523
        %v7525 = vand.u32 %v7524, 4294901760
        %v7526 = vsub.f32 %v7524, %v7525
        %v7527 = vand.u32 %v7526, 4294901760
        %7528 = vmatmul.mubr.f32.gmra.mrb[0].mxu0 %v7527
        %v7529 = vpop.f32.mrb[0].mxu0
        %v7530 = vadd.f32 %v7443, %v7529
        %v7531 = vpop.f32.mrb[0].mxu0
        %v7532 = vadd.f32 %v7443, %v7531
        %7533 = vmatprep.mubr.f32.mxu0 0.0
        %v7534 = vand.u32 %v7454, 4294901760
        %v7535 = vsub.f32 %v7454, %v7534
        %v7536 = vand.u32 %v7535, 4294901760
        %v7537 = vsub.f32 %v7535, %v7536
        %v7538 = vand.u32 %v7537, 4294901760
        %7539 = vmatmul.mubr.f32.gmra.mrb[0].mxu0 %v7538
        %v7540 = vpop.f32.mrb[0].mxu0
        %v7541 = vadd.f32 %v7448, %v7540
        %v7542 = vpop.f32.mrb[0].mxu0
        %v7543 = vadd.f32 %v7448, %v7542
        %7544 = vdwg.mxu0
        %v7545 = vand.u32 %v516, 4294901760
        %v7546 = vsub.f32 %v516, %v7545
        %v7547 = vand.u32 %v7546, 4294901760
        %v7548 = vsub.f32 %v7546, %v7547
        %v7549 = vand.u32 %v7548, 4294901760
        %7550 = vmatprep.subr.mxu0 %v7549
        %v7551 = vand.u32 %v515, 4294901760
        %v7552 = vsub.f32 %v515, %v7551
        %v7553 = vand.u32 %v7552, 4294901760
        %v7554 = vsub.f32 %v7552, %v7553
        %v7555 = vand.u32 %v7554, 4294901760
        %7556 = vmatpush1.msra.mxu0 %v7555
        %7557 = vmatprep.subr.mxu0 0.0
        %7558 = vmatpush1.msra.mxu0 0.0
        %7559 = vmatprep.subr.mxu0 0.0
        %7560 = vmatpush1.msra.mxu0 0.0
        %7561 = vmatprep.subr.mxu0 0.0
        %7562 = vmatpush1.msra.mxu0 0.0
        %7563 = vmatprep.subr.mxu0 0.0
        %7564 = vmatpush1.msra.mxu0 0.0
        %7565 = vmatprep.subr.mxu0 0.0
        %7566 = vmatpush1.msra.mxu0 0.0
        %7567 = vmatprep.subr.mxu0 0.0
        %7568 = vmatpush1.msra.mxu0 0.0
        %7569 = vmatprep.subr.mxu0 0.0
        %7570 = vmatpush1.msra.mxu0 0.0
        %7571 = vmatprep.subr.mxu0 0.0
        %7572 = vmatpush1.msra.mxu0 0.0
        %7573 = vmatprep.subr.mxu0 0.0
        %7574 = vmatpush1.msra.mxu0 0.0
        %7575 = vmatprep.subr.mxu0 0.0
        %7576 = vmatpush1.msra.mxu0 0.0
        %7577 = vmatprep.subr.mxu0 0.0
        %7578 = vmatpush1.msra.mxu0 0.0
        %7579 = vmatprep.subr.mxu0 0.0
        %7580 = vmatpush1.msra.mxu0 0.0
        %7581 = vmatprep.subr.mxu0 0.0
        %7582 = vmatpush1.msra.mxu0 0.0
        %7583 = vmatprep.subr.mxu0 0.0
        %7584 = vmatpush1.msra.mxu0 0.0
        %7585 = vmatprep.subr.mxu0 0.0
        %7586 = vmatpush1.msra.mxu0 0.0
        %7587 = vmatprep.subr.mxu0 0.0
        %7588 = vmatpush1.msra.mxu0 0.0
        %7589 = vmatprep.subr.mxu0 0.0
        %7590 = vmatpush1.msra.mxu0 0.0
        %7591 = vmatprep.subr.mxu0 0.0
        %7592 = vmatpush1.msra.mxu0 0.0
        %7593 = vmatprep.subr.mxu0 0.0
        %7594 = vmatpush1.msra.mxu0 0.0
        %7595 = vmatprep.subr.mxu0 0.0
        %7596 = vmatpush1.msra.mxu0 0.0
        %7597 = vmatprep.subr.mxu0 0.0
        %7598 = vmatpush1.msra.mxu0 0.0
        %7599 = vmatprep.subr.mxu0 0.0
        %7600 = vmatpush1.msra.mxu0 0.0
        %7601 = vmatprep.subr.mxu0 0.0
        %7602 = vmatpush1.msra.mxu0 0.0
        %7603 = vmatprep.subr.mxu0 0.0
        %7604 = vmatpush1.msra.mxu0 0.0
        %7605 = vmatprep.subr.mxu0 0.0
        %7606 = vmatpush1.msra.mxu0 0.0
        %7607 = vmatprep.subr.mxu0 0.0
        %7608 = vmatpush1.msra.mxu0 0.0
        %7609 = vmatprep.subr.mxu0 0.0
        %7610 = vmatpush1.msra.mxu0 0.0
        %7611 = vmatprep.subr.mxu0 0.0
        %7612 = vmatpush1.msra.mxu0 0.0
        %7613 = vmatprep.subr.mxu0 0.0
        %7614 = vmatpush1.msra.mxu0 0.0
        %7615 = vmatprep.subr.mxu0 0.0
        %7616 = vmatpush1.msra.mxu0 0.0
        %7617 = vmatprep.subr.mxu0 0.0
        %7618 = vmatpush1.msra.mxu0 0.0
        %7619 = vmatprep.mubr.f32.mxu0 0.0
        %v7620 = vand.u32 %v7451, 4294901760
        %7621 = vmatmul.mubr.f32.gmra.mrb[0].mxu0 %v7620
        %v7622 = vpop.f32.mrb[0].mxu0
        %v7623 = vadd.f32 %v7530, %v7622
        %v7624 = vpop.f32.mrb[0].mxu0
        %v7625 = vadd.f32 %v7532, %v7624
        %7626 = vmatprep.mubr.f32.mxu0 0.0
        %v7627 = vand.u32 %v7454, 4294901760
        %7628 = vmatmul.mubr.f32.gmra.mrb[0].mxu0 %v7627
        %v7629 = vpop.f32.mrb[0].mxu0
        %v7630 = vadd.f32 %v7541, %v7629
        %v7631 = vpop.f32.mrb[0].mxu0
        %v7632 = vadd.f32 %v7543, %v7631
        %7633 = vdwg.mxu0
        %v7634 = vand.u32 %v516, 4294901760
        %v7635 = vsub.f32 %v516, %v7634
        %7636 = vmatprep.subr.mxu0 %v7635
        %v7637 = vand.u32 %v515, 4294901760
        %v7638 = vsub.f32 %v515, %v7637
        %7639 = vmatpush1.msra.mxu0 %v7638
        %7640 = vmatprep.subr.mxu0 0.0
        %7641 = vmatpush1.msra.mxu0 0.0
        %7642 = vmatprep.subr.mxu0 0.0
        %7643 = vmatpush1.msra.mxu0 0.0
        %7644 = vmatprep.subr.mxu0 0.0
        %7645 = vmatpush1.msra.mxu0 0.0
        %7646 = vmatprep.subr.mxu0 0.0
        %7647 = vmatpush1.msra.mxu0 0.0
        %7648 = vmatprep.subr.mxu0 0.0
        %7649 = vmatpush1.msra.mxu0 0.0
        %7650 = vmatprep.subr.mxu0 0.0
        %7651 = vmatpush1.msra.mxu0 0.0
        %7652 = vmatprep.subr.mxu0 0.0
        %7653 = vmatpush1.msra.mxu0 0.0
        %7654 = vmatprep.subr.mxu0 0.0
        %7655 = vmatpush1.msra.mxu0 0.0
        %7656 = vmatprep.subr.mxu0 0.0
        %7657 = vmatpush1.msra.mxu0 0.0
        %7658 = vmatprep.subr.mxu0 0.0
        %7659 = vmatpush1.msra.mxu0 0.0
        %7660 = vmatprep.subr.mxu0 0.0
        %7661 = vmatpush1.msra.mxu0 0.0
        %7662 = vmatprep.subr.mxu0 0.0
        %7663 = vmatpush1.msra.mxu0 0.0
        %7664 = vmatprep.subr.mxu0 0.0
        %7665 = vmatpush1.msra.mxu0 0.0
        %7666 = vmatprep.subr.mxu0 0.0
        %7667 = vmatpush1.msra.mxu0 0.0
        %7668 = vmatprep.subr.mxu0 0.0
        %7669 = vmatpush1.msra.mxu0 0.0
        %7670 = vmatprep.subr.mxu0 0.0
        %7671 = vmatpush1.msra.mxu0 0.0
        %7672 = vmatprep.subr.mxu0 0.0
        %7673 = vmatpush1.msra.mxu0 0.0
        %7674 = vmatprep.subr.mxu0 0.0
        %7675 = vmatpush1.msra.mxu0 0.0
        %7676 = vmatprep.subr.mxu0 0.0
        %7677 = vmatpush1.msra.mxu0 0.0
        %7678 = vmatprep.subr.mxu0 0.0
        %7679 = vmatpush1.msra.mxu0 0.0
        %7680 = vmatprep.subr.mxu0 0.0
        %7681 = vmatpush1.msra.mxu0 0.0
        %7682 = vmatprep.subr.mxu0 0.0
        %7683 = vmatpush1.msra.mxu0 0.0
        %7684 = vmatprep.subr.mxu0 0.0
        %7685 = vmatpush1.msra.mxu0 0.0
        %7686 = vmatprep.subr.mxu0 0.0
        %7687 = vmatpush1.msra.mxu0 0.0
        %7688 = vmatprep.subr.mxu0 0.0
        %7689 = vmatpush1.msra.mxu0 0.0
        %7690 = vmatprep.subr.mxu0 0.0
        %7691 = vmatpush1.msra.mxu0 0.0
        %7692 = vmatprep.subr.mxu0 0.0
        %7693 = vmatpush1.msra.mxu0 0.0
        %7694 = vmatprep.subr.mxu0 0.0
        %7695 = vmatpush1.msra.mxu0 0.0
        %7696 = vmatprep.subr.mxu0 0.0
        %7697 = vmatpush1.msra.mxu0 0.0
        %7698 = vmatprep.subr.mxu0 0.0
        %7699 = vmatpush1.msra.mxu0 0.0
        %7700 = vmatprep.subr.mxu0 0.0
        %7701 = vmatpush1.msra.mxu0 0.0
        %7702 = vmatprep.mubr.f32.mxu0 0.0
        %v7703 = vand.u32 %v7451, 4294901760
        %v7704 = vsub.f32 %v7451, %v7703
        %7705 = vmatmul.mubr.f32.gmra.mrb[0].mxu0 %v7704
        %v7706 = vpop.f32.mrb[0].mxu0
        %v7707 = vadd.f32 %v7623, %v7706
        %v7708 = vpop.f32.mrb[0].mxu0
        %v7709 = vadd.f32 %v7625, %v7708
        %7710 = vmatprep.mubr.f32.mxu0 0.0
        %v7711 = vand.u32 %v7454, 4294901760
        %v7712 = vsub.f32 %v7454, %v7711
        %7713 = vmatmul.mubr.f32.gmra.mrb[0].mxu0 %v7712
        %v7714 = vpop.f32.mrb[0].mxu0
        %v7715 = vadd.f32 %v7630, %v7714
        %v7716 = vpop.f32.mrb[0].mxu0
        %v7717 = vadd.f32 %v7632, %v7716
        %7718 = vdwg.mxu0
        %v7719 = vand.u32 %v516, 4294901760
        %7720 = vmatprep.subr.mxu0 %v7719
        %v7721 = vand.u32 %v515, 4294901760
        %7722 = vmatpush1.msra.mxu0 %v7721
        %7723 = vmatprep.subr.mxu0 0.0
        %7724 = vmatpush1.msra.mxu0 0.0
        %7725 = vmatprep.subr.mxu0 0.0
        %7726 = vmatpush1.msra.mxu0 0.0
        %7727 = vmatprep.subr.mxu0 0.0
        %7728 = vmatpush1.msra.mxu0 0.0
        %7729 = vmatprep.subr.mxu0 0.0
        %7730 = vmatpush1.msra.mxu0 0.0
        %7731 = vmatprep.subr.mxu0 0.0
        %7732 = vmatpush1.msra.mxu0 0.0
        %7733 = vmatprep.subr.mxu0 0.0
        %7734 = vmatpush1.msra.mxu0 0.0
        %7735 = vmatprep.subr.mxu0 0.0
        %7736 = vmatpush1.msra.mxu0 0.0
        %7737 = vmatprep.subr.mxu0 0.0
        %7738 = vmatpush1.msra.mxu0 0.0
        %7739 = vmatprep.subr.mxu0 0.0
        %7740 = vmatpush1.msra.mxu0 0.0
        %7741 = vmatprep.subr.mxu0 0.0
        %7742 = vmatpush1.msra.mxu0 0.0
        %7743 = vmatprep.subr.mxu0 0.0
        %7744 = vmatpush1.msra.mxu0 0.0
        %7745 = vmatprep.subr.mxu0 0.0
        %7746 = vmatpush1.msra.mxu0 0.0
        %7747 = vmatprep.subr.mxu0 0.0
        %7748 = vmatpush1.msra.mxu0 0.0
        %7749 = vmatprep.subr.mxu0 0.0
        %7750 = vmatpush1.msra.mxu0 0.0
        %7751 = vmatprep.subr.mxu0 0.0
        %7752 = vmatpush1.msra.mxu0 0.0
        %7753 = vmatprep.subr.mxu0 0.0
        %7754 = vmatpush1.msra.mxu0 0.0
        %7755 = vmatprep.subr.mxu0 0.0
        %7756 = vmatpush1.msra.mxu0 0.0
        %7757 = vmatprep.subr.mxu0 0.0
        %7758 = vmatpush1.msra.mxu0 0.0
        %7759 = vmatprep.subr.mxu0 0.0
        %7760 = vmatpush1.msra.mxu0 0.0
        %7761 = vmatprep.subr.mxu0 0.0
        %7762 = vmatpush1.msra.mxu0 0.0
        %7763 = vmatprep.subr.mxu0 0.0
        %7764 = vmatpush1.msra.mxu0 0.0
        %7765 = vmatprep.subr.mxu0 0.0
        %7766 = vmatpush1.msra.mxu0 0.0
        %7767 = vmatprep.subr.mxu0 0.0
        %7768 = vmatpush1.msra.mxu0 0.0
        %7769 = vmatprep.subr.mxu0 0.0
        %7770 = vmatpush1.msra.mxu0 0.0
        %7771 = vmatprep.subr.mxu0 0.0
        %7772 = vmatpush1.msra.mxu0 0.0
        %7773 = vmatprep.subr.mxu0 0.0
        %7774 = vmatpush1.msra.mxu0 0.0
        %7775 = vmatprep.subr.mxu0 0.0
        %7776 = vmatpush1.msra.mxu0 0.0
        %7777 = vmatprep.subr.mxu0 0.0
        %7778 = vmatpush1.msra.mxu0 0.0
        %7779 = vmatprep.subr.mxu0 0.0
        %7780 = vmatpush1.msra.mxu0 0.0
        %7781 = vmatprep.subr.mxu0 0.0
        %7782 = vmatpush1.msra.mxu0 0.0
        %7783 = vmatprep.subr.mxu0 0.0
        %7784 = vmatpush1.msra.mxu0 0.0
        %7785 = vmatprep.mubr.f32.mxu0 0.0
        %v7786 = vand.u32 %v7451, 4294901760
        %v7787 = vsub.f32 %v7451, %v7786
        %v7788 = vand.u32 %v7787, 4294901760
        %7789 = vmatmul.mubr.f32.gmra.mrb[0].mxu0 %v7788
        %v7790 = vpop.f32.mrb[0].mxu0
        %v7791 = vadd.f32 %v7707, %v7790
        %v7792 = vpop.f32.mrb[0].mxu0
        %v7793 = vadd.f32 %v7709, %v7792
        %7794 = vmatprep.mubr.f32.mxu0 0.0
        %v7795 = vand.u32 %v7454, 4294901760
        %v7796 = vsub.f32 %v7454, %v7795
        %v7797 = vand.u32 %v7796, 4294901760
        %7798 = vmatmul.mubr.f32.gmra.mrb[0].mxu0 %v7797
        %v7799 = vpop.f32.mrb[0].mxu0
        %v7800 = vadd.f32 %v7715, %v7799
        %v7801 = vpop.f32.mrb[0].mxu0
        %v7802 = vadd.f32 %v7717, %v7801
        %7803 = vdwg.mxu0
        %v7804 = vand.u32 %v516, 4294901760
        %v7805 = vsub.f32 %v516, %v7804
        %v7806 = vand.u32 %v7805, 4294901760
        %7807 = vmatprep.subr.mxu0 %v7806
        %v7808 = vand.u32 %v515, 4294901760
        %v7809 = vsub.f32 %v515, %v7808
        %v7810 = vand.u32 %v7809, 4294901760
        %7811 = vmatpush1.msra.mxu0 %v7810
        %7812 = vmatprep.subr.mxu0 0.0
        %7813 = vmatpush1.msra.mxu0 0.0
        %7814 = vmatprep.subr.mxu0 0.0
        %7815 = vmatpush1.msra.mxu0 0.0
        %7816 = vmatprep.subr.mxu0 0.0
        %7817 = vmatpush1.msra.mxu0 0.0
        %7818 = vmatprep.subr.mxu0 0.0
        %7819 = vmatpush1.msra.mxu0 0.0
        %7820 = vmatprep.subr.mxu0 0.0
        %7821 = vmatpush1.msra.mxu0 0.0
        %7822 = vmatprep.subr.mxu0 0.0
        %7823 = vmatpush1.msra.mxu0 0.0
        %7824 = vmatprep.subr.mxu0 0.0
        %7825 = vmatpush1.msra.mxu0 0.0
        %7826 = vmatprep.subr.mxu0 0.0
        %7827 = vmatpush1.msra.mxu0 0.0
        %7828 = vmatprep.subr.mxu0 0.0
        %7829 = vmatpush1.msra.mxu0 0.0
        %7830 = vmatprep.subr.mxu0 0.0
        %7831 = vmatpush1.msra.mxu0 0.0
        %7832 = vmatprep.subr.mxu0 0.0
        %7833 = vmatpush1.msra.mxu0 0.0
        %7834 = vmatprep.subr.mxu0 0.0
        %7835 = vmatpush1.msra.mxu0 0.0
        %7836 = vmatprep.subr.mxu0 0.0
        %7837 = vmatpush1.msra.mxu0 0.0
        %7838 = vmatprep.subr.mxu0 0.0
        %7839 = vmatpush1.msra.mxu0 0.0
        %7840 = vmatprep.subr.mxu0 0.0
        %7841 = vmatpush1.msra.mxu0 0.0
        %7842 = vmatprep.subr.mxu0 0.0
        %7843 = vmatpush1.msra.mxu0 0.0
        %7844 = vmatprep.subr.mxu0 0.0
        %7845 = vmatpush1.msra.mxu0 0.0
        %7846 = vmatprep.subr.mxu0 0.0
        %7847 = vmatpush1.msra.mxu0 0.0
        %7848 = vmatprep.subr.mxu0 0.0
        %7849 = vmatpush1.msra.mxu0 0.0
        %7850 = vmatprep.subr.mxu0 0.0
        %7851 = vmatpush1.msra.mxu0 0.0
        %7852 = vmatprep.subr.mxu0 0.0
        %7853 = vmatpush1.msra.mxu0 0.0
        %7854 = vmatprep.subr.mxu0 0.0
        %7855 = vmatpush1.msra.mxu0 0.0
        %7856 = vmatprep.subr.mxu0 0.0
        %7857 = vmatpush1.msra.mxu0 0.0
        %7858 = vmatprep.subr.mxu0 0.0
        %7859 = vmatpush1.msra.mxu0 0.0
        %7860 = vmatprep.subr.mxu0 0.0
        %7861 = vmatpush1.msra.mxu0 0.0
        %7862 = vmatprep.subr.mxu0 0.0
        %7863 = vmatpush1.msra.mxu0 0.0
        %7864 = vmatprep.subr.mxu0 0.0
        %7865 = vmatpush1.msra.mxu0 0.0
        %7866 = vmatprep.subr.mxu0 0.0
        %7867 = vmatpush1.msra.mxu0 0.0
        %7868 = vmatprep.subr.mxu0 0.0
        %7869 = vmatpush1.msra.mxu0 0.0
        %7870 = vmatprep.subr.mxu0 0.0
        %7871 = vmatpush1.msra.mxu0 0.0
        %7872 = vmatprep.subr.mxu0 0.0
        %7873 = vmatpush1.msra.mxu0 0.0
        %7874 = vmatprep.mubr.f32.mxu0 0.0
        %v7875 = vand.u32 %v7451, 4294901760
        %7876 = vmatmul.mubr.f32.gmra.mrb[0].mxu0 %v7875
        %v7877 = vpop.f32.mrb[0].mxu0
        %v7878 = vadd.f32 %v7791, %v7877
        %v7879 = vpop.f32.mrb[0].mxu0
        %v7880 = vadd.f32 %v7793, %v7879
        %7881 = vmatprep.mubr.f32.mxu0 0.0
        %v7882 = vand.u32 %v7454, 4294901760
        %7883 = vmatmul.mubr.f32.gmra.mrb[0].mxu0 %v7882
        %v7884 = vpop.f32.mrb[0].mxu0
        %v7885 = vadd.f32 %v7800, %v7884
        %v7886 = vpop.f32.mrb[0].mxu0
        %v7887 = vadd.f32 %v7802, %v7886
        %7888 = vdwg.mxu0
        %v7889 = vand.u32 %v516, 4294901760
        %7890 = vmatprep.subr.mxu0 %v7889
        %v7891 = vand.u32 %v515, 4294901760
        %7892 = vmatpush1.msra.mxu0 %v7891
        %7893 = vmatprep.subr.mxu0 0.0
        %7894 = vmatpush1.msra.mxu0 0.0
        %7895 = vmatprep.subr.mxu0 0.0
        %7896 = vmatpush1.msra.mxu0 0.0
        %7897 = vmatprep.subr.mxu0 0.0
        %7898 = vmatpush1.msra.mxu0 0.0
        %7899 = vmatprep.subr.mxu0 0.0
        %7900 = vmatpush1.msra.mxu0 0.0
        %7901 = vmatprep.subr.mxu0 0.0
        %7902 = vmatpush1.msra.mxu0 0.0
        %7903 = vmatprep.subr.mxu0 0.0
        %7904 = vmatpush1.msra.mxu0 0.0
        %7905 = vmatprep.subr.mxu0 0.0
        %7906 = vmatpush1.msra.mxu0 0.0
        %7907 = vmatprep.subr.mxu0 0.0
        %7908 = vmatpush1.msra.mxu0 0.0
        %7909 = vmatprep.subr.mxu0 0.0
        %7910 = vmatpush1.msra.mxu0 0.0
        %7911 = vmatprep.subr.mxu0 0.0
        %7912 = vmatpush1.msra.mxu0 0.0
        %7913 = vmatprep.subr.mxu0 0.0
        %7914 = vmatpush1.msra.mxu0 0.0
        %7915 = vmatprep.subr.mxu0 0.0
        %7916 = vmatpush1.msra.mxu0 0.0
        %7917 = vmatprep.subr.mxu0 0.0
        %7918 = vmatpush1.msra.mxu0 0.0
        %7919 = vmatprep.subr.mxu0 0.0
        %7920 = vmatpush1.msra.mxu0 0.0
        %7921 = vmatprep.subr.mxu0 0.0
        %7922 = vmatpush1.msra.mxu0 0.0
        %7923 = vmatprep.subr.mxu0 0.0
        %7924 = vmatpush1.msra.mxu0 0.0
        %7925 = vmatprep.subr.mxu0 0.0
        %7926 = vmatpush1.msra.mxu0 0.0
        %7927 = vmatprep.subr.mxu0 0.0
        %7928 = vmatpush1.msra.mxu0 0.0
        %7929 = vmatprep.subr.mxu0 0.0
        %7930 = vmatpush1.msra.mxu0 0.0
        %7931 = vmatprep.subr.mxu0 0.0
        %7932 = vmatpush1.msra.mxu0 0.0
        %7933 = vmatprep.subr.mxu0 0.0
        %7934 = vmatpush1.msra.mxu0 0.0
        %7935 = vmatprep.subr.mxu0 0.0
        %7936 = vmatpush1.msra.mxu0 0.0
        %7937 = vmatprep.subr.mxu0 0.0
        %7938 = vmatpush1.msra.mxu0 0.0
        %7939 = vmatprep.subr.mxu0 0.0
        %7940 = vmatpush1.msra.mxu0 0.0
        %7941 = vmatprep.subr.mxu0 0.0
        %7942 = vmatpush1.msra.mxu0 0.0
        %7943 = vmatprep.subr.mxu0 0.0
        %7944 = vmatpush1.msra.mxu0 0.0
        %7945 = vmatprep.subr.mxu0 0.0
        %7946 = vmatpush1.msra.mxu0 0.0
        %7947 = vmatprep.subr.mxu0 0.0
        %7948 = vmatpush1.msra.mxu0 0.0
        %7949 = vmatprep.subr.mxu0 0.0
        %7950 = vmatpush1.msra.mxu0 0.0
        %7951 = vmatprep.subr.mxu0 0.0
        %7952 = vmatpush1.msra.mxu0 0.0
        %7953 = vmatprep.subr.mxu0 0.0
        %7954 = vmatpush1.msra.mxu0 0.0
        %7955 = vmatprep.mubr.f32.mxu0 0.0
        %v7956 = vand.u32 %v7451, 4294901760
        %7957 = vmatmul.mubr.f32.gmra.mrb[0].mxu0 %v7956
        %v7958 = vpop.f32.mrb[0].mxu0
        %v7959 = vadd.f32 %v7878, %v7958
        %v7960 = vpop.f32.mrb[0].mxu0
        %v7961 = vadd.f32 %v7880, %v7960
        %7962 = vmatprep.mubr.f32.mxu0 0.0
        %v7963 = vand.u32 %v7454, 4294901760
        %7964 = vmatmul.mubr.f32.gmra.mrb[0].mxu0 %v7963
        %v7965 = vpop.f32.mrb[0].mxu0
        %v7966 = vadd.f32 %v7885, %v7965
        %v7967 = vpop.f32.mrb[0].mxu0
        %v7968 = vadd.f32 %v7887, %v7967
        %7969 = vdwg.mxu0
        %v7970 = vadd.f32 %v7432, %v7959
        %v7971 = vadd.f32 %v7433, %v7961
        %v7972 = vadd.f32 %v7434, %v7966
        %v7973 = vadd.f32 %v7435, %v7968
        %7974 = vst [vmem:[%s506] sm:$0xff] %v7970
        %7975 = vst [vmem:[%s506 + $0x8] sm:$0xff] %v7971
        %7976 = vst [vmem:[%s506 + $0x10] sm:$0xff] %v7972
        %7977 = vst [vmem:[%s506 + $0x18] sm:$0xff] %v7973
        %s7978 = sand.u32 %s318, 1
        %s7979 = scalar_lea.sflag [#allocation6], %s7978
        %s7980 = sand.u32 %s318, 1
        %s7981 = smul.addr %s7980, 32
        %s7982 = scalar_lea.vmem [#allocation13], %s7981
        // Predicated region
        $region93: #{tpu_custom_call.1} parent=71 // pred_check
          %p7983 = pneg %p328
        $region94: #{tpu_custom_call.1} parent=71 // pred_check_branch
          %7985 = sbr.rel (%p7983) target = $region96
        $region95: #{tpu_custom_call.1} parent=71 // pred_region
          %s7987 = ssub.s32 512, 512
          %7988 = vsyncadd %s7979, %s7987
          %s7989 = smul.addr %s32, 4
          %s7990 = smul.addr %s7989, 128
          %s7991 = scalar_lea.hbm %s13, %s7990
          %s7992 = sshll.u32 %s7982, 4
          %s7993 = int_to_ptr.vmem [resolvable:$true] %s7992
          %7998 = dma.vmem_to_hbm [thread:$0]  %s7993, 512, %s7991, %s7979, 256, 256, 16
        $region96: #{tpu_custom_call.1} parent=71 // pred_fallthru
          _
      $region72: #{tpu_custom_call.1} parent=5 // pred_fallthru
        _
      %p7999 = scmp.le.s32.totalorder 2, %s27
      // Predicated region
      $region97: #{tpu_custom_call.1} parent=5 // pred_check
        %p8000 = pneg %p7999
      $region98: #{tpu_custom_call.1} parent=5 // pred_check_branch
        %8002 = sbr.rel (%p8000) target = $region100
      $region99: #{tpu_custom_call.1} parent=5 // pred_region
        %s8003 = ssub.s32 %s27, 2
        // Predicated region
        $region101: #{tpu_custom_call.1} parent=99 // pred_check
          %p8004 = pneg %p334
        $region102: #{tpu_custom_call.1} parent=99 // pred_check_branch
          %8006 = sbr.rel (%p8004) target = $region104
        $region103: #{tpu_custom_call.1} parent=99 // pred_region
          %s8007 = sand.u32 %s319, 1
          %s8008 = scalar_lea.sflag [#allocation6], %s8007
          %s8009 = sand.u32 %s319, 1
          %s8010 = smul.addr %s8009, 32
          %s8011 = scalar_lea.vmem [#allocation13], %s8010
          %8012 = dma.done %s8008, 512
        $region104: #{tpu_custom_call.1} parent=99 // pred_fallthru
          _
      $region100: #{tpu_custom_call.1} parent=5 // pred_fallthru
        _
    $region6: #{tpu_custom_call.1} parent=1 // loop_footer
      %s31 = sadd.s32 1, %s27
    $region7: #{tpu_custom_call.1} parent=1 // loop_footer_branch
      %26 = sbr.rel target = $region3
    $region8: #{tpu_custom_call.1} parent=1 // loop_exit
      _
    %8013 = vsyncpa [#allocation5], 1
    %s8014 = scalar_lea.sflag [#allocation5], 1
    %8015 = vsyncpa %s8014, 1
    %8016 = vsyncpa [#allocation8], 1
    %8017 = vsyncpa [#allocation11], 1
    %8018 = vsyncpa [#allocation6], 1
    %s8019 = scalar_lea.sflag [#allocation6], 1
    %8020 = vsyncpa %s8019, 1

</llo_original>
